<compile_context>
chip_gen: v7x
topology: tpu7x:2x2x1
jax: 0.10.0
libtpu: 0.0.40
codegen_flags: <defaults>
</compile_context>

<pallas_src>
import math

import jax
import jax.numpy as jnp
from jax import lax
from jax.experimental import pallas as pl
from jax.experimental.pallas import tpu as pltpu  # noqa: F401  (TPU backend assumed)

EPS = 1e-5
K1_PAD = 16       # conv1 im2col K (= 3*3*1 = 9) padded to 16
FC_OUT_PAD = 128  # lane-padded FC output width (real outputs = 10)

# Static layer configuration (square spatial sizes) - plain Python, never traced.
CONV_SPECS = (
    dict(cout=16, cin=1,  kh=3, kw=3, stride=2, pad=1, hi=32, ho=16),
    dict(cout=32, cin=16, kh=3, kw=3, stride=2, pad=1, hi=16, ho=8),
    dict(cout=64, cin=32, kh=3, kw=3, stride=2, pad=1, hi=8,  ho=4),
    dict(cout=64, cin=64, kh=2, kw=2, stride=2, pad=0, hi=4,  ho=2),
)


def _log2(v):
    l = int(math.log2(v))
    assert (1 << l) == v
    return l


# ----------------------------------------------------------------------------
# In-kernel building blocks
# ----------------------------------------------------------------------------
def _bn_relu(z, gamma, beta):
    """Training-mode BatchNorm2d (batch stats, biased variance) + ReLU.

    z: (M, C) f32, rows = (image, spatial) positions.  Two-pass variance in f32.
    """
    m = z.shape[0]
    mean = jnp.sum(z, axis=0, keepdims=True) * (1.0 / m)
    zc = z - mean
    var = jnp.sum(zc * zc, axis=0, keepdims=True) * (1.0 / m)
    scale = gamma * lax.rsqrt(var + EPS)          # rsqrt -> EUP (free slot)
    return jnp.maximum(zc * scale + beta, 0.0)


def _conv_block(y_in, w_ref, gamma_ref, beta_ref, *, n_img, hi, ho, kh, kw,
                stride, pad, spatial_major_out=False):
    """One Conv2d + BN + ReLU stage, fully in VMEM.

    y_in:  (n_img*hi*hi, cin) bf16, rows ordered (n, h, w) with n major.
    w_ref: (kh*kw, cin, cout) bf16 per-tap weight blocks (real channel counts).
    The im2col gather is expressed as per-tap one-hot matmuls on the MXU, so no
    strided slicing or layout-changing reshape is needed inside the kernel.
    Returns (n_img*ho*ho, cout) bf16; rows (n,h,w) or, if spatial_major_out,
    (h,w,n) ordered (used by conv4 so the fused FC gets contiguous row blocks).
    """
    wi, wo = hi, ho
    q_in, q_out = hi * wi, ho * wo
    m_in, m_out = n_img * q_in, n_img * q_out
    assert y_in.shape[0] == m_in
    assert pad in (0, 1)
    assert stride * (ho - 1) - pad + (kh - 1) <= hi - 1   # no high-side padding needed

    r = lax.broadcasted_iota(jnp.int32, (m_out, m_in), 0)   # output-row id
    c = lax.broadcasted_iota(jnp.int32, (m_out, m_in), 1)   # candidate input-row id
    if spatial_major_out:
        n_out = r & (n_img - 1)
        q = r >> _log2(n_img)
    else:
        n_out = r >> _log2(q_out)
        q = r & (q_out - 1)
    oh = q >> _log2(wo)
    ow = q & (wo - 1)
    # Input row read by tap (0,0): n*q_in + (s*oh - p)*wi + (s*ow - p).  All scales are
    # powers of two -> shifts only (no vector integer multiplies).
    base = ((n_out << _log2(q_in)) + (oh << _log2(stride * wi))
            + (ow << _log2(stride)) - (pad * wi + pad))
    diff = c - base                       # tap (di,dj) matches where diff == di*wi+dj
    if pad:
        h_ok = oh > 0                     # top/left-pad taps valid only past first row/col
        w_ok = ow > 0

    cout = w_ref.shape[2]
    z = jnp.zeros((m_out, cout), jnp.float32)
    for di in range(kh):
        for dj in range(kw):
            sel = diff == (di * wi + dj)
            if pad and di < pad:
                sel = sel & h_ok
            if pad and dj < pad:
                sel = sel & w_ok
            g = jnp.where(sel, 1.0, 0.0).astype(jnp.bfloat16)    # exact one-hot gather
            tap = jnp.dot(g, y_in, preferred_element_type=jnp.float32)
            z = z + jnp.dot(tap.astype(jnp.bfloat16), w_ref[di * kw + dj],
                            preferred_element_type=jnp.float32)
    return _bn_relu(z, gamma_ref[...], beta_ref[...]).astype(jnp.bfloat16)


# ----------------------------------------------------------------------------
# The single fused kernel
# ----------------------------------------------------------------------------
def fused_cnn_kernel(p1_ref, w1_ref, g1_ref, b1_ref,
                     w2_ref, g2_ref, b2_ref,
                     w3_ref, g3_ref, b3_ref,
                     w4_ref, g4_ref, b4_ref,
                     fcw_ref, fcb_ref, out_ref):
    _, s2, s3, s4 = CONV_SPECS
    n_img = out_ref.shape[0]

    # conv1 (cin=1): patches were im2col'd in the wrapper -> one small matmul (K=16).
    z1 = jnp.dot(p1_ref[...], w1_ref[...], preferred_element_type=jnp.float32)
    y1 = _bn_relu(z1, g1_ref[...], b1_ref[...]).astype(jnp.bfloat16)     # (N*256, 16)

    y2 = _conv_block(y1, w2_ref, g2_ref, b2_ref, n_img=n_img,
                     hi=s2["hi"], ho=s2["ho"], kh=s2["kh"], kw=s2["kw"],
                     stride=s2["stride"], pad=s2["pad"])                 # (N*64, 32)
    y3 = _conv_block(y2, w3_ref, g3_ref, b3_ref, n_img=n_img,
                     hi=s3["hi"], ho=s3["ho"], kh=s3["kh"], kw=s3["kw"],
                     stride=s3["stride"], pad=s3["pad"])                 # (N*16, 64)
    # conv4 emits rows in (spatial p, image n) order so the FC below uses
    # contiguous static row slices (no HBM transpose, no masked scatter).
    y4 = _conv_block(y3, w4_ref, g4_ref, b4_ref, n_img=n_img,
                     hi=s4["hi"], ho=s4["ho"], kh=s4["kh"], kw=s4["kw"],
                     stride=s4["stride"], pad=s4["pad"],
                     spatial_major_out=True)                             # (4*N, 64)

    # Fused Linear: logits = sum_p y4[p-block] @ W_p + b   (NCHW flatten folded into W_p)
    n_sp = s4["ho"] * s4["ho"]
    acc = jnp.zeros((n_img, FC_OUT_PAD), jnp.float32)
    for p in range(n_sp):
        acc = acc + jnp.dot(y4[p * n_img:(p + 1) * n_img, :], fcw_ref[p],
                            preferred_element_type=jnp.float32)
    out_ref[...] = acc + fcb_ref[...]


# ----------------------------------------------------------------------------
# Parameter construction (PyTorch layouts folded into kernel layouts at init)
# ----------------------------------------------------------------------------
def init_params(key):
    params = {}
    for idx, spec in enumerate(CONV_SPECS, start=1):
        cout, cin, kh, kw = spec["cout"], spec["cin"], spec["kh"], spec["kw"]
        key, kw_, kg_, kb_ = jax.random.split(key, 4)
        w = 0.1 * jax.random.normal(kw_, (cout, cin, kh, kw), jnp.float32)
        gamma = 1.0 + 0.1 * jax.random.normal(kg_, (cout,), jnp.float32)
        beta = 0.1 * jax.random.normal(kb_, (cout,), jnp.float32)
        # (cout, cin, kh, kw) -> (kh*kw, cin, cout): per-tap blocks, REAL channel counts.
        w_t = jnp.transpose(w, (2, 3, 1, 0)).reshape(kh * kw, cin, cout)
        if idx == 1:   # conv1: cin=1 -> plain (K, cout) im2col weight, K padded to 16
            w_flat = w_t.reshape(kh * kw * cin, cout)
            w_t = jnp.zeros((K1_PAD, cout), jnp.float32).at[:kh * kw * cin].set(w_flat)
        params[f"w{idx}"] = w_t.astype(jnp.bfloat16)
        params[f"g{idx}"] = gamma.reshape(1, cout)
        params[f"b{idx}"] = beta.reshape(1, cout)
        # NOTE: Conv2d bias not materialised - cancelled exactly by training-mode BN.

    # fc: PyTorch layout (10, 2*2*64); flatten index = c*4 + (h*2 + w).
    key, kfw, kfb = jax.random.split(key, 3)
    fw = 0.1 * jax.random.normal(kfw, (10, 2 * 2 * 64), jnp.float32)
    fb = 0.1 * jax.random.normal(kfb, (10,), jnp.float32)
    fw_pco = jnp.transpose(fw.reshape(10, 64, 4), (2, 1, 0))          # (4, 64, 10)
    params["fcw"] = (jnp.zeros((4, 64, FC_OUT_PAD), jnp.float32)
                     .at[:, :, :10].set(fw_pco).astype(jnp.bfloat16))
    params["fcb"] = jnp.zeros((1, FC_OUT_PAD), jnp.float32).at[0, :10].set(fb)
    return params


# ----------------------------------------------------------------------------
# Forward pass: one tiny XLA im2col for the raw input, then ONE pallas_call
# ----------------------------------------------------------------------------
def cnn_forward(params, x_nchw):
    n, cin, h, w = x_nchw.shape
    assert cin == 1 and h == 32 and w == 32
    assert n & (n - 1) == 0, "spatial-major conv4 row decode assumes power-of-two batch"

    s1 = CONV_SPECS[0]
    ho, kh, kw = s1["ho"], s1["kh"], s1["kw"]
    # conv1 im2col on the 8 KB raw input (9 strided slices, stays a single small fusion).
    xp = jnp.pad(x_nchw[:, 0, :, :], ((0, 0), (1, 1), (1, 1)))
    taps = [xp[:, di:di + 2 * ho:2, dj:dj + 2 * ho:2]
            for di in range(kh) for dj in range(kw)]
    patches = jnp.stack(taps, axis=-1).reshape(n * ho * ho, kh * kw)
    patches = jnp.pad(patches, ((0, 0), (0, K1_PAD - kh * kw))).astype(jnp.bfloat16)

    out = pl.pallas_call(
        fused_cnn_kernel,
        out_shape=jax.ShapeDtypeStruct((n, FC_OUT_PAD), jnp.float32),
    )(patches,
      params["w1"], params["g1"], params["b1"],
      params["w2"], params["g2"], params["b2"],
      params["w3"], params["g3"], params["b3"],
      params["w4"], params["g4"], params["b4"],
      params["fcw"], params["fcb"])
    return out[:, :10]


if __name__ == "__main__":
    key = jax.random.PRNGKey(0)
    key_x, key_p = jax.random.split(key)
    # fc expects 2*2*64 features => input spatial 32x32, 1 channel (per the spec).
    x = jax.random.normal(key_x, (2, 1, 32, 32), jnp.float32)
    params = init_params(key_p)

    out = jax.jit(cnn_forward)(params, x)
    out = jax.block_until_ready(out)
    assert out.shape == (2, 10) and out.dtype == jnp.float32
    print("KERNEL_OK")
</pallas_src>

<mosaic_0001>
module attributes {stable_mosaic.version = 11 : i64} {
  func.func @fused_cnn_kernel(%arg0: memref<512x16xbf16, #tpu.memory_space<vmem>>, %arg1: memref<16x16xbf16, #tpu.memory_space<vmem>>, %arg2: memref<1x16xf32, #tpu.memory_space<vmem>>, %arg3: memref<1x16xf32, #tpu.memory_space<vmem>>, %arg4: memref<9x16x32xbf16, #tpu.memory_space<vmem>>, %arg5: memref<1x32xf32, #tpu.memory_space<vmem>>, %arg6: memref<1x32xf32, #tpu.memory_space<vmem>>, %arg7: memref<9x32x64xbf16, #tpu.memory_space<vmem>>, %arg8: memref<1x64xf32, #tpu.memory_space<vmem>>, %arg9: memref<1x64xf32, #tpu.memory_space<vmem>>, %arg10: memref<4x64x64xbf16, #tpu.memory_space<vmem>>, %arg11: memref<1x64xf32, #tpu.memory_space<vmem>>, %arg12: memref<1x64xf32, #tpu.memory_space<vmem>>, %arg13: memref<4x64x128xbf16, #tpu.memory_space<vmem>>, %arg14: memref<1x128xf32, #tpu.memory_space<vmem>>, %arg15: memref<2x128xf32, #tpu.memory_space<vmem>>) attributes {dimension_semantics = [], scalar_prefetch = 0 : i64, scratch_operands = 0 : i64, tpu.core_type = #tpu.core_type<tc>} {
    %c0 = arith.constant 0 : index
    %c0_0 = arith.constant 0 : index
    %0 = vector.load %arg0[%c0, %c0_0] : memref<512x16xbf16, #tpu.memory_space<vmem>>, vector<512x16xbf16>
    %c0_1 = arith.constant 0 : index
    %c0_2 = arith.constant 0 : index
    %1 = vector.load %arg1[%c0_1, %c0_2] : memref<16x16xbf16, #tpu.memory_space<vmem>>, vector<16x16xbf16>
    %cst = arith.constant dense<0.000000e+00> : vector<512x16xf32>
    %2 = tpu.matmul %0, %1, %cst {dimension_numbers = #tpu.dot_dimension_numbers<[1], [0], [0], [1], [0, 0, 1, 1], [], []>} : vector<512x16xbf16>, vector<16x16xbf16>, vector<512x16xf32> -> vector<512x16xf32>
    %c0_3 = arith.constant 0 : index
    %c0_4 = arith.constant 0 : index
    %3 = vector.load %arg2[%c0_3, %c0_4] : memref<1x16xf32, #tpu.memory_space<vmem>>, vector<1x16xf32>
    %c0_5 = arith.constant 0 : index
    %c0_6 = arith.constant 0 : index
    %4 = vector.load %arg3[%c0_5, %c0_6] : memref<1x16xf32, #tpu.memory_space<vmem>>, vector<1x16xf32>
    %cst_7 = arith.constant dense<0.000000e+00> : vector<16xf32>
    %5 = vector.multi_reduction <add>, %2, %cst_7 [0] : vector<512x16xf32> to vector<16xf32>
    %6 = vector.shape_cast %5 : vector<16xf32> to vector<1x16xf32>
    %cst_8 = arith.constant 0.001953125 : f32
    %7 = vector.broadcast %cst_8 : f32 to vector<1x16xf32>
    %8 = arith.mulf %6, %7 : vector<1x16xf32>
    %9 = vector.broadcast %8 : vector<1x16xf32> to vector<512x16xf32>
    %10 = arith.subf %2, %9 : vector<512x16xf32>
    %11 = arith.mulf %10, %10 : vector<512x16xf32>
    %cst_9 = arith.constant dense<0.000000e+00> : vector<16xf32>
    %12 = vector.multi_reduction <add>, %11, %cst_9 [0] : vector<512x16xf32> to vector<16xf32>
    %13 = vector.shape_cast %12 : vector<16xf32> to vector<1x16xf32>
    %cst_10 = arith.constant 0.001953125 : f32
    %14 = vector.broadcast %cst_10 : f32 to vector<1x16xf32>
    %15 = arith.mulf %13, %14 : vector<1x16xf32>
    %cst_11 = arith.constant 9.99999974E-6 : f32
    %16 = vector.broadcast %cst_11 : f32 to vector<1x16xf32>
    %17 = arith.addf %15, %16 : vector<1x16xf32>
    %18 = math.rsqrt %17 : vector<1x16xf32>
    %19 = arith.mulf %3, %18 : vector<1x16xf32>
    %20 = vector.broadcast %19 : vector<1x16xf32> to vector<512x16xf32>
    %21 = arith.mulf %10, %20 : vector<512x16xf32>
    %22 = vector.broadcast %4 : vector<1x16xf32> to vector<512x16xf32>
    %23 = arith.addf %21, %22 : vector<512x16xf32>
    %cst_12 = arith.constant 0.000000e+00 : f32
    %24 = vector.broadcast %cst_12 : f32 to vector<512x16xf32>
    %25 = arith.maximumf %23, %24 : vector<512x16xf32>
    %26 = arith.truncf %25 : vector<512x16xf32> to vector<512x16xbf16>
    %27 = tpu.iota {dimensions = array<i32: 0>} : vector<128x512xi32>
    %28 = tpu.iota {dimensions = array<i32: 1>} : vector<128x512xi32>
    %c6_i32 = arith.constant 6 : i32
    %29 = vector.broadcast %c6_i32 : i32 to vector<128x512xi32>
    %30 = arith.shrsi %27, %29 : vector<128x512xi32>
    %c63_i32 = arith.constant 63 : i32
    %31 = vector.broadcast %c63_i32 : i32 to vector<128x512xi32>
    %32 = arith.andi %27, %31 : vector<128x512xi32>
    %c3_i32 = arith.constant 3 : i32
    %33 = vector.broadcast %c3_i32 : i32 to vector<128x512xi32>
    %34 = arith.shrsi %32, %33 : vector<128x512xi32>
    %c7_i32 = arith.constant 7 : i32
    %35 = vector.broadcast %c7_i32 : i32 to vector<128x512xi32>
    %36 = arith.andi %32, %35 : vector<128x512xi32>
    %c8_i32 = arith.constant 8 : i32
    %37 = vector.broadcast %c8_i32 : i32 to vector<128x512xi32>
    %38 = arith.shli %30, %37 : vector<128x512xi32>
    %c5_i32 = arith.constant 5 : i32
    %39 = vector.broadcast %c5_i32 : i32 to vector<128x512xi32>
    %40 = arith.shli %34, %39 : vector<128x512xi32>
    %41 = arith.addi %38, %40 : vector<128x512xi32>
    %c1_i32 = arith.constant 1 : i32
    %42 = vector.broadcast %c1_i32 : i32 to vector<128x512xi32>
    %43 = arith.shli %36, %42 : vector<128x512xi32>
    %44 = arith.addi %41, %43 : vector<128x512xi32>
    %c17_i32 = arith.constant 17 : i32
    %45 = vector.broadcast %c17_i32 : i32 to vector<128x512xi32>
    %46 = arith.subi %44, %45 : vector<128x512xi32>
    %47 = arith.subi %28, %46 : vector<128x512xi32>
    %c0_i32 = arith.constant 0 : i32
    %48 = vector.broadcast %c0_i32 : i32 to vector<128x512xi32>
    %49 = arith.cmpi sgt, %34, %48 : vector<128x512xi32>
    %c0_i32_13 = arith.constant 0 : i32
    %50 = vector.broadcast %c0_i32_13 : i32 to vector<128x512xi32>
    %51 = arith.cmpi sgt, %36, %50 : vector<128x512xi32>
    %cst_14 = arith.constant 0.000000e+00 : f32
    %52 = vector.broadcast %cst_14 : f32 to vector<128x32xf32>
    %c0_i32_15 = arith.constant 0 : i32
    %53 = vector.broadcast %c0_i32_15 : i32 to vector<128x512xi32>
    %54 = arith.cmpi eq, %47, %53 : vector<128x512xi32>
    %55 = arith.andi %54, %49 : vector<128x512xi1>
    %56 = arith.andi %55, %51 : vector<128x512xi1>
    %cst_16 = arith.constant 1.000000e+00 : f32
    %cst_17 = arith.constant 0.000000e+00 : f32
    %57 = vector.broadcast %cst_16 : f32 to vector<128x512xf32>
    %58 = vector.broadcast %cst_17 : f32 to vector<128x512xf32>
    %59 = arith.select %56, %57, %58 : vector<128x512xi1>, vector<128x512xf32>
    %60 = arith.truncf %59 : vector<128x512xf32> to vector<128x512xbf16>
    %cst_18 = arith.constant dense<0.000000e+00> : vector<128x16xf32>
    %61 = tpu.matmul %60, %26, %cst_18 {dimension_numbers = #tpu.dot_dimension_numbers<[1], [0], [0], [1], [0, 0, 1, 1], [], []>} : vector<128x512xbf16>, vector<512x16xbf16>, vector<128x16xf32> -> vector<128x16xf32>
    %62 = arith.truncf %61 : vector<128x16xf32> to vector<128x16xbf16>
    %c0_19 = arith.constant 0 : index
    %c0_20 = arith.constant 0 : index
    %c0_21 = arith.constant 0 : index
    %63 = vector.load %arg4[%c0_19, %c0_20, %c0_21] : memref<9x16x32xbf16, #tpu.memory_space<vmem>>, vector<1x16x32xbf16>
    %64 = vector.shape_cast %63 : vector<1x16x32xbf16> to vector<16x32xbf16>
    %cst_22 = arith.constant dense<0.000000e+00> : vector<128x32xf32>
    %65 = tpu.matmul %62, %64, %cst_22 {dimension_numbers = #tpu.dot_dimension_numbers<[1], [0], [0], [1], [0, 0, 1, 1], [], []>} : vector<128x16xbf16>, vector<16x32xbf16>, vector<128x32xf32> -> vector<128x32xf32>
    %66 = arith.addf %52, %65 : vector<128x32xf32>
    %c1_i32_23 = arith.constant 1 : i32
    %67 = vector.broadcast %c1_i32_23 : i32 to vector<128x512xi32>
    %68 = arith.cmpi eq, %47, %67 : vector<128x512xi32>
    %69 = arith.andi %68, %49 : vector<128x512xi1>
    %cst_24 = arith.constant 1.000000e+00 : f32
    %cst_25 = arith.constant 0.000000e+00 : f32
    %70 = vector.broadcast %cst_24 : f32 to vector<128x512xf32>
    %71 = vector.broadcast %cst_25 : f32 to vector<128x512xf32>
    %72 = arith.select %69, %70, %71 : vector<128x512xi1>, vector<128x512xf32>
    %73 = arith.truncf %72 : vector<128x512xf32> to vector<128x512xbf16>
    %cst_26 = arith.constant dense<0.000000e+00> : vector<128x16xf32>
    %74 = tpu.matmul %73, %26, %cst_26 {dimension_numbers = #tpu.dot_dimension_numbers<[1], [0], [0], [1], [0, 0, 1, 1], [], []>} : vector<128x512xbf16>, vector<512x16xbf16>, vector<128x16xf32> -> vector<128x16xf32>
    %75 = arith.truncf %74 : vector<128x16xf32> to vector<128x16xbf16>
    %c1 = arith.constant 1 : index
    %c0_27 = arith.constant 0 : index
    %c0_28 = arith.constant 0 : index
    %76 = vector.load %arg4[%c1, %c0_27, %c0_28] : memref<9x16x32xbf16, #tpu.memory_space<vmem>>, vector<1x16x32xbf16>
    %77 = vector.shape_cast %76 : vector<1x16x32xbf16> to vector<16x32xbf16>
    %cst_29 = arith.constant dense<0.000000e+00> : vector<128x32xf32>
    %78 = tpu.matmul %75, %77, %cst_29 {dimension_numbers = #tpu.dot_dimension_numbers<[1], [0], [0], [1], [0, 0, 1, 1], [], []>} : vector<128x16xbf16>, vector<16x32xbf16>, vector<128x32xf32> -> vector<128x32xf32>
    %79 = arith.addf %66, %78 : vector<128x32xf32>
    %c2_i32 = arith.constant 2 : i32
    %80 = vector.broadcast %c2_i32 : i32 to vector<128x512xi32>
    %81 = arith.cmpi eq, %47, %80 : vector<128x512xi32>
    %82 = arith.andi %81, %49 : vector<128x512xi1>
    %cst_30 = arith.constant 1.000000e+00 : f32
    %cst_31 = arith.constant 0.000000e+00 : f32
    %83 = vector.broadcast %cst_30 : f32 to vector<128x512xf32>
    %84 = vector.broadcast %cst_31 : f32 to vector<128x512xf32>
    %85 = arith.select %82, %83, %84 : vector<128x512xi1>, vector<128x512xf32>
    %86 = arith.truncf %85 : vector<128x512xf32> to vector<128x512xbf16>
    %cst_32 = arith.constant dense<0.000000e+00> : vector<128x16xf32>
    %87 = tpu.matmul %86, %26, %cst_32 {dimension_numbers = #tpu.dot_dimension_numbers<[1], [0], [0], [1], [0, 0, 1, 1], [], []>} : vector<128x512xbf16>, vector<512x16xbf16>, vector<128x16xf32> -> vector<128x16xf32>
    %88 = arith.truncf %87 : vector<128x16xf32> to vector<128x16xbf16>
    %c2 = arith.constant 2 : index
    %c0_33 = arith.constant 0 : index
    %c0_34 = arith.constant 0 : index
    %89 = vector.load %arg4[%c2, %c0_33, %c0_34] : memref<9x16x32xbf16, #tpu.memory_space<vmem>>, vector<1x16x32xbf16>
    %90 = vector.shape_cast %89 : vector<1x16x32xbf16> to vector<16x32xbf16>
    %cst_35 = arith.constant dense<0.000000e+00> : vector<128x32xf32>
    %91 = tpu.matmul %88, %90, %cst_35 {dimension_numbers = #tpu.dot_dimension_numbers<[1], [0], [0], [1], [0, 0, 1, 1], [], []>} : vector<128x16xbf16>, vector<16x32xbf16>, vector<128x32xf32> -> vector<128x32xf32>
    %92 = arith.addf %79, %91 : vector<128x32xf32>
    %c16_i32 = arith.constant 16 : i32
    %93 = vector.broadcast %c16_i32 : i32 to vector<128x512xi32>
    %94 = arith.cmpi eq, %47, %93 : vector<128x512xi32>
    %95 = arith.andi %94, %51 : vector<128x512xi1>
    %cst_36 = arith.constant 1.000000e+00 : f32
    %cst_37 = arith.constant 0.000000e+00 : f32
    %96 = vector.broadcast %cst_36 : f32 to vector<128x512xf32>
    %97 = vector.broadcast %cst_37 : f32 to vector<128x512xf32>
    %98 = arith.select %95, %96, %97 : vector<128x512xi1>, vector<128x512xf32>
    %99 = arith.truncf %98 : vector<128x512xf32> to vector<128x512xbf16>
    %cst_38 = arith.constant dense<0.000000e+00> : vector<128x16xf32>
    %100 = tpu.matmul %99, %26, %cst_38 {dimension_numbers = #tpu.dot_dimension_numbers<[1], [0], [0], [1], [0, 0, 1, 1], [], []>} : vector<128x512xbf16>, vector<512x16xbf16>, vector<128x16xf32> -> vector<128x16xf32>
    %101 = arith.truncf %100 : vector<128x16xf32> to vector<128x16xbf16>
    %c3 = arith.constant 3 : index
    %c0_39 = arith.constant 0 : index
    %c0_40 = arith.constant 0 : index
    %102 = vector.load %arg4[%c3, %c0_39, %c0_40] : memref<9x16x32xbf16, #tpu.memory_space<vmem>>, vector<1x16x32xbf16>
    %103 = vector.shape_cast %102 : vector<1x16x32xbf16> to vector<16x32xbf16>
    %cst_41 = arith.constant dense<0.000000e+00> : vector<128x32xf32>
    %104 = tpu.matmul %101, %103, %cst_41 {dimension_numbers = #tpu.dot_dimension_numbers<[1], [0], [0], [1], [0, 0, 1, 1], [], []>} : vector<128x16xbf16>, vector<16x32xbf16>, vector<128x32xf32> -> vector<128x32xf32>
    %105 = arith.addf %92, %104 : vector<128x32xf32>
    %c17_i32_42 = arith.constant 17 : i32
    %106 = vector.broadcast %c17_i32_42 : i32 to vector<128x512xi32>
    %107 = arith.cmpi eq, %47, %106 : vector<128x512xi32>
    %cst_43 = arith.constant 1.000000e+00 : f32
    %cst_44 = arith.constant 0.000000e+00 : f32
    %108 = vector.broadcast %cst_43 : f32 to vector<128x512xf32>
    %109 = vector.broadcast %cst_44 : f32 to vector<128x512xf32>
    %110 = arith.select %107, %108, %109 : vector<128x512xi1>, vector<128x512xf32>
    %111 = arith.truncf %110 : vector<128x512xf32> to vector<128x512xbf16>
    %cst_45 = arith.constant dense<0.000000e+00> : vector<128x16xf32>
    %112 = tpu.matmul %111, %26, %cst_45 {dimension_numbers = #tpu.dot_dimension_numbers<[1], [0], [0], [1], [0, 0, 1, 1], [], []>} : vector<128x512xbf16>, vector<512x16xbf16>, vector<128x16xf32> -> vector<128x16xf32>
    %113 = arith.truncf %112 : vector<128x16xf32> to vector<128x16xbf16>
    %c4 = arith.constant 4 : index
    %c0_46 = arith.constant 0 : index
    %c0_47 = arith.constant 0 : index
    %114 = vector.load %arg4[%c4, %c0_46, %c0_47] : memref<9x16x32xbf16, #tpu.memory_space<vmem>>, vector<1x16x32xbf16>
    %115 = vector.shape_cast %114 : vector<1x16x32xbf16> to vector<16x32xbf16>
    %cst_48 = arith.constant dense<0.000000e+00> : vector<128x32xf32>
    %116 = tpu.matmul %113, %115, %cst_48 {dimension_numbers = #tpu.dot_dimension_numbers<[1], [0], [0], [1], [0, 0, 1, 1], [], []>} : vector<128x16xbf16>, vector<16x32xbf16>, vector<128x32xf32> -> vector<128x32xf32>
    %117 = arith.addf %105, %116 : vector<128x32xf32>
    %c18_i32 = arith.constant 18 : i32
    %118 = vector.broadcast %c18_i32 : i32 to vector<128x512xi32>
    %119 = arith.cmpi eq, %47, %118 : vector<128x512xi32>
    %cst_49 = arith.constant 1.000000e+00 : f32
    %cst_50 = arith.constant 0.000000e+00 : f32
    %120 = vector.broadcast %cst_49 : f32 to vector<128x512xf32>
    %121 = vector.broadcast %cst_50 : f32 to vector<128x512xf32>
    %122 = arith.select %119, %120, %121 : vector<128x512xi1>, vector<128x512xf32>
    %123 = arith.truncf %122 : vector<128x512xf32> to vector<128x512xbf16>
    %cst_51 = arith.constant dense<0.000000e+00> : vector<128x16xf32>
    %124 = tpu.matmul %123, %26, %cst_51 {dimension_numbers = #tpu.dot_dimension_numbers<[1], [0], [0], [1], [0, 0, 1, 1], [], []>} : vector<128x512xbf16>, vector<512x16xbf16>, vector<128x16xf32> -> vector<128x16xf32>
    %125 = arith.truncf %124 : vector<128x16xf32> to vector<128x16xbf16>
    %c5 = arith.constant 5 : index
    %c0_52 = arith.constant 0 : index
    %c0_53 = arith.constant 0 : index
    %126 = vector.load %arg4[%c5, %c0_52, %c0_53] : memref<9x16x32xbf16, #tpu.memory_space<vmem>>, vector<1x16x32xbf16>
    %127 = vector.shape_cast %126 : vector<1x16x32xbf16> to vector<16x32xbf16>
    %cst_54 = arith.constant dense<0.000000e+00> : vector<128x32xf32>
    %128 = tpu.matmul %125, %127, %cst_54 {dimension_numbers = #tpu.dot_dimension_numbers<[1], [0], [0], [1], [0, 0, 1, 1], [], []>} : vector<128x16xbf16>, vector<16x32xbf16>, vector<128x32xf32> -> vector<128x32xf32>
    %129 = arith.addf %117, %128 : vector<128x32xf32>
    %c32_i32 = arith.constant 32 : i32
    %130 = vector.broadcast %c32_i32 : i32 to vector<128x512xi32>
    %131 = arith.cmpi eq, %47, %130 : vector<128x512xi32>
    %132 = arith.andi %131, %51 : vector<128x512xi1>
    %cst_55 = arith.constant 1.000000e+00 : f32
    %cst_56 = arith.constant 0.000000e+00 : f32
    %133 = vector.broadcast %cst_55 : f32 to vector<128x512xf32>
    %134 = vector.broadcast %cst_56 : f32 to vector<128x512xf32>
    %135 = arith.select %132, %133, %134 : vector<128x512xi1>, vector<128x512xf32>
    %136 = arith.truncf %135 : vector<128x512xf32> to vector<128x512xbf16>
    %cst_57 = arith.constant dense<0.000000e+00> : vector<128x16xf32>
    %137 = tpu.matmul %136, %26, %cst_57 {dimension_numbers = #tpu.dot_dimension_numbers<[1], [0], [0], [1], [0, 0, 1, 1], [], []>} : vector<128x512xbf16>, vector<512x16xbf16>, vector<128x16xf32> -> vector<128x16xf32>
    %138 = arith.truncf %137 : vector<128x16xf32> to vector<128x16xbf16>
    %c6 = arith.constant 6 : index
    %c0_58 = arith.constant 0 : index
    %c0_59 = arith.constant 0 : index
    %139 = vector.load %arg4[%c6, %c0_58, %c0_59] : memref<9x16x32xbf16, #tpu.memory_space<vmem>>, vector<1x16x32xbf16>
    %140 = vector.shape_cast %139 : vector<1x16x32xbf16> to vector<16x32xbf16>
    %cst_60 = arith.constant dense<0.000000e+00> : vector<128x32xf32>
    %141 = tpu.matmul %138, %140, %cst_60 {dimension_numbers = #tpu.dot_dimension_numbers<[1], [0], [0], [1], [0, 0, 1, 1], [], []>} : vector<128x16xbf16>, vector<16x32xbf16>, vector<128x32xf32> -> vector<128x32xf32>
    %142 = arith.addf %129, %141 : vector<128x32xf32>
    %c33_i32 = arith.constant 33 : i32
    %143 = vector.broadcast %c33_i32 : i32 to vector<128x512xi32>
    %144 = arith.cmpi eq, %47, %143 : vector<128x512xi32>
    %cst_61 = arith.constant 1.000000e+00 : f32
    %cst_62 = arith.constant 0.000000e+00 : f32
    %145 = vector.broadcast %cst_61 : f32 to vector<128x512xf32>
    %146 = vector.broadcast %cst_62 : f32 to vector<128x512xf32>
    %147 = arith.select %144, %145, %146 : vector<128x512xi1>, vector<128x512xf32>
    %148 = arith.truncf %147 : vector<128x512xf32> to vector<128x512xbf16>
    %cst_63 = arith.constant dense<0.000000e+00> : vector<128x16xf32>
    %149 = tpu.matmul %148, %26, %cst_63 {dimension_numbers = #tpu.dot_dimension_numbers<[1], [0], [0], [1], [0, 0, 1, 1], [], []>} : vector<128x512xbf16>, vector<512x16xbf16>, vector<128x16xf32> -> vector<128x16xf32>
    %150 = arith.truncf %149 : vector<128x16xf32> to vector<128x16xbf16>
    %c7 = arith.constant 7 : index
    %c0_64 = arith.constant 0 : index
    %c0_65 = arith.constant 0 : index
    %151 = vector.load %arg4[%c7, %c0_64, %c0_65] : memref<9x16x32xbf16, #tpu.memory_space<vmem>>, vector<1x16x32xbf16>
    %152 = vector.shape_cast %151 : vector<1x16x32xbf16> to vector<16x32xbf16>
    %cst_66 = arith.constant dense<0.000000e+00> : vector<128x32xf32>
    %153 = tpu.matmul %150, %152, %cst_66 {dimension_numbers = #tpu.dot_dimension_numbers<[1], [0], [0], [1], [0, 0, 1, 1], [], []>} : vector<128x16xbf16>, vector<16x32xbf16>, vector<128x32xf32> -> vector<128x32xf32>
    %154 = arith.addf %142, %153 : vector<128x32xf32>
    %c34_i32 = arith.constant 34 : i32
    %155 = vector.broadcast %c34_i32 : i32 to vector<128x512xi32>
    %156 = arith.cmpi eq, %47, %155 : vector<128x512xi32>
    %cst_67 = arith.constant 1.000000e+00 : f32
    %cst_68 = arith.constant 0.000000e+00 : f32
    %157 = vector.broadcast %cst_67 : f32 to vector<128x512xf32>
    %158 = vector.broadcast %cst_68 : f32 to vector<128x512xf32>
    %159 = arith.select %156, %157, %158 : vector<128x512xi1>, vector<128x512xf32>
    %160 = arith.truncf %159 : vector<128x512xf32> to vector<128x512xbf16>
    %cst_69 = arith.constant dense<0.000000e+00> : vector<128x16xf32>
    %161 = tpu.matmul %160, %26, %cst_69 {dimension_numbers = #tpu.dot_dimension_numbers<[1], [0], [0], [1], [0, 0, 1, 1], [], []>} : vector<128x512xbf16>, vector<512x16xbf16>, vector<128x16xf32> -> vector<128x16xf32>
    %162 = arith.truncf %161 : vector<128x16xf32> to vector<128x16xbf16>
    %c8 = arith.constant 8 : index
    %c0_70 = arith.constant 0 : index
    %c0_71 = arith.constant 0 : index
    %163 = vector.load %arg4[%c8, %c0_70, %c0_71] : memref<9x16x32xbf16, #tpu.memory_space<vmem>>, vector<1x16x32xbf16>
    %164 = vector.shape_cast %163 : vector<1x16x32xbf16> to vector<16x32xbf16>
    %cst_72 = arith.constant dense<0.000000e+00> : vector<128x32xf32>
    %165 = tpu.matmul %162, %164, %cst_72 {dimension_numbers = #tpu.dot_dimension_numbers<[1], [0], [0], [1], [0, 0, 1, 1], [], []>} : vector<128x16xbf16>, vector<16x32xbf16>, vector<128x32xf32> -> vector<128x32xf32>
    %166 = arith.addf %154, %165 : vector<128x32xf32>
    %c0_73 = arith.constant 0 : index
    %c0_74 = arith.constant 0 : index
    %167 = vector.load %arg5[%c0_73, %c0_74] : memref<1x32xf32, #tpu.memory_space<vmem>>, vector<1x32xf32>
    %c0_75 = arith.constant 0 : index
    %c0_76 = arith.constant 0 : index
    %168 = vector.load %arg6[%c0_75, %c0_76] : memref<1x32xf32, #tpu.memory_space<vmem>>, vector<1x32xf32>
    %cst_77 = arith.constant dense<0.000000e+00> : vector<32xf32>
    %169 = vector.multi_reduction <add>, %166, %cst_77 [0] : vector<128x32xf32> to vector<32xf32>
    %170 = vector.shape_cast %169 : vector<32xf32> to vector<1x32xf32>
    %cst_78 = arith.constant 7.812500e-03 : f32
    %171 = vector.broadcast %cst_78 : f32 to vector<1x32xf32>
    %172 = arith.mulf %170, %171 : vector<1x32xf32>
    %173 = vector.broadcast %172 : vector<1x32xf32> to vector<128x32xf32>
    %174 = arith.subf %166, %173 : vector<128x32xf32>
    %175 = arith.mulf %174, %174 : vector<128x32xf32>
    %cst_79 = arith.constant dense<0.000000e+00> : vector<32xf32>
    %176 = vector.multi_reduction <add>, %175, %cst_79 [0] : vector<128x32xf32> to vector<32xf32>
    %177 = vector.shape_cast %176 : vector<32xf32> to vector<1x32xf32>
    %cst_80 = arith.constant 7.812500e-03 : f32
    %178 = vector.broadcast %cst_80 : f32 to vector<1x32xf32>
    %179 = arith.mulf %177, %178 : vector<1x32xf32>
    %cst_81 = arith.constant 9.99999974E-6 : f32
    %180 = vector.broadcast %cst_81 : f32 to vector<1x32xf32>
    %181 = arith.addf %179, %180 : vector<1x32xf32>
    %182 = math.rsqrt %181 : vector<1x32xf32>
    %183 = arith.mulf %167, %182 : vector<1x32xf32>
    %184 = vector.broadcast %183 : vector<1x32xf32> to vector<128x32xf32>
    %185 = arith.mulf %174, %184 : vector<128x32xf32>
    %186 = vector.broadcast %168 : vector<1x32xf32> to vector<128x32xf32>
    %187 = arith.addf %185, %186 : vector<128x32xf32>
    %cst_82 = arith.constant 0.000000e+00 : f32
    %188 = vector.broadcast %cst_82 : f32 to vector<128x32xf32>
    %189 = arith.maximumf %187, %188 : vector<128x32xf32>
    %190 = arith.truncf %189 : vector<128x32xf32> to vector<128x32xbf16>
    %191 = tpu.iota {dimensions = array<i32: 0>} : vector<32x128xi32>
    %192 = tpu.iota {dimensions = array<i32: 1>} : vector<32x128xi32>
    %c4_i32 = arith.constant 4 : i32
    %193 = vector.broadcast %c4_i32 : i32 to vector<32x128xi32>
    %194 = arith.shrsi %191, %193 : vector<32x128xi32>
    %c15_i32 = arith.constant 15 : i32
    %195 = vector.broadcast %c15_i32 : i32 to vector<32x128xi32>
    %196 = arith.andi %191, %195 : vector<32x128xi32>
    %c2_i32_83 = arith.constant 2 : i32
    %197 = vector.broadcast %c2_i32_83 : i32 to vector<32x128xi32>
    %198 = arith.shrsi %196, %197 : vector<32x128xi32>
    %c3_i32_84 = arith.constant 3 : i32
    %199 = vector.broadcast %c3_i32_84 : i32 to vector<32x128xi32>
    %200 = arith.andi %196, %199 : vector<32x128xi32>
    %c6_i32_85 = arith.constant 6 : i32
    %201 = vector.broadcast %c6_i32_85 : i32 to vector<32x128xi32>
    %202 = arith.shli %194, %201 : vector<32x128xi32>
    %c4_i32_86 = arith.constant 4 : i32
    %203 = vector.broadcast %c4_i32_86 : i32 to vector<32x128xi32>
    %204 = arith.shli %198, %203 : vector<32x128xi32>
    %205 = arith.addi %202, %204 : vector<32x128xi32>
    %c1_i32_87 = arith.constant 1 : i32
    %206 = vector.broadcast %c1_i32_87 : i32 to vector<32x128xi32>
    %207 = arith.shli %200, %206 : vector<32x128xi32>
    %208 = arith.addi %205, %207 : vector<32x128xi32>
    %c9_i32 = arith.constant 9 : i32
    %209 = vector.broadcast %c9_i32 : i32 to vector<32x128xi32>
    %210 = arith.subi %208, %209 : vector<32x128xi32>
    %211 = arith.subi %192, %210 : vector<32x128xi32>
    %c0_i32_88 = arith.constant 0 : i32
    %212 = vector.broadcast %c0_i32_88 : i32 to vector<32x128xi32>
    %213 = arith.cmpi sgt, %198, %212 : vector<32x128xi32>
    %c0_i32_89 = arith.constant 0 : i32
    %214 = vector.broadcast %c0_i32_89 : i32 to vector<32x128xi32>
    %215 = arith.cmpi sgt, %200, %214 : vector<32x128xi32>
    %cst_90 = arith.constant 0.000000e+00 : f32
    %216 = vector.broadcast %cst_90 : f32 to vector<32x64xf32>
    %c0_i32_91 = arith.constant 0 : i32
    %217 = vector.broadcast %c0_i32_91 : i32 to vector<32x128xi32>
    %218 = arith.cmpi eq, %211, %217 : vector<32x128xi32>
    %219 = arith.andi %218, %213 : vector<32x128xi1>
    %220 = arith.andi %219, %215 : vector<32x128xi1>
    %cst_92 = arith.constant 1.000000e+00 : f32
    %cst_93 = arith.constant 0.000000e+00 : f32
    %221 = vector.broadcast %cst_92 : f32 to vector<32x128xf32>
    %222 = vector.broadcast %cst_93 : f32 to vector<32x128xf32>
    %223 = arith.select %220, %221, %222 : vector<32x128xi1>, vector<32x128xf32>
    %224 = arith.truncf %223 : vector<32x128xf32> to vector<32x128xbf16>
    %cst_94 = arith.constant dense<0.000000e+00> : vector<32x32xf32>
    %225 = tpu.matmul %224, %190, %cst_94 {dimension_numbers = #tpu.dot_dimension_numbers<[1], [0], [0], [1], [0, 0, 1, 1], [], []>} : vector<32x128xbf16>, vector<128x32xbf16>, vector<32x32xf32> -> vector<32x32xf32>
    %226 = arith.truncf %225 : vector<32x32xf32> to vector<32x32xbf16>
    %c0_95 = arith.constant 0 : index
    %c0_96 = arith.constant 0 : index
    %c0_97 = arith.constant 0 : index
    %227 = vector.load %arg7[%c0_95, %c0_96, %c0_97] : memref<9x32x64xbf16, #tpu.memory_space<vmem>>, vector<1x32x64xbf16>
    %228 = vector.shape_cast %227 : vector<1x32x64xbf16> to vector<32x64xbf16>
    %cst_98 = arith.constant dense<0.000000e+00> : vector<32x64xf32>
    %229 = tpu.matmul %226, %228, %cst_98 {dimension_numbers = #tpu.dot_dimension_numbers<[1], [0], [0], [1], [0, 0, 1, 1], [], []>} : vector<32x32xbf16>, vector<32x64xbf16>, vector<32x64xf32> -> vector<32x64xf32>
    %230 = arith.addf %216, %229 : vector<32x64xf32>
    %c1_i32_99 = arith.constant 1 : i32
    %231 = vector.broadcast %c1_i32_99 : i32 to vector<32x128xi32>
    %232 = arith.cmpi eq, %211, %231 : vector<32x128xi32>
    %233 = arith.andi %232, %213 : vector<32x128xi1>
    %cst_100 = arith.constant 1.000000e+00 : f32
    %cst_101 = arith.constant 0.000000e+00 : f32
    %234 = vector.broadcast %cst_100 : f32 to vector<32x128xf32>
    %235 = vector.broadcast %cst_101 : f32 to vector<32x128xf32>
    %236 = arith.select %233, %234, %235 : vector<32x128xi1>, vector<32x128xf32>
    %237 = arith.truncf %236 : vector<32x128xf32> to vector<32x128xbf16>
    %cst_102 = arith.constant dense<0.000000e+00> : vector<32x32xf32>
    %238 = tpu.matmul %237, %190, %cst_102 {dimension_numbers = #tpu.dot_dimension_numbers<[1], [0], [0], [1], [0, 0, 1, 1], [], []>} : vector<32x128xbf16>, vector<128x32xbf16>, vector<32x32xf32> -> vector<32x32xf32>
    %239 = arith.truncf %238 : vector<32x32xf32> to vector<32x32xbf16>
    %c1_103 = arith.constant 1 : index
    %c0_104 = arith.constant 0 : index
    %c0_105 = arith.constant 0 : index
    %240 = vector.load %arg7[%c1_103, %c0_104, %c0_105] : memref<9x32x64xbf16, #tpu.memory_space<vmem>>, vector<1x32x64xbf16>
    %241 = vector.shape_cast %240 : vector<1x32x64xbf16> to vector<32x64xbf16>
    %cst_106 = arith.constant dense<0.000000e+00> : vector<32x64xf32>
    %242 = tpu.matmul %239, %241, %cst_106 {dimension_numbers = #tpu.dot_dimension_numbers<[1], [0], [0], [1], [0, 0, 1, 1], [], []>} : vector<32x32xbf16>, vector<32x64xbf16>, vector<32x64xf32> -> vector<32x64xf32>
    %243 = arith.addf %230, %242 : vector<32x64xf32>
    %c2_i32_107 = arith.constant 2 : i32
    %244 = vector.broadcast %c2_i32_107 : i32 to vector<32x128xi32>
    %245 = arith.cmpi eq, %211, %244 : vector<32x128xi32>
    %246 = arith.andi %245, %213 : vector<32x128xi1>
    %cst_108 = arith.constant 1.000000e+00 : f32
    %cst_109 = arith.constant 0.000000e+00 : f32
    %247 = vector.broadcast %cst_108 : f32 to vector<32x128xf32>
    %248 = vector.broadcast %cst_109 : f32 to vector<32x128xf32>
    %249 = arith.select %246, %247, %248 : vector<32x128xi1>, vector<32x128xf32>
    %250 = arith.truncf %249 : vector<32x128xf32> to vector<32x128xbf16>
    %cst_110 = arith.constant dense<0.000000e+00> : vector<32x32xf32>
    %251 = tpu.matmul %250, %190, %cst_110 {dimension_numbers = #tpu.dot_dimension_numbers<[1], [0], [0], [1], [0, 0, 1, 1], [], []>} : vector<32x128xbf16>, vector<128x32xbf16>, vector<32x32xf32> -> vector<32x32xf32>
    %252 = arith.truncf %251 : vector<32x32xf32> to vector<32x32xbf16>
    %c2_111 = arith.constant 2 : index
    %c0_112 = arith.constant 0 : index
    %c0_113 = arith.constant 0 : index
    %253 = vector.load %arg7[%c2_111, %c0_112, %c0_113] : memref<9x32x64xbf16, #tpu.memory_space<vmem>>, vector<1x32x64xbf16>
    %254 = vector.shape_cast %253 : vector<1x32x64xbf16> to vector<32x64xbf16>
    %cst_114 = arith.constant dense<0.000000e+00> : vector<32x64xf32>
    %255 = tpu.matmul %252, %254, %cst_114 {dimension_numbers = #tpu.dot_dimension_numbers<[1], [0], [0], [1], [0, 0, 1, 1], [], []>} : vector<32x32xbf16>, vector<32x64xbf16>, vector<32x64xf32> -> vector<32x64xf32>
    %256 = arith.addf %243, %255 : vector<32x64xf32>
    %c8_i32_115 = arith.constant 8 : i32
    %257 = vector.broadcast %c8_i32_115 : i32 to vector<32x128xi32>
    %258 = arith.cmpi eq, %211, %257 : vector<32x128xi32>
    %259 = arith.andi %258, %215 : vector<32x128xi1>
    %cst_116 = arith.constant 1.000000e+00 : f32
    %cst_117 = arith.constant 0.000000e+00 : f32
    %260 = vector.broadcast %cst_116 : f32 to vector<32x128xf32>
    %261 = vector.broadcast %cst_117 : f32 to vector<32x128xf32>
    %262 = arith.select %259, %260, %261 : vector<32x128xi1>, vector<32x128xf32>
    %263 = arith.truncf %262 : vector<32x128xf32> to vector<32x128xbf16>
    %cst_118 = arith.constant dense<0.000000e+00> : vector<32x32xf32>
    %264 = tpu.matmul %263, %190, %cst_118 {dimension_numbers = #tpu.dot_dimension_numbers<[1], [0], [0], [1], [0, 0, 1, 1], [], []>} : vector<32x128xbf16>, vector<128x32xbf16>, vector<32x32xf32> -> vector<32x32xf32>
    %265 = arith.truncf %264 : vector<32x32xf32> to vector<32x32xbf16>
    %c3_119 = arith.constant 3 : index
    %c0_120 = arith.constant 0 : index
    %c0_121 = arith.constant 0 : index
    %266 = vector.load %arg7[%c3_119, %c0_120, %c0_121] : memref<9x32x64xbf16, #tpu.memory_space<vmem>>, vector<1x32x64xbf16>
    %267 = vector.shape_cast %266 : vector<1x32x64xbf16> to vector<32x64xbf16>
    %cst_122 = arith.constant dense<0.000000e+00> : vector<32x64xf32>
    %268 = tpu.matmul %265, %267, %cst_122 {dimension_numbers = #tpu.dot_dimension_numbers<[1], [0], [0], [1], [0, 0, 1, 1], [], []>} : vector<32x32xbf16>, vector<32x64xbf16>, vector<32x64xf32> -> vector<32x64xf32>
    %269 = arith.addf %256, %268 : vector<32x64xf32>
    %c9_i32_123 = arith.constant 9 : i32
    %270 = vector.broadcast %c9_i32_123 : i32 to vector<32x128xi32>
    %271 = arith.cmpi eq, %211, %270 : vector<32x128xi32>
    %cst_124 = arith.constant 1.000000e+00 : f32
    %cst_125 = arith.constant 0.000000e+00 : f32
    %272 = vector.broadcast %cst_124 : f32 to vector<32x128xf32>
    %273 = vector.broadcast %cst_125 : f32 to vector<32x128xf32>
    %274 = arith.select %271, %272, %273 : vector<32x128xi1>, vector<32x128xf32>
    %275 = arith.truncf %274 : vector<32x128xf32> to vector<32x128xbf16>
    %cst_126 = arith.constant dense<0.000000e+00> : vector<32x32xf32>
    %276 = tpu.matmul %275, %190, %cst_126 {dimension_numbers = #tpu.dot_dimension_numbers<[1], [0], [0], [1], [0, 0, 1, 1], [], []>} : vector<32x128xbf16>, vector<128x32xbf16>, vector<32x32xf32> -> vector<32x32xf32>
    %277 = arith.truncf %276 : vector<32x32xf32> to vector<32x32xbf16>
    %c4_127 = arith.constant 4 : index
    %c0_128 = arith.constant 0 : index
    %c0_129 = arith.constant 0 : index
    %278 = vector.load %arg7[%c4_127, %c0_128, %c0_129] : memref<9x32x64xbf16, #tpu.memory_space<vmem>>, vector<1x32x64xbf16>
    %279 = vector.shape_cast %278 : vector<1x32x64xbf16> to vector<32x64xbf16>
    %cst_130 = arith.constant dense<0.000000e+00> : vector<32x64xf32>
    %280 = tpu.matmul %277, %279, %cst_130 {dimension_numbers = #tpu.dot_dimension_numbers<[1], [0], [0], [1], [0, 0, 1, 1], [], []>} : vector<32x32xbf16>, vector<32x64xbf16>, vector<32x64xf32> -> vector<32x64xf32>
    %281 = arith.addf %269, %280 : vector<32x64xf32>
    %c10_i32 = arith.constant 10 : i32
    %282 = vector.broadcast %c10_i32 : i32 to vector<32x128xi32>
    %283 = arith.cmpi eq, %211, %282 : vector<32x128xi32>
    %cst_131 = arith.constant 1.000000e+00 : f32
    %cst_132 = arith.constant 0.000000e+00 : f32
    %284 = vector.broadcast %cst_131 : f32 to vector<32x128xf32>
    %285 = vector.broadcast %cst_132 : f32 to vector<32x128xf32>
    %286 = arith.select %283, %284, %285 : vector<32x128xi1>, vector<32x128xf32>
    %287 = arith.truncf %286 : vector<32x128xf32> to vector<32x128xbf16>
    %cst_133 = arith.constant dense<0.000000e+00> : vector<32x32xf32>
    %288 = tpu.matmul %287, %190, %cst_133 {dimension_numbers = #tpu.dot_dimension_numbers<[1], [0], [0], [1], [0, 0, 1, 1], [], []>} : vector<32x128xbf16>, vector<128x32xbf16>, vector<32x32xf32> -> vector<32x32xf32>
    %289 = arith.truncf %288 : vector<32x32xf32> to vector<32x32xbf16>
    %c5_134 = arith.constant 5 : index
    %c0_135 = arith.constant 0 : index
    %c0_136 = arith.constant 0 : index
    %290 = vector.load %arg7[%c5_134, %c0_135, %c0_136] : memref<9x32x64xbf16, #tpu.memory_space<vmem>>, vector<1x32x64xbf16>
    %291 = vector.shape_cast %290 : vector<1x32x64xbf16> to vector<32x64xbf16>
    %cst_137 = arith.constant dense<0.000000e+00> : vector<32x64xf32>
    %292 = tpu.matmul %289, %291, %cst_137 {dimension_numbers = #tpu.dot_dimension_numbers<[1], [0], [0], [1], [0, 0, 1, 1], [], []>} : vector<32x32xbf16>, vector<32x64xbf16>, vector<32x64xf32> -> vector<32x64xf32>
    %293 = arith.addf %281, %292 : vector<32x64xf32>
    %c16_i32_138 = arith.constant 16 : i32
    %294 = vector.broadcast %c16_i32_138 : i32 to vector<32x128xi32>
    %295 = arith.cmpi eq, %211, %294 : vector<32x128xi32>
    %296 = arith.andi %295, %215 : vector<32x128xi1>
    %cst_139 = arith.constant 1.000000e+00 : f32
    %cst_140 = arith.constant 0.000000e+00 : f32
    %297 = vector.broadcast %cst_139 : f32 to vector<32x128xf32>
    %298 = vector.broadcast %cst_140 : f32 to vector<32x128xf32>
    %299 = arith.select %296, %297, %298 : vector<32x128xi1>, vector<32x128xf32>
    %300 = arith.truncf %299 : vector<32x128xf32> to vector<32x128xbf16>
    %cst_141 = arith.constant dense<0.000000e+00> : vector<32x32xf32>
    %301 = tpu.matmul %300, %190, %cst_141 {dimension_numbers = #tpu.dot_dimension_numbers<[1], [0], [0], [1], [0, 0, 1, 1], [], []>} : vector<32x128xbf16>, vector<128x32xbf16>, vector<32x32xf32> -> vector<32x32xf32>
    %302 = arith.truncf %301 : vector<32x32xf32> to vector<32x32xbf16>
    %c6_142 = arith.constant 6 : index
    %c0_143 = arith.constant 0 : index
    %c0_144 = arith.constant 0 : index
    %303 = vector.load %arg7[%c6_142, %c0_143, %c0_144] : memref<9x32x64xbf16, #tpu.memory_space<vmem>>, vector<1x32x64xbf16>
    %304 = vector.shape_cast %303 : vector<1x32x64xbf16> to vector<32x64xbf16>
    %cst_145 = arith.constant dense<0.000000e+00> : vector<32x64xf32>
    %305 = tpu.matmul %302, %304, %cst_145 {dimension_numbers = #tpu.dot_dimension_numbers<[1], [0], [0], [1], [0, 0, 1, 1], [], []>} : vector<32x32xbf16>, vector<32x64xbf16>, vector<32x64xf32> -> vector<32x64xf32>
    %306 = arith.addf %293, %305 : vector<32x64xf32>
    %c17_i32_146 = arith.constant 17 : i32
    %307 = vector.broadcast %c17_i32_146 : i32 to vector<32x128xi32>
    %308 = arith.cmpi eq, %211, %307 : vector<32x128xi32>
    %cst_147 = arith.constant 1.000000e+00 : f32
    %cst_148 = arith.constant 0.000000e+00 : f32
    %309 = vector.broadcast %cst_147 : f32 to vector<32x128xf32>
    %310 = vector.broadcast %cst_148 : f32 to vector<32x128xf32>
    %311 = arith.select %308, %309, %310 : vector<32x128xi1>, vector<32x128xf32>
    %312 = arith.truncf %311 : vector<32x128xf32> to vector<32x128xbf16>
    %cst_149 = arith.constant dense<0.000000e+00> : vector<32x32xf32>
    %313 = tpu.matmul %312, %190, %cst_149 {dimension_numbers = #tpu.dot_dimension_numbers<[1], [0], [0], [1], [0, 0, 1, 1], [], []>} : vector<32x128xbf16>, vector<128x32xbf16>, vector<32x32xf32> -> vector<32x32xf32>
    %314 = arith.truncf %313 : vector<32x32xf32> to vector<32x32xbf16>
    %c7_150 = arith.constant 7 : index
    %c0_151 = arith.constant 0 : index
    %c0_152 = arith.constant 0 : index
    %315 = vector.load %arg7[%c7_150, %c0_151, %c0_152] : memref<9x32x64xbf16, #tpu.memory_space<vmem>>, vector<1x32x64xbf16>
    %316 = vector.shape_cast %315 : vector<1x32x64xbf16> to vector<32x64xbf16>
    %cst_153 = arith.constant dense<0.000000e+00> : vector<32x64xf32>
    %317 = tpu.matmul %314, %316, %cst_153 {dimension_numbers = #tpu.dot_dimension_numbers<[1], [0], [0], [1], [0, 0, 1, 1], [], []>} : vector<32x32xbf16>, vector<32x64xbf16>, vector<32x64xf32> -> vector<32x64xf32>
    %318 = arith.addf %306, %317 : vector<32x64xf32>
    %c18_i32_154 = arith.constant 18 : i32
    %319 = vector.broadcast %c18_i32_154 : i32 to vector<32x128xi32>
    %320 = arith.cmpi eq, %211, %319 : vector<32x128xi32>
    %cst_155 = arith.constant 1.000000e+00 : f32
    %cst_156 = arith.constant 0.000000e+00 : f32
    %321 = vector.broadcast %cst_155 : f32 to vector<32x128xf32>
    %322 = vector.broadcast %cst_156 : f32 to vector<32x128xf32>
    %323 = arith.select %320, %321, %322 : vector<32x128xi1>, vector<32x128xf32>
    %324 = arith.truncf %323 : vector<32x128xf32> to vector<32x128xbf16>
    %cst_157 = arith.constant dense<0.000000e+00> : vector<32x32xf32>
    %325 = tpu.matmul %324, %190, %cst_157 {dimension_numbers = #tpu.dot_dimension_numbers<[1], [0], [0], [1], [0, 0, 1, 1], [], []>} : vector<32x128xbf16>, vector<128x32xbf16>, vector<32x32xf32> -> vector<32x32xf32>
    %326 = arith.truncf %325 : vector<32x32xf32> to vector<32x32xbf16>
    %c8_158 = arith.constant 8 : index
    %c0_159 = arith.constant 0 : index
    %c0_160 = arith.constant 0 : index
    %327 = vector.load %arg7[%c8_158, %c0_159, %c0_160] : memref<9x32x64xbf16, #tpu.memory_space<vmem>>, vector<1x32x64xbf16>
    %328 = vector.shape_cast %327 : vector<1x32x64xbf16> to vector<32x64xbf16>
    %cst_161 = arith.constant dense<0.000000e+00> : vector<32x64xf32>
    %329 = tpu.matmul %326, %328, %cst_161 {dimension_numbers = #tpu.dot_dimension_numbers<[1], [0], [0], [1], [0, 0, 1, 1], [], []>} : vector<32x32xbf16>, vector<32x64xbf16>, vector<32x64xf32> -> vector<32x64xf32>
    %330 = arith.addf %318, %329 : vector<32x64xf32>
    %c0_162 = arith.constant 0 : index
    %c0_163 = arith.constant 0 : index
    %331 = vector.load %arg8[%c0_162, %c0_163] : memref<1x64xf32, #tpu.memory_space<vmem>>, vector<1x64xf32>
    %c0_164 = arith.constant 0 : index
    %c0_165 = arith.constant 0 : index
    %332 = vector.load %arg9[%c0_164, %c0_165] : memref<1x64xf32, #tpu.memory_space<vmem>>, vector<1x64xf32>
    %cst_166 = arith.constant dense<0.000000e+00> : vector<64xf32>
    %333 = vector.multi_reduction <add>, %330, %cst_166 [0] : vector<32x64xf32> to vector<64xf32>
    %334 = vector.shape_cast %333 : vector<64xf32> to vector<1x64xf32>
    %cst_167 = arith.constant 3.125000e-02 : f32
    %335 = vector.broadcast %cst_167 : f32 to vector<1x64xf32>
    %336 = arith.mulf %334, %335 : vector<1x64xf32>
    %337 = vector.broadcast %336 : vector<1x64xf32> to vector<32x64xf32>
    %338 = arith.subf %330, %337 : vector<32x64xf32>
    %339 = arith.mulf %338, %338 : vector<32x64xf32>
    %cst_168 = arith.constant dense<0.000000e+00> : vector<64xf32>
    %340 = vector.multi_reduction <add>, %339, %cst_168 [0] : vector<32x64xf32> to vector<64xf32>
    %341 = vector.shape_cast %340 : vector<64xf32> to vector<1x64xf32>
    %cst_169 = arith.constant 3.125000e-02 : f32
    %342 = vector.broadcast %cst_169 : f32 to vector<1x64xf32>
    %343 = arith.mulf %341, %342 : vector<1x64xf32>
    %cst_170 = arith.constant 9.99999974E-6 : f32
    %344 = vector.broadcast %cst_170 : f32 to vector<1x64xf32>
    %345 = arith.addf %343, %344 : vector<1x64xf32>
    %346 = math.rsqrt %345 : vector<1x64xf32>
    %347 = arith.mulf %331, %346 : vector<1x64xf32>
    %348 = vector.broadcast %347 : vector<1x64xf32> to vector<32x64xf32>
    %349 = arith.mulf %338, %348 : vector<32x64xf32>
    %350 = vector.broadcast %332 : vector<1x64xf32> to vector<32x64xf32>
    %351 = arith.addf %349, %350 : vector<32x64xf32>
    %cst_171 = arith.constant 0.000000e+00 : f32
    %352 = vector.broadcast %cst_171 : f32 to vector<32x64xf32>
    %353 = arith.maximumf %351, %352 : vector<32x64xf32>
    %354 = arith.truncf %353 : vector<32x64xf32> to vector<32x64xbf16>
    %355 = tpu.iota {dimensions = array<i32: 0>} : vector<8x32xi32>
    %356 = tpu.iota {dimensions = array<i32: 1>} : vector<8x32xi32>
    %c1_i32_172 = arith.constant 1 : i32
    %357 = vector.broadcast %c1_i32_172 : i32 to vector<8x32xi32>
    %358 = arith.andi %355, %357 : vector<8x32xi32>
    %c1_i32_173 = arith.constant 1 : i32
    %359 = vector.broadcast %c1_i32_173 : i32 to vector<8x32xi32>
    %360 = arith.shrsi %355, %359 : vector<8x32xi32>
    %c1_i32_174 = arith.constant 1 : i32
    %361 = vector.broadcast %c1_i32_174 : i32 to vector<8x32xi32>
    %362 = arith.shrsi %360, %361 : vector<8x32xi32>
    %c1_i32_175 = arith.constant 1 : i32
    %363 = vector.broadcast %c1_i32_175 : i32 to vector<8x32xi32>
    %364 = arith.andi %360, %363 : vector<8x32xi32>
    %c4_i32_176 = arith.constant 4 : i32
    %365 = vector.broadcast %c4_i32_176 : i32 to vector<8x32xi32>
    %366 = arith.shli %358, %365 : vector<8x32xi32>
    %c3_i32_177 = arith.constant 3 : i32
    %367 = vector.broadcast %c3_i32_177 : i32 to vector<8x32xi32>
    %368 = arith.shli %362, %367 : vector<8x32xi32>
    %369 = arith.addi %366, %368 : vector<8x32xi32>
    %c1_i32_178 = arith.constant 1 : i32
    %370 = vector.broadcast %c1_i32_178 : i32 to vector<8x32xi32>
    %371 = arith.shli %364, %370 : vector<8x32xi32>
    %372 = arith.addi %369, %371 : vector<8x32xi32>
    %c0_i32_179 = arith.constant 0 : i32
    %373 = vector.broadcast %c0_i32_179 : i32 to vector<8x32xi32>
    %374 = arith.subi %372, %373 : vector<8x32xi32>
    %375 = arith.subi %356, %374 : vector<8x32xi32>
    %cst_180 = arith.constant 0.000000e+00 : f32
    %376 = vector.broadcast %cst_180 : f32 to vector<8x64xf32>
    %c0_i32_181 = arith.constant 0 : i32
    %377 = vector.broadcast %c0_i32_181 : i32 to vector<8x32xi32>
    %378 = arith.cmpi eq, %375, %377 : vector<8x32xi32>
    %cst_182 = arith.constant 1.000000e+00 : f32
    %cst_183 = arith.constant 0.000000e+00 : f32
    %379 = vector.broadcast %cst_182 : f32 to vector<8x32xf32>
    %380 = vector.broadcast %cst_183 : f32 to vector<8x32xf32>
    %381 = arith.select %378, %379, %380 : vector<8x32xi1>, vector<8x32xf32>
    %382 = arith.truncf %381 : vector<8x32xf32> to vector<8x32xbf16>
    %cst_184 = arith.constant dense<0.000000e+00> : vector<8x64xf32>
    %383 = tpu.matmul %382, %354, %cst_184 {dimension_numbers = #tpu.dot_dimension_numbers<[1], [0], [0], [1], [0, 0, 1, 1], [], []>} : vector<8x32xbf16>, vector<32x64xbf16>, vector<8x64xf32> -> vector<8x64xf32>
    %384 = arith.truncf %383 : vector<8x64xf32> to vector<8x64xbf16>
    %c0_185 = arith.constant 0 : index
    %c0_186 = arith.constant 0 : index
    %c0_187 = arith.constant 0 : index
    %385 = vector.load %arg10[%c0_185, %c0_186, %c0_187] : memref<4x64x64xbf16, #tpu.memory_space<vmem>>, vector<1x64x64xbf16>
    %386 = vector.shape_cast %385 : vector<1x64x64xbf16> to vector<64x64xbf16>
    %cst_188 = arith.constant dense<0.000000e+00> : vector<8x64xf32>
    %387 = tpu.matmul %384, %386, %cst_188 {dimension_numbers = #tpu.dot_dimension_numbers<[1], [0], [0], [1], [0, 0, 1, 1], [], []>} : vector<8x64xbf16>, vector<64x64xbf16>, vector<8x64xf32> -> vector<8x64xf32>
    %388 = arith.addf %376, %387 : vector<8x64xf32>
    %c1_i32_189 = arith.constant 1 : i32
    %389 = vector.broadcast %c1_i32_189 : i32 to vector<8x32xi32>
    %390 = arith.cmpi eq, %375, %389 : vector<8x32xi32>
    %cst_190 = arith.constant 1.000000e+00 : f32
    %cst_191 = arith.constant 0.000000e+00 : f32
    %391 = vector.broadcast %cst_190 : f32 to vector<8x32xf32>
    %392 = vector.broadcast %cst_191 : f32 to vector<8x32xf32>
    %393 = arith.select %390, %391, %392 : vector<8x32xi1>, vector<8x32xf32>
    %394 = arith.truncf %393 : vector<8x32xf32> to vector<8x32xbf16>
    %cst_192 = arith.constant dense<0.000000e+00> : vector<8x64xf32>
    %395 = tpu.matmul %394, %354, %cst_192 {dimension_numbers = #tpu.dot_dimension_numbers<[1], [0], [0], [1], [0, 0, 1, 1], [], []>} : vector<8x32xbf16>, vector<32x64xbf16>, vector<8x64xf32> -> vector<8x64xf32>
    %396 = arith.truncf %395 : vector<8x64xf32> to vector<8x64xbf16>
    %c1_193 = arith.constant 1 : index
    %c0_194 = arith.constant 0 : index
    %c0_195 = arith.constant 0 : index
    %397 = vector.load %arg10[%c1_193, %c0_194, %c0_195] : memref<4x64x64xbf16, #tpu.memory_space<vmem>>, vector<1x64x64xbf16>
    %398 = vector.shape_cast %397 : vector<1x64x64xbf16> to vector<64x64xbf16>
    %cst_196 = arith.constant dense<0.000000e+00> : vector<8x64xf32>
    %399 = tpu.matmul %396, %398, %cst_196 {dimension_numbers = #tpu.dot_dimension_numbers<[1], [0], [0], [1], [0, 0, 1, 1], [], []>} : vector<8x64xbf16>, vector<64x64xbf16>, vector<8x64xf32> -> vector<8x64xf32>
    %400 = arith.addf %388, %399 : vector<8x64xf32>
    %c4_i32_197 = arith.constant 4 : i32
    %401 = vector.broadcast %c4_i32_197 : i32 to vector<8x32xi32>
    %402 = arith.cmpi eq, %375, %401 : vector<8x32xi32>
    %cst_198 = arith.constant 1.000000e+00 : f32
    %cst_199 = arith.constant 0.000000e+00 : f32
    %403 = vector.broadcast %cst_198 : f32 to vector<8x32xf32>
    %404 = vector.broadcast %cst_199 : f32 to vector<8x32xf32>
    %405 = arith.select %402, %403, %404 : vector<8x32xi1>, vector<8x32xf32>
    %406 = arith.truncf %405 : vector<8x32xf32> to vector<8x32xbf16>
    %cst_200 = arith.constant dense<0.000000e+00> : vector<8x64xf32>
    %407 = tpu.matmul %406, %354, %cst_200 {dimension_numbers = #tpu.dot_dimension_numbers<[1], [0], [0], [1], [0, 0, 1, 1], [], []>} : vector<8x32xbf16>, vector<32x64xbf16>, vector<8x64xf32> -> vector<8x64xf32>
    %408 = arith.truncf %407 : vector<8x64xf32> to vector<8x64xbf16>
    %c2_201 = arith.constant 2 : index
    %c0_202 = arith.constant 0 : index
    %c0_203 = arith.constant 0 : index
    %409 = vector.load %arg10[%c2_201, %c0_202, %c0_203] : memref<4x64x64xbf16, #tpu.memory_space<vmem>>, vector<1x64x64xbf16>
    %410 = vector.shape_cast %409 : vector<1x64x64xbf16> to vector<64x64xbf16>
    %cst_204 = arith.constant dense<0.000000e+00> : vector<8x64xf32>
    %411 = tpu.matmul %408, %410, %cst_204 {dimension_numbers = #tpu.dot_dimension_numbers<[1], [0], [0], [1], [0, 0, 1, 1], [], []>} : vector<8x64xbf16>, vector<64x64xbf16>, vector<8x64xf32> -> vector<8x64xf32>
    %412 = arith.addf %400, %411 : vector<8x64xf32>
    %c5_i32_205 = arith.constant 5 : i32
    %413 = vector.broadcast %c5_i32_205 : i32 to vector<8x32xi32>
    %414 = arith.cmpi eq, %375, %413 : vector<8x32xi32>
    %cst_206 = arith.constant 1.000000e+00 : f32
    %cst_207 = arith.constant 0.000000e+00 : f32
    %415 = vector.broadcast %cst_206 : f32 to vector<8x32xf32>
    %416 = vector.broadcast %cst_207 : f32 to vector<8x32xf32>
    %417 = arith.select %414, %415, %416 : vector<8x32xi1>, vector<8x32xf32>
    %418 = arith.truncf %417 : vector<8x32xf32> to vector<8x32xbf16>
    %cst_208 = arith.constant dense<0.000000e+00> : vector<8x64xf32>
    %419 = tpu.matmul %418, %354, %cst_208 {dimension_numbers = #tpu.dot_dimension_numbers<[1], [0], [0], [1], [0, 0, 1, 1], [], []>} : vector<8x32xbf16>, vector<32x64xbf16>, vector<8x64xf32> -> vector<8x64xf32>
    %420 = arith.truncf %419 : vector<8x64xf32> to vector<8x64xbf16>
    %c3_209 = arith.constant 3 : index
    %c0_210 = arith.constant 0 : index
    %c0_211 = arith.constant 0 : index
    %421 = vector.load %arg10[%c3_209, %c0_210, %c0_211] : memref<4x64x64xbf16, #tpu.memory_space<vmem>>, vector<1x64x64xbf16>
    %422 = vector.shape_cast %421 : vector<1x64x64xbf16> to vector<64x64xbf16>
    %cst_212 = arith.constant dense<0.000000e+00> : vector<8x64xf32>
    %423 = tpu.matmul %420, %422, %cst_212 {dimension_numbers = #tpu.dot_dimension_numbers<[1], [0], [0], [1], [0, 0, 1, 1], [], []>} : vector<8x64xbf16>, vector<64x64xbf16>, vector<8x64xf32> -> vector<8x64xf32>
    %424 = arith.addf %412, %423 : vector<8x64xf32>
    %c0_213 = arith.constant 0 : index
    %c0_214 = arith.constant 0 : index
    %425 = vector.load %arg11[%c0_213, %c0_214] : memref<1x64xf32, #tpu.memory_space<vmem>>, vector<1x64xf32>
    %c0_215 = arith.constant 0 : index
    %c0_216 = arith.constant 0 : index
    %426 = vector.load %arg12[%c0_215, %c0_216] : memref<1x64xf32, #tpu.memory_space<vmem>>, vector<1x64xf32>
    %cst_217 = arith.constant dense<0.000000e+00> : vector<64xf32>
    %427 = vector.multi_reduction <add>, %424, %cst_217 [0] : vector<8x64xf32> to vector<64xf32>
    %428 = vector.shape_cast %427 : vector<64xf32> to vector<1x64xf32>
    %cst_218 = arith.constant 1.250000e-01 : f32
    %429 = vector.broadcast %cst_218 : f32 to vector<1x64xf32>
    %430 = arith.mulf %428, %429 : vector<1x64xf32>
    %431 = vector.broadcast %430 : vector<1x64xf32> to vector<8x64xf32>
    %432 = arith.subf %424, %431 : vector<8x64xf32>
    %433 = arith.mulf %432, %432 : vector<8x64xf32>
    %cst_219 = arith.constant dense<0.000000e+00> : vector<64xf32>
    %434 = vector.multi_reduction <add>, %433, %cst_219 [0] : vector<8x64xf32> to vector<64xf32>
    %435 = vector.shape_cast %434 : vector<64xf32> to vector<1x64xf32>
    %cst_220 = arith.constant 1.250000e-01 : f32
    %436 = vector.broadcast %cst_220 : f32 to vector<1x64xf32>
    %437 = arith.mulf %435, %436 : vector<1x64xf32>
    %cst_221 = arith.constant 9.99999974E-6 : f32
    %438 = vector.broadcast %cst_221 : f32 to vector<1x64xf32>
    %439 = arith.addf %437, %438 : vector<1x64xf32>
    %440 = math.rsqrt %439 : vector<1x64xf32>
    %441 = arith.mulf %425, %440 : vector<1x64xf32>
    %442 = vector.broadcast %441 : vector<1x64xf32> to vector<8x64xf32>
    %443 = arith.mulf %432, %442 : vector<8x64xf32>
    %444 = vector.broadcast %426 : vector<1x64xf32> to vector<8x64xf32>
    %445 = arith.addf %443, %444 : vector<8x64xf32>
    %cst_222 = arith.constant 0.000000e+00 : f32
    %446 = vector.broadcast %cst_222 : f32 to vector<8x64xf32>
    %447 = arith.maximumf %445, %446 : vector<8x64xf32>
    %448 = arith.truncf %447 : vector<8x64xf32> to vector<8x64xbf16>
    %cst_223 = arith.constant 0.000000e+00 : f32
    %449 = vector.broadcast %cst_223 : f32 to vector<2x128xf32>
    %450 = vector.extract_strided_slice %448 {offsets = [0, 0], sizes = [2, 64], strides = [1, 1]} : vector<8x64xbf16> to vector<2x64xbf16>
    %c0_224 = arith.constant 0 : index
    %c0_225 = arith.constant 0 : index
    %c0_226 = arith.constant 0 : index
    %451 = vector.load %arg13[%c0_224, %c0_225, %c0_226] : memref<4x64x128xbf16, #tpu.memory_space<vmem>>, vector<1x64x128xbf16>
    %452 = vector.shape_cast %451 : vector<1x64x128xbf16> to vector<64x128xbf16>
    %cst_227 = arith.constant dense<0.000000e+00> : vector<2x128xf32>
    %453 = tpu.matmul %450, %452, %cst_227 {dimension_numbers = #tpu.dot_dimension_numbers<[1], [0], [0], [1], [0, 0, 1, 1], [], []>} : vector<2x64xbf16>, vector<64x128xbf16>, vector<2x128xf32> -> vector<2x128xf32>
    %454 = arith.addf %449, %453 : vector<2x128xf32>
    %455 = vector.extract_strided_slice %448 {offsets = [2, 0], sizes = [2, 64], strides = [1, 1]} : vector<8x64xbf16> to vector<2x64xbf16>
    %c1_228 = arith.constant 1 : index
    %c0_229 = arith.constant 0 : index
    %c0_230 = arith.constant 0 : index
    %456 = vector.load %arg13[%c1_228, %c0_229, %c0_230] : memref<4x64x128xbf16, #tpu.memory_space<vmem>>, vector<1x64x128xbf16>
    %457 = vector.shape_cast %456 : vector<1x64x128xbf16> to vector<64x128xbf16>
    %cst_231 = arith.constant dense<0.000000e+00> : vector<2x128xf32>
    %458 = tpu.matmul %455, %457, %cst_231 {dimension_numbers = #tpu.dot_dimension_numbers<[1], [0], [0], [1], [0, 0, 1, 1], [], []>} : vector<2x64xbf16>, vector<64x128xbf16>, vector<2x128xf32> -> vector<2x128xf32>
    %459 = arith.addf %454, %458 : vector<2x128xf32>
    %460 = vector.extract_strided_slice %448 {offsets = [4, 0], sizes = [2, 64], strides = [1, 1]} : vector<8x64xbf16> to vector<2x64xbf16>
    %c2_232 = arith.constant 2 : index
    %c0_233 = arith.constant 0 : index
    %c0_234 = arith.constant 0 : index
    %461 = vector.load %arg13[%c2_232, %c0_233, %c0_234] : memref<4x64x128xbf16, #tpu.memory_space<vmem>>, vector<1x64x128xbf16>
    %462 = vector.shape_cast %461 : vector<1x64x128xbf16> to vector<64x128xbf16>
    %cst_235 = arith.constant dense<0.000000e+00> : vector<2x128xf32>
    %463 = tpu.matmul %460, %462, %cst_235 {dimension_numbers = #tpu.dot_dimension_numbers<[1], [0], [0], [1], [0, 0, 1, 1], [], []>} : vector<2x64xbf16>, vector<64x128xbf16>, vector<2x128xf32> -> vector<2x128xf32>
    %464 = arith.addf %459, %463 : vector<2x128xf32>
    %465 = vector.extract_strided_slice %448 {offsets = [6, 0], sizes = [2, 64], strides = [1, 1]} : vector<8x64xbf16> to vector<2x64xbf16>
    %c3_236 = arith.constant 3 : index
    %c0_237 = arith.constant 0 : index
    %c0_238 = arith.constant 0 : index
    %466 = vector.load %arg13[%c3_236, %c0_237, %c0_238] : memref<4x64x128xbf16, #tpu.memory_space<vmem>>, vector<1x64x128xbf16>
    %467 = vector.shape_cast %466 : vector<1x64x128xbf16> to vector<64x128xbf16>
    %cst_239 = arith.constant dense<0.000000e+00> : vector<2x128xf32>
    %468 = tpu.matmul %465, %467, %cst_239 {dimension_numbers = #tpu.dot_dimension_numbers<[1], [0], [0], [1], [0, 0, 1, 1], [], []>} : vector<2x64xbf16>, vector<64x128xbf16>, vector<2x128xf32> -> vector<2x128xf32>
    %469 = arith.addf %464, %468 : vector<2x128xf32>
    %c0_240 = arith.constant 0 : index
    %c0_241 = arith.constant 0 : index
    %470 = vector.load %arg14[%c0_240, %c0_241] : memref<1x128xf32, #tpu.memory_space<vmem>>, vector<1x128xf32>
    %471 = vector.broadcast %470 : vector<1x128xf32> to vector<2x128xf32>
    %472 = arith.addf %469, %471 : vector<2x128xf32>
    %c0_242 = arith.constant 0 : index
    %c0_243 = arith.constant 0 : index
    %473 = vector.load %arg15[%c0_242, %c0_243] : memref<2x128xf32, #tpu.memory_space<vmem>>, vector<2x128xf32>
    tpu.vector_store %arg15[%c0_242, %c0_243], %472 {strides = array<i32>} : memref<2x128xf32, #tpu.memory_space<vmem>>, vector<2x128xf32>,
    return
  }
}

</mosaic_0001>

<llo_original>
// kernel: cnn_forward.1
$region0: #{cnn_forward.1}
  #allocation0 [shape = 'u32[]', space=smem, size = 0x4, offset = 0x4, fixed_abs, tag = 'smem constant byte address 0x4 - core index']
  #allocation1 [shape = 'u32[144,128]{1,0:T(1,128)}', space=vmem, size = 0x12000, scoped, tag = 'internal scratch']
  %s0 = inlined_call_operand.vmem [shape: bf16[512,16], index: 0, kind: input, shape index: {}]
  %s1 = inlined_call_operand.vmem [shape: bf16[16,16], index: 1, kind: input, shape index: {}]
  %s2 = inlined_call_operand.vmem [shape: f32[1,16], index: 2, kind: input, shape index: {}]
  %s3 = inlined_call_operand.vmem [shape: f32[1,16], index: 3, kind: input, shape index: {}]
  %s4 = inlined_call_operand.vmem [shape: bf16[9,16,32], index: 4, kind: input, shape index: {}]
  %s5 = inlined_call_operand.vmem [shape: f32[1,32], index: 5, kind: input, shape index: {}]
  %s6 = inlined_call_operand.vmem [shape: f32[1,32], index: 6, kind: input, shape index: {}]
  %s7 = inlined_call_operand.vmem [shape: bf16[9,32,64], index: 7, kind: input, shape index: {}]
  %s8 = inlined_call_operand.vmem [shape: f32[1,64], index: 8, kind: input, shape index: {}]
  %s9 = inlined_call_operand.vmem [shape: f32[1,64], index: 9, kind: input, shape index: {}]
  %s10 = inlined_call_operand.vmem [shape: bf16[4,64,64], index: 10, kind: input, shape index: {}]
  %s11 = inlined_call_operand.vmem [shape: f32[1,64], index: 11, kind: input, shape index: {}]
  %s12 = inlined_call_operand.vmem [shape: f32[1,64], index: 12, kind: input, shape index: {}]
  %s13 = inlined_call_operand.vmem [shape: bf16[4,64,128], index: 13, kind: input, shape index: {}]
  %s14 = inlined_call_operand.vmem [shape: f32[1,128], index: 14, kind: input, shape index: {}]
  %s15 = inlined_call_operand.hbm [shape: f32[2,128], index: 15, kind: output, shape index: {}]
  %s16 = sld [smem:[#allocation0]]
  $region70: #{cnn_forward.1} parent=0
    _
  %s18 = ssub.s32 1, %s16
  %s19 = scalar_select 0, %s18, %s16
  $region1: #{cnn_forward.1} parent=0
    #allocation2 [shape = 'u8[1024]{0}', space=vmem, size = 0x400, scoped, tag = 'output window, operand 0, single buffered']
    #allocation3 [shape = 's32[1]{0}', space=sflag, size = 0x4, scoped, tag = 'scoped memory for cnn_forward.1']
    %20 = vsyncpa [#allocation3], 0
    // Predicated region
    $region2: #{cnn_forward.1} parent=1 // pred_check
      _
    $region3: #{cnn_forward.1} parent=1 // pred_check_branch
      %22 = sbr.rel (0) target = $region5
    $region4: #{cnn_forward.1} parent=1 // pred_region
      _
    $region5: #{cnn_forward.1} parent=1 // pred_fallthru
      _
    // Predicated region
    $region6: #{cnn_forward.1} parent=1 // pred_check
      _
    $region7: #{cnn_forward.1} parent=1 // pred_check_branch
      %24 = sbr.rel (0) target = $region9
    $region8: #{cnn_forward.1} parent=1 // pred_region
      _
    $region9: #{cnn_forward.1} parent=1 // pred_fallthru
      _
    // Predicated region
    $region10: #{cnn_forward.1} parent=1 // pred_check
      _
    $region11: #{cnn_forward.1} parent=1 // pred_check_branch
      %26 = sbr.rel (0) target = $region13
    $region12: #{cnn_forward.1} parent=1 // pred_region
      _
    $region13: #{cnn_forward.1} parent=1 // pred_fallthru
      _
    // Predicated region
    $region14: #{cnn_forward.1} parent=1 // pred_check
      _
    $region15: #{cnn_forward.1} parent=1 // pred_check_branch
      %28 = sbr.rel (0) target = $region17
    $region16: #{cnn_forward.1} parent=1 // pred_region
      _
    $region17: #{cnn_forward.1} parent=1 // pred_fallthru
      _
    // Predicated region
    $region18: #{cnn_forward.1} parent=1 // pred_check
      _
    $region19: #{cnn_forward.1} parent=1 // pred_check_branch
      %30 = sbr.rel (0) target = $region21
    $region20: #{cnn_forward.1} parent=1 // pred_region
      _
    $region21: #{cnn_forward.1} parent=1 // pred_fallthru
      _
    // Predicated region
    $region22: #{cnn_forward.1} parent=1 // pred_check
      _
    $region23: #{cnn_forward.1} parent=1 // pred_check_branch
      %32 = sbr.rel (0) target = $region25
    $region24: #{cnn_forward.1} parent=1 // pred_region
      _
    $region25: #{cnn_forward.1} parent=1 // pred_fallthru
      _
    // Predicated region
    $region26: #{cnn_forward.1} parent=1 // pred_check
      _
    $region27: #{cnn_forward.1} parent=1 // pred_check_branch
      %34 = sbr.rel (0) target = $region29
    $region28: #{cnn_forward.1} parent=1 // pred_region
      _
    $region29: #{cnn_forward.1} parent=1 // pred_fallthru
      _
    // Predicated region
    $region30: #{cnn_forward.1} parent=1 // pred_check
      _
    $region31: #{cnn_forward.1} parent=1 // pred_check_branch
      %36 = sbr.rel (0) target = $region33
    $region32: #{cnn_forward.1} parent=1 // pred_region
      _
    $region33: #{cnn_forward.1} parent=1 // pred_fallthru
      _
    // Predicated region
    $region34: #{cnn_forward.1} parent=1 // pred_check
      _
    $region35: #{cnn_forward.1} parent=1 // pred_check_branch
      %38 = sbr.rel (0) target = $region37
    $region36: #{cnn_forward.1} parent=1 // pred_region
      _
    $region37: #{cnn_forward.1} parent=1 // pred_fallthru
      _
    // Predicated region
    $region38: #{cnn_forward.1} parent=1 // pred_check
      _
    $region39: #{cnn_forward.1} parent=1 // pred_check_branch
      %40 = sbr.rel (0) target = $region41
    $region40: #{cnn_forward.1} parent=1 // pred_region
      _
    $region41: #{cnn_forward.1} parent=1 // pred_fallthru
      _
    // Predicated region
    $region42: #{cnn_forward.1} parent=1 // pred_check
      _
    $region43: #{cnn_forward.1} parent=1 // pred_check_branch
      %42 = sbr.rel (0) target = $region45
    $region44: #{cnn_forward.1} parent=1 // pred_region
      _
    $region45: #{cnn_forward.1} parent=1 // pred_fallthru
      _
    // Predicated region
    $region46: #{cnn_forward.1} parent=1 // pred_check
      _
    $region47: #{cnn_forward.1} parent=1 // pred_check_branch
      %44 = sbr.rel (0) target = $region49
    $region48: #{cnn_forward.1} parent=1 // pred_region
      _
    $region49: #{cnn_forward.1} parent=1 // pred_fallthru
      _
    // Predicated region
    $region50: #{cnn_forward.1} parent=1 // pred_check
      _
    $region51: #{cnn_forward.1} parent=1 // pred_check_branch
      %46 = sbr.rel (0) target = $region53
    $region52: #{cnn_forward.1} parent=1 // pred_region
      _
    $region53: #{cnn_forward.1} parent=1 // pred_fallthru
      _
    // Predicated region
    $region54: #{cnn_forward.1} parent=1 // pred_check
      _
    $region55: #{cnn_forward.1} parent=1 // pred_check_branch
      %48 = sbr.rel (0) target = $region57
    $region56: #{cnn_forward.1} parent=1 // pred_region
      _
    $region57: #{cnn_forward.1} parent=1 // pred_fallthru
      _
    // Predicated region
    $region58: #{cnn_forward.1} parent=1 // pred_check
      _
    $region59: #{cnn_forward.1} parent=1 // pred_check_branch
      %50 = sbr.rel (0) target = $region61
    $region60: #{cnn_forward.1} parent=1 // pred_region
      _
    $region61: #{cnn_forward.1} parent=1 // pred_fallthru
      _
    %v52 = vld [vmem:[%s0] sm:$0xf]
    %v53 = vld [vmem:[%s0 + $0x4] sm:$0xf]
    %v54 = vld [vmem:[%s0 + $0x8] sm:$0xf]
    %v55 = vld [vmem:[%s0 + $0xc] sm:$0xf]
    %v56 = vld [vmem:[%s0 + $0x10] sm:$0xf]
    %v57 = vld [vmem:[%s0 + $0x14] sm:$0xf]
    %v58 = vld [vmem:[%s0 + $0x18] sm:$0xf]
    %v59 = vld [vmem:[%s0 + $0x1c] sm:$0xf]
    %v60 = vld [vmem:[%s0 + $0x20] sm:$0xf]
    %v61 = vld [vmem:[%s0 + $0x24] sm:$0xf]
    %v62 = vld [vmem:[%s0 + $0x28] sm:$0xf]
    %v63 = vld [vmem:[%s0 + $0x2c] sm:$0xf]
    %v64 = vld [vmem:[%s0 + $0x30] sm:$0xf]
    %v65 = vld [vmem:[%s0 + $0x34] sm:$0xf]
    %v66 = vld [vmem:[%s0 + $0x38] sm:$0xf]
    %v67 = vld [vmem:[%s0 + $0x3c] sm:$0xf]
    %v68 = vld [vmem:[%s0 + $0x40] sm:$0xf]
    %v69 = vld [vmem:[%s0 + $0x44] sm:$0xf]
    %v70 = vld [vmem:[%s0 + $0x48] sm:$0xf]
    %v71 = vld [vmem:[%s0 + $0x4c] sm:$0xf]
    %v72 = vld [vmem:[%s0 + $0x50] sm:$0xf]
    %v73 = vld [vmem:[%s0 + $0x54] sm:$0xf]
    %v74 = vld [vmem:[%s0 + $0x58] sm:$0xf]
    %v75 = vld [vmem:[%s0 + $0x5c] sm:$0xf]
    %v76 = vld [vmem:[%s0 + $0x60] sm:$0xf]
    %v77 = vld [vmem:[%s0 + $0x64] sm:$0xf]
    %v78 = vld [vmem:[%s0 + $0x68] sm:$0xf]
    %v79 = vld [vmem:[%s0 + $0x6c] sm:$0xf]
    %v80 = vld [vmem:[%s0 + $0x70] sm:$0xf]
    %v81 = vld [vmem:[%s0 + $0x74] sm:$0xf]
    %v82 = vld [vmem:[%s0 + $0x78] sm:$0xf]
    %v83 = vld [vmem:[%s0 + $0x7c] sm:$0xf]
    %v84 = vld [vmem:[%s0 + $0x80] sm:$0xf]
    %v85 = vld [vmem:[%s0 + $0x84] sm:$0xf]
    %v86 = vld [vmem:[%s0 + $0x88] sm:$0xf]
    %v87 = vld [vmem:[%s0 + $0x8c] sm:$0xf]
    %v88 = vld [vmem:[%s0 + $0x90] sm:$0xf]
    %v89 = vld [vmem:[%s0 + $0x94] sm:$0xf]
    %v90 = vld [vmem:[%s0 + $0x98] sm:$0xf]
    %v91 = vld [vmem:[%s0 + $0x9c] sm:$0xf]
    %v92 = vld [vmem:[%s0 + $0xa0] sm:$0xf]
    %v93 = vld [vmem:[%s0 + $0xa4] sm:$0xf]
    %v94 = vld [vmem:[%s0 + $0xa8] sm:$0xf]
    %v95 = vld [vmem:[%s0 + $0xac] sm:$0xf]
    %v96 = vld [vmem:[%s0 + $0xb0] sm:$0xf]
    %v97 = vld [vmem:[%s0 + $0xb4] sm:$0xf]
    %v98 = vld [vmem:[%s0 + $0xb8] sm:$0xf]
    %v99 = vld [vmem:[%s0 + $0xbc] sm:$0xf]
    %v100 = vld [vmem:[%s0 + $0xc0] sm:$0xf]
    %v101 = vld [vmem:[%s0 + $0xc4] sm:$0xf]
    %v102 = vld [vmem:[%s0 + $0xc8] sm:$0xf]
    %v103 = vld [vmem:[%s0 + $0xcc] sm:$0xf]
    %v104 = vld [vmem:[%s0 + $0xd0] sm:$0xf]
    %v105 = vld [vmem:[%s0 + $0xd4] sm:$0xf]
    %v106 = vld [vmem:[%s0 + $0xd8] sm:$0xf]
    %v107 = vld [vmem:[%s0 + $0xdc] sm:$0xf]
    %v108 = vld [vmem:[%s0 + $0xe0] sm:$0xf]
    %v109 = vld [vmem:[%s0 + $0xe4] sm:$0xf]
    %v110 = vld [vmem:[%s0 + $0xe8] sm:$0xf]
    %v111 = vld [vmem:[%s0 + $0xec] sm:$0xf]
    %v112 = vld [vmem:[%s0 + $0xf0] sm:$0xf]
    %v113 = vld [vmem:[%s0 + $0xf4] sm:$0xf]
    %v114 = vld [vmem:[%s0 + $0xf8] sm:$0xf]
    %v115 = vld [vmem:[%s0 + $0xfc] sm:$0xf]
    %v116 = vld [vmem:[%s1] sm:$0xf]
    %v117 = vld [vmem:[%s1 + $0x4] sm:$0xf]
    %v182 = vunpack.c.l.b16 %v52
    %v183 = vunpack.c.l.b16 %v53
    %v184 = vunpack.c.l.b16 %v54
    %v185 = vunpack.c.l.b16 %v55
    %v186 = vunpack.c.l.b16 %v56
    %v187 = vunpack.c.l.b16 %v57
    %v188 = vunpack.c.l.b16 %v58
    %v189 = vunpack.c.l.b16 %v59
    %v190 = vunpack.c.l.b16 %v60
    %v191 = vunpack.c.l.b16 %v61
    %v192 = vunpack.c.l.b16 %v62
    %v193 = vunpack.c.l.b16 %v63
    %v194 = vunpack.c.l.b16 %v64
    %v195 = vunpack.c.l.b16 %v65
    %v196 = vunpack.c.l.b16 %v66
    %v197 = vunpack.c.l.b16 %v67
    %v198 = vunpack.c.l.b16 %v68
    %v199 = vunpack.c.l.b16 %v69
    %v200 = vunpack.c.l.b16 %v70
    %v201 = vunpack.c.l.b16 %v71
    %v202 = vunpack.c.l.b16 %v72
    %v203 = vunpack.c.l.b16 %v73
    %v204 = vunpack.c.l.b16 %v74
    %v205 = vunpack.c.l.b16 %v75
    %v206 = vunpack.c.l.b16 %v76
    %v207 = vunpack.c.l.b16 %v77
    %v208 = vunpack.c.l.b16 %v78
    %v209 = vunpack.c.l.b16 %v79
    %v210 = vunpack.c.l.b16 %v80
    %v211 = vunpack.c.l.b16 %v81
    %v212 = vunpack.c.l.b16 %v82
    %v213 = vunpack.c.l.b16 %v83
    %v214 = vunpack.c.l.b16 %v84
    %v215 = vunpack.c.l.b16 %v85
    %v216 = vunpack.c.l.b16 %v86
    %v217 = vunpack.c.l.b16 %v87
    %v218 = vunpack.c.l.b16 %v88
    %v219 = vunpack.c.l.b16 %v89
    %v220 = vunpack.c.l.b16 %v90
    %v221 = vunpack.c.l.b16 %v91
    %v222 = vunpack.c.l.b16 %v92
    %v223 = vunpack.c.l.b16 %v93
    %v224 = vunpack.c.l.b16 %v94
    %v225 = vunpack.c.l.b16 %v95
    %v226 = vunpack.c.l.b16 %v96
    %v227 = vunpack.c.l.b16 %v97
    %v228 = vunpack.c.l.b16 %v98
    %v229 = vunpack.c.l.b16 %v99
    %v230 = vunpack.c.l.b16 %v100
    %v231 = vunpack.c.l.b16 %v101
    %v232 = vunpack.c.l.b16 %v102
    %v233 = vunpack.c.l.b16 %v103
    %v234 = vunpack.c.l.b16 %v104
    %v235 = vunpack.c.l.b16 %v105
    %v236 = vunpack.c.l.b16 %v106
    %v237 = vunpack.c.l.b16 %v107
    %v238 = vunpack.c.l.b16 %v108
    %v239 = vunpack.c.l.b16 %v109
    %v240 = vunpack.c.l.b16 %v110
    %v241 = vunpack.c.l.b16 %v111
    %v242 = vunpack.c.l.b16 %v112
    %v243 = vunpack.c.l.b16 %v113
    %v244 = vunpack.c.l.b16 %v114
    %v245 = vunpack.c.l.b16 %v115
    %v246 = vpack.c.b16 %v183, %v182
    %v247 = vpack.c.b16 %v185, %v184
    %v248 = vpack.c.b16 %v187, %v186
    %v249 = vpack.c.b16 %v189, %v188
    %v250 = vpack.c.b16 %v191, %v190
    %v251 = vpack.c.b16 %v193, %v192
    %v252 = vpack.c.b16 %v195, %v194
    %v253 = vpack.c.b16 %v197, %v196
    %v254 = vpack.c.b16 %v199, %v198
    %v255 = vpack.c.b16 %v201, %v200
    %v256 = vpack.c.b16 %v203, %v202
    %v257 = vpack.c.b16 %v205, %v204
    %v258 = vpack.c.b16 %v207, %v206
    %v259 = vpack.c.b16 %v209, %v208
    %v260 = vpack.c.b16 %v211, %v210
    %v261 = vpack.c.b16 %v213, %v212
    %v262 = vpack.c.b16 %v215, %v214
    %v263 = vpack.c.b16 %v217, %v216
    %v264 = vpack.c.b16 %v219, %v218
    %v265 = vpack.c.b16 %v221, %v220
    %v266 = vpack.c.b16 %v223, %v222
    %v267 = vpack.c.b16 %v225, %v224
    %v268 = vpack.c.b16 %v227, %v226
    %v269 = vpack.c.b16 %v229, %v228
    %v270 = vpack.c.b16 %v231, %v230
    %v271 = vpack.c.b16 %v233, %v232
    %v272 = vpack.c.b16 %v235, %v234
    %v273 = vpack.c.b16 %v237, %v236
    %v274 = vpack.c.b16 %v239, %v238
    %v275 = vpack.c.b16 %v241, %v240
    %v276 = vpack.c.b16 %v243, %v242
    %v277 = vpack.c.b16 %v245, %v244
    %v280 = vunpack.c.l.b16 %v116
    %v281 = vunpack.c.l.b16 %v117
    %v282 = vpack.c.b16 %v281, %v280
    %vm284 = vcmask 130048
    %v286 = vsel %vm284, %v246, 0
    %v289 = vsel %vm284, %v247, 0
    %v292 = vsel %vm284, %v248, 0
    %v295 = vsel %vm284, %v249, 0
    %v298 = vsel %vm284, %v250, 0
    %v301 = vsel %vm284, %v251, 0
    %v304 = vsel %vm284, %v252, 0
    %v307 = vsel %vm284, %v253, 0
    %v310 = vsel %vm284, %v254, 0
    %v313 = vsel %vm284, %v255, 0
    %v316 = vsel %vm284, %v256, 0
    %v319 = vsel %vm284, %v257, 0
    %v322 = vsel %vm284, %v258, 0
    %v325 = vsel %vm284, %v259, 0
    %v328 = vsel %vm284, %v260, 0
    %v331 = vsel %vm284, %v261, 0
    %v334 = vsel %vm284, %v262, 0
    %v337 = vsel %vm284, %v263, 0
    %v340 = vsel %vm284, %v264, 0
    %v343 = vsel %vm284, %v265, 0
    %v346 = vsel %vm284, %v266, 0
    %v349 = vsel %vm284, %v267, 0
    %v352 = vsel %vm284, %v268, 0
    %v355 = vsel %vm284, %v269, 0
    %v358 = vsel %vm284, %v270, 0
    %v361 = vsel %vm284, %v271, 0
    %v364 = vsel %vm284, %v272, 0
    %v367 = vsel %vm284, %v273, 0
    %v370 = vsel %vm284, %v274, 0
    %v373 = vsel %vm284, %v275, 0
    %v376 = vsel %vm284, %v276, 0
    %v379 = vsel %vm284, %v277, 0
    %381 = vmatprep.subr.bf16.mxu0 0
    %382 = vmatpush1.bf16.msra.mxu0 %v282
    %383 = vmatprep.subr.bf16.mxu0 0
    %384 = vmatpush1.bf16.msra.mxu0 0
    %385 = vmatprep.subr.bf16.mxu0 0
    %386 = vmatpush1.bf16.msra.mxu0 0
    %387 = vmatprep.subr.bf16.mxu0 0
    %388 = vmatpush1.bf16.msra.mxu0 0
    %389 = vmatprep.subr.bf16.mxu0 0
    %390 = vmatpush1.bf16.msra.mxu0 0
    %391 = vmatprep.subr.bf16.mxu0 0
    %392 = vmatpush1.bf16.msra.mxu0 0
    %393 = vmatprep.subr.bf16.mxu0 0
    %394 = vmatpush1.bf16.msra.mxu0 0
    %395 = vmatprep.subr.bf16.mxu0 0
    %396 = vmatpush1.bf16.msra.mxu0 0
    %397 = vmatprep.subr.bf16.mxu0 0
    %398 = vmatpush1.bf16.msra.mxu0 0
    %399 = vmatprep.subr.bf16.mxu0 0
    %400 = vmatpush1.bf16.msra.mxu0 0
    %401 = vmatprep.subr.bf16.mxu0 0
    %402 = vmatpush1.bf16.msra.mxu0 0
    %403 = vmatprep.subr.bf16.mxu0 0
    %404 = vmatpush1.bf16.msra.mxu0 0
    %405 = vmatprep.subr.bf16.mxu0 0
    %406 = vmatpush1.bf16.msra.mxu0 0
    %407 = vmatprep.subr.bf16.mxu0 0
    %408 = vmatpush1.bf16.msra.mxu0 0
    %409 = vmatprep.subr.bf16.mxu0 0
    %410 = vmatpush1.bf16.msra.mxu0 0
    %411 = vmatprep.subr.bf16.mxu0 0
    %412 = vmatpush1.bf16.msra.mxu0 0
    %413 = vmatprep.mubr.bf16.mxu0 0
    %414 = vmatmul.mubr.bf16.gmra.mrb[0].mxu0 %v286
    %v415 = vpop.f32.mrb[0].mxu0
    %v416 = vadd.f32 0.0, %v415
    %v417 = vpop.f32.mrb[0].mxu0
    %v418 = vpop.f32.mrb[0].mxu0
    %v419 = vadd.f32 0.0, %v418
    %v420 = vpop.f32.mrb[0].mxu0
    %421 = vmatprep.mubr.bf16.mxu0 0
    %422 = vmatmul.mubr.bf16.gmra.mrb[0].mxu0 %v289
    %v423 = vpop.f32.mrb[0].mxu0
    %v424 = vadd.f32 0.0, %v423
    %v425 = vpop.f32.mrb[0].mxu0
    %v426 = vpop.f32.mrb[0].mxu0
    %v427 = vadd.f32 0.0, %v426
    %v428 = vpop.f32.mrb[0].mxu0
    %429 = vmatprep.mubr.bf16.mxu0 0
    %430 = vmatmul.mubr.bf16.gmra.mrb[0].mxu0 %v292
    %v431 = vpop.f32.mrb[0].mxu0
    %v432 = vadd.f32 0.0, %v431
    %v433 = vpop.f32.mrb[0].mxu0
    %v434 = vpop.f32.mrb[0].mxu0
    %v435 = vadd.f32 0.0, %v434
    %v436 = vpop.f32.mrb[0].mxu0
    %437 = vmatprep.mubr.bf16.mxu0 0
    %438 = vmatmul.mubr.bf16.gmra.mrb[0].mxu0 %v295
    %v439 = vpop.f32.mrb[0].mxu0
    %v440 = vadd.f32 0.0, %v439
    %v441 = vpop.f32.mrb[0].mxu0
    %v442 = vpop.f32.mrb[0].mxu0
    %v443 = vadd.f32 0.0, %v442
    %v444 = vpop.f32.mrb[0].mxu0
    %445 = vmatprep.mubr.bf16.mxu0 0
    %446 = vmatmul.mubr.bf16.gmra.mrb[0].mxu0 %v298
    %v447 = vpop.f32.mrb[0].mxu0
    %v448 = vadd.f32 0.0, %v447
    %v449 = vpop.f32.mrb[0].mxu0
    %v450 = vpop.f32.mrb[0].mxu0
    %v451 = vadd.f32 0.0, %v450
    %v452 = vpop.f32.mrb[0].mxu0
    %453 = vmatprep.mubr.bf16.mxu0 0
    %454 = vmatmul.mubr.bf16.gmra.mrb[0].mxu0 %v301
    %v455 = vpop.f32.mrb[0].mxu0
    %v456 = vadd.f32 0.0, %v455
    %v457 = vpop.f32.mrb[0].mxu0
    %v458 = vpop.f32.mrb[0].mxu0
    %v459 = vadd.f32 0.0, %v458
    %v460 = vpop.f32.mrb[0].mxu0
    %461 = vmatprep.mubr.bf16.mxu0 0
    %462 = vmatmul.mubr.bf16.gmra.mrb[0].mxu0 %v304
    %v463 = vpop.f32.mrb[0].mxu0
    %v464 = vadd.f32 0.0, %v463
    %v465 = vpop.f32.mrb[0].mxu0
    %v466 = vpop.f32.mrb[0].mxu0
    %v467 = vadd.f32 0.0, %v466
    %v468 = vpop.f32.mrb[0].mxu0
    %469 = vmatprep.mubr.bf16.mxu0 0
    %470 = vmatmul.mubr.bf16.gmra.mrb[0].mxu0 %v307
    %v471 = vpop.f32.mrb[0].mxu0
    %v472 = vadd.f32 0.0, %v471
    %v473 = vpop.f32.mrb[0].mxu0
    %v474 = vpop.f32.mrb[0].mxu0
    %v475 = vadd.f32 0.0, %v474
    %v476 = vpop.f32.mrb[0].mxu0
    %477 = vmatprep.mubr.bf16.mxu0 0
    %478 = vmatmul.mubr.bf16.gmra.mrb[0].mxu0 %v310
    %v479 = vpop.f32.mrb[0].mxu0
    %v480 = vadd.f32 0.0, %v479
    %v481 = vpop.f32.mrb[0].mxu0
    %v482 = vpop.f32.mrb[0].mxu0
    %v483 = vadd.f32 0.0, %v482
    %v484 = vpop.f32.mrb[0].mxu0
    %485 = vmatprep.mubr.bf16.mxu0 0
    %486 = vmatmul.mubr.bf16.gmra.mrb[0].mxu0 %v313
    %v487 = vpop.f32.mrb[0].mxu0
    %v488 = vadd.f32 0.0, %v487
    %v489 = vpop.f32.mrb[0].mxu0
    %v490 = vpop.f32.mrb[0].mxu0
    %v491 = vadd.f32 0.0, %v490
    %v492 = vpop.f32.mrb[0].mxu0
    %493 = vmatprep.mubr.bf16.mxu0 0
    %494 = vmatmul.mubr.bf16.gmra.mrb[0].mxu0 %v316
    %v495 = vpop.f32.mrb[0].mxu0
    %v496 = vadd.f32 0.0, %v495
    %v497 = vpop.f32.mrb[0].mxu0
    %v498 = vpop.f32.mrb[0].mxu0
    %v499 = vadd.f32 0.0, %v498
    %v500 = vpop.f32.mrb[0].mxu0
    %501 = vmatprep.mubr.bf16.mxu0 0
    %502 = vmatmul.mubr.bf16.gmra.mrb[0].mxu0 %v319
    %v503 = vpop.f32.mrb[0].mxu0
    %v504 = vadd.f32 0.0, %v503
    %v505 = vpop.f32.mrb[0].mxu0
    %v506 = vpop.f32.mrb[0].mxu0
    %v507 = vadd.f32 0.0, %v506
    %v508 = vpop.f32.mrb[0].mxu0
    %509 = vmatprep.mubr.bf16.mxu0 0
    %510 = vmatmul.mubr.bf16.gmra.mrb[0].mxu0 %v322
    %v511 = vpop.f32.mrb[0].mxu0
    %v512 = vadd.f32 0.0, %v511
    %v513 = vpop.f32.mrb[0].mxu0
    %v514 = vpop.f32.mrb[0].mxu0
    %v515 = vadd.f32 0.0, %v514
    %v516 = vpop.f32.mrb[0].mxu0
    %517 = vmatprep.mubr.bf16.mxu0 0
    %518 = vmatmul.mubr.bf16.gmra.mrb[0].mxu0 %v325
    %v519 = vpop.f32.mrb[0].mxu0
    %v520 = vadd.f32 0.0, %v519
    %v521 = vpop.f32.mrb[0].mxu0
    %v522 = vpop.f32.mrb[0].mxu0
    %v523 = vadd.f32 0.0, %v522
    %v524 = vpop.f32.mrb[0].mxu0
    %525 = vmatprep.mubr.bf16.mxu0 0
    %526 = vmatmul.mubr.bf16.gmra.mrb[0].mxu0 %v328
    %v527 = vpop.f32.mrb[0].mxu0
    %v528 = vadd.f32 0.0, %v527
    %v529 = vpop.f32.mrb[0].mxu0
    %v530 = vpop.f32.mrb[0].mxu0
    %v531 = vadd.f32 0.0, %v530
    %v532 = vpop.f32.mrb[0].mxu0
    %533 = vmatprep.mubr.bf16.mxu0 0
    %534 = vmatmul.mubr.bf16.gmra.mrb[0].mxu0 %v331
    %v535 = vpop.f32.mrb[0].mxu0
    %v536 = vadd.f32 0.0, %v535
    %v537 = vpop.f32.mrb[0].mxu0
    %v538 = vpop.f32.mrb[0].mxu0
    %v539 = vadd.f32 0.0, %v538
    %v540 = vpop.f32.mrb[0].mxu0
    %541 = vmatprep.mubr.bf16.mxu0 0
    %542 = vmatmul.mubr.bf16.gmra.mrb[0].mxu0 %v334
    %v543 = vpop.f32.mrb[0].mxu0
    %v544 = vadd.f32 0.0, %v543
    %v545 = vpop.f32.mrb[0].mxu0
    %v546 = vpop.f32.mrb[0].mxu0
    %v547 = vadd.f32 0.0, %v546
    %v548 = vpop.f32.mrb[0].mxu0
    %549 = vmatprep.mubr.bf16.mxu0 0
    %550 = vmatmul.mubr.bf16.gmra.mrb[0].mxu0 %v337
    %v551 = vpop.f32.mrb[0].mxu0
    %v552 = vadd.f32 0.0, %v551
    %v553 = vpop.f32.mrb[0].mxu0
    %v554 = vpop.f32.mrb[0].mxu0
    %v555 = vadd.f32 0.0, %v554
    %v556 = vpop.f32.mrb[0].mxu0
    %557 = vmatprep.mubr.bf16.mxu0 0
    %558 = vmatmul.mubr.bf16.gmra.mrb[0].mxu0 %v340
    %v559 = vpop.f32.mrb[0].mxu0
    %v560 = vadd.f32 0.0, %v559
    %v561 = vpop.f32.mrb[0].mxu0
    %v562 = vpop.f32.mrb[0].mxu0
    %v563 = vadd.f32 0.0, %v562
    %v564 = vpop.f32.mrb[0].mxu0
    %565 = vmatprep.mubr.bf16.mxu0 0
    %566 = vmatmul.mubr.bf16.gmra.mrb[0].mxu0 %v343
    %v567 = vpop.f32.mrb[0].mxu0
    %v568 = vadd.f32 0.0, %v567
    %v569 = vpop.f32.mrb[0].mxu0
    %v570 = vpop.f32.mrb[0].mxu0
    %v571 = vadd.f32 0.0, %v570
    %v572 = vpop.f32.mrb[0].mxu0
    %573 = vmatprep.mubr.bf16.mxu0 0
    %574 = vmatmul.mubr.bf16.gmra.mrb[0].mxu0 %v346
    %v575 = vpop.f32.mrb[0].mxu0
    %v576 = vadd.f32 0.0, %v575
    %v577 = vpop.f32.mrb[0].mxu0
    %v578 = vpop.f32.mrb[0].mxu0
    %v579 = vadd.f32 0.0, %v578
    %v580 = vpop.f32.mrb[0].mxu0
    %581 = vmatprep.mubr.bf16.mxu0 0
    %582 = vmatmul.mubr.bf16.gmra.mrb[0].mxu0 %v349
    %v583 = vpop.f32.mrb[0].mxu0
    %v584 = vadd.f32 0.0, %v583
    %v585 = vpop.f32.mrb[0].mxu0
    %v586 = vpop.f32.mrb[0].mxu0
    %v587 = vadd.f32 0.0, %v586
    %v588 = vpop.f32.mrb[0].mxu0
    %589 = vmatprep.mubr.bf16.mxu0 0
    %590 = vmatmul.mubr.bf16.gmra.mrb[0].mxu0 %v352
    %v591 = vpop.f32.mrb[0].mxu0
    %v592 = vadd.f32 0.0, %v591
    %v593 = vpop.f32.mrb[0].mxu0
    %v594 = vpop.f32.mrb[0].mxu0
    %v595 = vadd.f32 0.0, %v594
    %v596 = vpop.f32.mrb[0].mxu0
    %597 = vmatprep.mubr.bf16.mxu0 0
    %598 = vmatmul.mubr.bf16.gmra.mrb[0].mxu0 %v355
    %v599 = vpop.f32.mrb[0].mxu0
    %v600 = vadd.f32 0.0, %v599
    %v601 = vpop.f32.mrb[0].mxu0
    %v602 = vpop.f32.mrb[0].mxu0
    %v603 = vadd.f32 0.0, %v602
    %v604 = vpop.f32.mrb[0].mxu0
    %605 = vmatprep.mubr.bf16.mxu0 0
    %606 = vmatmul.mubr.bf16.gmra.mrb[0].mxu0 %v358
    %v607 = vpop.f32.mrb[0].mxu0
    %v608 = vadd.f32 0.0, %v607
    %v609 = vpop.f32.mrb[0].mxu0
    %v610 = vpop.f32.mrb[0].mxu0
    %v611 = vadd.f32 0.0, %v610
    %v612 = vpop.f32.mrb[0].mxu0
    %613 = vmatprep.mubr.bf16.mxu0 0
    %614 = vmatmul.mubr.bf16.gmra.mrb[0].mxu0 %v361
    %v615 = vpop.f32.mrb[0].mxu0
    %v616 = vadd.f32 0.0, %v615
    %v617 = vpop.f32.mrb[0].mxu0
    %v618 = vpop.f32.mrb[0].mxu0
    %v619 = vadd.f32 0.0, %v618
    %v620 = vpop.f32.mrb[0].mxu0
    %621 = vmatprep.mubr.bf16.mxu0 0
    %622 = vmatmul.mubr.bf16.gmra.mrb[0].mxu0 %v364
    %v623 = vpop.f32.mrb[0].mxu0
    %v624 = vadd.f32 0.0, %v623
    %v625 = vpop.f32.mrb[0].mxu0
    %v626 = vpop.f32.mrb[0].mxu0
    %v627 = vadd.f32 0.0, %v626
    %v628 = vpop.f32.mrb[0].mxu0
    %629 = vmatprep.mubr.bf16.mxu0 0
    %630 = vmatmul.mubr.bf16.gmra.mrb[0].mxu0 %v367
    %v631 = vpop.f32.mrb[0].mxu0
    %v632 = vadd.f32 0.0, %v631
    %v633 = vpop.f32.mrb[0].mxu0
    %v634 = vpop.f32.mrb[0].mxu0
    %v635 = vadd.f32 0.0, %v634
    %v636 = vpop.f32.mrb[0].mxu0
    %637 = vmatprep.mubr.bf16.mxu0 0
    %638 = vmatmul.mubr.bf16.gmra.mrb[0].mxu0 %v370
    %v639 = vpop.f32.mrb[0].mxu0
    %v640 = vadd.f32 0.0, %v639
    %v641 = vpop.f32.mrb[0].mxu0
    %v642 = vpop.f32.mrb[0].mxu0
    %v643 = vadd.f32 0.0, %v642
    %v644 = vpop.f32.mrb[0].mxu0
    %645 = vmatprep.mubr.bf16.mxu0 0
    %646 = vmatmul.mubr.bf16.gmra.mrb[0].mxu0 %v373
    %v647 = vpop.f32.mrb[0].mxu0
    %v648 = vadd.f32 0.0, %v647
    %v649 = vpop.f32.mrb[0].mxu0
    %v650 = vpop.f32.mrb[0].mxu0
    %v651 = vadd.f32 0.0, %v650
    %v652 = vpop.f32.mrb[0].mxu0
    %653 = vmatprep.mubr.bf16.mxu0 0
    %654 = vmatmul.mubr.bf16.gmra.mrb[0].mxu0 %v376
    %v655 = vpop.f32.mrb[0].mxu0
    %v656 = vadd.f32 0.0, %v655
    %v657 = vpop.f32.mrb[0].mxu0
    %v658 = vpop.f32.mrb[0].mxu0
    %v659 = vadd.f32 0.0, %v658
    %v660 = vpop.f32.mrb[0].mxu0
    %661 = vmatprep.mubr.bf16.mxu0 0
    %662 = vmatmul.mubr.bf16.gmra.mrb[0].mxu0 %v379
    %v663 = vpop.f32.mrb[0].mxu0
    %v664 = vadd.f32 0.0, %v663
    %v665 = vpop.f32.mrb[0].mxu0
    %v666 = vpop.f32.mrb[0].mxu0
    %v667 = vadd.f32 0.0, %v666
    %v668 = vpop.f32.mrb[0].mxu0
    %669 = vdwg.mxu0
    %v670 = vld [vmem:[%s2] sm:$0x1]
    %v671 = vld [vmem:[%s3] sm:$0x1]
    %v672 = vsel %vm284, %v416, 0.0
    %v673 = vsel %vm284, %v419, 0.0
    %v674 = vadd.f32 %v672, %v673
    %v675 = vsel %vm284, %v424, 0.0
    %v676 = vadd.f32 %v674, %v675
    %v677 = vsel %vm284, %v427, 0.0
    %v678 = vadd.f32 %v676, %v677
    %v679 = vsel %vm284, %v432, 0.0
    %v680 = vadd.f32 %v678, %v679
    %v681 = vsel %vm284, %v435, 0.0
    %v682 = vadd.f32 %v680, %v681
    %v683 = vsel %vm284, %v440, 0.0
    %v684 = vadd.f32 %v682, %v683
    %v685 = vsel %vm284, %v443, 0.0
    %v686 = vadd.f32 %v684, %v685
    %v687 = vsel %vm284, %v448, 0.0
    %v688 = vadd.f32 %v686, %v687
    %v689 = vsel %vm284, %v451, 0.0
    %v690 = vadd.f32 %v688, %v689
    %v691 = vsel %vm284, %v456, 0.0
    %v692 = vadd.f32 %v690, %v691
    %v693 = vsel %vm284, %v459, 0.0
    %v694 = vadd.f32 %v692, %v693
    %v695 = vsel %vm284, %v464, 0.0
    %v696 = vadd.f32 %v694, %v695
    %v697 = vsel %vm284, %v467, 0.0
    %v698 = vadd.f32 %v696, %v697
    %v699 = vsel %vm284, %v472, 0.0
    %v700 = vadd.f32 %v698, %v699
    %v701 = vsel %vm284, %v475, 0.0
    %v702 = vadd.f32 %v700, %v701
    %v703 = vsel %vm284, %v480, 0.0
    %v704 = vadd.f32 %v702, %v703
    %v705 = vsel %vm284, %v483, 0.0
    %v706 = vadd.f32 %v704, %v705
    %v707 = vsel %vm284, %v488, 0.0
    %v708 = vadd.f32 %v706, %v707
    %v709 = vsel %vm284, %v491, 0.0
    %v710 = vadd.f32 %v708, %v709
    %v711 = vsel %vm284, %v496, 0.0
    %v712 = vadd.f32 %v710, %v711
    %v713 = vsel %vm284, %v499, 0.0
    %v714 = vadd.f32 %v712, %v713
    %v715 = vsel %vm284, %v504, 0.0
    %v716 = vadd.f32 %v714, %v715
    %v717 = vsel %vm284, %v507, 0.0
    %v718 = vadd.f32 %v716, %v717
    %v719 = vsel %vm284, %v512, 0.0
    %v720 = vadd.f32 %v718, %v719
    %v721 = vsel %vm284, %v515, 0.0
    %v722 = vadd.f32 %v720, %v721
    %v723 = vsel %vm284, %v520, 0.0
    %v724 = vadd.f32 %v722, %v723
    %v725 = vsel %vm284, %v523, 0.0
    %v726 = vadd.f32 %v724, %v725
    %v727 = vsel %vm284, %v528, 0.0
    %v728 = vadd.f32 %v726, %v727
    %v729 = vsel %vm284, %v531, 0.0
    %v730 = vadd.f32 %v728, %v729
    %v731 = vsel %vm284, %v536, 0.0
    %v732 = vadd.f32 %v730, %v731
    %v733 = vsel %vm284, %v539, 0.0
    %v734 = vadd.f32 %v732, %v733
    %v735 = vsel %vm284, %v544, 0.0
    %v736 = vadd.f32 %v734, %v735
    %v737 = vsel %vm284, %v547, 0.0
    %v738 = vadd.f32 %v736, %v737
    %v739 = vsel %vm284, %v552, 0.0
    %v740 = vadd.f32 %v738, %v739
    %v741 = vsel %vm284, %v555, 0.0
    %v742 = vadd.f32 %v740, %v741
    %v743 = vsel %vm284, %v560, 0.0
    %v744 = vadd.f32 %v742, %v743
    %v745 = vsel %vm284, %v563, 0.0
    %v746 = vadd.f32 %v744, %v745
    %v747 = vsel %vm284, %v568, 0.0
    %v748 = vadd.f32 %v746, %v747
    %v749 = vsel %vm284, %v571, 0.0
    %v750 = vadd.f32 %v748, %v749
    %v751 = vsel %vm284, %v576, 0.0
    %v752 = vadd.f32 %v750, %v751
    %v753 = vsel %vm284, %v579, 0.0
    %v754 = vadd.f32 %v752, %v753
    %v755 = vsel %vm284, %v584, 0.0
    %v756 = vadd.f32 %v754, %v755
    %v757 = vsel %vm284, %v587, 0.0
    %v758 = vadd.f32 %v756, %v757
    %v759 = vsel %vm284, %v592, 0.0
    %v760 = vadd.f32 %v758, %v759
    %v761 = vsel %vm284, %v595, 0.0
    %v762 = vadd.f32 %v760, %v761
    %v763 = vsel %vm284, %v600, 0.0
    %v764 = vadd.f32 %v762, %v763
    %v765 = vsel %vm284, %v603, 0.0
    %v766 = vadd.f32 %v764, %v765
    %v767 = vsel %vm284, %v608, 0.0
    %v768 = vadd.f32 %v766, %v767
    %v769 = vsel %vm284, %v611, 0.0
    %v770 = vadd.f32 %v768, %v769
    %v771 = vsel %vm284, %v616, 0.0
    %v772 = vadd.f32 %v770, %v771
    %v773 = vsel %vm284, %v619, 0.0
    %v774 = vadd.f32 %v772, %v773
    %v775 = vsel %vm284, %v624, 0.0
    %v776 = vadd.f32 %v774, %v775
    %v777 = vsel %vm284, %v627, 0.0
    %v778 = vadd.f32 %v776, %v777
    %v779 = vsel %vm284, %v632, 0.0
    %v780 = vadd.f32 %v778, %v779
    %v781 = vsel %vm284, %v635, 0.0
    %v782 = vadd.f32 %v780, %v781
    %v783 = vsel %vm284, %v640, 0.0
    %v784 = vadd.f32 %v782, %v783
    %v785 = vsel %vm284, %v643, 0.0
    %v786 = vadd.f32 %v784, %v785
    %v787 = vsel %vm284, %v648, 0.0
    %v788 = vadd.f32 %v786, %v787
    %v789 = vsel %vm284, %v651, 0.0
    %v790 = vadd.f32 %v788, %v789
    %v791 = vsel %vm284, %v656, 0.0
    %v792 = vadd.f32 %v790, %v791
    %v793 = vsel %vm284, %v659, 0.0
    %v794 = vadd.f32 %v792, %v793
    %v795 = vsel %vm284, %v664, 0.0
    %v796 = vadd.f32 %v794, %v795
    %v797 = vsel %vm284, %v667, 0.0
    %v798 = vadd.f32 %v796, %v797
    %v799 = vrot.slane %v798, 4
    %v800 = vadd.f32 %v798, %v799
    %v801 = vrot.slane %v800, 2
    %v802 = vadd.f32 %v800, %v801
    %v803 = vrot.slane %v802, 1
    %v804 = vadd.f32 %v802, %v803
    %v805 = vmul.f32 %v804, 0.001953125
    %v806 = vsub.f32 %v416, %v805
    %v807 = vsub.f32 %v419, %v805
    %v808 = vsub.f32 %v424, %v805
    %v809 = vsub.f32 %v427, %v805
    %v810 = vsub.f32 %v432, %v805
    %v811 = vsub.f32 %v435, %v805
    %v812 = vsub.f32 %v440, %v805
    %v813 = vsub.f32 %v443, %v805
    %v814 = vsub.f32 %v448, %v805
    %v815 = vsub.f32 %v451, %v805
    %v816 = vsub.f32 %v456, %v805
    %v817 = vsub.f32 %v459, %v805
    %v818 = vsub.f32 %v464, %v805
    %v819 = vsub.f32 %v467, %v805
    %v820 = vsub.f32 %v472, %v805
    %v821 = vsub.f32 %v475, %v805
    %v822 = vsub.f32 %v480, %v805
    %v823 = vsub.f32 %v483, %v805
    %v824 = vsub.f32 %v488, %v805
    %v825 = vsub.f32 %v491, %v805
    %v826 = vsub.f32 %v496, %v805
    %v827 = vsub.f32 %v499, %v805
    %v828 = vsub.f32 %v504, %v805
    %v829 = vsub.f32 %v507, %v805
    %v830 = vsub.f32 %v512, %v805
    %v831 = vsub.f32 %v515, %v805
    %v832 = vsub.f32 %v520, %v805
    %v833 = vsub.f32 %v523, %v805
    %v834 = vsub.f32 %v528, %v805
    %v835 = vsub.f32 %v531, %v805
    %v836 = vsub.f32 %v536, %v805
    %v837 = vsub.f32 %v539, %v805
    %v838 = vsub.f32 %v544, %v805
    %v839 = vsub.f32 %v547, %v805
    %v840 = vsub.f32 %v552, %v805
    %v841 = vsub.f32 %v555, %v805
    %v842 = vsub.f32 %v560, %v805
    %v843 = vsub.f32 %v563, %v805
    %v844 = vsub.f32 %v568, %v805
    %v845 = vsub.f32 %v571, %v805
    %v846 = vsub.f32 %v576, %v805
    %v847 = vsub.f32 %v579, %v805
    %v848 = vsub.f32 %v584, %v805
    %v849 = vsub.f32 %v587, %v805
    %v850 = vsub.f32 %v592, %v805
    %v851 = vsub.f32 %v595, %v805
    %v852 = vsub.f32 %v600, %v805
    %v853 = vsub.f32 %v603, %v805
    %v854 = vsub.f32 %v608, %v805
    %v855 = vsub.f32 %v611, %v805
    %v856 = vsub.f32 %v616, %v805
    %v857 = vsub.f32 %v619, %v805
    %v858 = vsub.f32 %v624, %v805
    %v859 = vsub.f32 %v627, %v805
    %v860 = vsub.f32 %v632, %v805
    %v861 = vsub.f32 %v635, %v805
    %v862 = vsub.f32 %v640, %v805
    %v863 = vsub.f32 %v643, %v805
    %v864 = vsub.f32 %v648, %v805
    %v865 = vsub.f32 %v651, %v805
    %v866 = vsub.f32 %v656, %v805
    %v867 = vsub.f32 %v659, %v805
    %v868 = vsub.f32 %v664, %v805
    %v869 = vsub.f32 %v667, %v805
    %v870 = vmul.f32 %v806, %v806
    %v871 = vmul.f32 %v807, %v807
    %v872 = vmul.f32 %v808, %v808
    %v873 = vmul.f32 %v809, %v809
    %v874 = vmul.f32 %v810, %v810
    %v875 = vmul.f32 %v811, %v811
    %v876 = vmul.f32 %v812, %v812
    %v877 = vmul.f32 %v813, %v813
    %v878 = vmul.f32 %v814, %v814
    %v879 = vmul.f32 %v815, %v815
    %v880 = vmul.f32 %v816, %v816
    %v881 = vmul.f32 %v817, %v817
    %v882 = vmul.f32 %v818, %v818
    %v883 = vmul.f32 %v819, %v819
    %v884 = vmul.f32 %v820, %v820
    %v885 = vmul.f32 %v821, %v821
    %v886 = vmul.f32 %v822, %v822
    %v887 = vmul.f32 %v823, %v823
    %v888 = vmul.f32 %v824, %v824
    %v889 = vmul.f32 %v825, %v825
    %v890 = vmul.f32 %v826, %v826
    %v891 = vmul.f32 %v827, %v827
    %v892 = vmul.f32 %v828, %v828
    %v893 = vmul.f32 %v829, %v829
    %v894 = vmul.f32 %v830, %v830
    %v895 = vmul.f32 %v831, %v831
    %v896 = vmul.f32 %v832, %v832
    %v897 = vmul.f32 %v833, %v833
    %v898 = vmul.f32 %v834, %v834
    %v899 = vmul.f32 %v835, %v835
    %v900 = vmul.f32 %v836, %v836
    %v901 = vmul.f32 %v837, %v837
    %v902 = vmul.f32 %v838, %v838
    %v903 = vmul.f32 %v839, %v839
    %v904 = vmul.f32 %v840, %v840
    %v905 = vmul.f32 %v841, %v841
    %v906 = vmul.f32 %v842, %v842
    %v907 = vmul.f32 %v843, %v843
    %v908 = vmul.f32 %v844, %v844
    %v909 = vmul.f32 %v845, %v845
    %v910 = vmul.f32 %v846, %v846
    %v911 = vmul.f32 %v847, %v847
    %v912 = vmul.f32 %v848, %v848
    %v913 = vmul.f32 %v849, %v849
    %v914 = vmul.f32 %v850, %v850
    %v915 = vmul.f32 %v851, %v851
    %v916 = vmul.f32 %v852, %v852
    %v917 = vmul.f32 %v853, %v853
    %v918 = vmul.f32 %v854, %v854
    %v919 = vmul.f32 %v855, %v855
    %v920 = vmul.f32 %v856, %v856
    %v921 = vmul.f32 %v857, %v857
    %v922 = vmul.f32 %v858, %v858
    %v923 = vmul.f32 %v859, %v859
    %v924 = vmul.f32 %v860, %v860
    %v925 = vmul.f32 %v861, %v861
    %v926 = vmul.f32 %v862, %v862
    %v927 = vmul.f32 %v863, %v863
    %v928 = vmul.f32 %v864, %v864
    %v929 = vmul.f32 %v865, %v865
    %v930 = vmul.f32 %v866, %v866
    %v931 = vmul.f32 %v867, %v867
    %v932 = vmul.f32 %v868, %v868
    %v933 = vmul.f32 %v869, %v869
    %v934 = vsel %vm284, %v870, 0.0
    %v935 = vsel %vm284, %v871, 0.0
    %v936 = vadd.f32 %v934, %v935
    %v937 = vsel %vm284, %v872, 0.0
    %v938 = vadd.f32 %v936, %v937
    %v939 = vsel %vm284, %v873, 0.0
    %v940 = vadd.f32 %v938, %v939
    %v941 = vsel %vm284, %v874, 0.0
    %v942 = vadd.f32 %v940, %v941
    %v943 = vsel %vm284, %v875, 0.0
    %v944 = vadd.f32 %v942, %v943
    %v945 = vsel %vm284, %v876, 0.0
    %v946 = vadd.f32 %v944, %v945
    %v947 = vsel %vm284, %v877, 0.0
    %v948 = vadd.f32 %v946, %v947
    %v949 = vsel %vm284, %v878, 0.0
    %v950 = vadd.f32 %v948, %v949
    %v951 = vsel %vm284, %v879, 0.0
    %v952 = vadd.f32 %v950, %v951
    %v953 = vsel %vm284, %v880, 0.0
    %v954 = vadd.f32 %v952, %v953
    %v955 = vsel %vm284, %v881, 0.0
    %v956 = vadd.f32 %v954, %v955
    %v957 = vsel %vm284, %v882, 0.0
    %v958 = vadd.f32 %v956, %v957
    %v959 = vsel %vm284, %v883, 0.0
    %v960 = vadd.f32 %v958, %v959
    %v961 = vsel %vm284, %v884, 0.0
    %v962 = vadd.f32 %v960, %v961
    %v963 = vsel %vm284, %v885, 0.0
    %v964 = vadd.f32 %v962, %v963
    %v965 = vsel %vm284, %v886, 0.0
    %v966 = vadd.f32 %v964, %v965
    %v967 = vsel %vm284, %v887, 0.0
    %v968 = vadd.f32 %v966, %v967
    %v969 = vsel %vm284, %v888, 0.0
    %v970 = vadd.f32 %v968, %v969
    %v971 = vsel %vm284, %v889, 0.0
    %v972 = vadd.f32 %v970, %v971
    %v973 = vsel %vm284, %v890, 0.0
    %v974 = vadd.f32 %v972, %v973
    %v975 = vsel %vm284, %v891, 0.0
    %v976 = vadd.f32 %v974, %v975
    %v977 = vsel %vm284, %v892, 0.0
    %v978 = vadd.f32 %v976, %v977
    %v979 = vsel %vm284, %v893, 0.0
    %v980 = vadd.f32 %v978, %v979
    %v981 = vsel %vm284, %v894, 0.0
    %v982 = vadd.f32 %v980, %v981
    %v983 = vsel %vm284, %v895, 0.0
    %v984 = vadd.f32 %v982, %v983
    %v985 = vsel %vm284, %v896, 0.0
    %v986 = vadd.f32 %v984, %v985
    %v987 = vsel %vm284, %v897, 0.0
    %v988 = vadd.f32 %v986, %v987
    %v989 = vsel %vm284, %v898, 0.0
    %v990 = vadd.f32 %v988, %v989
    %v991 = vsel %vm284, %v899, 0.0
    %v992 = vadd.f32 %v990, %v991
    %v993 = vsel %vm284, %v900, 0.0
    %v994 = vadd.f32 %v992, %v993
    %v995 = vsel %vm284, %v901, 0.0
    %v996 = vadd.f32 %v994, %v995
    %v997 = vsel %vm284, %v902, 0.0
    %v998 = vadd.f32 %v996, %v997
    %v999 = vsel %vm284, %v903, 0.0
    %v1000 = vadd.f32 %v998, %v999
    %v1001 = vsel %vm284, %v904, 0.0
    %v1002 = vadd.f32 %v1000, %v1001
    %v1003 = vsel %vm284, %v905, 0.0
    %v1004 = vadd.f32 %v1002, %v1003
    %v1005 = vsel %vm284, %v906, 0.0
    %v1006 = vadd.f32 %v1004, %v1005
    %v1007 = vsel %vm284, %v907, 0.0
    %v1008 = vadd.f32 %v1006, %v1007
    %v1009 = vsel %vm284, %v908, 0.0
    %v1010 = vadd.f32 %v1008, %v1009
    %v1011 = vsel %vm284, %v909, 0.0
    %v1012 = vadd.f32 %v1010, %v1011
    %v1013 = vsel %vm284, %v910, 0.0
    %v1014 = vadd.f32 %v1012, %v1013
    %v1015 = vsel %vm284, %v911, 0.0
    %v1016 = vadd.f32 %v1014, %v1015
    %v1017 = vsel %vm284, %v912, 0.0
    %v1018 = vadd.f32 %v1016, %v1017
    %v1019 = vsel %vm284, %v913, 0.0
    %v1020 = vadd.f32 %v1018, %v1019
    %v1021 = vsel %vm284, %v914, 0.0
    %v1022 = vadd.f32 %v1020, %v1021
    %v1023 = vsel %vm284, %v915, 0.0
    %v1024 = vadd.f32 %v1022, %v1023
    %v1025 = vsel %vm284, %v916, 0.0
    %v1026 = vadd.f32 %v1024, %v1025
    %v1027 = vsel %vm284, %v917, 0.0
    %v1028 = vadd.f32 %v1026, %v1027
    %v1029 = vsel %vm284, %v918, 0.0
    %v1030 = vadd.f32 %v1028, %v1029
    %v1031 = vsel %vm284, %v919, 0.0
    %v1032 = vadd.f32 %v1030, %v1031
    %v1033 = vsel %vm284, %v920, 0.0
    %v1034 = vadd.f32 %v1032, %v1033
    %v1035 = vsel %vm284, %v921, 0.0
    %v1036 = vadd.f32 %v1034, %v1035
    %v1037 = vsel %vm284, %v922, 0.0
    %v1038 = vadd.f32 %v1036, %v1037
    %v1039 = vsel %vm284, %v923, 0.0
    %v1040 = vadd.f32 %v1038, %v1039
    %v1041 = vsel %vm284, %v924, 0.0
    %v1042 = vadd.f32 %v1040, %v1041
    %v1043 = vsel %vm284, %v925, 0.0
    %v1044 = vadd.f32 %v1042, %v1043
    %v1045 = vsel %vm284, %v926, 0.0
    %v1046 = vadd.f32 %v1044, %v1045
    %v1047 = vsel %vm284, %v927, 0.0
    %v1048 = vadd.f32 %v1046, %v1047
    %v1049 = vsel %vm284, %v928, 0.0
    %v1050 = vadd.f32 %v1048, %v1049
    %v1051 = vsel %vm284, %v929, 0.0
    %v1052 = vadd.f32 %v1050, %v1051
    %v1053 = vsel %vm284, %v930, 0.0
    %v1054 = vadd.f32 %v1052, %v1053
    %v1055 = vsel %vm284, %v931, 0.0
    %v1056 = vadd.f32 %v1054, %v1055
    %v1057 = vsel %vm284, %v932, 0.0
    %v1058 = vadd.f32 %v1056, %v1057
    %v1059 = vsel %vm284, %v933, 0.0
    %v1060 = vadd.f32 %v1058, %v1059
    %v1061 = vrot.slane %v1060, 4
    %v1062 = vadd.f32 %v1060, %v1061
    %v1063 = vrot.slane %v1062, 2
    %v1064 = vadd.f32 %v1062, %v1063
    %v1065 = vrot.slane %v1064, 1
    %v1066 = vadd.f32 %v1064, %v1065
    %v1067 = vmul.f32 %v1066, 0.001953125
    %v1068 = vadd.f32 %v1067, 1e-05
    %v1069 = vrsqrt.pop %v1068
    %v1070 = vmul.f32 %v670, %v1069
    %v1072 = vlaneseq
    %v1073 = vshrl.u32 %v1072, 7
    %v1074 = vsub.s32 0, %v1073
    %v1075 = vrot.slane %v1070, %v1074
    %v1077 = vmul.f32 %v806, %v1075
    %v1078 = vmul.f32 %v807, %v1075
    %v1079 = vmul.f32 %v808, %v1075
    %v1080 = vmul.f32 %v809, %v1075
    %v1081 = vmul.f32 %v810, %v1075
    %v1082 = vmul.f32 %v811, %v1075
    %v1083 = vmul.f32 %v812, %v1075
    %v1084 = vmul.f32 %v813, %v1075
    %v1085 = vmul.f32 %v814, %v1075
    %v1086 = vmul.f32 %v815, %v1075
    %v1087 = vmul.f32 %v816, %v1075
    %v1088 = vmul.f32 %v817, %v1075
    %v1089 = vmul.f32 %v818, %v1075
    %v1090 = vmul.f32 %v819, %v1075
    %v1091 = vmul.f32 %v820, %v1075
    %v1092 = vmul.f32 %v821, %v1075
    %v1093 = vmul.f32 %v822, %v1075
    %v1094 = vmul.f32 %v823, %v1075
    %v1095 = vmul.f32 %v824, %v1075
    %v1096 = vmul.f32 %v825, %v1075
    %v1097 = vmul.f32 %v826, %v1075
    %v1098 = vmul.f32 %v827, %v1075
    %v1099 = vmul.f32 %v828, %v1075
    %v1100 = vmul.f32 %v829, %v1075
    %v1101 = vmul.f32 %v830, %v1075
    %v1102 = vmul.f32 %v831, %v1075
    %v1103 = vmul.f32 %v832, %v1075
    %v1104 = vmul.f32 %v833, %v1075
    %v1105 = vmul.f32 %v834, %v1075
    %v1106 = vmul.f32 %v835, %v1075
    %v1107 = vmul.f32 %v836, %v1075
    %v1108 = vmul.f32 %v837, %v1075
    %v1109 = vmul.f32 %v838, %v1075
    %v1110 = vmul.f32 %v839, %v1075
    %v1111 = vmul.f32 %v840, %v1075
    %v1112 = vmul.f32 %v841, %v1075
    %v1113 = vmul.f32 %v842, %v1075
    %v1114 = vmul.f32 %v843, %v1075
    %v1115 = vmul.f32 %v844, %v1075
    %v1116 = vmul.f32 %v845, %v1075
    %v1117 = vmul.f32 %v846, %v1075
    %v1118 = vmul.f32 %v847, %v1075
    %v1119 = vmul.f32 %v848, %v1075
    %v1120 = vmul.f32 %v849, %v1075
    %v1121 = vmul.f32 %v850, %v1075
    %v1122 = vmul.f32 %v851, %v1075
    %v1123 = vmul.f32 %v852, %v1075
    %v1124 = vmul.f32 %v853, %v1075
    %v1125 = vmul.f32 %v854, %v1075
    %v1126 = vmul.f32 %v855, %v1075
    %v1127 = vmul.f32 %v856, %v1075
    %v1128 = vmul.f32 %v857, %v1075
    %v1129 = vmul.f32 %v858, %v1075
    %v1130 = vmul.f32 %v859, %v1075
    %v1131 = vmul.f32 %v860, %v1075
    %v1132 = vmul.f32 %v861, %v1075
    %v1133 = vmul.f32 %v862, %v1075
    %v1134 = vmul.f32 %v863, %v1075
    %v1135 = vmul.f32 %v864, %v1075
    %v1136 = vmul.f32 %v865, %v1075
    %v1137 = vmul.f32 %v866, %v1075
    %v1138 = vmul.f32 %v867, %v1075
    %v1139 = vmul.f32 %v868, %v1075
    %v1140 = vmul.f32 %v869, %v1075
    %v1142 = vlaneseq
    %v1143 = vshrl.u32 %v1142, 7
    %v1144 = vsub.s32 0, %v1143
    %v1145 = vrot.slane %v671, %v1144
    %v1147 = vadd.f32 %v1077, %v1145
    %v1148 = vadd.f32 %v1078, %v1145
    %v1149 = vadd.f32 %v1079, %v1145
    %v1150 = vadd.f32 %v1080, %v1145
    %v1151 = vadd.f32 %v1081, %v1145
    %v1152 = vadd.f32 %v1082, %v1145
    %v1153 = vadd.f32 %v1083, %v1145
    %v1154 = vadd.f32 %v1084, %v1145
    %v1155 = vadd.f32 %v1085, %v1145
    %v1156 = vadd.f32 %v1086, %v1145
    %v1157 = vadd.f32 %v1087, %v1145
    %v1158 = vadd.f32 %v1088, %v1145
    %v1159 = vadd.f32 %v1089, %v1145
    %v1160 = vadd.f32 %v1090, %v1145
    %v1161 = vadd.f32 %v1091, %v1145
    %v1162 = vadd.f32 %v1092, %v1145
    %v1163 = vadd.f32 %v1093, %v1145
    %v1164 = vadd.f32 %v1094, %v1145
    %v1165 = vadd.f32 %v1095, %v1145
    %v1166 = vadd.f32 %v1096, %v1145
    %v1167 = vadd.f32 %v1097, %v1145
    %v1168 = vadd.f32 %v1098, %v1145
    %v1169 = vadd.f32 %v1099, %v1145
    %v1170 = vadd.f32 %v1100, %v1145
    %v1171 = vadd.f32 %v1101, %v1145
    %v1172 = vadd.f32 %v1102, %v1145
    %v1173 = vadd.f32 %v1103, %v1145
    %v1174 = vadd.f32 %v1104, %v1145
    %v1175 = vadd.f32 %v1105, %v1145
    %v1176 = vadd.f32 %v1106, %v1145
    %v1177 = vadd.f32 %v1107, %v1145
    %v1178 = vadd.f32 %v1108, %v1145
    %v1179 = vadd.f32 %v1109, %v1145
    %v1180 = vadd.f32 %v1110, %v1145
    %v1181 = vadd.f32 %v1111, %v1145
    %v1182 = vadd.f32 %v1112, %v1145
    %v1183 = vadd.f32 %v1113, %v1145
    %v1184 = vadd.f32 %v1114, %v1145
    %v1185 = vadd.f32 %v1115, %v1145
    %v1186 = vadd.f32 %v1116, %v1145
    %v1187 = vadd.f32 %v1117, %v1145
    %v1188 = vadd.f32 %v1118, %v1145
    %v1189 = vadd.f32 %v1119, %v1145
    %v1190 = vadd.f32 %v1120, %v1145
    %v1191 = vadd.f32 %v1121, %v1145
    %v1192 = vadd.f32 %v1122, %v1145
    %v1193 = vadd.f32 %v1123, %v1145
    %v1194 = vadd.f32 %v1124, %v1145
    %v1195 = vadd.f32 %v1125, %v1145
    %v1196 = vadd.f32 %v1126, %v1145
    %v1197 = vadd.f32 %v1127, %v1145
    %v1198 = vadd.f32 %v1128, %v1145
    %v1199 = vadd.f32 %v1129, %v1145
    %v1200 = vadd.f32 %v1130, %v1145
    %v1201 = vadd.f32 %v1131, %v1145
    %v1202 = vadd.f32 %v1132, %v1145
    %v1203 = vadd.f32 %v1133, %v1145
    %v1204 = vadd.f32 %v1134, %v1145
    %v1205 = vadd.f32 %v1135, %v1145
    %v1206 = vadd.f32 %v1136, %v1145
    %v1207 = vadd.f32 %v1137, %v1145
    %v1208 = vadd.f32 %v1138, %v1145
    %v1209 = vadd.f32 %v1139, %v1145
    %v1210 = vadd.f32 %v1140, %v1145
    %v1211 = vmax.f32 %v1147, 0.0
    %v1212 = vmax.f32 %v1148, 0.0
    %v1213 = vmax.f32 %v1149, 0.0
    %v1214 = vmax.f32 %v1150, 0.0
    %v1215 = vmax.f32 %v1151, 0.0
    %v1216 = vmax.f32 %v1152, 0.0
    %v1217 = vmax.f32 %v1153, 0.0
    %v1218 = vmax.f32 %v1154, 0.0
    %v1219 = vmax.f32 %v1155, 0.0
    %v1220 = vmax.f32 %v1156, 0.0
    %v1221 = vmax.f32 %v1157, 0.0
    %v1222 = vmax.f32 %v1158, 0.0
    %v1223 = vmax.f32 %v1159, 0.0
    %v1224 = vmax.f32 %v1160, 0.0
    %v1225 = vmax.f32 %v1161, 0.0
    %v1226 = vmax.f32 %v1162, 0.0
    %v1227 = vmax.f32 %v1163, 0.0
    %v1228 = vmax.f32 %v1164, 0.0
    %v1229 = vmax.f32 %v1165, 0.0
    %v1230 = vmax.f32 %v1166, 0.0
    %v1231 = vmax.f32 %v1167, 0.0
    %v1232 = vmax.f32 %v1168, 0.0
    %v1233 = vmax.f32 %v1169, 0.0
    %v1234 = vmax.f32 %v1170, 0.0
    %v1235 = vmax.f32 %v1171, 0.0
    %v1236 = vmax.f32 %v1172, 0.0
    %v1237 = vmax.f32 %v1173, 0.0
    %v1238 = vmax.f32 %v1174, 0.0
    %v1239 = vmax.f32 %v1175, 0.0
    %v1240 = vmax.f32 %v1176, 0.0
    %v1241 = vmax.f32 %v1177, 0.0
    %v1242 = vmax.f32 %v1178, 0.0
    %v1243 = vmax.f32 %v1179, 0.0
    %v1244 = vmax.f32 %v1180, 0.0
    %v1245 = vmax.f32 %v1181, 0.0
    %v1246 = vmax.f32 %v1182, 0.0
    %v1247 = vmax.f32 %v1183, 0.0
    %v1248 = vmax.f32 %v1184, 0.0
    %v1249 = vmax.f32 %v1185, 0.0
    %v1250 = vmax.f32 %v1186, 0.0
    %v1251 = vmax.f32 %v1187, 0.0
    %v1252 = vmax.f32 %v1188, 0.0
    %v1253 = vmax.f32 %v1189, 0.0
    %v1254 = vmax.f32 %v1190, 0.0
    %v1255 = vmax.f32 %v1191, 0.0
    %v1256 = vmax.f32 %v1192, 0.0
    %v1257 = vmax.f32 %v1193, 0.0
    %v1258 = vmax.f32 %v1194, 0.0
    %v1259 = vmax.f32 %v1195, 0.0
    %v1260 = vmax.f32 %v1196, 0.0
    %v1261 = vmax.f32 %v1197, 0.0
    %v1262 = vmax.f32 %v1198, 0.0
    %v1263 = vmax.f32 %v1199, 0.0
    %v1264 = vmax.f32 %v1200, 0.0
    %v1265 = vmax.f32 %v1201, 0.0
    %v1266 = vmax.f32 %v1202, 0.0
    %v1267 = vmax.f32 %v1203, 0.0
    %v1268 = vmax.f32 %v1204, 0.0
    %v1269 = vmax.f32 %v1205, 0.0
    %v1270 = vmax.f32 %v1206, 0.0
    %v1271 = vmax.f32 %v1207, 0.0
    %v1272 = vmax.f32 %v1208, 0.0
    %v1273 = vmax.f32 %v1209, 0.0
    %v1274 = vmax.f32 %v1210, 0.0
    %v1275 = vpack.c.bf16 %v1212, %v1211
    %v1276 = vpack.c.bf16 %v1214, %v1213
    %v1277 = vpack.c.bf16 %v1216, %v1215
    %v1278 = vpack.c.bf16 %v1218, %v1217
    %v1279 = vpack.c.bf16 %v1220, %v1219
    %v1280 = vpack.c.bf16 %v1222, %v1221
    %v1281 = vpack.c.bf16 %v1224, %v1223
    %v1282 = vpack.c.bf16 %v1226, %v1225
    %v1283 = vpack.c.bf16 %v1228, %v1227
    %v1284 = vpack.c.bf16 %v1230, %v1229
    %v1285 = vpack.c.bf16 %v1232, %v1231
    %v1286 = vpack.c.bf16 %v1234, %v1233
    %v1287 = vpack.c.bf16 %v1236, %v1235
    %v1288 = vpack.c.bf16 %v1238, %v1237
    %v1289 = vpack.c.bf16 %v1240, %v1239
    %v1290 = vpack.c.bf16 %v1242, %v1241
    %v1291 = vpack.c.bf16 %v1244, %v1243
    %v1292 = vpack.c.bf16 %v1246, %v1245
    %v1293 = vpack.c.bf16 %v1248, %v1247
    %v1294 = vpack.c.bf16 %v1250, %v1249
    %v1295 = vpack.c.bf16 %v1252, %v1251
    %v1296 = vpack.c.bf16 %v1254, %v1253
    %v1297 = vpack.c.bf16 %v1256, %v1255
    %v1298 = vpack.c.bf16 %v1258, %v1257
    %v1299 = vpack.c.bf16 %v1260, %v1259
    %v1300 = vpack.c.bf16 %v1262, %v1261
    %v1301 = vpack.c.bf16 %v1264, %v1263
    %v1302 = vpack.c.bf16 %v1266, %v1265
    %v1303 = vpack.c.bf16 %v1268, %v1267
    %v1304 = vpack.c.bf16 %v1270, %v1269
    %v1305 = vpack.c.bf16 %v1272, %v1271
    %v1306 = vpack.c.bf16 %v1274, %v1273
    %v1307 = vlaneseq
    %v1308 = vshrl.u32 %v1307, 7
    %v1309 = vadd.s32 %v1308, 8
    %v1310 = vadd.s32 %v1308, 16
    %v1311 = vadd.s32 %v1308, 24
    %v1312 = vadd.s32 %v1308, 32
    %v1313 = vadd.s32 %v1308, 40
    %v1314 = vadd.s32 %v1308, 48
    %v1315 = vadd.s32 %v1308, 56
    %v1316 = vadd.s32 %v1308, 64
    %v1317 = vadd.s32 %v1308, 72
    %v1318 = vadd.s32 %v1308, 80
    %v1319 = vadd.s32 %v1308, 88
    %v1320 = vadd.s32 %v1308, 96
    %v1321 = vadd.s32 %v1308, 104
    %v1322 = vadd.s32 %v1308, 112
    %v1323 = vadd.s32 %v1308, 120
    %v1324 = vlaneseq
    %v1325 = vand.u32 %v1324, 127
    %v1326 = vadd.s32 %v1325, 128
    %v1327 = vadd.s32 %v1325, 256
    %v1328 = vadd.s32 %v1325, 384
    %v1329 = vshra.s32 %v1308, 6
    %v1330 = vshra.s32 %v1309, 6
    %v1331 = vshra.s32 %v1310, 6
    %v1332 = vshra.s32 %v1311, 6
    %v1333 = vshra.s32 %v1312, 6
    %v1334 = vshra.s32 %v1313, 6
    %v1335 = vshra.s32 %v1314, 6
    %v1336 = vshra.s32 %v1315, 6
    %v1337 = vshra.s32 %v1316, 6
    %v1338 = vshra.s32 %v1317, 6
    %v1339 = vshra.s32 %v1318, 6
    %v1340 = vshra.s32 %v1319, 6
    %v1341 = vshra.s32 %v1320, 6
    %v1342 = vshra.s32 %v1321, 6
    %v1343 = vshra.s32 %v1322, 6
    %v1344 = vshra.s32 %v1323, 6
    %v1345 = vand.u32 %v1308, 63
    %v1346 = vand.u32 %v1309, 63
    %v1347 = vand.u32 %v1310, 63
    %v1348 = vand.u32 %v1311, 63
    %v1349 = vand.u32 %v1312, 63
    %v1350 = vand.u32 %v1313, 63
    %v1351 = vand.u32 %v1314, 63
    %v1352 = vand.u32 %v1315, 63
    %v1353 = vand.u32 %v1316, 63
    %v1354 = vand.u32 %v1317, 63
    %v1355 = vand.u32 %v1318, 63
    %v1356 = vand.u32 %v1319, 63
    %v1357 = vand.u32 %v1320, 63
    %v1358 = vand.u32 %v1321, 63
    %v1359 = vand.u32 %v1322, 63
    %v1360 = vand.u32 %v1323, 63
    %v1361 = vshra.s32 %v1345, 3
    %v1362 = vshra.s32 %v1346, 3
    %v1363 = vshra.s32 %v1347, 3
    %v1364 = vshra.s32 %v1348, 3
    %v1365 = vshra.s32 %v1349, 3
    %v1366 = vshra.s32 %v1350, 3
    %v1367 = vshra.s32 %v1351, 3
    %v1368 = vshra.s32 %v1352, 3
    %v1369 = vshra.s32 %v1353, 3
    %v1370 = vshra.s32 %v1354, 3
    %v1371 = vshra.s32 %v1355, 3
    %v1372 = vshra.s32 %v1356, 3
    %v1373 = vshra.s32 %v1357, 3
    %v1374 = vshra.s32 %v1358, 3
    %v1375 = vshra.s32 %v1359, 3
    %v1376 = vshra.s32 %v1360, 3
    %v1377 = vand.u32 %v1345, 7
    %v1378 = vand.u32 %v1346, 7
    %v1379 = vand.u32 %v1347, 7
    %v1380 = vand.u32 %v1348, 7
    %v1381 = vand.u32 %v1349, 7
    %v1382 = vand.u32 %v1350, 7
    %v1383 = vand.u32 %v1351, 7
    %v1384 = vand.u32 %v1352, 7
    %v1385 = vand.u32 %v1353, 7
    %v1386 = vand.u32 %v1354, 7
    %v1387 = vand.u32 %v1355, 7
    %v1388 = vand.u32 %v1356, 7
    %v1389 = vand.u32 %v1357, 7
    %v1390 = vand.u32 %v1358, 7
    %v1391 = vand.u32 %v1359, 7
    %v1392 = vand.u32 %v1360, 7
    %v1393 = vshll.u32 %v1329, 8
    %v1394 = vshll.u32 %v1330, 8
    %v1395 = vshll.u32 %v1331, 8
    %v1396 = vshll.u32 %v1332, 8
    %v1397 = vshll.u32 %v1333, 8
    %v1398 = vshll.u32 %v1334, 8
    %v1399 = vshll.u32 %v1335, 8
    %v1400 = vshll.u32 %v1336, 8
    %v1401 = vshll.u32 %v1337, 8
    %v1402 = vshll.u32 %v1338, 8
    %v1403 = vshll.u32 %v1339, 8
    %v1404 = vshll.u32 %v1340, 8
    %v1405 = vshll.u32 %v1341, 8
    %v1406 = vshll.u32 %v1342, 8
    %v1407 = vshll.u32 %v1343, 8
    %v1408 = vshll.u32 %v1344, 8
    %v1409 = vshll.u32 %v1361, 5
    %v1410 = vshll.u32 %v1362, 5
    %v1411 = vshll.u32 %v1363, 5
    %v1412 = vshll.u32 %v1364, 5
    %v1413 = vshll.u32 %v1365, 5
    %v1414 = vshll.u32 %v1366, 5
    %v1415 = vshll.u32 %v1367, 5
    %v1416 = vshll.u32 %v1368, 5
    %v1417 = vshll.u32 %v1369, 5
    %v1418 = vshll.u32 %v1370, 5
    %v1419 = vshll.u32 %v1371, 5
    %v1420 = vshll.u32 %v1372, 5
    %v1421 = vshll.u32 %v1373, 5
    %v1422 = vshll.u32 %v1374, 5
    %v1423 = vshll.u32 %v1375, 5
    %v1424 = vshll.u32 %v1376, 5
    %v1425 = vadd.s32 %v1393, %v1409
    %v1426 = vadd.s32 %v1394, %v1410
    %v1427 = vadd.s32 %v1395, %v1411
    %v1428 = vadd.s32 %v1396, %v1412
    %v1429 = vadd.s32 %v1397, %v1413
    %v1430 = vadd.s32 %v1398, %v1414
    %v1431 = vadd.s32 %v1399, %v1415
    %v1432 = vadd.s32 %v1400, %v1416
    %v1433 = vadd.s32 %v1401, %v1417
    %v1434 = vadd.s32 %v1402, %v1418
    %v1435 = vadd.s32 %v1403, %v1419
    %v1436 = vadd.s32 %v1404, %v1420
    %v1437 = vadd.s32 %v1405, %v1421
    %v1438 = vadd.s32 %v1406, %v1422
    %v1439 = vadd.s32 %v1407, %v1423
    %v1440 = vadd.s32 %v1408, %v1424
    %v1441 = vshll.u32 %v1377, 1
    %v1442 = vshll.u32 %v1378, 1
    %v1443 = vshll.u32 %v1379, 1
    %v1444 = vshll.u32 %v1380, 1
    %v1445 = vshll.u32 %v1381, 1
    %v1446 = vshll.u32 %v1382, 1
    %v1447 = vshll.u32 %v1383, 1
    %v1448 = vshll.u32 %v1384, 1
    %v1449 = vshll.u32 %v1385, 1
    %v1450 = vshll.u32 %v1386, 1
    %v1451 = vshll.u32 %v1387, 1
    %v1452 = vshll.u32 %v1388, 1
    %v1453 = vshll.u32 %v1389, 1
    %v1454 = vshll.u32 %v1390, 1
    %v1455 = vshll.u32 %v1391, 1
    %v1456 = vshll.u32 %v1392, 1
    %v1457 = vadd.s32 %v1425, %v1441
    %v1458 = vadd.s32 %v1426, %v1442
    %v1459 = vadd.s32 %v1427, %v1443
    %v1460 = vadd.s32 %v1428, %v1444
    %v1461 = vadd.s32 %v1429, %v1445
    %v1462 = vadd.s32 %v1430, %v1446
    %v1463 = vadd.s32 %v1431, %v1447
    %v1464 = vadd.s32 %v1432, %v1448
    %v1465 = vadd.s32 %v1433, %v1449
    %v1466 = vadd.s32 %v1434, %v1450
    %v1467 = vadd.s32 %v1435, %v1451
    %v1468 = vadd.s32 %v1436, %v1452
    %v1469 = vadd.s32 %v1437, %v1453
    %v1470 = vadd.s32 %v1438, %v1454
    %v1471 = vadd.s32 %v1439, %v1455
    %v1472 = vadd.s32 %v1440, %v1456
    %v1473 = vsub.s32 %v1457, 17
    %v1474 = vsub.s32 %v1458, 17
    %v1475 = vsub.s32 %v1459, 17
    %v1476 = vsub.s32 %v1460, 17
    %v1477 = vsub.s32 %v1461, 17
    %v1478 = vsub.s32 %v1462, 17
    %v1479 = vsub.s32 %v1463, 17
    %v1480 = vsub.s32 %v1464, 17
    %v1481 = vsub.s32 %v1465, 17
    %v1482 = vsub.s32 %v1466, 17
    %v1483 = vsub.s32 %v1467, 17
    %v1484 = vsub.s32 %v1468, 17
    %v1485 = vsub.s32 %v1469, 17
    %v1486 = vsub.s32 %v1470, 17
    %v1487 = vsub.s32 %v1471, 17
    %v1488 = vsub.s32 %v1472, 17
    %v1489 = vsub.s32 %v1325, %v1473
    %v1490 = vsub.s32 %v1326, %v1473
    %v1491 = vsub.s32 %v1327, %v1473
    %v1492 = vsub.s32 %v1328, %v1473
    %v1493 = vsub.s32 %v1325, %v1474
    %v1494 = vsub.s32 %v1326, %v1474
    %v1495 = vsub.s32 %v1327, %v1474
    %v1496 = vsub.s32 %v1328, %v1474
    %v1497 = vsub.s32 %v1325, %v1475
    %v1498 = vsub.s32 %v1326, %v1475
    %v1499 = vsub.s32 %v1327, %v1475
    %v1500 = vsub.s32 %v1328, %v1475
    %v1501 = vsub.s32 %v1325, %v1476
    %v1502 = vsub.s32 %v1326, %v1476
    %v1503 = vsub.s32 %v1327, %v1476
    %v1504 = vsub.s32 %v1328, %v1476
    %v1505 = vsub.s32 %v1325, %v1477
    %v1506 = vsub.s32 %v1326, %v1477
    %v1507 = vsub.s32 %v1327, %v1477
    %v1508 = vsub.s32 %v1328, %v1477
    %v1509 = vsub.s32 %v1325, %v1478
    %v1510 = vsub.s32 %v1326, %v1478
    %v1511 = vsub.s32 %v1327, %v1478
    %v1512 = vsub.s32 %v1328, %v1478
    %v1513 = vsub.s32 %v1325, %v1479
    %v1514 = vsub.s32 %v1326, %v1479
    %v1515 = vsub.s32 %v1327, %v1479
    %v1516 = vsub.s32 %v1328, %v1479
    %v1517 = vsub.s32 %v1325, %v1480
    %v1518 = vsub.s32 %v1326, %v1480
    %v1519 = vsub.s32 %v1327, %v1480
    %v1520 = vsub.s32 %v1328, %v1480
    %v1521 = vsub.s32 %v1325, %v1481
    %v1522 = vsub.s32 %v1326, %v1481
    %v1523 = vsub.s32 %v1327, %v1481
    %v1524 = vsub.s32 %v1328, %v1481
    %v1525 = vsub.s32 %v1325, %v1482
    %v1526 = vsub.s32 %v1326, %v1482
    %v1527 = vsub.s32 %v1327, %v1482
    %v1528 = vsub.s32 %v1328, %v1482
    %v1529 = vsub.s32 %v1325, %v1483
    %v1530 = vsub.s32 %v1326, %v1483
    %v1531 = vsub.s32 %v1327, %v1483
    %v1532 = vsub.s32 %v1328, %v1483
    %v1533 = vsub.s32 %v1325, %v1484
    %v1534 = vsub.s32 %v1326, %v1484
    %v1535 = vsub.s32 %v1327, %v1484
    %v1536 = vsub.s32 %v1328, %v1484
    %v1537 = vsub.s32 %v1325, %v1485
    %v1538 = vsub.s32 %v1326, %v1485
    %v1539 = vsub.s32 %v1327, %v1485
    %v1540 = vsub.s32 %v1328, %v1485
    %v1541 = vsub.s32 %v1325, %v1486
    %v1542 = vsub.s32 %v1326, %v1486
    %v1543 = vsub.s32 %v1327, %v1486
    %v1544 = vsub.s32 %v1328, %v1486
    %v1545 = vsub.s32 %v1325, %v1487
    %v1546 = vsub.s32 %v1326, %v1487
    %v1547 = vsub.s32 %v1327, %v1487
    %v1548 = vsub.s32 %v1328, %v1487
    %v1549 = vsub.s32 %v1325, %v1488
    %v1550 = vsub.s32 %v1326, %v1488
    %v1551 = vsub.s32 %v1327, %v1488
    %v1552 = vsub.s32 %v1328, %v1488
    %vm1553 = vcmp.gt.s32.totalorder %v1361, 0
    %vm1554 = vcmp.gt.s32.totalorder %v1362, 0
    %vm1555 = vcmp.gt.s32.totalorder %v1363, 0
    %vm1556 = vcmp.gt.s32.totalorder %v1364, 0
    %vm1557 = vcmp.gt.s32.totalorder %v1365, 0
    %vm1558 = vcmp.gt.s32.totalorder %v1366, 0
    %vm1559 = vcmp.gt.s32.totalorder %v1367, 0
    %vm1560 = vcmp.gt.s32.totalorder %v1368, 0
    %vm1561 = vcmp.gt.s32.totalorder %v1369, 0
    %vm1562 = vcmp.gt.s32.totalorder %v1370, 0
    %vm1563 = vcmp.gt.s32.totalorder %v1371, 0
    %vm1564 = vcmp.gt.s32.totalorder %v1372, 0
    %vm1565 = vcmp.gt.s32.totalorder %v1373, 0
    %vm1566 = vcmp.gt.s32.totalorder %v1374, 0
    %vm1567 = vcmp.gt.s32.totalorder %v1375, 0
    %vm1568 = vcmp.gt.s32.totalorder %v1376, 0
    %vm1569 = vcmp.gt.s32.totalorder %v1377, 0
    %vm1570 = vcmp.gt.s32.totalorder %v1378, 0
    %vm1571 = vcmp.gt.s32.totalorder %v1379, 0
    %vm1572 = vcmp.gt.s32.totalorder %v1380, 0
    %vm1573 = vcmp.gt.s32.totalorder %v1381, 0
    %vm1574 = vcmp.gt.s32.totalorder %v1382, 0
    %vm1575 = vcmp.gt.s32.totalorder %v1383, 0
    %vm1576 = vcmp.gt.s32.totalorder %v1384, 0
    %vm1577 = vcmp.gt.s32.totalorder %v1385, 0
    %vm1578 = vcmp.gt.s32.totalorder %v1386, 0
    %vm1579 = vcmp.gt.s32.totalorder %v1387, 0
    %vm1580 = vcmp.gt.s32.totalorder %v1388, 0
    %vm1581 = vcmp.gt.s32.totalorder %v1389, 0
    %vm1582 = vcmp.gt.s32.totalorder %v1390, 0
    %vm1583 = vcmp.gt.s32.totalorder %v1391, 0
    %vm1584 = vcmp.gt.s32.totalorder %v1392, 0
    %vm1585 = vcmp.eq.s32.totalorder %v1489, 0
    %vm1586 = vcmp.eq.s32.totalorder %v1490, 0
    %vm1587 = vcmp.eq.s32.totalorder %v1491, 0
    %vm1588 = vcmp.eq.s32.totalorder %v1492, 0
    %vm1589 = vcmp.eq.s32.totalorder %v1493, 0
    %vm1590 = vcmp.eq.s32.totalorder %v1494, 0
    %vm1591 = vcmp.eq.s32.totalorder %v1495, 0
    %vm1592 = vcmp.eq.s32.totalorder %v1496, 0
    %vm1593 = vcmp.eq.s32.totalorder %v1497, 0
    %vm1594 = vcmp.eq.s32.totalorder %v1498, 0
    %vm1595 = vcmp.eq.s32.totalorder %v1499, 0
    %vm1596 = vcmp.eq.s32.totalorder %v1500, 0
    %vm1597 = vcmp.eq.s32.totalorder %v1501, 0
    %vm1598 = vcmp.eq.s32.totalorder %v1502, 0
    %vm1599 = vcmp.eq.s32.totalorder %v1503, 0
    %vm1600 = vcmp.eq.s32.totalorder %v1504, 0
    %vm1601 = vcmp.eq.s32.totalorder %v1505, 0
    %vm1602 = vcmp.eq.s32.totalorder %v1506, 0
    %vm1603 = vcmp.eq.s32.totalorder %v1507, 0
    %vm1604 = vcmp.eq.s32.totalorder %v1508, 0
    %vm1605 = vcmp.eq.s32.totalorder %v1509, 0
    %vm1606 = vcmp.eq.s32.totalorder %v1510, 0
    %vm1607 = vcmp.eq.s32.totalorder %v1511, 0
    %vm1608 = vcmp.eq.s32.totalorder %v1512, 0
    %vm1609 = vcmp.eq.s32.totalorder %v1513, 0
    %vm1610 = vcmp.eq.s32.totalorder %v1514, 0
    %vm1611 = vcmp.eq.s32.totalorder %v1515, 0
    %vm1612 = vcmp.eq.s32.totalorder %v1516, 0
    %vm1613 = vcmp.eq.s32.totalorder %v1517, 0
    %vm1614 = vcmp.eq.s32.totalorder %v1518, 0
    %vm1615 = vcmp.eq.s32.totalorder %v1519, 0
    %vm1616 = vcmp.eq.s32.totalorder %v1520, 0
    %vm1617 = vcmp.eq.s32.totalorder %v1521, 0
    %vm1618 = vcmp.eq.s32.totalorder %v1522, 0
    %vm1619 = vcmp.eq.s32.totalorder %v1523, 0
    %vm1620 = vcmp.eq.s32.totalorder %v1524, 0
    %vm1621 = vcmp.eq.s32.totalorder %v1525, 0
    %vm1622 = vcmp.eq.s32.totalorder %v1526, 0
    %vm1623 = vcmp.eq.s32.totalorder %v1527, 0
    %vm1624 = vcmp.eq.s32.totalorder %v1528, 0
    %vm1625 = vcmp.eq.s32.totalorder %v1529, 0
    %vm1626 = vcmp.eq.s32.totalorder %v1530, 0
    %vm1627 = vcmp.eq.s32.totalorder %v1531, 0
    %vm1628 = vcmp.eq.s32.totalorder %v1532, 0
    %vm1629 = vcmp.eq.s32.totalorder %v1533, 0
    %vm1630 = vcmp.eq.s32.totalorder %v1534, 0
    %vm1631 = vcmp.eq.s32.totalorder %v1535, 0
    %vm1632 = vcmp.eq.s32.totalorder %v1536, 0
    %vm1633 = vcmp.eq.s32.totalorder %v1537, 0
    %vm1634 = vcmp.eq.s32.totalorder %v1538, 0
    %vm1635 = vcmp.eq.s32.totalorder %v1539, 0
    %vm1636 = vcmp.eq.s32.totalorder %v1540, 0
    %vm1637 = vcmp.eq.s32.totalorder %v1541, 0
    %vm1638 = vcmp.eq.s32.totalorder %v1542, 0
    %vm1639 = vcmp.eq.s32.totalorder %v1543, 0
    %vm1640 = vcmp.eq.s32.totalorder %v1544, 0
    %vm1641 = vcmp.eq.s32.totalorder %v1545, 0
    %vm1642 = vcmp.eq.s32.totalorder %v1546, 0
    %vm1643 = vcmp.eq.s32.totalorder %v1547, 0
    %vm1644 = vcmp.eq.s32.totalorder %v1548, 0
    %vm1645 = vcmp.eq.s32.totalorder %v1549, 0
    %vm1646 = vcmp.eq.s32.totalorder %v1550, 0
    %vm1647 = vcmp.eq.s32.totalorder %v1551, 0
    %vm1648 = vcmp.eq.s32.totalorder %v1552, 0
    %vm1649 = vmand %vm1585, %vm1553
    %vm1650 = vmand %vm1586, %vm1553
    %vm1651 = vmand %vm1587, %vm1553
    %vm1652 = vmand %vm1588, %vm1553
    %vm1653 = vmand %vm1589, %vm1554
    %vm1654 = vmand %vm1590, %vm1554
    %vm1655 = vmand %vm1591, %vm1554
    %vm1656 = vmand %vm1592, %vm1554
    %vm1657 = vmand %vm1593, %vm1555
    %vm1658 = vmand %vm1594, %vm1555
    %vm1659 = vmand %vm1595, %vm1555
    %vm1660 = vmand %vm1596, %vm1555
    %vm1661 = vmand %vm1597, %vm1556
    %vm1662 = vmand %vm1598, %vm1556
    %vm1663 = vmand %vm1599, %vm1556
    %vm1664 = vmand %vm1600, %vm1556
    %vm1665 = vmand %vm1601, %vm1557
    %vm1666 = vmand %vm1602, %vm1557
    %vm1667 = vmand %vm1603, %vm1557
    %vm1668 = vmand %vm1604, %vm1557
    %vm1669 = vmand %vm1605, %vm1558
    %vm1670 = vmand %vm1606, %vm1558
    %vm1671 = vmand %vm1607, %vm1558
    %vm1672 = vmand %vm1608, %vm1558
    %vm1673 = vmand %vm1609, %vm1559
    %vm1674 = vmand %vm1610, %vm1559
    %vm1675 = vmand %vm1611, %vm1559
    %vm1676 = vmand %vm1612, %vm1559
    %vm1677 = vmand %vm1613, %vm1560
    %vm1678 = vmand %vm1614, %vm1560
    %vm1679 = vmand %vm1615, %vm1560
    %vm1680 = vmand %vm1616, %vm1560
    %vm1681 = vmand %vm1617, %vm1561
    %vm1682 = vmand %vm1618, %vm1561
    %vm1683 = vmand %vm1619, %vm1561
    %vm1684 = vmand %vm1620, %vm1561
    %vm1685 = vmand %vm1621, %vm1562
    %vm1686 = vmand %vm1622, %vm1562
    %vm1687 = vmand %vm1623, %vm1562
    %vm1688 = vmand %vm1624, %vm1562
    %vm1689 = vmand %vm1625, %vm1563
    %vm1690 = vmand %vm1626, %vm1563
    %vm1691 = vmand %vm1627, %vm1563
    %vm1692 = vmand %vm1628, %vm1563
    %vm1693 = vmand %vm1629, %vm1564
    %vm1694 = vmand %vm1630, %vm1564
    %vm1695 = vmand %vm1631, %vm1564
    %vm1696 = vmand %vm1632, %vm1564
    %vm1697 = vmand %vm1633, %vm1565
    %vm1698 = vmand %vm1634, %vm1565
    %vm1699 = vmand %vm1635, %vm1565
    %vm1700 = vmand %vm1636, %vm1565
    %vm1701 = vmand %vm1637, %vm1566
    %vm1702 = vmand %vm1638, %vm1566
    %vm1703 = vmand %vm1639, %vm1566
    %vm1704 = vmand %vm1640, %vm1566
    %vm1705 = vmand %vm1641, %vm1567
    %vm1706 = vmand %vm1642, %vm1567
    %vm1707 = vmand %vm1643, %vm1567
    %vm1708 = vmand %vm1644, %vm1567
    %vm1709 = vmand %vm1645, %vm1568
    %vm1710 = vmand %vm1646, %vm1568
    %vm1711 = vmand %vm1647, %vm1568
    %vm1712 = vmand %vm1648, %vm1568
    %vm1713 = vmand %vm1649, %vm1569
    %vm1714 = vmand %vm1650, %vm1569
    %vm1715 = vmand %vm1651, %vm1569
    %vm1716 = vmand %vm1652, %vm1569
    %vm1717 = vmand %vm1653, %vm1570
    %vm1718 = vmand %vm1654, %vm1570
    %vm1719 = vmand %vm1655, %vm1570
    %vm1720 = vmand %vm1656, %vm1570
    %vm1721 = vmand %vm1657, %vm1571
    %vm1722 = vmand %vm1658, %vm1571
    %vm1723 = vmand %vm1659, %vm1571
    %vm1724 = vmand %vm1660, %vm1571
    %vm1725 = vmand %vm1661, %vm1572
    %vm1726 = vmand %vm1662, %vm1572
    %vm1727 = vmand %vm1663, %vm1572
    %vm1728 = vmand %vm1664, %vm1572
    %vm1729 = vmand %vm1665, %vm1573
    %vm1730 = vmand %vm1666, %vm1573
    %vm1731 = vmand %vm1667, %vm1573
    %vm1732 = vmand %vm1668, %vm1573
    %vm1733 = vmand %vm1669, %vm1574
    %vm1734 = vmand %vm1670, %vm1574
    %vm1735 = vmand %vm1671, %vm1574
    %vm1736 = vmand %vm1672, %vm1574
    %vm1737 = vmand %vm1673, %vm1575
    %vm1738 = vmand %vm1674, %vm1575
    %vm1739 = vmand %vm1675, %vm1575
    %vm1740 = vmand %vm1676, %vm1575
    %vm1741 = vmand %vm1677, %vm1576
    %vm1742 = vmand %vm1678, %vm1576
    %vm1743 = vmand %vm1679, %vm1576
    %vm1744 = vmand %vm1680, %vm1576
    %vm1745 = vmand %vm1681, %vm1577
    %vm1746 = vmand %vm1682, %vm1577
    %vm1747 = vmand %vm1683, %vm1577
    %vm1748 = vmand %vm1684, %vm1577
    %vm1749 = vmand %vm1685, %vm1578
    %vm1750 = vmand %vm1686, %vm1578
    %vm1751 = vmand %vm1687, %vm1578
    %vm1752 = vmand %vm1688, %vm1578
    %vm1753 = vmand %vm1689, %vm1579
    %vm1754 = vmand %vm1690, %vm1579
    %vm1755 = vmand %vm1691, %vm1579
    %vm1756 = vmand %vm1692, %vm1579
    %vm1757 = vmand %vm1693, %vm1580
    %vm1758 = vmand %vm1694, %vm1580
    %vm1759 = vmand %vm1695, %vm1580
    %vm1760 = vmand %vm1696, %vm1580
    %vm1761 = vmand %vm1697, %vm1581
    %vm1762 = vmand %vm1698, %vm1581
    %vm1763 = vmand %vm1699, %vm1581
    %vm1764 = vmand %vm1700, %vm1581
    %vm1765 = vmand %vm1701, %vm1582
    %vm1766 = vmand %vm1702, %vm1582
    %vm1767 = vmand %vm1703, %vm1582
    %vm1768 = vmand %vm1704, %vm1582
    %vm1769 = vmand %vm1705, %vm1583
    %vm1770 = vmand %vm1706, %vm1583
    %vm1771 = vmand %vm1707, %vm1583
    %vm1772 = vmand %vm1708, %vm1583
    %vm1773 = vmand %vm1709, %vm1584
    %vm1774 = vmand %vm1710, %vm1584
    %vm1775 = vmand %vm1711, %vm1584
    %vm1776 = vmand %vm1712, %vm1584
    %v1777 = vsel %vm1713, 1.0, 0.0
    %v1778 = vsel %vm1714, 1.0, 0.0
    %v1779 = vsel %vm1715, 1.0, 0.0
    %v1780 = vsel %vm1716, 1.0, 0.0
    %v1781 = vsel %vm1717, 1.0, 0.0
    %v1782 = vsel %vm1718, 1.0, 0.0
    %v1783 = vsel %vm1719, 1.0, 0.0
    %v1784 = vsel %vm1720, 1.0, 0.0
    %v1785 = vsel %vm1721, 1.0, 0.0
    %v1786 = vsel %vm1722, 1.0, 0.0
    %v1787 = vsel %vm1723, 1.0, 0.0
    %v1788 = vsel %vm1724, 1.0, 0.0
    %v1789 = vsel %vm1725, 1.0, 0.0
    %v1790 = vsel %vm1726, 1.0, 0.0
    %v1791 = vsel %vm1727, 1.0, 0.0
    %v1792 = vsel %vm1728, 1.0, 0.0
    %v1793 = vsel %vm1729, 1.0, 0.0
    %v1794 = vsel %vm1730, 1.0, 0.0
    %v1795 = vsel %vm1731, 1.0, 0.0
    %v1796 = vsel %vm1732, 1.0, 0.0
    %v1797 = vsel %vm1733, 1.0, 0.0
    %v1798 = vsel %vm1734, 1.0, 0.0
    %v1799 = vsel %vm1735, 1.0, 0.0
    %v1800 = vsel %vm1736, 1.0, 0.0
    %v1801 = vsel %vm1737, 1.0, 0.0
    %v1802 = vsel %vm1738, 1.0, 0.0
    %v1803 = vsel %vm1739, 1.0, 0.0
    %v1804 = vsel %vm1740, 1.0, 0.0
    %v1805 = vsel %vm1741, 1.0, 0.0
    %v1806 = vsel %vm1742, 1.0, 0.0
    %v1807 = vsel %vm1743, 1.0, 0.0
    %v1808 = vsel %vm1744, 1.0, 0.0
    %v1809 = vsel %vm1745, 1.0, 0.0
    %v1810 = vsel %vm1746, 1.0, 0.0
    %v1811 = vsel %vm1747, 1.0, 0.0
    %v1812 = vsel %vm1748, 1.0, 0.0
    %v1813 = vsel %vm1749, 1.0, 0.0
    %v1814 = vsel %vm1750, 1.0, 0.0
    %v1815 = vsel %vm1751, 1.0, 0.0
    %v1816 = vsel %vm1752, 1.0, 0.0
    %v1817 = vsel %vm1753, 1.0, 0.0
    %v1818 = vsel %vm1754, 1.0, 0.0
    %v1819 = vsel %vm1755, 1.0, 0.0
    %v1820 = vsel %vm1756, 1.0, 0.0
    %v1821 = vsel %vm1757, 1.0, 0.0
    %v1822 = vsel %vm1758, 1.0, 0.0
    %v1823 = vsel %vm1759, 1.0, 0.0
    %v1824 = vsel %vm1760, 1.0, 0.0
    %v1825 = vsel %vm1761, 1.0, 0.0
    %v1826 = vsel %vm1762, 1.0, 0.0
    %v1827 = vsel %vm1763, 1.0, 0.0
    %v1828 = vsel %vm1764, 1.0, 0.0
    %v1829 = vsel %vm1765, 1.0, 0.0
    %v1830 = vsel %vm1766, 1.0, 0.0
    %v1831 = vsel %vm1767, 1.0, 0.0
    %v1832 = vsel %vm1768, 1.0, 0.0
    %v1833 = vsel %vm1769, 1.0, 0.0
    %v1834 = vsel %vm1770, 1.0, 0.0
    %v1835 = vsel %vm1771, 1.0, 0.0
    %v1836 = vsel %vm1772, 1.0, 0.0
    %v1837 = vsel %vm1773, 1.0, 0.0
    %v1838 = vsel %vm1774, 1.0, 0.0
    %v1839 = vsel %vm1775, 1.0, 0.0
    %v1840 = vsel %vm1776, 1.0, 0.0
    %v1841 = vpack.c.bf16 %v1781, %v1777
    %v1842 = vpack.c.bf16 %v1782, %v1778
    %v1843 = vpack.c.bf16 %v1783, %v1779
    %v1844 = vpack.c.bf16 %v1784, %v1780
    %v1845 = vpack.c.bf16 %v1789, %v1785
    %v1846 = vpack.c.bf16 %v1790, %v1786
    %v1847 = vpack.c.bf16 %v1791, %v1787
    %v1848 = vpack.c.bf16 %v1792, %v1788
    %v1849 = vpack.c.bf16 %v1797, %v1793
    %v1850 = vpack.c.bf16 %v1798, %v1794
    %v1851 = vpack.c.bf16 %v1799, %v1795
    %v1852 = vpack.c.bf16 %v1800, %v1796
    %v1853 = vpack.c.bf16 %v1805, %v1801
    %v1854 = vpack.c.bf16 %v1806, %v1802
    %v1855 = vpack.c.bf16 %v1807, %v1803
    %v1856 = vpack.c.bf16 %v1808, %v1804
    %v1857 = vpack.c.bf16 %v1813, %v1809
    %v1858 = vpack.c.bf16 %v1814, %v1810
    %v1859 = vpack.c.bf16 %v1815, %v1811
    %v1860 = vpack.c.bf16 %v1816, %v1812
    %v1861 = vpack.c.bf16 %v1821, %v1817
    %v1862 = vpack.c.bf16 %v1822, %v1818
    %v1863 = vpack.c.bf16 %v1823, %v1819
    %v1864 = vpack.c.bf16 %v1824, %v1820
    %v1865 = vpack.c.bf16 %v1829, %v1825
    %v1866 = vpack.c.bf16 %v1830, %v1826
    %v1867 = vpack.c.bf16 %v1831, %v1827
    %v1868 = vpack.c.bf16 %v1832, %v1828
    %v1869 = vpack.c.bf16 %v1837, %v1833
    %v1870 = vpack.c.bf16 %v1838, %v1834
    %v1871 = vpack.c.bf16 %v1839, %v1835
    %v1872 = vpack.c.bf16 %v1840, %v1836
    %1873 = vmatprep.subr.bf16.mxu0 0
    %1874 = vmatpush1.bf16.msra.mxu0 %v1275
    %1875 = vmatprep.subr.bf16.mxu0 0
    %1876 = vmatpush1.bf16.msra.mxu0 %v1276
    %1877 = vmatprep.subr.bf16.mxu0 0
    %1878 = vmatpush1.bf16.msra.mxu0 %v1277
    %1879 = vmatprep.subr.bf16.mxu0 0
    %1880 = vmatpush1.bf16.msra.mxu0 %v1278
    %1881 = vmatprep.subr.bf16.mxu0 0
    %1882 = vmatpush1.bf16.msra.mxu0 %v1279
    %1883 = vmatprep.subr.bf16.mxu0 0
    %1884 = vmatpush1.bf16.msra.mxu0 %v1280
    %1885 = vmatprep.subr.bf16.mxu0 0
    %1886 = vmatpush1.bf16.msra.mxu0 %v1281
    %1887 = vmatprep.subr.bf16.mxu0 0
    %1888 = vmatpush1.bf16.msra.mxu0 %v1282
    %1889 = vmatprep.subr.bf16.mxu0 0
    %1890 = vmatpush1.bf16.msra.mxu0 %v1283
    %1891 = vmatprep.subr.bf16.mxu0 0
    %1892 = vmatpush1.bf16.msra.mxu0 %v1284
    %1893 = vmatprep.subr.bf16.mxu0 0
    %1894 = vmatpush1.bf16.msra.mxu0 %v1285
    %1895 = vmatprep.subr.bf16.mxu0 0
    %1896 = vmatpush1.bf16.msra.mxu0 %v1286
    %1897 = vmatprep.subr.bf16.mxu0 0
    %1898 = vmatpush1.bf16.msra.mxu0 %v1287
    %1899 = vmatprep.subr.bf16.mxu0 0
    %1900 = vmatpush1.bf16.msra.mxu0 %v1288
    %1901 = vmatprep.subr.bf16.mxu0 0
    %1902 = vmatpush1.bf16.msra.mxu0 %v1289
    %1903 = vmatprep.subr.bf16.mxu0 0
    %1904 = vmatpush1.bf16.msra.mxu0 %v1290
    %1905 = vmatprep.mubr.bf16.mxu0 %v1842
    %1906 = vmatmul.mubr.bf16.gmra.mrb[0].mxu0 %v1841
    %v1907 = vpop.f32.mrb[0].mxu0
    %v1908 = vadd.f32 0.0, %v1907
    %v1909 = vpop.f32.mrb[0].mxu0
    %v1910 = vpop.f32.mrb[0].mxu0
    %v1911 = vadd.f32 0.0, %v1910
    %v1912 = vpop.f32.mrb[0].mxu0
    %1913 = vmatprep.mubr.bf16.mxu0 %v1846
    %1914 = vmatmul.mubr.bf16.gmra.mrb[0].mxu0 %v1845
    %v1915 = vpop.f32.mrb[0].mxu0
    %v1916 = vadd.f32 0.0, %v1915
    %v1917 = vpop.f32.mrb[0].mxu0
    %v1918 = vpop.f32.mrb[0].mxu0
    %v1919 = vadd.f32 0.0, %v1918
    %v1920 = vpop.f32.mrb[0].mxu0
    %1921 = vmatprep.mubr.bf16.mxu0 %v1850
    %1922 = vmatmul.mubr.bf16.gmra.mrb[0].mxu0 %v1849
    %v1923 = vpop.f32.mrb[0].mxu0
    %v1924 = vadd.f32 0.0, %v1923
    %v1925 = vpop.f32.mrb[0].mxu0
    %v1926 = vpop.f32.mrb[0].mxu0
    %v1927 = vadd.f32 0.0, %v1926
    %v1928 = vpop.f32.mrb[0].mxu0
    %1929 = vmatprep.mubr.bf16.mxu0 %v1854
    %1930 = vmatmul.mubr.bf16.gmra.mrb[0].mxu0 %v1853
    %v1931 = vpop.f32.mrb[0].mxu0
    %v1932 = vadd.f32 0.0, %v1931
    %v1933 = vpop.f32.mrb[0].mxu0
    %v1934 = vpop.f32.mrb[0].mxu0
    %v1935 = vadd.f32 0.0, %v1934
    %v1936 = vpop.f32.mrb[0].mxu0
    %1937 = vmatprep.mubr.bf16.mxu0 %v1858
    %1938 = vmatmul.mubr.bf16.gmra.mrb[0].mxu0 %v1857
    %v1939 = vpop.f32.mrb[0].mxu0
    %v1940 = vadd.f32 0.0, %v1939
    %v1941 = vpop.f32.mrb[0].mxu0
    %v1942 = vpop.f32.mrb[0].mxu0
    %v1943 = vadd.f32 0.0, %v1942
    %v1944 = vpop.f32.mrb[0].mxu0
    %1945 = vmatprep.mubr.bf16.mxu0 %v1862
    %1946 = vmatmul.mubr.bf16.gmra.mrb[0].mxu0 %v1861
    %v1947 = vpop.f32.mrb[0].mxu0
    %v1948 = vadd.f32 0.0, %v1947
    %v1949 = vpop.f32.mrb[0].mxu0
    %v1950 = vpop.f32.mrb[0].mxu0
    %v1951 = vadd.f32 0.0, %v1950
    %v1952 = vpop.f32.mrb[0].mxu0
    %1953 = vmatprep.mubr.bf16.mxu0 %v1866
    %1954 = vmatmul.mubr.bf16.gmra.mrb[0].mxu0 %v1865
    %v1955 = vpop.f32.mrb[0].mxu0
    %v1956 = vadd.f32 0.0, %v1955
    %v1957 = vpop.f32.mrb[0].mxu0
    %v1958 = vpop.f32.mrb[0].mxu0
    %v1959 = vadd.f32 0.0, %v1958
    %v1960 = vpop.f32.mrb[0].mxu0
    %1961 = vmatprep.mubr.bf16.mxu0 %v1870
    %1962 = vmatmul.mubr.bf16.gmra.mrb[0].mxu0 %v1869
    %v1963 = vpop.f32.mrb[0].mxu0
    %v1964 = vadd.f32 0.0, %v1963
    %v1965 = vpop.f32.mrb[0].mxu0
    %v1966 = vpop.f32.mrb[0].mxu0
    %v1967 = vadd.f32 0.0, %v1966
    %v1968 = vpop.f32.mrb[0].mxu0
    %1969 = vdwg.mxu0
    %1970 = vmatprep.subr.bf16.mxu0 0
    %1971 = vmatpush1.bf16.msra.mxu0 %v1291
    %1972 = vmatprep.subr.bf16.mxu0 0
    %1973 = vmatpush1.bf16.msra.mxu0 %v1292
    %1974 = vmatprep.subr.bf16.mxu0 0
    %1975 = vmatpush1.bf16.msra.mxu0 %v1293
    %1976 = vmatprep.subr.bf16.mxu0 0
    %1977 = vmatpush1.bf16.msra.mxu0 %v1294
    %1978 = vmatprep.subr.bf16.mxu0 0
    %1979 = vmatpush1.bf16.msra.mxu0 %v1295
    %1980 = vmatprep.subr.bf16.mxu0 0
    %1981 = vmatpush1.bf16.msra.mxu0 %v1296
    %1982 = vmatprep.subr.bf16.mxu0 0
    %1983 = vmatpush1.bf16.msra.mxu0 %v1297
    %1984 = vmatprep.subr.bf16.mxu0 0
    %1985 = vmatpush1.bf16.msra.mxu0 %v1298
    %1986 = vmatprep.subr.bf16.mxu0 0
    %1987 = vmatpush1.bf16.msra.mxu0 %v1299
    %1988 = vmatprep.subr.bf16.mxu0 0
    %1989 = vmatpush1.bf16.msra.mxu0 %v1300
    %1990 = vmatprep.subr.bf16.mxu0 0
    %1991 = vmatpush1.bf16.msra.mxu0 %v1301
    %1992 = vmatprep.subr.bf16.mxu0 0
    %1993 = vmatpush1.bf16.msra.mxu0 %v1302
    %1994 = vmatprep.subr.bf16.mxu0 0
    %1995 = vmatpush1.bf16.msra.mxu0 %v1303
    %1996 = vmatprep.subr.bf16.mxu0 0
    %1997 = vmatpush1.bf16.msra.mxu0 %v1304
    %1998 = vmatprep.subr.bf16.mxu0 0
    %1999 = vmatpush1.bf16.msra.mxu0 %v1305
    %2000 = vmatprep.subr.bf16.mxu0 0
    %2001 = vmatpush1.bf16.msra.mxu0 %v1306
    %2002 = vmatprep.mubr.bf16.mxu0 %v1844
    %2003 = vmatmul.mubr.bf16.gmra.mrb[0].mxu0 %v1843
    %v2004 = vpop.f32.mrb[0].mxu0
    %v2005 = vadd.f32 %v1908, %v2004
    %v2006 = vpop.f32.mrb[0].mxu0
    %v2007 = vpop.f32.mrb[0].mxu0
    %v2008 = vadd.f32 %v1911, %v2007
    %v2009 = vpop.f32.mrb[0].mxu0
    %2010 = vmatprep.mubr.bf16.mxu0 %v1848
    %2011 = vmatmul.mubr.bf16.gmra.mrb[0].mxu0 %v1847
    %v2012 = vpop.f32.mrb[0].mxu0
    %v2013 = vadd.f32 %v1916, %v2012
    %v2014 = vpop.f32.mrb[0].mxu0
    %v2015 = vpop.f32.mrb[0].mxu0
    %v2016 = vadd.f32 %v1919, %v2015
    %v2017 = vpop.f32.mrb[0].mxu0
    %2018 = vmatprep.mubr.bf16.mxu0 %v1852
    %2019 = vmatmul.mubr.bf16.gmra.mrb[0].mxu0 %v1851
    %v2020 = vpop.f32.mrb[0].mxu0
    %v2021 = vadd.f32 %v1924, %v2020
    %v2022 = vpop.f32.mrb[0].mxu0
    %v2023 = vpop.f32.mrb[0].mxu0
    %v2024 = vadd.f32 %v1927, %v2023
    %v2025 = vpop.f32.mrb[0].mxu0
    %2026 = vmatprep.mubr.bf16.mxu0 %v1856
    %2027 = vmatmul.mubr.bf16.gmra.mrb[0].mxu0 %v1855
    %v2028 = vpop.f32.mrb[0].mxu0
    %v2029 = vadd.f32 %v1932, %v2028
    %v2030 = vpop.f32.mrb[0].mxu0
    %v2031 = vpop.f32.mrb[0].mxu0
    %v2032 = vadd.f32 %v1935, %v2031
    %v2033 = vpop.f32.mrb[0].mxu0
    %2034 = vmatprep.mubr.bf16.mxu0 %v1860
    %2035 = vmatmul.mubr.bf16.gmra.mrb[0].mxu0 %v1859
    %v2036 = vpop.f32.mrb[0].mxu0
    %v2037 = vadd.f32 %v1940, %v2036
    %v2038 = vpop.f32.mrb[0].mxu0
    %v2039 = vpop.f32.mrb[0].mxu0
    %v2040 = vadd.f32 %v1943, %v2039
    %v2041 = vpop.f32.mrb[0].mxu0
    %2042 = vmatprep.mubr.bf16.mxu0 %v1864
    %2043 = vmatmul.mubr.bf16.gmra.mrb[0].mxu0 %v1863
    %v2044 = vpop.f32.mrb[0].mxu0
    %v2045 = vadd.f32 %v1948, %v2044
    %v2046 = vpop.f32.mrb[0].mxu0
    %v2047 = vpop.f32.mrb[0].mxu0
    %v2048 = vadd.f32 %v1951, %v2047
    %v2049 = vpop.f32.mrb[0].mxu0
    %2050 = vmatprep.mubr.bf16.mxu0 %v1868
    %2051 = vmatmul.mubr.bf16.gmra.mrb[0].mxu0 %v1867
    %v2052 = vpop.f32.mrb[0].mxu0
    %v2053 = vadd.f32 %v1956, %v2052
    %v2054 = vpop.f32.mrb[0].mxu0
    %v2055 = vpop.f32.mrb[0].mxu0
    %v2056 = vadd.f32 %v1959, %v2055
    %v2057 = vpop.f32.mrb[0].mxu0
    %2058 = vmatprep.mubr.bf16.mxu0 %v1872
    %2059 = vmatmul.mubr.bf16.gmra.mrb[0].mxu0 %v1871
    %v2060 = vpop.f32.mrb[0].mxu0
    %v2061 = vadd.f32 %v1964, %v2060
    %v2062 = vpop.f32.mrb[0].mxu0
    %v2063 = vpop.f32.mrb[0].mxu0
    %v2064 = vadd.f32 %v1967, %v2063
    %v2065 = vpop.f32.mrb[0].mxu0
    %2066 = vdwg.mxu0
    %v2067 = vpack.c.bf16 %v2008, %v2005
    %v2068 = vpack.c.bf16 %v2016, %v2013
    %v2069 = vpack.c.bf16 %v2024, %v2021
    %v2070 = vpack.c.bf16 %v2032, %v2029
    %v2071 = vpack.c.bf16 %v2040, %v2037
    %v2072 = vpack.c.bf16 %v2048, %v2045
    %v2073 = vpack.c.bf16 %v2056, %v2053
    %v2074 = vpack.c.bf16 %v2064, %v2061
    %v2075 = vld [vmem:[%s4] sm:$0xf]
    %v2076 = vld [vmem:[%s4 + $0x4] sm:$0xf]
    %vm2077 = vcmp.eq.s32.totalorder %v1489, 1
    %vm2078 = vcmp.eq.s32.totalorder %v1490, 1
    %vm2079 = vcmp.eq.s32.totalorder %v1491, 1
    %vm2080 = vcmp.eq.s32.totalorder %v1492, 1
    %vm2081 = vcmp.eq.s32.totalorder %v1493, 1
    %vm2082 = vcmp.eq.s32.totalorder %v1494, 1
    %vm2083 = vcmp.eq.s32.totalorder %v1495, 1
    %vm2084 = vcmp.eq.s32.totalorder %v1496, 1
    %vm2085 = vcmp.eq.s32.totalorder %v1497, 1
    %vm2086 = vcmp.eq.s32.totalorder %v1498, 1
    %vm2087 = vcmp.eq.s32.totalorder %v1499, 1
    %vm2088 = vcmp.eq.s32.totalorder %v1500, 1
    %vm2089 = vcmp.eq.s32.totalorder %v1501, 1
    %vm2090 = vcmp.eq.s32.totalorder %v1502, 1
    %vm2091 = vcmp.eq.s32.totalorder %v1503, 1
    %vm2092 = vcmp.eq.s32.totalorder %v1504, 1
    %vm2093 = vcmp.eq.s32.totalorder %v1505, 1
    %vm2094 = vcmp.eq.s32.totalorder %v1506, 1
    %vm2095 = vcmp.eq.s32.totalorder %v1507, 1
    %vm2096 = vcmp.eq.s32.totalorder %v1508, 1
    %vm2097 = vcmp.eq.s32.totalorder %v1509, 1
    %vm2098 = vcmp.eq.s32.totalorder %v1510, 1
    %vm2099 = vcmp.eq.s32.totalorder %v1511, 1
    %vm2100 = vcmp.eq.s32.totalorder %v1512, 1
    %vm2101 = vcmp.eq.s32.totalorder %v1513, 1
    %vm2102 = vcmp.eq.s32.totalorder %v1514, 1
    %vm2103 = vcmp.eq.s32.totalorder %v1515, 1
    %vm2104 = vcmp.eq.s32.totalorder %v1516, 1
    %vm2105 = vcmp.eq.s32.totalorder %v1517, 1
    %vm2106 = vcmp.eq.s32.totalorder %v1518, 1
    %vm2107 = vcmp.eq.s32.totalorder %v1519, 1
    %vm2108 = vcmp.eq.s32.totalorder %v1520, 1
    %vm2109 = vcmp.eq.s32.totalorder %v1521, 1
    %vm2110 = vcmp.eq.s32.totalorder %v1522, 1
    %vm2111 = vcmp.eq.s32.totalorder %v1523, 1
    %vm2112 = vcmp.eq.s32.totalorder %v1524, 1
    %vm2113 = vcmp.eq.s32.totalorder %v1525, 1
    %vm2114 = vcmp.eq.s32.totalorder %v1526, 1
    %vm2115 = vcmp.eq.s32.totalorder %v1527, 1
    %vm2116 = vcmp.eq.s32.totalorder %v1528, 1
    %vm2117 = vcmp.eq.s32.totalorder %v1529, 1
    %vm2118 = vcmp.eq.s32.totalorder %v1530, 1
    %vm2119 = vcmp.eq.s32.totalorder %v1531, 1
    %vm2120 = vcmp.eq.s32.totalorder %v1532, 1
    %vm2121 = vcmp.eq.s32.totalorder %v1533, 1
    %vm2122 = vcmp.eq.s32.totalorder %v1534, 1
    %vm2123 = vcmp.eq.s32.totalorder %v1535, 1
    %vm2124 = vcmp.eq.s32.totalorder %v1536, 1
    %vm2125 = vcmp.eq.s32.totalorder %v1537, 1
    %vm2126 = vcmp.eq.s32.totalorder %v1538, 1
    %vm2127 = vcmp.eq.s32.totalorder %v1539, 1
    %vm2128 = vcmp.eq.s32.totalorder %v1540, 1
    %vm2129 = vcmp.eq.s32.totalorder %v1541, 1
    %vm2130 = vcmp.eq.s32.totalorder %v1542, 1
    %vm2131 = vcmp.eq.s32.totalorder %v1543, 1
    %vm2132 = vcmp.eq.s32.totalorder %v1544, 1
    %vm2133 = vcmp.eq.s32.totalorder %v1545, 1
    %vm2134 = vcmp.eq.s32.totalorder %v1546, 1
    %vm2135 = vcmp.eq.s32.totalorder %v1547, 1
    %vm2136 = vcmp.eq.s32.totalorder %v1548, 1
    %vm2137 = vcmp.eq.s32.totalorder %v1549, 1
    %vm2138 = vcmp.eq.s32.totalorder %v1550, 1
    %vm2139 = vcmp.eq.s32.totalorder %v1551, 1
    %vm2140 = vcmp.eq.s32.totalorder %v1552, 1
    %vm2141 = vmand %vm2077, %vm1553
    %vm2142 = vmand %vm2078, %vm1553
    %vm2143 = vmand %vm2079, %vm1553
    %vm2144 = vmand %vm2080, %vm1553
    %vm2145 = vmand %vm2081, %vm1554
    %vm2146 = vmand %vm2082, %vm1554
    %vm2147 = vmand %vm2083, %vm1554
    %vm2148 = vmand %vm2084, %vm1554
    %vm2149 = vmand %vm2085, %vm1555
    %vm2150 = vmand %vm2086, %vm1555
    %vm2151 = vmand %vm2087, %vm1555
    %vm2152 = vmand %vm2088, %vm1555
    %vm2153 = vmand %vm2089, %vm1556
    %vm2154 = vmand %vm2090, %vm1556
    %vm2155 = vmand %vm2091, %vm1556
    %vm2156 = vmand %vm2092, %vm1556
    %vm2157 = vmand %vm2093, %vm1557
    %vm2158 = vmand %vm2094, %vm1557
    %vm2159 = vmand %vm2095, %vm1557
    %vm2160 = vmand %vm2096, %vm1557
    %vm2161 = vmand %vm2097, %vm1558
    %vm2162 = vmand %vm2098, %vm1558
    %vm2163 = vmand %vm2099, %vm1558
    %vm2164 = vmand %vm2100, %vm1558
    %vm2165 = vmand %vm2101, %vm1559
    %vm2166 = vmand %vm2102, %vm1559
    %vm2167 = vmand %vm2103, %vm1559
    %vm2168 = vmand %vm2104, %vm1559
    %vm2169 = vmand %vm2105, %vm1560
    %vm2170 = vmand %vm2106, %vm1560
    %vm2171 = vmand %vm2107, %vm1560
    %vm2172 = vmand %vm2108, %vm1560
    %vm2173 = vmand %vm2109, %vm1561
    %vm2174 = vmand %vm2110, %vm1561
    %vm2175 = vmand %vm2111, %vm1561
    %vm2176 = vmand %vm2112, %vm1561
    %vm2177 = vmand %vm2113, %vm1562
    %vm2178 = vmand %vm2114, %vm1562
    %vm2179 = vmand %vm2115, %vm1562
    %vm2180 = vmand %vm2116, %vm1562
    %vm2181 = vmand %vm2117, %vm1563
    %vm2182 = vmand %vm2118, %vm1563
    %vm2183 = vmand %vm2119, %vm1563
    %vm2184 = vmand %vm2120, %vm1563
    %vm2185 = vmand %vm2121, %vm1564
    %vm2186 = vmand %vm2122, %vm1564
    %vm2187 = vmand %vm2123, %vm1564
    %vm2188 = vmand %vm2124, %vm1564
    %vm2189 = vmand %vm2125, %vm1565
    %vm2190 = vmand %vm2126, %vm1565
    %vm2191 = vmand %vm2127, %vm1565
    %vm2192 = vmand %vm2128, %vm1565
    %vm2193 = vmand %vm2129, %vm1566
    %vm2194 = vmand %vm2130, %vm1566
    %vm2195 = vmand %vm2131, %vm1566
    %vm2196 = vmand %vm2132, %vm1566
    %vm2197 = vmand %vm2133, %vm1567
    %vm2198 = vmand %vm2134, %vm1567
    %vm2199 = vmand %vm2135, %vm1567
    %vm2200 = vmand %vm2136, %vm1567
    %vm2201 = vmand %vm2137, %vm1568
    %vm2202 = vmand %vm2138, %vm1568
    %vm2203 = vmand %vm2139, %vm1568
    %vm2204 = vmand %vm2140, %vm1568
    %v2205 = vsel %vm2141, 1.0, 0.0
    %v2206 = vsel %vm2142, 1.0, 0.0
    %v2207 = vsel %vm2143, 1.0, 0.0
    %v2208 = vsel %vm2144, 1.0, 0.0
    %v2209 = vsel %vm2145, 1.0, 0.0
    %v2210 = vsel %vm2146, 1.0, 0.0
    %v2211 = vsel %vm2147, 1.0, 0.0
    %v2212 = vsel %vm2148, 1.0, 0.0
    %v2213 = vsel %vm2149, 1.0, 0.0
    %v2214 = vsel %vm2150, 1.0, 0.0
    %v2215 = vsel %vm2151, 1.0, 0.0
    %v2216 = vsel %vm2152, 1.0, 0.0
    %v2217 = vsel %vm2153, 1.0, 0.0
    %v2218 = vsel %vm2154, 1.0, 0.0
    %v2219 = vsel %vm2155, 1.0, 0.0
    %v2220 = vsel %vm2156, 1.0, 0.0
    %v2221 = vsel %vm2157, 1.0, 0.0
    %v2222 = vsel %vm2158, 1.0, 0.0
    %v2223 = vsel %vm2159, 1.0, 0.0
    %v2224 = vsel %vm2160, 1.0, 0.0
    %v2225 = vsel %vm2161, 1.0, 0.0
    %v2226 = vsel %vm2162, 1.0, 0.0
    %v2227 = vsel %vm2163, 1.0, 0.0
    %v2228 = vsel %vm2164, 1.0, 0.0
    %v2229 = vsel %vm2165, 1.0, 0.0
    %v2230 = vsel %vm2166, 1.0, 0.0
    %v2231 = vsel %vm2167, 1.0, 0.0
    %v2232 = vsel %vm2168, 1.0, 0.0
    %v2233 = vsel %vm2169, 1.0, 0.0
    %v2234 = vsel %vm2170, 1.0, 0.0
    %v2235 = vsel %vm2171, 1.0, 0.0
    %v2236 = vsel %vm2172, 1.0, 0.0
    %v2237 = vsel %vm2173, 1.0, 0.0
    %v2238 = vsel %vm2174, 1.0, 0.0
    %v2239 = vsel %vm2175, 1.0, 0.0
    %v2240 = vsel %vm2176, 1.0, 0.0
    %v2241 = vsel %vm2177, 1.0, 0.0
    %v2242 = vsel %vm2178, 1.0, 0.0
    %v2243 = vsel %vm2179, 1.0, 0.0
    %v2244 = vsel %vm2180, 1.0, 0.0
    %v2245 = vsel %vm2181, 1.0, 0.0
    %v2246 = vsel %vm2182, 1.0, 0.0
    %v2247 = vsel %vm2183, 1.0, 0.0
    %v2248 = vsel %vm2184, 1.0, 0.0
    %v2249 = vsel %vm2185, 1.0, 0.0
    %v2250 = vsel %vm2186, 1.0, 0.0
    %v2251 = vsel %vm2187, 1.0, 0.0
    %v2252 = vsel %vm2188, 1.0, 0.0
    %v2253 = vsel %vm2189, 1.0, 0.0
    %v2254 = vsel %vm2190, 1.0, 0.0
    %v2255 = vsel %vm2191, 1.0, 0.0
    %v2256 = vsel %vm2192, 1.0, 0.0
    %v2257 = vsel %vm2193, 1.0, 0.0
    %v2258 = vsel %vm2194, 1.0, 0.0
    %v2259 = vsel %vm2195, 1.0, 0.0
    %v2260 = vsel %vm2196, 1.0, 0.0
    %v2261 = vsel %vm2197, 1.0, 0.0
    %v2262 = vsel %vm2198, 1.0, 0.0
    %v2263 = vsel %vm2199, 1.0, 0.0
    %v2264 = vsel %vm2200, 1.0, 0.0
    %v2265 = vsel %vm2201, 1.0, 0.0
    %v2266 = vsel %vm2202, 1.0, 0.0
    %v2267 = vsel %vm2203, 1.0, 0.0
    %v2268 = vsel %vm2204, 1.0, 0.0
    %v2269 = vpack.c.bf16 %v2209, %v2205
    %v2270 = vpack.c.bf16 %v2210, %v2206
    %v2271 = vpack.c.bf16 %v2211, %v2207
    %v2272 = vpack.c.bf16 %v2212, %v2208
    %v2273 = vpack.c.bf16 %v2217, %v2213
    %v2274 = vpack.c.bf16 %v2218, %v2214
    %v2275 = vpack.c.bf16 %v2219, %v2215
    %v2276 = vpack.c.bf16 %v2220, %v2216
    %v2277 = vpack.c.bf16 %v2225, %v2221
    %v2278 = vpack.c.bf16 %v2226, %v2222
    %v2279 = vpack.c.bf16 %v2227, %v2223
    %v2280 = vpack.c.bf16 %v2228, %v2224
    %v2281 = vpack.c.bf16 %v2233, %v2229
    %v2282 = vpack.c.bf16 %v2234, %v2230
    %v2283 = vpack.c.bf16 %v2235, %v2231
    %v2284 = vpack.c.bf16 %v2236, %v2232
    %v2285 = vpack.c.bf16 %v2241, %v2237
    %v2286 = vpack.c.bf16 %v2242, %v2238
    %v2287 = vpack.c.bf16 %v2243, %v2239
    %v2288 = vpack.c.bf16 %v2244, %v2240
    %v2289 = vpack.c.bf16 %v2249, %v2245
    %v2290 = vpack.c.bf16 %v2250, %v2246
    %v2291 = vpack.c.bf16 %v2251, %v2247
    %v2292 = vpack.c.bf16 %v2252, %v2248
    %v2293 = vpack.c.bf16 %v2257, %v2253
    %v2294 = vpack.c.bf16 %v2258, %v2254
    %v2295 = vpack.c.bf16 %v2259, %v2255
    %v2296 = vpack.c.bf16 %v2260, %v2256
    %v2297 = vpack.c.bf16 %v2265, %v2261
    %v2298 = vpack.c.bf16 %v2266, %v2262
    %v2299 = vpack.c.bf16 %v2267, %v2263
    %v2300 = vpack.c.bf16 %v2268, %v2264
    %2301 = vmatprep.subr.bf16.mxu0 0
    %2302 = vmatpush1.bf16.msra.mxu0 %v1275
    %2303 = vmatprep.subr.bf16.mxu0 0
    %2304 = vmatpush1.bf16.msra.mxu0 %v1276
    %2305 = vmatprep.subr.bf16.mxu0 0
    %2306 = vmatpush1.bf16.msra.mxu0 %v1277
    %2307 = vmatprep.subr.bf16.mxu0 0
    %2308 = vmatpush1.bf16.msra.mxu0 %v1278
    %2309 = vmatprep.subr.bf16.mxu0 0
    %2310 = vmatpush1.bf16.msra.mxu0 %v1279
    %2311 = vmatprep.subr.bf16.mxu0 0
    %2312 = vmatpush1.bf16.msra.mxu0 %v1280
    %2313 = vmatprep.subr.bf16.mxu0 0
    %2314 = vmatpush1.bf16.msra.mxu0 %v1281
    %2315 = vmatprep.subr.bf16.mxu0 0
    %2316 = vmatpush1.bf16.msra.mxu0 %v1282
    %2317 = vmatprep.subr.bf16.mxu0 0
    %2318 = vmatpush1.bf16.msra.mxu0 %v1283
    %2319 = vmatprep.subr.bf16.mxu0 0
    %2320 = vmatpush1.bf16.msra.mxu0 %v1284
    %2321 = vmatprep.subr.bf16.mxu0 0
    %2322 = vmatpush1.bf16.msra.mxu0 %v1285
    %2323 = vmatprep.subr.bf16.mxu0 0
    %2324 = vmatpush1.bf16.msra.mxu0 %v1286
    %2325 = vmatprep.subr.bf16.mxu0 0
    %2326 = vmatpush1.bf16.msra.mxu0 %v1287
    %2327 = vmatprep.subr.bf16.mxu0 0
    %2328 = vmatpush1.bf16.msra.mxu0 %v1288
    %2329 = vmatprep.subr.bf16.mxu0 0
    %2330 = vmatpush1.bf16.msra.mxu0 %v1289
    %2331 = vmatprep.subr.bf16.mxu0 0
    %2332 = vmatpush1.bf16.msra.mxu0 %v1290
    %2333 = vmatprep.mubr.bf16.mxu0 %v2270
    %2334 = vmatmul.mubr.bf16.gmra.mrb[0].mxu0 %v2269
    %v2335 = vpop.f32.mrb[0].mxu0
    %v2336 = vadd.f32 0.0, %v2335
    %v2337 = vpop.f32.mrb[0].mxu0
    %v2338 = vpop.f32.mrb[0].mxu0
    %v2339 = vadd.f32 0.0, %v2338
    %v2340 = vpop.f32.mrb[0].mxu0
    %2341 = vmatprep.mubr.bf16.mxu0 %v2274
    %2342 = vmatmul.mubr.bf16.gmra.mrb[0].mxu0 %v2273
    %v2343 = vpop.f32.mrb[0].mxu0
    %v2344 = vadd.f32 0.0, %v2343
    %v2345 = vpop.f32.mrb[0].mxu0
    %v2346 = vpop.f32.mrb[0].mxu0
    %v2347 = vadd.f32 0.0, %v2346
    %v2348 = vpop.f32.mrb[0].mxu0
    %2349 = vmatprep.mubr.bf16.mxu0 %v2278
    %2350 = vmatmul.mubr.bf16.gmra.mrb[0].mxu0 %v2277
    %v2351 = vpop.f32.mrb[0].mxu0
    %v2352 = vadd.f32 0.0, %v2351
    %v2353 = vpop.f32.mrb[0].mxu0
    %v2354 = vpop.f32.mrb[0].mxu0
    %v2355 = vadd.f32 0.0, %v2354
    %v2356 = vpop.f32.mrb[0].mxu0
    %2357 = vmatprep.mubr.bf16.mxu0 %v2282
    %2358 = vmatmul.mubr.bf16.gmra.mrb[0].mxu0 %v2281
    %v2359 = vpop.f32.mrb[0].mxu0
    %v2360 = vadd.f32 0.0, %v2359
    %v2361 = vpop.f32.mrb[0].mxu0
    %v2362 = vpop.f32.mrb[0].mxu0
    %v2363 = vadd.f32 0.0, %v2362
    %v2364 = vpop.f32.mrb[0].mxu0
    %2365 = vmatprep.mubr.bf16.mxu0 %v2286
    %2366 = vmatmul.mubr.bf16.gmra.mrb[0].mxu0 %v2285
    %v2367 = vpop.f32.mrb[0].mxu0
    %v2368 = vadd.f32 0.0, %v2367
    %v2369 = vpop.f32.mrb[0].mxu0
    %v2370 = vpop.f32.mrb[0].mxu0
    %v2371 = vadd.f32 0.0, %v2370
    %v2372 = vpop.f32.mrb[0].mxu0
    %2373 = vmatprep.mubr.bf16.mxu0 %v2290
    %2374 = vmatmul.mubr.bf16.gmra.mrb[0].mxu0 %v2289
    %v2375 = vpop.f32.mrb[0].mxu0
    %v2376 = vadd.f32 0.0, %v2375
    %v2377 = vpop.f32.mrb[0].mxu0
    %v2378 = vpop.f32.mrb[0].mxu0
    %v2379 = vadd.f32 0.0, %v2378
    %v2380 = vpop.f32.mrb[0].mxu0
    %2381 = vmatprep.mubr.bf16.mxu0 %v2294
    %2382 = vmatmul.mubr.bf16.gmra.mrb[0].mxu0 %v2293
    %v2383 = vpop.f32.mrb[0].mxu0
    %v2384 = vadd.f32 0.0, %v2383
    %v2385 = vpop.f32.mrb[0].mxu0
    %v2386 = vpop.f32.mrb[0].mxu0
    %v2387 = vadd.f32 0.0, %v2386
    %v2388 = vpop.f32.mrb[0].mxu0
    %2389 = vmatprep.mubr.bf16.mxu0 %v2298
    %2390 = vmatmul.mubr.bf16.gmra.mrb[0].mxu0 %v2297
    %v2391 = vpop.f32.mrb[0].mxu0
    %v2392 = vadd.f32 0.0, %v2391
    %v2393 = vpop.f32.mrb[0].mxu0
    %v2394 = vpop.f32.mrb[0].mxu0
    %v2395 = vadd.f32 0.0, %v2394
    %v2396 = vpop.f32.mrb[0].mxu0
    %2397 = vdwg.mxu0
    %2398 = vmatprep.subr.bf16.mxu0 0
    %2399 = vmatpush1.bf16.msra.mxu0 %v1291
    %2400 = vmatprep.subr.bf16.mxu0 0
    %2401 = vmatpush1.bf16.msra.mxu0 %v1292
    %2402 = vmatprep.subr.bf16.mxu0 0
    %2403 = vmatpush1.bf16.msra.mxu0 %v1293
    %2404 = vmatprep.subr.bf16.mxu0 0
    %2405 = vmatpush1.bf16.msra.mxu0 %v1294
    %2406 = vmatprep.subr.bf16.mxu0 0
    %2407 = vmatpush1.bf16.msra.mxu0 %v1295
    %2408 = vmatprep.subr.bf16.mxu0 0
    %2409 = vmatpush1.bf16.msra.mxu0 %v1296
    %2410 = vmatprep.subr.bf16.mxu0 0
    %2411 = vmatpush1.bf16.msra.mxu0 %v1297
    %2412 = vmatprep.subr.bf16.mxu0 0
    %2413 = vmatpush1.bf16.msra.mxu0 %v1298
    %2414 = vmatprep.subr.bf16.mxu0 0
    %2415 = vmatpush1.bf16.msra.mxu0 %v1299
    %2416 = vmatprep.subr.bf16.mxu0 0
    %2417 = vmatpush1.bf16.msra.mxu0 %v1300
    %2418 = vmatprep.subr.bf16.mxu0 0
    %2419 = vmatpush1.bf16.msra.mxu0 %v1301
    %2420 = vmatprep.subr.bf16.mxu0 0
    %2421 = vmatpush1.bf16.msra.mxu0 %v1302
    %2422 = vmatprep.subr.bf16.mxu0 0
    %2423 = vmatpush1.bf16.msra.mxu0 %v1303
    %2424 = vmatprep.subr.bf16.mxu0 0
    %2425 = vmatpush1.bf16.msra.mxu0 %v1304
    %2426 = vmatprep.subr.bf16.mxu0 0
    %2427 = vmatpush1.bf16.msra.mxu0 %v1305
    %2428 = vmatprep.subr.bf16.mxu0 0
    %2429 = vmatpush1.bf16.msra.mxu0 %v1306
    %2430 = vmatprep.mubr.bf16.mxu0 %v2272
    %2431 = vmatmul.mubr.bf16.gmra.mrb[0].mxu0 %v2271
    %v2432 = vpop.f32.mrb[0].mxu0
    %v2433 = vadd.f32 %v2336, %v2432
    %v2434 = vpop.f32.mrb[0].mxu0
    %v2435 = vpop.f32.mrb[0].mxu0
    %v2436 = vadd.f32 %v2339, %v2435
    %v2437 = vpop.f32.mrb[0].mxu0
    %2438 = vmatprep.mubr.bf16.mxu0 %v2276
    %2439 = vmatmul.mubr.bf16.gmra.mrb[0].mxu0 %v2275
    %v2440 = vpop.f32.mrb[0].mxu0
    %v2441 = vadd.f32 %v2344, %v2440
    %v2442 = vpop.f32.mrb[0].mxu0
    %v2443 = vpop.f32.mrb[0].mxu0
    %v2444 = vadd.f32 %v2347, %v2443
    %v2445 = vpop.f32.mrb[0].mxu0
    %2446 = vmatprep.mubr.bf16.mxu0 %v2280
    %2447 = vmatmul.mubr.bf16.gmra.mrb[0].mxu0 %v2279
    %v2448 = vpop.f32.mrb[0].mxu0
    %v2449 = vadd.f32 %v2352, %v2448
    %v2450 = vpop.f32.mrb[0].mxu0
    %v2451 = vpop.f32.mrb[0].mxu0
    %v2452 = vadd.f32 %v2355, %v2451
    %v2453 = vpop.f32.mrb[0].mxu0
    %2454 = vmatprep.mubr.bf16.mxu0 %v2284
    %2455 = vmatmul.mubr.bf16.gmra.mrb[0].mxu0 %v2283
    %v2456 = vpop.f32.mrb[0].mxu0
    %v2457 = vadd.f32 %v2360, %v2456
    %v2458 = vpop.f32.mrb[0].mxu0
    %v2459 = vpop.f32.mrb[0].mxu0
    %v2460 = vadd.f32 %v2363, %v2459
    %v2461 = vpop.f32.mrb[0].mxu0
    %2462 = vmatprep.mubr.bf16.mxu0 %v2288
    %2463 = vmatmul.mubr.bf16.gmra.mrb[0].mxu0 %v2287
    %v2464 = vpop.f32.mrb[0].mxu0
    %v2465 = vadd.f32 %v2368, %v2464
    %v2466 = vpop.f32.mrb[0].mxu0
    %v2467 = vpop.f32.mrb[0].mxu0
    %v2468 = vadd.f32 %v2371, %v2467
    %v2469 = vpop.f32.mrb[0].mxu0
    %2470 = vmatprep.mubr.bf16.mxu0 %v2292
    %2471 = vmatmul.mubr.bf16.gmra.mrb[0].mxu0 %v2291
    %v2472 = vpop.f32.mrb[0].mxu0
    %v2473 = vadd.f32 %v2376, %v2472
    %v2474 = vpop.f32.mrb[0].mxu0
    %v2475 = vpop.f32.mrb[0].mxu0
    %v2476 = vadd.f32 %v2379, %v2475
    %v2477 = vpop.f32.mrb[0].mxu0
    %2478 = vmatprep.mubr.bf16.mxu0 %v2296
    %2479 = vmatmul.mubr.bf16.gmra.mrb[0].mxu0 %v2295
    %v2480 = vpop.f32.mrb[0].mxu0
    %v2481 = vadd.f32 %v2384, %v2480
    %v2482 = vpop.f32.mrb[0].mxu0
    %v2483 = vpop.f32.mrb[0].mxu0
    %v2484 = vadd.f32 %v2387, %v2483
    %v2485 = vpop.f32.mrb[0].mxu0
    %2486 = vmatprep.mubr.bf16.mxu0 %v2300
    %2487 = vmatmul.mubr.bf16.gmra.mrb[0].mxu0 %v2299
    %v2488 = vpop.f32.mrb[0].mxu0
    %v2489 = vadd.f32 %v2392, %v2488
    %v2490 = vpop.f32.mrb[0].mxu0
    %v2491 = vpop.f32.mrb[0].mxu0
    %v2492 = vadd.f32 %v2395, %v2491
    %v2493 = vpop.f32.mrb[0].mxu0
    %2494 = vdwg.mxu0
    %v2495 = vpack.c.bf16 %v2436, %v2433
    %v2496 = vpack.c.bf16 %v2444, %v2441
    %v2497 = vpack.c.bf16 %v2452, %v2449
    %v2498 = vpack.c.bf16 %v2460, %v2457
    %v2499 = vpack.c.bf16 %v2468, %v2465
    %v2500 = vpack.c.bf16 %v2476, %v2473
    %v2501 = vpack.c.bf16 %v2484, %v2481
    %v2502 = vpack.c.bf16 %v2492, %v2489
    %s2503 = scalar_lea.vmem %s4, 8
    %v2504 = vld [vmem:[%s2503] sm:$0xf]
    %v2505 = vld [vmem:[%s2503 + $0x4] sm:$0xf]
    %v2508 = vunpack.c.l.b16 %v2504
    %v2509 = vunpack.c.l.b16 %v2505
    %v2510 = vpack.c.b16 %v2509, %v2508
    %v2513 = vsel %vm284, %v2495, 0
    %v2516 = vsel %vm284, %v2496, 0
    %v2519 = vsel %vm284, %v2497, 0
    %v2522 = vsel %vm284, %v2498, 0
    %v2525 = vsel %vm284, %v2499, 0
    %v2528 = vsel %vm284, %v2500, 0
    %v2531 = vsel %vm284, %v2501, 0
    %v2534 = vsel %vm284, %v2502, 0
    %2536 = vmatprep.subr.bf16.mxu0 0
    %2537 = vmatpush1.bf16.msra.mxu0 %v2510
    %2538 = vmatprep.subr.bf16.mxu0 0
    %2539 = vmatpush1.bf16.msra.mxu0 0
    %2540 = vmatprep.subr.bf16.mxu0 0
    %2541 = vmatpush1.bf16.msra.mxu0 0
    %2542 = vmatprep.subr.bf16.mxu0 0
    %2543 = vmatpush1.bf16.msra.mxu0 0
    %2544 = vmatprep.subr.bf16.mxu0 0
    %2545 = vmatpush1.bf16.msra.mxu0 0
    %2546 = vmatprep.subr.bf16.mxu0 0
    %2547 = vmatpush1.bf16.msra.mxu0 0
    %2548 = vmatprep.subr.bf16.mxu0 0
    %2549 = vmatpush1.bf16.msra.mxu0 0
    %2550 = vmatprep.subr.bf16.mxu0 0
    %2551 = vmatpush1.bf16.msra.mxu0 0
    %2552 = vmatprep.subr.bf16.mxu0 0
    %2553 = vmatpush1.bf16.msra.mxu0 0
    %2554 = vmatprep.subr.bf16.mxu0 0
    %2555 = vmatpush1.bf16.msra.mxu0 0
    %2556 = vmatprep.subr.bf16.mxu0 0
    %2557 = vmatpush1.bf16.msra.mxu0 0
    %2558 = vmatprep.subr.bf16.mxu0 0
    %2559 = vmatpush1.bf16.msra.mxu0 0
    %2560 = vmatprep.subr.bf16.mxu0 0
    %2561 = vmatpush1.bf16.msra.mxu0 0
    %2562 = vmatprep.subr.bf16.mxu0 0
    %2563 = vmatpush1.bf16.msra.mxu0 0
    %2564 = vmatprep.subr.bf16.mxu0 0
    %2565 = vmatpush1.bf16.msra.mxu0 0
    %2566 = vmatprep.subr.bf16.mxu0 0
    %2567 = vmatpush1.bf16.msra.mxu0 0
    %2568 = vmatprep.mubr.bf16.mxu0 0
    %2569 = vmatmul.mubr.bf16.gmra.mrb[0].mxu0 %v2513
    %v2570 = vpop.f32.mrb[0].mxu0
    %v2571 = vadd.f32 0.0, %v2570
    %v2572 = vpop.f32.mrb[0].mxu0
    %v2573 = vpop.f32.mrb[0].mxu0
    %v2574 = vadd.f32 0.0, %v2573
    %v2575 = vpop.f32.mrb[0].mxu0
    %2576 = vmatprep.mubr.bf16.mxu0 0
    %2577 = vmatmul.mubr.bf16.gmra.mrb[0].mxu0 %v2516
    %v2578 = vpop.f32.mrb[0].mxu0
    %v2579 = vadd.f32 0.0, %v2578
    %v2580 = vpop.f32.mrb[0].mxu0
    %v2581 = vpop.f32.mrb[0].mxu0
    %v2582 = vadd.f32 0.0, %v2581
    %v2583 = vpop.f32.mrb[0].mxu0
    %2584 = vmatprep.mubr.bf16.mxu0 0
    %2585 = vmatmul.mubr.bf16.gmra.mrb[0].mxu0 %v2519
    %v2586 = vpop.f32.mrb[0].mxu0
    %v2587 = vadd.f32 0.0, %v2586
    %v2588 = vpop.f32.mrb[0].mxu0
    %v2589 = vpop.f32.mrb[0].mxu0
    %v2590 = vadd.f32 0.0, %v2589
    %v2591 = vpop.f32.mrb[0].mxu0
    %2592 = vmatprep.mubr.bf16.mxu0 0
    %2593 = vmatmul.mubr.bf16.gmra.mrb[0].mxu0 %v2522
    %v2594 = vpop.f32.mrb[0].mxu0
    %v2595 = vadd.f32 0.0, %v2594
    %v2596 = vpop.f32.mrb[0].mxu0
    %v2597 = vpop.f32.mrb[0].mxu0
    %v2598 = vadd.f32 0.0, %v2597
    %v2599 = vpop.f32.mrb[0].mxu0
    %2600 = vmatprep.mubr.bf16.mxu0 0
    %2601 = vmatmul.mubr.bf16.gmra.mrb[0].mxu0 %v2525
    %v2602 = vpop.f32.mrb[0].mxu0
    %v2603 = vadd.f32 0.0, %v2602
    %v2604 = vpop.f32.mrb[0].mxu0
    %v2605 = vpop.f32.mrb[0].mxu0
    %v2606 = vadd.f32 0.0, %v2605
    %v2607 = vpop.f32.mrb[0].mxu0
    %2608 = vmatprep.mubr.bf16.mxu0 0
    %2609 = vmatmul.mubr.bf16.gmra.mrb[0].mxu0 %v2528
    %v2610 = vpop.f32.mrb[0].mxu0
    %v2611 = vadd.f32 0.0, %v2610
    %v2612 = vpop.f32.mrb[0].mxu0
    %v2613 = vpop.f32.mrb[0].mxu0
    %v2614 = vadd.f32 0.0, %v2613
    %v2615 = vpop.f32.mrb[0].mxu0
    %2616 = vmatprep.mubr.bf16.mxu0 0
    %2617 = vmatmul.mubr.bf16.gmra.mrb[0].mxu0 %v2531
    %v2618 = vpop.f32.mrb[0].mxu0
    %v2619 = vadd.f32 0.0, %v2618
    %v2620 = vpop.f32.mrb[0].mxu0
    %v2621 = vpop.f32.mrb[0].mxu0
    %v2622 = vadd.f32 0.0, %v2621
    %v2623 = vpop.f32.mrb[0].mxu0
    %2624 = vmatprep.mubr.bf16.mxu0 0
    %2625 = vmatmul.mubr.bf16.gmra.mrb[0].mxu0 %v2534
    %v2626 = vpop.f32.mrb[0].mxu0
    %v2627 = vadd.f32 0.0, %v2626
    %v2628 = vpop.f32.mrb[0].mxu0
    %v2629 = vpop.f32.mrb[0].mxu0
    %v2630 = vadd.f32 0.0, %v2629
    %v2631 = vpop.f32.mrb[0].mxu0
    %2632 = vdwg.mxu0
    %v2635 = vunpack.c.l.b16 %v2075
    %v2636 = vunpack.c.l.b16 %v2076
    %v2637 = vpack.c.b16 %v2636, %v2635
    %v2640 = vsel %vm284, %v2067, 0
    %v2643 = vsel %vm284, %v2068, 0
    %v2646 = vsel %vm284, %v2069, 0
    %v2649 = vsel %vm284, %v2070, 0
    %v2652 = vsel %vm284, %v2071, 0
    %v2655 = vsel %vm284, %v2072, 0
    %v2658 = vsel %vm284, %v2073, 0
    %v2661 = vsel %vm284, %v2074, 0
    %2663 = vmatprep.subr.bf16.mxu0 0
    %2664 = vmatpush1.bf16.msra.mxu0 %v2637
    %2665 = vmatprep.subr.bf16.mxu0 0
    %2666 = vmatpush1.bf16.msra.mxu0 0
    %2667 = vmatprep.subr.bf16.mxu0 0
    %2668 = vmatpush1.bf16.msra.mxu0 0
    %2669 = vmatprep.subr.bf16.mxu0 0
    %2670 = vmatpush1.bf16.msra.mxu0 0
    %2671 = vmatprep.subr.bf16.mxu0 0
    %2672 = vmatpush1.bf16.msra.mxu0 0
    %2673 = vmatprep.subr.bf16.mxu0 0
    %2674 = vmatpush1.bf16.msra.mxu0 0
    %2675 = vmatprep.subr.bf16.mxu0 0
    %2676 = vmatpush1.bf16.msra.mxu0 0
    %2677 = vmatprep.subr.bf16.mxu0 0
    %2678 = vmatpush1.bf16.msra.mxu0 0
    %2679 = vmatprep.subr.bf16.mxu0 0
    %2680 = vmatpush1.bf16.msra.mxu0 0
    %2681 = vmatprep.subr.bf16.mxu0 0
    %2682 = vmatpush1.bf16.msra.mxu0 0
    %2683 = vmatprep.subr.bf16.mxu0 0
    %2684 = vmatpush1.bf16.msra.mxu0 0
    %2685 = vmatprep.subr.bf16.mxu0 0
    %2686 = vmatpush1.bf16.msra.mxu0 0
    %2687 = vmatprep.subr.bf16.mxu0 0
    %2688 = vmatpush1.bf16.msra.mxu0 0
    %2689 = vmatprep.subr.bf16.mxu0 0
    %2690 = vmatpush1.bf16.msra.mxu0 0
    %2691 = vmatprep.subr.bf16.mxu0 0
    %2692 = vmatpush1.bf16.msra.mxu0 0
    %2693 = vmatprep.subr.bf16.mxu0 0
    %2694 = vmatpush1.bf16.msra.mxu0 0
    %2695 = vmatprep.mubr.bf16.mxu0 0
    %2696 = vmatmul.mubr.bf16.gmra.mrb[0].mxu0 %v2640
    %v2697 = vpop.f32.mrb[0].mxu0
    %v2698 = vadd.f32 %v2571, %v2697
    %v2699 = vpop.f32.mrb[0].mxu0
    %v2700 = vpop.f32.mrb[0].mxu0
    %v2701 = vadd.f32 %v2574, %v2700
    %v2702 = vpop.f32.mrb[0].mxu0
    %2703 = vmatprep.mubr.bf16.mxu0 0
    %2704 = vmatmul.mubr.bf16.gmra.mrb[0].mxu0 %v2643
    %v2705 = vpop.f32.mrb[0].mxu0
    %v2706 = vadd.f32 %v2579, %v2705
    %v2707 = vpop.f32.mrb[0].mxu0
    %v2708 = vpop.f32.mrb[0].mxu0
    %v2709 = vadd.f32 %v2582, %v2708
    %v2710 = vpop.f32.mrb[0].mxu0
    %2711 = vmatprep.mubr.bf16.mxu0 0
    %2712 = vmatmul.mubr.bf16.gmra.mrb[0].mxu0 %v2646
    %v2713 = vpop.f32.mrb[0].mxu0
    %v2714 = vadd.f32 %v2587, %v2713
    %v2715 = vpop.f32.mrb[0].mxu0
    %v2716 = vpop.f32.mrb[0].mxu0
    %v2717 = vadd.f32 %v2590, %v2716
    %v2718 = vpop.f32.mrb[0].mxu0
    %2719 = vmatprep.mubr.bf16.mxu0 0
    %2720 = vmatmul.mubr.bf16.gmra.mrb[0].mxu0 %v2649
    %v2721 = vpop.f32.mrb[0].mxu0
    %v2722 = vadd.f32 %v2595, %v2721
    %v2723 = vpop.f32.mrb[0].mxu0
    %v2724 = vpop.f32.mrb[0].mxu0
    %v2725 = vadd.f32 %v2598, %v2724
    %v2726 = vpop.f32.mrb[0].mxu0
    %2727 = vmatprep.mubr.bf16.mxu0 0
    %2728 = vmatmul.mubr.bf16.gmra.mrb[0].mxu0 %v2652
    %v2729 = vpop.f32.mrb[0].mxu0
    %v2730 = vadd.f32 %v2603, %v2729
    %v2731 = vpop.f32.mrb[0].mxu0
    %v2732 = vpop.f32.mrb[0].mxu0
    %v2733 = vadd.f32 %v2606, %v2732
    %v2734 = vpop.f32.mrb[0].mxu0
    %2735 = vmatprep.mubr.bf16.mxu0 0
    %2736 = vmatmul.mubr.bf16.gmra.mrb[0].mxu0 %v2655
    %v2737 = vpop.f32.mrb[0].mxu0
    %v2738 = vadd.f32 %v2611, %v2737
    %v2739 = vpop.f32.mrb[0].mxu0
    %v2740 = vpop.f32.mrb[0].mxu0
    %v2741 = vadd.f32 %v2614, %v2740
    %v2742 = vpop.f32.mrb[0].mxu0
    %2743 = vmatprep.mubr.bf16.mxu0 0
    %2744 = vmatmul.mubr.bf16.gmra.mrb[0].mxu0 %v2658
    %v2745 = vpop.f32.mrb[0].mxu0
    %v2746 = vadd.f32 %v2619, %v2745
    %v2747 = vpop.f32.mrb[0].mxu0
    %v2748 = vpop.f32.mrb[0].mxu0
    %v2749 = vadd.f32 %v2622, %v2748
    %v2750 = vpop.f32.mrb[0].mxu0
    %2751 = vmatprep.mubr.bf16.mxu0 0
    %2752 = vmatmul.mubr.bf16.gmra.mrb[0].mxu0 %v2661
    %v2753 = vpop.f32.mrb[0].mxu0
    %v2754 = vadd.f32 %v2627, %v2753
    %v2755 = vpop.f32.mrb[0].mxu0
    %v2756 = vpop.f32.mrb[0].mxu0
    %v2757 = vadd.f32 %v2630, %v2756
    %v2758 = vpop.f32.mrb[0].mxu0
    %2759 = vdwg.mxu0
    %vm2760 = vcmp.eq.s32.totalorder %v1489, 2
    %vm2761 = vcmp.eq.s32.totalorder %v1490, 2
    %vm2762 = vcmp.eq.s32.totalorder %v1491, 2
    %vm2763 = vcmp.eq.s32.totalorder %v1492, 2
    %vm2764 = vcmp.eq.s32.totalorder %v1493, 2
    %vm2765 = vcmp.eq.s32.totalorder %v1494, 2
    %vm2766 = vcmp.eq.s32.totalorder %v1495, 2
    %vm2767 = vcmp.eq.s32.totalorder %v1496, 2
    %vm2768 = vcmp.eq.s32.totalorder %v1497, 2
    %vm2769 = vcmp.eq.s32.totalorder %v1498, 2
    %vm2770 = vcmp.eq.s32.totalorder %v1499, 2
    %vm2771 = vcmp.eq.s32.totalorder %v1500, 2
    %vm2772 = vcmp.eq.s32.totalorder %v1501, 2
    %vm2773 = vcmp.eq.s32.totalorder %v1502, 2
    %vm2774 = vcmp.eq.s32.totalorder %v1503, 2
    %vm2775 = vcmp.eq.s32.totalorder %v1504, 2
    %vm2776 = vcmp.eq.s32.totalorder %v1505, 2
    %vm2777 = vcmp.eq.s32.totalorder %v1506, 2
    %vm2778 = vcmp.eq.s32.totalorder %v1507, 2
    %vm2779 = vcmp.eq.s32.totalorder %v1508, 2
    %vm2780 = vcmp.eq.s32.totalorder %v1509, 2
    %vm2781 = vcmp.eq.s32.totalorder %v1510, 2
    %vm2782 = vcmp.eq.s32.totalorder %v1511, 2
    %vm2783 = vcmp.eq.s32.totalorder %v1512, 2
    %vm2784 = vcmp.eq.s32.totalorder %v1513, 2
    %vm2785 = vcmp.eq.s32.totalorder %v1514, 2
    %vm2786 = vcmp.eq.s32.totalorder %v1515, 2
    %vm2787 = vcmp.eq.s32.totalorder %v1516, 2
    %vm2788 = vcmp.eq.s32.totalorder %v1517, 2
    %vm2789 = vcmp.eq.s32.totalorder %v1518, 2
    %vm2790 = vcmp.eq.s32.totalorder %v1519, 2
    %vm2791 = vcmp.eq.s32.totalorder %v1520, 2
    %vm2792 = vcmp.eq.s32.totalorder %v1521, 2
    %vm2793 = vcmp.eq.s32.totalorder %v1522, 2
    %vm2794 = vcmp.eq.s32.totalorder %v1523, 2
    %vm2795 = vcmp.eq.s32.totalorder %v1524, 2
    %vm2796 = vcmp.eq.s32.totalorder %v1525, 2
    %vm2797 = vcmp.eq.s32.totalorder %v1526, 2
    %vm2798 = vcmp.eq.s32.totalorder %v1527, 2
    %vm2799 = vcmp.eq.s32.totalorder %v1528, 2
    %vm2800 = vcmp.eq.s32.totalorder %v1529, 2
    %vm2801 = vcmp.eq.s32.totalorder %v1530, 2
    %vm2802 = vcmp.eq.s32.totalorder %v1531, 2
    %vm2803 = vcmp.eq.s32.totalorder %v1532, 2
    %vm2804 = vcmp.eq.s32.totalorder %v1533, 2
    %vm2805 = vcmp.eq.s32.totalorder %v1534, 2
    %vm2806 = vcmp.eq.s32.totalorder %v1535, 2
    %vm2807 = vcmp.eq.s32.totalorder %v1536, 2
    %vm2808 = vcmp.eq.s32.totalorder %v1537, 2
    %vm2809 = vcmp.eq.s32.totalorder %v1538, 2
    %vm2810 = vcmp.eq.s32.totalorder %v1539, 2
    %vm2811 = vcmp.eq.s32.totalorder %v1540, 2
    %vm2812 = vcmp.eq.s32.totalorder %v1541, 2
    %vm2813 = vcmp.eq.s32.totalorder %v1542, 2
    %vm2814 = vcmp.eq.s32.totalorder %v1543, 2
    %vm2815 = vcmp.eq.s32.totalorder %v1544, 2
    %vm2816 = vcmp.eq.s32.totalorder %v1545, 2
    %vm2817 = vcmp.eq.s32.totalorder %v1546, 2
    %vm2818 = vcmp.eq.s32.totalorder %v1547, 2
    %vm2819 = vcmp.eq.s32.totalorder %v1548, 2
    %vm2820 = vcmp.eq.s32.totalorder %v1549, 2
    %vm2821 = vcmp.eq.s32.totalorder %v1550, 2
    %vm2822 = vcmp.eq.s32.totalorder %v1551, 2
    %vm2823 = vcmp.eq.s32.totalorder %v1552, 2
    %vm2824 = vmand %vm2760, %vm1553
    %vm2825 = vmand %vm2761, %vm1553
    %vm2826 = vmand %vm2762, %vm1553
    %vm2827 = vmand %vm2763, %vm1553
    %vm2828 = vmand %vm2764, %vm1554
    %vm2829 = vmand %vm2765, %vm1554
    %vm2830 = vmand %vm2766, %vm1554
    %vm2831 = vmand %vm2767, %vm1554
    %vm2832 = vmand %vm2768, %vm1555
    %vm2833 = vmand %vm2769, %vm1555
    %vm2834 = vmand %vm2770, %vm1555
    %vm2835 = vmand %vm2771, %vm1555
    %vm2836 = vmand %vm2772, %vm1556
    %vm2837 = vmand %vm2773, %vm1556
    %vm2838 = vmand %vm2774, %vm1556
    %vm2839 = vmand %vm2775, %vm1556
    %vm2840 = vmand %vm2776, %vm1557
    %vm2841 = vmand %vm2777, %vm1557
    %vm2842 = vmand %vm2778, %vm1557
    %vm2843 = vmand %vm2779, %vm1557
    %vm2844 = vmand %vm2780, %vm1558
    %vm2845 = vmand %vm2781, %vm1558
    %vm2846 = vmand %vm2782, %vm1558
    %vm2847 = vmand %vm2783, %vm1558
    %vm2848 = vmand %vm2784, %vm1559
    %vm2849 = vmand %vm2785, %vm1559
    %vm2850 = vmand %vm2786, %vm1559
    %vm2851 = vmand %vm2787, %vm1559
    %vm2852 = vmand %vm2788, %vm1560
    %vm2853 = vmand %vm2789, %vm1560
    %vm2854 = vmand %vm2790, %vm1560
    %vm2855 = vmand %vm2791, %vm1560
    %vm2856 = vmand %vm2792, %vm1561
    %vm2857 = vmand %vm2793, %vm1561
    %vm2858 = vmand %vm2794, %vm1561
    %vm2859 = vmand %vm2795, %vm1561
    %vm2860 = vmand %vm2796, %vm1562
    %vm2861 = vmand %vm2797, %vm1562
    %vm2862 = vmand %vm2798, %vm1562
    %vm2863 = vmand %vm2799, %vm1562
    %vm2864 = vmand %vm2800, %vm1563
    %vm2865 = vmand %vm2801, %vm1563
    %vm2866 = vmand %vm2802, %vm1563
    %vm2867 = vmand %vm2803, %vm1563
    %vm2868 = vmand %vm2804, %vm1564
    %vm2869 = vmand %vm2805, %vm1564
    %vm2870 = vmand %vm2806, %vm1564
    %vm2871 = vmand %vm2807, %vm1564
    %vm2872 = vmand %vm2808, %vm1565
    %vm2873 = vmand %vm2809, %vm1565
    %vm2874 = vmand %vm2810, %vm1565
    %vm2875 = vmand %vm2811, %vm1565
    %vm2876 = vmand %vm2812, %vm1566
    %vm2877 = vmand %vm2813, %vm1566
    %vm2878 = vmand %vm2814, %vm1566
    %vm2879 = vmand %vm2815, %vm1566
    %vm2880 = vmand %vm2816, %vm1567
    %vm2881 = vmand %vm2817, %vm1567
    %vm2882 = vmand %vm2818, %vm1567
    %vm2883 = vmand %vm2819, %vm1567
    %vm2884 = vmand %vm2820, %vm1568
    %vm2885 = vmand %vm2821, %vm1568
    %vm2886 = vmand %vm2822, %vm1568
    %vm2887 = vmand %vm2823, %vm1568
    %v2888 = vsel %vm2824, 1.0, 0.0
    %v2889 = vsel %vm2825, 1.0, 0.0
    %v2890 = vsel %vm2826, 1.0, 0.0
    %v2891 = vsel %vm2827, 1.0, 0.0
    %v2892 = vsel %vm2828, 1.0, 0.0
    %v2893 = vsel %vm2829, 1.0, 0.0
    %v2894 = vsel %vm2830, 1.0, 0.0
    %v2895 = vsel %vm2831, 1.0, 0.0
    %v2896 = vsel %vm2832, 1.0, 0.0
    %v2897 = vsel %vm2833, 1.0, 0.0
    %v2898 = vsel %vm2834, 1.0, 0.0
    %v2899 = vsel %vm2835, 1.0, 0.0
    %v2900 = vsel %vm2836, 1.0, 0.0
    %v2901 = vsel %vm2837, 1.0, 0.0
    %v2902 = vsel %vm2838, 1.0, 0.0
    %v2903 = vsel %vm2839, 1.0, 0.0
    %v2904 = vsel %vm2840, 1.0, 0.0
    %v2905 = vsel %vm2841, 1.0, 0.0
    %v2906 = vsel %vm2842, 1.0, 0.0
    %v2907 = vsel %vm2843, 1.0, 0.0
    %v2908 = vsel %vm2844, 1.0, 0.0
    %v2909 = vsel %vm2845, 1.0, 0.0
    %v2910 = vsel %vm2846, 1.0, 0.0
    %v2911 = vsel %vm2847, 1.0, 0.0
    %v2912 = vsel %vm2848, 1.0, 0.0
    %v2913 = vsel %vm2849, 1.0, 0.0
    %v2914 = vsel %vm2850, 1.0, 0.0
    %v2915 = vsel %vm2851, 1.0, 0.0
    %v2916 = vsel %vm2852, 1.0, 0.0
    %v2917 = vsel %vm2853, 1.0, 0.0
    %v2918 = vsel %vm2854, 1.0, 0.0
    %v2919 = vsel %vm2855, 1.0, 0.0
    %v2920 = vsel %vm2856, 1.0, 0.0
    %v2921 = vsel %vm2857, 1.0, 0.0
    %v2922 = vsel %vm2858, 1.0, 0.0
    %v2923 = vsel %vm2859, 1.0, 0.0
    %v2924 = vsel %vm2860, 1.0, 0.0
    %v2925 = vsel %vm2861, 1.0, 0.0
    %v2926 = vsel %vm2862, 1.0, 0.0
    %v2927 = vsel %vm2863, 1.0, 0.0
    %v2928 = vsel %vm2864, 1.0, 0.0
    %v2929 = vsel %vm2865, 1.0, 0.0
    %v2930 = vsel %vm2866, 1.0, 0.0
    %v2931 = vsel %vm2867, 1.0, 0.0
    %v2932 = vsel %vm2868, 1.0, 0.0
    %v2933 = vsel %vm2869, 1.0, 0.0
    %v2934 = vsel %vm2870, 1.0, 0.0
    %v2935 = vsel %vm2871, 1.0, 0.0
    %v2936 = vsel %vm2872, 1.0, 0.0
    %v2937 = vsel %vm2873, 1.0, 0.0
    %v2938 = vsel %vm2874, 1.0, 0.0
    %v2939 = vsel %vm2875, 1.0, 0.0
    %v2940 = vsel %vm2876, 1.0, 0.0
    %v2941 = vsel %vm2877, 1.0, 0.0
    %v2942 = vsel %vm2878, 1.0, 0.0
    %v2943 = vsel %vm2879, 1.0, 0.0
    %v2944 = vsel %vm2880, 1.0, 0.0
    %v2945 = vsel %vm2881, 1.0, 0.0
    %v2946 = vsel %vm2882, 1.0, 0.0
    %v2947 = vsel %vm2883, 1.0, 0.0
    %v2948 = vsel %vm2884, 1.0, 0.0
    %v2949 = vsel %vm2885, 1.0, 0.0
    %v2950 = vsel %vm2886, 1.0, 0.0
    %v2951 = vsel %vm2887, 1.0, 0.0
    %v2952 = vpack.c.bf16 %v2892, %v2888
    %v2953 = vpack.c.bf16 %v2893, %v2889
    %v2954 = vpack.c.bf16 %v2894, %v2890
    %v2955 = vpack.c.bf16 %v2895, %v2891
    %v2956 = vpack.c.bf16 %v2900, %v2896
    %v2957 = vpack.c.bf16 %v2901, %v2897
    %v2958 = vpack.c.bf16 %v2902, %v2898
    %v2959 = vpack.c.bf16 %v2903, %v2899
    %v2960 = vpack.c.bf16 %v2908, %v2904
    %v2961 = vpack.c.bf16 %v2909, %v2905
    %v2962 = vpack.c.bf16 %v2910, %v2906
    %v2963 = vpack.c.bf16 %v2911, %v2907
    %v2964 = vpack.c.bf16 %v2916, %v2912
    %v2965 = vpack.c.bf16 %v2917, %v2913
    %v2966 = vpack.c.bf16 %v2918, %v2914
    %v2967 = vpack.c.bf16 %v2919, %v2915
    %v2968 = vpack.c.bf16 %v2924, %v2920
    %v2969 = vpack.c.bf16 %v2925, %v2921
    %v2970 = vpack.c.bf16 %v2926, %v2922
    %v2971 = vpack.c.bf16 %v2927, %v2923
    %v2972 = vpack.c.bf16 %v2932, %v2928
    %v2973 = vpack.c.bf16 %v2933, %v2929
    %v2974 = vpack.c.bf16 %v2934, %v2930
    %v2975 = vpack.c.bf16 %v2935, %v2931
    %v2976 = vpack.c.bf16 %v2940, %v2936
    %v2977 = vpack.c.bf16 %v2941, %v2937
    %v2978 = vpack.c.bf16 %v2942, %v2938
    %v2979 = vpack.c.bf16 %v2943, %v2939
    %v2980 = vpack.c.bf16 %v2948, %v2944
    %v2981 = vpack.c.bf16 %v2949, %v2945
    %v2982 = vpack.c.bf16 %v2950, %v2946
    %v2983 = vpack.c.bf16 %v2951, %v2947
    %2984 = vmatprep.subr.bf16.mxu0 0
    %2985 = vmatpush1.bf16.msra.mxu0 %v1275
    %2986 = vmatprep.subr.bf16.mxu0 0
    %2987 = vmatpush1.bf16.msra.mxu0 %v1276
    %2988 = vmatprep.subr.bf16.mxu0 0
    %2989 = vmatpush1.bf16.msra.mxu0 %v1277
    %2990 = vmatprep.subr.bf16.mxu0 0
    %2991 = vmatpush1.bf16.msra.mxu0 %v1278
    %2992 = vmatprep.subr.bf16.mxu0 0
    %2993 = vmatpush1.bf16.msra.mxu0 %v1279
    %2994 = vmatprep.subr.bf16.mxu0 0
    %2995 = vmatpush1.bf16.msra.mxu0 %v1280
    %2996 = vmatprep.subr.bf16.mxu0 0
    %2997 = vmatpush1.bf16.msra.mxu0 %v1281
    %2998 = vmatprep.subr.bf16.mxu0 0
    %2999 = vmatpush1.bf16.msra.mxu0 %v1282
    %3000 = vmatprep.subr.bf16.mxu0 0
    %3001 = vmatpush1.bf16.msra.mxu0 %v1283
    %3002 = vmatprep.subr.bf16.mxu0 0
    %3003 = vmatpush1.bf16.msra.mxu0 %v1284
    %3004 = vmatprep.subr.bf16.mxu0 0
    %3005 = vmatpush1.bf16.msra.mxu0 %v1285
    %3006 = vmatprep.subr.bf16.mxu0 0
    %3007 = vmatpush1.bf16.msra.mxu0 %v1286
    %3008 = vmatprep.subr.bf16.mxu0 0
    %3009 = vmatpush1.bf16.msra.mxu0 %v1287
    %3010 = vmatprep.subr.bf16.mxu0 0
    %3011 = vmatpush1.bf16.msra.mxu0 %v1288
    %3012 = vmatprep.subr.bf16.mxu0 0
    %3013 = vmatpush1.bf16.msra.mxu0 %v1289
    %3014 = vmatprep.subr.bf16.mxu0 0
    %3015 = vmatpush1.bf16.msra.mxu0 %v1290
    %3016 = vmatprep.mubr.bf16.mxu0 %v2953
    %3017 = vmatmul.mubr.bf16.gmra.mrb[0].mxu0 %v2952
    %v3018 = vpop.f32.mrb[0].mxu0
    %v3019 = vadd.f32 0.0, %v3018
    %v3020 = vpop.f32.mrb[0].mxu0
    %v3021 = vpop.f32.mrb[0].mxu0
    %v3022 = vadd.f32 0.0, %v3021
    %v3023 = vpop.f32.mrb[0].mxu0
    %3024 = vmatprep.mubr.bf16.mxu0 %v2957
    %3025 = vmatmul.mubr.bf16.gmra.mrb[0].mxu0 %v2956
    %v3026 = vpop.f32.mrb[0].mxu0
    %v3027 = vadd.f32 0.0, %v3026
    %v3028 = vpop.f32.mrb[0].mxu0
    %v3029 = vpop.f32.mrb[0].mxu0
    %v3030 = vadd.f32 0.0, %v3029
    %v3031 = vpop.f32.mrb[0].mxu0
    %3032 = vmatprep.mubr.bf16.mxu0 %v2961
    %3033 = vmatmul.mubr.bf16.gmra.mrb[0].mxu0 %v2960
    %v3034 = vpop.f32.mrb[0].mxu0
    %v3035 = vadd.f32 0.0, %v3034
    %v3036 = vpop.f32.mrb[0].mxu0
    %v3037 = vpop.f32.mrb[0].mxu0
    %v3038 = vadd.f32 0.0, %v3037
    %v3039 = vpop.f32.mrb[0].mxu0
    %3040 = vmatprep.mubr.bf16.mxu0 %v2965
    %3041 = vmatmul.mubr.bf16.gmra.mrb[0].mxu0 %v2964
    %v3042 = vpop.f32.mrb[0].mxu0
    %v3043 = vadd.f32 0.0, %v3042
    %v3044 = vpop.f32.mrb[0].mxu0
    %v3045 = vpop.f32.mrb[0].mxu0
    %v3046 = vadd.f32 0.0, %v3045
    %v3047 = vpop.f32.mrb[0].mxu0
    %3048 = vmatprep.mubr.bf16.mxu0 %v2969
    %3049 = vmatmul.mubr.bf16.gmra.mrb[0].mxu0 %v2968
    %v3050 = vpop.f32.mrb[0].mxu0
    %v3051 = vadd.f32 0.0, %v3050
    %v3052 = vpop.f32.mrb[0].mxu0
    %v3053 = vpop.f32.mrb[0].mxu0
    %v3054 = vadd.f32 0.0, %v3053
    %v3055 = vpop.f32.mrb[0].mxu0
    %3056 = vmatprep.mubr.bf16.mxu0 %v2973
    %3057 = vmatmul.mubr.bf16.gmra.mrb[0].mxu0 %v2972
    %v3058 = vpop.f32.mrb[0].mxu0
    %v3059 = vadd.f32 0.0, %v3058
    %v3060 = vpop.f32.mrb[0].mxu0
    %v3061 = vpop.f32.mrb[0].mxu0
    %v3062 = vadd.f32 0.0, %v3061
    %v3063 = vpop.f32.mrb[0].mxu0
    %3064 = vmatprep.mubr.bf16.mxu0 %v2977
    %3065 = vmatmul.mubr.bf16.gmra.mrb[0].mxu0 %v2976
    %v3066 = vpop.f32.mrb[0].mxu0
    %v3067 = vadd.f32 0.0, %v3066
    %v3068 = vpop.f32.mrb[0].mxu0
    %v3069 = vpop.f32.mrb[0].mxu0
    %v3070 = vadd.f32 0.0, %v3069
    %v3071 = vpop.f32.mrb[0].mxu0
    %3072 = vmatprep.mubr.bf16.mxu0 %v2981
    %3073 = vmatmul.mubr.bf16.gmra.mrb[0].mxu0 %v2980
    %v3074 = vpop.f32.mrb[0].mxu0
    %v3075 = vadd.f32 0.0, %v3074
    %v3076 = vpop.f32.mrb[0].mxu0
    %v3077 = vpop.f32.mrb[0].mxu0
    %v3078 = vadd.f32 0.0, %v3077
    %v3079 = vpop.f32.mrb[0].mxu0
    %3080 = vdwg.mxu0
    %3081 = vmatprep.subr.bf16.mxu0 0
    %3082 = vmatpush1.bf16.msra.mxu0 %v1291
    %3083 = vmatprep.subr.bf16.mxu0 0
    %3084 = vmatpush1.bf16.msra.mxu0 %v1292
    %3085 = vmatprep.subr.bf16.mxu0 0
    %3086 = vmatpush1.bf16.msra.mxu0 %v1293
    %3087 = vmatprep.subr.bf16.mxu0 0
    %3088 = vmatpush1.bf16.msra.mxu0 %v1294
    %3089 = vmatprep.subr.bf16.mxu0 0
    %3090 = vmatpush1.bf16.msra.mxu0 %v1295
    %3091 = vmatprep.subr.bf16.mxu0 0
    %3092 = vmatpush1.bf16.msra.mxu0 %v1296
    %3093 = vmatprep.subr.bf16.mxu0 0
    %3094 = vmatpush1.bf16.msra.mxu0 %v1297
    %3095 = vmatprep.subr.bf16.mxu0 0
    %3096 = vmatpush1.bf16.msra.mxu0 %v1298
    %3097 = vmatprep.subr.bf16.mxu0 0
    %3098 = vmatpush1.bf16.msra.mxu0 %v1299
    %3099 = vmatprep.subr.bf16.mxu0 0
    %3100 = vmatpush1.bf16.msra.mxu0 %v1300
    %3101 = vmatprep.subr.bf16.mxu0 0
    %3102 = vmatpush1.bf16.msra.mxu0 %v1301
    %3103 = vmatprep.subr.bf16.mxu0 0
    %3104 = vmatpush1.bf16.msra.mxu0 %v1302
    %3105 = vmatprep.subr.bf16.mxu0 0
    %3106 = vmatpush1.bf16.msra.mxu0 %v1303
    %3107 = vmatprep.subr.bf16.mxu0 0
    %3108 = vmatpush1.bf16.msra.mxu0 %v1304
    %3109 = vmatprep.subr.bf16.mxu0 0
    %3110 = vmatpush1.bf16.msra.mxu0 %v1305
    %3111 = vmatprep.subr.bf16.mxu0 0
    %3112 = vmatpush1.bf16.msra.mxu0 %v1306
    %3113 = vmatprep.mubr.bf16.mxu0 %v2955
    %3114 = vmatmul.mubr.bf16.gmra.mrb[0].mxu0 %v2954
    %v3115 = vpop.f32.mrb[0].mxu0
    %v3116 = vadd.f32 %v3019, %v3115
    %v3117 = vpop.f32.mrb[0].mxu0
    %v3118 = vpop.f32.mrb[0].mxu0
    %v3119 = vadd.f32 %v3022, %v3118
    %v3120 = vpop.f32.mrb[0].mxu0
    %3121 = vmatprep.mubr.bf16.mxu0 %v2959
    %3122 = vmatmul.mubr.bf16.gmra.mrb[0].mxu0 %v2958
    %v3123 = vpop.f32.mrb[0].mxu0
    %v3124 = vadd.f32 %v3027, %v3123
    %v3125 = vpop.f32.mrb[0].mxu0
    %v3126 = vpop.f32.mrb[0].mxu0
    %v3127 = vadd.f32 %v3030, %v3126
    %v3128 = vpop.f32.mrb[0].mxu0
    %3129 = vmatprep.mubr.bf16.mxu0 %v2963
    %3130 = vmatmul.mubr.bf16.gmra.mrb[0].mxu0 %v2962
    %v3131 = vpop.f32.mrb[0].mxu0
    %v3132 = vadd.f32 %v3035, %v3131
    %v3133 = vpop.f32.mrb[0].mxu0
    %v3134 = vpop.f32.mrb[0].mxu0
    %v3135 = vadd.f32 %v3038, %v3134
    %v3136 = vpop.f32.mrb[0].mxu0
    %3137 = vmatprep.mubr.bf16.mxu0 %v2967
    %3138 = vmatmul.mubr.bf16.gmra.mrb[0].mxu0 %v2966
    %v3139 = vpop.f32.mrb[0].mxu0
    %v3140 = vadd.f32 %v3043, %v3139
    %v3141 = vpop.f32.mrb[0].mxu0
    %v3142 = vpop.f32.mrb[0].mxu0
    %v3143 = vadd.f32 %v3046, %v3142
    %v3144 = vpop.f32.mrb[0].mxu0
    %3145 = vmatprep.mubr.bf16.mxu0 %v2971
    %3146 = vmatmul.mubr.bf16.gmra.mrb[0].mxu0 %v2970
    %v3147 = vpop.f32.mrb[0].mxu0
    %v3148 = vadd.f32 %v3051, %v3147
    %v3149 = vpop.f32.mrb[0].mxu0
    %v3150 = vpop.f32.mrb[0].mxu0
    %v3151 = vadd.f32 %v3054, %v3150
    %v3152 = vpop.f32.mrb[0].mxu0
    %3153 = vmatprep.mubr.bf16.mxu0 %v2975
    %3154 = vmatmul.mubr.bf16.gmra.mrb[0].mxu0 %v2974
    %v3155 = vpop.f32.mrb[0].mxu0
    %v3156 = vadd.f32 %v3059, %v3155
    %v3157 = vpop.f32.mrb[0].mxu0
    %v3158 = vpop.f32.mrb[0].mxu0
    %v3159 = vadd.f32 %v3062, %v3158
    %v3160 = vpop.f32.mrb[0].mxu0
    %3161 = vmatprep.mubr.bf16.mxu0 %v2979
    %3162 = vmatmul.mubr.bf16.gmra.mrb[0].mxu0 %v2978
    %v3163 = vpop.f32.mrb[0].mxu0
    %v3164 = vadd.f32 %v3067, %v3163
    %v3165 = vpop.f32.mrb[0].mxu0
    %v3166 = vpop.f32.mrb[0].mxu0
    %v3167 = vadd.f32 %v3070, %v3166
    %v3168 = vpop.f32.mrb[0].mxu0
    %3169 = vmatprep.mubr.bf16.mxu0 %v2983
    %3170 = vmatmul.mubr.bf16.gmra.mrb[0].mxu0 %v2982
    %v3171 = vpop.f32.mrb[0].mxu0
    %v3172 = vadd.f32 %v3075, %v3171
    %v3173 = vpop.f32.mrb[0].mxu0
    %v3174 = vpop.f32.mrb[0].mxu0
    %v3175 = vadd.f32 %v3078, %v3174
    %v3176 = vpop.f32.mrb[0].mxu0
    %3177 = vdwg.mxu0
    %v3178 = vpack.c.bf16 %v3119, %v3116
    %v3179 = vpack.c.bf16 %v3127, %v3124
    %v3180 = vpack.c.bf16 %v3135, %v3132
    %v3181 = vpack.c.bf16 %v3143, %v3140
    %v3182 = vpack.c.bf16 %v3151, %v3148
    %v3183 = vpack.c.bf16 %v3159, %v3156
    %v3184 = vpack.c.bf16 %v3167, %v3164
    %v3185 = vpack.c.bf16 %v3175, %v3172
    %s3186 = scalar_lea.vmem %s4, 16
    %v3187 = vld [vmem:[%s3186] sm:$0xf]
    %v3188 = vld [vmem:[%s3186 + $0x4] sm:$0xf]
    %v3191 = vunpack.c.l.b16 %v3187
    %v3192 = vunpack.c.l.b16 %v3188
    %v3193 = vpack.c.b16 %v3192, %v3191
    %v3196 = vsel %vm284, %v3178, 0
    %v3199 = vsel %vm284, %v3179, 0
    %v3202 = vsel %vm284, %v3180, 0
    %v3205 = vsel %vm284, %v3181, 0
    %v3208 = vsel %vm284, %v3182, 0
    %v3211 = vsel %vm284, %v3183, 0
    %v3214 = vsel %vm284, %v3184, 0
    %v3217 = vsel %vm284, %v3185, 0
    %3219 = vmatprep.subr.bf16.mxu0 0
    %3220 = vmatpush1.bf16.msra.mxu0 %v3193
    %3221 = vmatprep.subr.bf16.mxu0 0
    %3222 = vmatpush1.bf16.msra.mxu0 0
    %3223 = vmatprep.subr.bf16.mxu0 0
    %3224 = vmatpush1.bf16.msra.mxu0 0
    %3225 = vmatprep.subr.bf16.mxu0 0
    %3226 = vmatpush1.bf16.msra.mxu0 0
    %3227 = vmatprep.subr.bf16.mxu0 0
    %3228 = vmatpush1.bf16.msra.mxu0 0
    %3229 = vmatprep.subr.bf16.mxu0 0
    %3230 = vmatpush1.bf16.msra.mxu0 0
    %3231 = vmatprep.subr.bf16.mxu0 0
    %3232 = vmatpush1.bf16.msra.mxu0 0
    %3233 = vmatprep.subr.bf16.mxu0 0
    %3234 = vmatpush1.bf16.msra.mxu0 0
    %3235 = vmatprep.subr.bf16.mxu0 0
    %3236 = vmatpush1.bf16.msra.mxu0 0
    %3237 = vmatprep.subr.bf16.mxu0 0
    %3238 = vmatpush1.bf16.msra.mxu0 0
    %3239 = vmatprep.subr.bf16.mxu0 0
    %3240 = vmatpush1.bf16.msra.mxu0 0
    %3241 = vmatprep.subr.bf16.mxu0 0
    %3242 = vmatpush1.bf16.msra.mxu0 0
    %3243 = vmatprep.subr.bf16.mxu0 0
    %3244 = vmatpush1.bf16.msra.mxu0 0
    %3245 = vmatprep.subr.bf16.mxu0 0
    %3246 = vmatpush1.bf16.msra.mxu0 0
    %3247 = vmatprep.subr.bf16.mxu0 0
    %3248 = vmatpush1.bf16.msra.mxu0 0
    %3249 = vmatprep.subr.bf16.mxu0 0
    %3250 = vmatpush1.bf16.msra.mxu0 0
    %3251 = vmatprep.mubr.bf16.mxu0 0
    %3252 = vmatmul.mubr.bf16.gmra.mrb[0].mxu0 %v3196
    %v3253 = vpop.f32.mrb[0].mxu0
    %v3254 = vadd.f32 0.0, %v3253
    %v3255 = vpop.f32.mrb[0].mxu0
    %v3256 = vpop.f32.mrb[0].mxu0
    %v3257 = vadd.f32 0.0, %v3256
    %v3258 = vpop.f32.mrb[0].mxu0
    %3259 = vmatprep.mubr.bf16.mxu0 0
    %3260 = vmatmul.mubr.bf16.gmra.mrb[0].mxu0 %v3199
    %v3261 = vpop.f32.mrb[0].mxu0
    %v3262 = vadd.f32 0.0, %v3261
    %v3263 = vpop.f32.mrb[0].mxu0
    %v3264 = vpop.f32.mrb[0].mxu0
    %v3265 = vadd.f32 0.0, %v3264
    %v3266 = vpop.f32.mrb[0].mxu0
    %3267 = vmatprep.mubr.bf16.mxu0 0
    %3268 = vmatmul.mubr.bf16.gmra.mrb[0].mxu0 %v3202
    %v3269 = vpop.f32.mrb[0].mxu0
    %v3270 = vadd.f32 0.0, %v3269
    %v3271 = vpop.f32.mrb[0].mxu0
    %v3272 = vpop.f32.mrb[0].mxu0
    %v3273 = vadd.f32 0.0, %v3272
    %v3274 = vpop.f32.mrb[0].mxu0
    %3275 = vmatprep.mubr.bf16.mxu0 0
    %3276 = vmatmul.mubr.bf16.gmra.mrb[0].mxu0 %v3205
    %v3277 = vpop.f32.mrb[0].mxu0
    %v3278 = vadd.f32 0.0, %v3277
    %v3279 = vpop.f32.mrb[0].mxu0
    %v3280 = vpop.f32.mrb[0].mxu0
    %v3281 = vadd.f32 0.0, %v3280
    %v3282 = vpop.f32.mrb[0].mxu0
    %3283 = vmatprep.mubr.bf16.mxu0 0
    %3284 = vmatmul.mubr.bf16.gmra.mrb[0].mxu0 %v3208
    %v3285 = vpop.f32.mrb[0].mxu0
    %v3286 = vadd.f32 0.0, %v3285
    %v3287 = vpop.f32.mrb[0].mxu0
    %v3288 = vpop.f32.mrb[0].mxu0
    %v3289 = vadd.f32 0.0, %v3288
    %v3290 = vpop.f32.mrb[0].mxu0
    %3291 = vmatprep.mubr.bf16.mxu0 0
    %3292 = vmatmul.mubr.bf16.gmra.mrb[0].mxu0 %v3211
    %v3293 = vpop.f32.mrb[0].mxu0
    %v3294 = vadd.f32 0.0, %v3293
    %v3295 = vpop.f32.mrb[0].mxu0
    %v3296 = vpop.f32.mrb[0].mxu0
    %v3297 = vadd.f32 0.0, %v3296
    %v3298 = vpop.f32.mrb[0].mxu0
    %3299 = vmatprep.mubr.bf16.mxu0 0
    %3300 = vmatmul.mubr.bf16.gmra.mrb[0].mxu0 %v3214
    %v3301 = vpop.f32.mrb[0].mxu0
    %v3302 = vadd.f32 0.0, %v3301
    %v3303 = vpop.f32.mrb[0].mxu0
    %v3304 = vpop.f32.mrb[0].mxu0
    %v3305 = vadd.f32 0.0, %v3304
    %v3306 = vpop.f32.mrb[0].mxu0
    %3307 = vmatprep.mubr.bf16.mxu0 0
    %3308 = vmatmul.mubr.bf16.gmra.mrb[0].mxu0 %v3217
    %v3309 = vpop.f32.mrb[0].mxu0
    %v3310 = vadd.f32 0.0, %v3309
    %v3311 = vpop.f32.mrb[0].mxu0
    %v3312 = vpop.f32.mrb[0].mxu0
    %v3313 = vadd.f32 0.0, %v3312
    %v3314 = vpop.f32.mrb[0].mxu0
    %3315 = vdwg.mxu0
    %v3316 = vadd.f32 %v2698, %v3254
    %v3317 = vadd.f32 %v2701, %v3257
    %v3318 = vadd.f32 %v2706, %v3262
    %v3319 = vadd.f32 %v2709, %v3265
    %v3320 = vadd.f32 %v2714, %v3270
    %v3321 = vadd.f32 %v2717, %v3273
    %v3322 = vadd.f32 %v2722, %v3278
    %v3323 = vadd.f32 %v2725, %v3281
    %v3324 = vadd.f32 %v2730, %v3286
    %v3325 = vadd.f32 %v2733, %v3289
    %v3326 = vadd.f32 %v2738, %v3294
    %v3327 = vadd.f32 %v2741, %v3297
    %v3328 = vadd.f32 %v2746, %v3302
    %v3329 = vadd.f32 %v2749, %v3305
    %v3330 = vadd.f32 %v2754, %v3310
    %v3331 = vadd.f32 %v2757, %v3313
    %vm3332 = vcmp.eq.s32.totalorder %v1489, 16
    %vm3333 = vcmp.eq.s32.totalorder %v1490, 16
    %vm3334 = vcmp.eq.s32.totalorder %v1491, 16
    %vm3335 = vcmp.eq.s32.totalorder %v1492, 16
    %vm3336 = vcmp.eq.s32.totalorder %v1493, 16
    %vm3337 = vcmp.eq.s32.totalorder %v1494, 16
    %vm3338 = vcmp.eq.s32.totalorder %v1495, 16
    %vm3339 = vcmp.eq.s32.totalorder %v1496, 16
    %vm3340 = vcmp.eq.s32.totalorder %v1497, 16
    %vm3341 = vcmp.eq.s32.totalorder %v1498, 16
    %vm3342 = vcmp.eq.s32.totalorder %v1499, 16
    %vm3343 = vcmp.eq.s32.totalorder %v1500, 16
    %vm3344 = vcmp.eq.s32.totalorder %v1501, 16
    %vm3345 = vcmp.eq.s32.totalorder %v1502, 16
    %vm3346 = vcmp.eq.s32.totalorder %v1503, 16
    %vm3347 = vcmp.eq.s32.totalorder %v1504, 16
    %vm3348 = vcmp.eq.s32.totalorder %v1505, 16
    %vm3349 = vcmp.eq.s32.totalorder %v1506, 16
    %vm3350 = vcmp.eq.s32.totalorder %v1507, 16
    %vm3351 = vcmp.eq.s32.totalorder %v1508, 16
    %vm3352 = vcmp.eq.s32.totalorder %v1509, 16
    %vm3353 = vcmp.eq.s32.totalorder %v1510, 16
    %vm3354 = vcmp.eq.s32.totalorder %v1511, 16
    %vm3355 = vcmp.eq.s32.totalorder %v1512, 16
    %vm3356 = vcmp.eq.s32.totalorder %v1513, 16
    %vm3357 = vcmp.eq.s32.totalorder %v1514, 16
    %vm3358 = vcmp.eq.s32.totalorder %v1515, 16
    %vm3359 = vcmp.eq.s32.totalorder %v1516, 16
    %vm3360 = vcmp.eq.s32.totalorder %v1517, 16
    %vm3361 = vcmp.eq.s32.totalorder %v1518, 16
    %vm3362 = vcmp.eq.s32.totalorder %v1519, 16
    %vm3363 = vcmp.eq.s32.totalorder %v1520, 16
    %vm3364 = vcmp.eq.s32.totalorder %v1521, 16
    %vm3365 = vcmp.eq.s32.totalorder %v1522, 16
    %vm3366 = vcmp.eq.s32.totalorder %v1523, 16
    %vm3367 = vcmp.eq.s32.totalorder %v1524, 16
    %vm3368 = vcmp.eq.s32.totalorder %v1525, 16
    %vm3369 = vcmp.eq.s32.totalorder %v1526, 16
    %vm3370 = vcmp.eq.s32.totalorder %v1527, 16
    %vm3371 = vcmp.eq.s32.totalorder %v1528, 16
    %vm3372 = vcmp.eq.s32.totalorder %v1529, 16
    %vm3373 = vcmp.eq.s32.totalorder %v1530, 16
    %vm3374 = vcmp.eq.s32.totalorder %v1531, 16
    %vm3375 = vcmp.eq.s32.totalorder %v1532, 16
    %vm3376 = vcmp.eq.s32.totalorder %v1533, 16
    %vm3377 = vcmp.eq.s32.totalorder %v1534, 16
    %vm3378 = vcmp.eq.s32.totalorder %v1535, 16
    %vm3379 = vcmp.eq.s32.totalorder %v1536, 16
    %vm3380 = vcmp.eq.s32.totalorder %v1537, 16
    %vm3381 = vcmp.eq.s32.totalorder %v1538, 16
    %vm3382 = vcmp.eq.s32.totalorder %v1539, 16
    %vm3383 = vcmp.eq.s32.totalorder %v1540, 16
    %vm3384 = vcmp.eq.s32.totalorder %v1541, 16
    %vm3385 = vcmp.eq.s32.totalorder %v1542, 16
    %vm3386 = vcmp.eq.s32.totalorder %v1543, 16
    %vm3387 = vcmp.eq.s32.totalorder %v1544, 16
    %vm3388 = vcmp.eq.s32.totalorder %v1545, 16
    %vm3389 = vcmp.eq.s32.totalorder %v1546, 16
    %vm3390 = vcmp.eq.s32.totalorder %v1547, 16
    %vm3391 = vcmp.eq.s32.totalorder %v1548, 16
    %vm3392 = vcmp.eq.s32.totalorder %v1549, 16
    %vm3393 = vcmp.eq.s32.totalorder %v1550, 16
    %vm3394 = vcmp.eq.s32.totalorder %v1551, 16
    %vm3395 = vcmp.eq.s32.totalorder %v1552, 16
    %vm3396 = vmand %vm3332, %vm1569
    %vm3397 = vmand %vm3333, %vm1569
    %vm3398 = vmand %vm3334, %vm1569
    %vm3399 = vmand %vm3335, %vm1569
    %vm3400 = vmand %vm3336, %vm1570
    %vm3401 = vmand %vm3337, %vm1570
    %vm3402 = vmand %vm3338, %vm1570
    %vm3403 = vmand %vm3339, %vm1570
    %vm3404 = vmand %vm3340, %vm1571
    %vm3405 = vmand %vm3341, %vm1571
    %vm3406 = vmand %vm3342, %vm1571
    %vm3407 = vmand %vm3343, %vm1571
    %vm3408 = vmand %vm3344, %vm1572
    %vm3409 = vmand %vm3345, %vm1572
    %vm3410 = vmand %vm3346, %vm1572
    %vm3411 = vmand %vm3347, %vm1572
    %vm3412 = vmand %vm3348, %vm1573
    %vm3413 = vmand %vm3349, %vm1573
    %vm3414 = vmand %vm3350, %vm1573
    %vm3415 = vmand %vm3351, %vm1573
    %vm3416 = vmand %vm3352, %vm1574
    %vm3417 = vmand %vm3353, %vm1574
    %vm3418 = vmand %vm3354, %vm1574
    %vm3419 = vmand %vm3355, %vm1574
    %vm3420 = vmand %vm3356, %vm1575
    %vm3421 = vmand %vm3357, %vm1575
    %vm3422 = vmand %vm3358, %vm1575
    %vm3423 = vmand %vm3359, %vm1575
    %vm3424 = vmand %vm3360, %vm1576
    %vm3425 = vmand %vm3361, %vm1576
    %vm3426 = vmand %vm3362, %vm1576
    %vm3427 = vmand %vm3363, %vm1576
    %vm3428 = vmand %vm3364, %vm1577
    %vm3429 = vmand %vm3365, %vm1577
    %vm3430 = vmand %vm3366, %vm1577
    %vm3431 = vmand %vm3367, %vm1577
    %vm3432 = vmand %vm3368, %vm1578
    %vm3433 = vmand %vm3369, %vm1578
    %vm3434 = vmand %vm3370, %vm1578
    %vm3435 = vmand %vm3371, %vm1578
    %vm3436 = vmand %vm3372, %vm1579
    %vm3437 = vmand %vm3373, %vm1579
    %vm3438 = vmand %vm3374, %vm1579
    %vm3439 = vmand %vm3375, %vm1579
    %vm3440 = vmand %vm3376, %vm1580
    %vm3441 = vmand %vm3377, %vm1580
    %vm3442 = vmand %vm3378, %vm1580
    %vm3443 = vmand %vm3379, %vm1580
    %vm3444 = vmand %vm3380, %vm1581
    %vm3445 = vmand %vm3381, %vm1581
    %vm3446 = vmand %vm3382, %vm1581
    %vm3447 = vmand %vm3383, %vm1581
    %vm3448 = vmand %vm3384, %vm1582
    %vm3449 = vmand %vm3385, %vm1582
    %vm3450 = vmand %vm3386, %vm1582
    %vm3451 = vmand %vm3387, %vm1582
    %vm3452 = vmand %vm3388, %vm1583
    %vm3453 = vmand %vm3389, %vm1583
    %vm3454 = vmand %vm3390, %vm1583
    %vm3455 = vmand %vm3391, %vm1583
    %vm3456 = vmand %vm3392, %vm1584
    %vm3457 = vmand %vm3393, %vm1584
    %vm3458 = vmand %vm3394, %vm1584
    %vm3459 = vmand %vm3395, %vm1584
    %v3460 = vsel %vm3396, 1.0, 0.0
    %v3461 = vsel %vm3397, 1.0, 0.0
    %v3462 = vsel %vm3398, 1.0, 0.0
    %v3463 = vsel %vm3399, 1.0, 0.0
    %v3464 = vsel %vm3400, 1.0, 0.0
    %v3465 = vsel %vm3401, 1.0, 0.0
    %v3466 = vsel %vm3402, 1.0, 0.0
    %v3467 = vsel %vm3403, 1.0, 0.0
    %v3468 = vsel %vm3404, 1.0, 0.0
    %v3469 = vsel %vm3405, 1.0, 0.0
    %v3470 = vsel %vm3406, 1.0, 0.0
    %v3471 = vsel %vm3407, 1.0, 0.0
    %v3472 = vsel %vm3408, 1.0, 0.0
    %v3473 = vsel %vm3409, 1.0, 0.0
    %v3474 = vsel %vm3410, 1.0, 0.0
    %v3475 = vsel %vm3411, 1.0, 0.0
    %v3476 = vsel %vm3412, 1.0, 0.0
    %v3477 = vsel %vm3413, 1.0, 0.0
    %v3478 = vsel %vm3414, 1.0, 0.0
    %v3479 = vsel %vm3415, 1.0, 0.0
    %v3480 = vsel %vm3416, 1.0, 0.0
    %v3481 = vsel %vm3417, 1.0, 0.0
    %v3482 = vsel %vm3418, 1.0, 0.0
    %v3483 = vsel %vm3419, 1.0, 0.0
    %v3484 = vsel %vm3420, 1.0, 0.0
    %v3485 = vsel %vm3421, 1.0, 0.0
    %v3486 = vsel %vm3422, 1.0, 0.0
    %v3487 = vsel %vm3423, 1.0, 0.0
    %v3488 = vsel %vm3424, 1.0, 0.0
    %v3489 = vsel %vm3425, 1.0, 0.0
    %v3490 = vsel %vm3426, 1.0, 0.0
    %v3491 = vsel %vm3427, 1.0, 0.0
    %v3492 = vsel %vm3428, 1.0, 0.0
    %v3493 = vsel %vm3429, 1.0, 0.0
    %v3494 = vsel %vm3430, 1.0, 0.0
    %v3495 = vsel %vm3431, 1.0, 0.0
    %v3496 = vsel %vm3432, 1.0, 0.0
    %v3497 = vsel %vm3433, 1.0, 0.0
    %v3498 = vsel %vm3434, 1.0, 0.0
    %v3499 = vsel %vm3435, 1.0, 0.0
    %v3500 = vsel %vm3436, 1.0, 0.0
    %v3501 = vsel %vm3437, 1.0, 0.0
    %v3502 = vsel %vm3438, 1.0, 0.0
    %v3503 = vsel %vm3439, 1.0, 0.0
    %v3504 = vsel %vm3440, 1.0, 0.0
    %v3505 = vsel %vm3441, 1.0, 0.0
    %v3506 = vsel %vm3442, 1.0, 0.0
    %v3507 = vsel %vm3443, 1.0, 0.0
    %v3508 = vsel %vm3444, 1.0, 0.0
    %v3509 = vsel %vm3445, 1.0, 0.0
    %v3510 = vsel %vm3446, 1.0, 0.0
    %v3511 = vsel %vm3447, 1.0, 0.0
    %v3512 = vsel %vm3448, 1.0, 0.0
    %v3513 = vsel %vm3449, 1.0, 0.0
    %v3514 = vsel %vm3450, 1.0, 0.0
    %v3515 = vsel %vm3451, 1.0, 0.0
    %v3516 = vsel %vm3452, 1.0, 0.0
    %v3517 = vsel %vm3453, 1.0, 0.0
    %v3518 = vsel %vm3454, 1.0, 0.0
    %v3519 = vsel %vm3455, 1.0, 0.0
    %v3520 = vsel %vm3456, 1.0, 0.0
    %v3521 = vsel %vm3457, 1.0, 0.0
    %v3522 = vsel %vm3458, 1.0, 0.0
    %v3523 = vsel %vm3459, 1.0, 0.0
    %v3524 = vpack.c.bf16 %v3464, %v3460
    %v3525 = vpack.c.bf16 %v3465, %v3461
    %v3526 = vpack.c.bf16 %v3466, %v3462
    %v3527 = vpack.c.bf16 %v3467, %v3463
    %v3528 = vpack.c.bf16 %v3472, %v3468
    %v3529 = vpack.c.bf16 %v3473, %v3469
    %v3530 = vpack.c.bf16 %v3474, %v3470
    %v3531 = vpack.c.bf16 %v3475, %v3471
    %v3532 = vpack.c.bf16 %v3480, %v3476
    %v3533 = vpack.c.bf16 %v3481, %v3477
    %v3534 = vpack.c.bf16 %v3482, %v3478
    %v3535 = vpack.c.bf16 %v3483, %v3479
    %v3536 = vpack.c.bf16 %v3488, %v3484
    %v3537 = vpack.c.bf16 %v3489, %v3485
    %v3538 = vpack.c.bf16 %v3490, %v3486
    %v3539 = vpack.c.bf16 %v3491, %v3487
    %v3540 = vpack.c.bf16 %v3496, %v3492
    %v3541 = vpack.c.bf16 %v3497, %v3493
    %v3542 = vpack.c.bf16 %v3498, %v3494
    %v3543 = vpack.c.bf16 %v3499, %v3495
    %v3544 = vpack.c.bf16 %v3504, %v3500
    %v3545 = vpack.c.bf16 %v3505, %v3501
    %v3546 = vpack.c.bf16 %v3506, %v3502
    %v3547 = vpack.c.bf16 %v3507, %v3503
    %v3548 = vpack.c.bf16 %v3512, %v3508
    %v3549 = vpack.c.bf16 %v3513, %v3509
    %v3550 = vpack.c.bf16 %v3514, %v3510
    %v3551 = vpack.c.bf16 %v3515, %v3511
    %v3552 = vpack.c.bf16 %v3520, %v3516
    %v3553 = vpack.c.bf16 %v3521, %v3517
    %v3554 = vpack.c.bf16 %v3522, %v3518
    %v3555 = vpack.c.bf16 %v3523, %v3519
    %3556 = vmatprep.subr.bf16.mxu0 0
    %3557 = vmatpush1.bf16.msra.mxu0 %v1275
    %3558 = vmatprep.subr.bf16.mxu0 0
    %3559 = vmatpush1.bf16.msra.mxu0 %v1276
    %3560 = vmatprep.subr.bf16.mxu0 0
    %3561 = vmatpush1.bf16.msra.mxu0 %v1277
    %3562 = vmatprep.subr.bf16.mxu0 0
    %3563 = vmatpush1.bf16.msra.mxu0 %v1278
    %3564 = vmatprep.subr.bf16.mxu0 0
    %3565 = vmatpush1.bf16.msra.mxu0 %v1279
    %3566 = vmatprep.subr.bf16.mxu0 0
    %3567 = vmatpush1.bf16.msra.mxu0 %v1280
    %3568 = vmatprep.subr.bf16.mxu0 0
    %3569 = vmatpush1.bf16.msra.mxu0 %v1281
    %3570 = vmatprep.subr.bf16.mxu0 0
    %3571 = vmatpush1.bf16.msra.mxu0 %v1282
    %3572 = vmatprep.subr.bf16.mxu0 0
    %3573 = vmatpush1.bf16.msra.mxu0 %v1283
    %3574 = vmatprep.subr.bf16.mxu0 0
    %3575 = vmatpush1.bf16.msra.mxu0 %v1284
    %3576 = vmatprep.subr.bf16.mxu0 0
    %3577 = vmatpush1.bf16.msra.mxu0 %v1285
    %3578 = vmatprep.subr.bf16.mxu0 0
    %3579 = vmatpush1.bf16.msra.mxu0 %v1286
    %3580 = vmatprep.subr.bf16.mxu0 0
    %3581 = vmatpush1.bf16.msra.mxu0 %v1287
    %3582 = vmatprep.subr.bf16.mxu0 0
    %3583 = vmatpush1.bf16.msra.mxu0 %v1288
    %3584 = vmatprep.subr.bf16.mxu0 0
    %3585 = vmatpush1.bf16.msra.mxu0 %v1289
    %3586 = vmatprep.subr.bf16.mxu0 0
    %3587 = vmatpush1.bf16.msra.mxu0 %v1290
    %3588 = vmatprep.mubr.bf16.mxu0 %v3525
    %3589 = vmatmul.mubr.bf16.gmra.mrb[0].mxu0 %v3524
    %v3590 = vpop.f32.mrb[0].mxu0
    %v3591 = vadd.f32 0.0, %v3590
    %v3592 = vpop.f32.mrb[0].mxu0
    %v3593 = vpop.f32.mrb[0].mxu0
    %v3594 = vadd.f32 0.0, %v3593
    %v3595 = vpop.f32.mrb[0].mxu0
    %3596 = vmatprep.mubr.bf16.mxu0 %v3529
    %3597 = vmatmul.mubr.bf16.gmra.mrb[0].mxu0 %v3528
    %v3598 = vpop.f32.mrb[0].mxu0
    %v3599 = vadd.f32 0.0, %v3598
    %v3600 = vpop.f32.mrb[0].mxu0
    %v3601 = vpop.f32.mrb[0].mxu0
    %v3602 = vadd.f32 0.0, %v3601
    %v3603 = vpop.f32.mrb[0].mxu0
    %3604 = vmatprep.mubr.bf16.mxu0 %v3533
    %3605 = vmatmul.mubr.bf16.gmra.mrb[0].mxu0 %v3532
    %v3606 = vpop.f32.mrb[0].mxu0
    %v3607 = vadd.f32 0.0, %v3606
    %v3608 = vpop.f32.mrb[0].mxu0
    %v3609 = vpop.f32.mrb[0].mxu0
    %v3610 = vadd.f32 0.0, %v3609
    %v3611 = vpop.f32.mrb[0].mxu0
    %3612 = vmatprep.mubr.bf16.mxu0 %v3537
    %3613 = vmatmul.mubr.bf16.gmra.mrb[0].mxu0 %v3536
    %v3614 = vpop.f32.mrb[0].mxu0
    %v3615 = vadd.f32 0.0, %v3614
    %v3616 = vpop.f32.mrb[0].mxu0
    %v3617 = vpop.f32.mrb[0].mxu0
    %v3618 = vadd.f32 0.0, %v3617
    %v3619 = vpop.f32.mrb[0].mxu0
    %3620 = vmatprep.mubr.bf16.mxu0 %v3541
    %3621 = vmatmul.mubr.bf16.gmra.mrb[0].mxu0 %v3540
    %v3622 = vpop.f32.mrb[0].mxu0
    %v3623 = vadd.f32 0.0, %v3622
    %v3624 = vpop.f32.mrb[0].mxu0
    %v3625 = vpop.f32.mrb[0].mxu0
    %v3626 = vadd.f32 0.0, %v3625
    %v3627 = vpop.f32.mrb[0].mxu0
    %3628 = vmatprep.mubr.bf16.mxu0 %v3545
    %3629 = vmatmul.mubr.bf16.gmra.mrb[0].mxu0 %v3544
    %v3630 = vpop.f32.mrb[0].mxu0
    %v3631 = vadd.f32 0.0, %v3630
    %v3632 = vpop.f32.mrb[0].mxu0
    %v3633 = vpop.f32.mrb[0].mxu0
    %v3634 = vadd.f32 0.0, %v3633
    %v3635 = vpop.f32.mrb[0].mxu0
    %3636 = vmatprep.mubr.bf16.mxu0 %v3549
    %3637 = vmatmul.mubr.bf16.gmra.mrb[0].mxu0 %v3548
    %v3638 = vpop.f32.mrb[0].mxu0
    %v3639 = vadd.f32 0.0, %v3638
    %v3640 = vpop.f32.mrb[0].mxu0
    %v3641 = vpop.f32.mrb[0].mxu0
    %v3642 = vadd.f32 0.0, %v3641
    %v3643 = vpop.f32.mrb[0].mxu0
    %3644 = vmatprep.mubr.bf16.mxu0 %v3553
    %3645 = vmatmul.mubr.bf16.gmra.mrb[0].mxu0 %v3552
    %v3646 = vpop.f32.mrb[0].mxu0
    %v3647 = vadd.f32 0.0, %v3646
    %v3648 = vpop.f32.mrb[0].mxu0
    %v3649 = vpop.f32.mrb[0].mxu0
    %v3650 = vadd.f32 0.0, %v3649
    %v3651 = vpop.f32.mrb[0].mxu0
    %3652 = vdwg.mxu0
    %3653 = vmatprep.subr.bf16.mxu0 0
    %3654 = vmatpush1.bf16.msra.mxu0 %v1291
    %3655 = vmatprep.subr.bf16.mxu0 0
    %3656 = vmatpush1.bf16.msra.mxu0 %v1292
    %3657 = vmatprep.subr.bf16.mxu0 0
    %3658 = vmatpush1.bf16.msra.mxu0 %v1293
    %3659 = vmatprep.subr.bf16.mxu0 0
    %3660 = vmatpush1.bf16.msra.mxu0 %v1294
    %3661 = vmatprep.subr.bf16.mxu0 0
    %3662 = vmatpush1.bf16.msra.mxu0 %v1295
    %3663 = vmatprep.subr.bf16.mxu0 0
    %3664 = vmatpush1.bf16.msra.mxu0 %v1296
    %3665 = vmatprep.subr.bf16.mxu0 0
    %3666 = vmatpush1.bf16.msra.mxu0 %v1297
    %3667 = vmatprep.subr.bf16.mxu0 0
    %3668 = vmatpush1.bf16.msra.mxu0 %v1298
    %3669 = vmatprep.subr.bf16.mxu0 0
    %3670 = vmatpush1.bf16.msra.mxu0 %v1299
    %3671 = vmatprep.subr.bf16.mxu0 0
    %3672 = vmatpush1.bf16.msra.mxu0 %v1300
    %3673 = vmatprep.subr.bf16.mxu0 0
    %3674 = vmatpush1.bf16.msra.mxu0 %v1301
    %3675 = vmatprep.subr.bf16.mxu0 0
    %3676 = vmatpush1.bf16.msra.mxu0 %v1302
    %3677 = vmatprep.subr.bf16.mxu0 0
    %3678 = vmatpush1.bf16.msra.mxu0 %v1303
    %3679 = vmatprep.subr.bf16.mxu0 0
    %3680 = vmatpush1.bf16.msra.mxu0 %v1304
    %3681 = vmatprep.subr.bf16.mxu0 0
    %3682 = vmatpush1.bf16.msra.mxu0 %v1305
    %3683 = vmatprep.subr.bf16.mxu0 0
    %3684 = vmatpush1.bf16.msra.mxu0 %v1306
    %3685 = vmatprep.mubr.bf16.mxu0 %v3527
    %3686 = vmatmul.mubr.bf16.gmra.mrb[0].mxu0 %v3526
    %v3687 = vpop.f32.mrb[0].mxu0
    %v3688 = vadd.f32 %v3591, %v3687
    %v3689 = vpop.f32.mrb[0].mxu0
    %v3690 = vpop.f32.mrb[0].mxu0
    %v3691 = vadd.f32 %v3594, %v3690
    %v3692 = vpop.f32.mrb[0].mxu0
    %3693 = vmatprep.mubr.bf16.mxu0 %v3531
    %3694 = vmatmul.mubr.bf16.gmra.mrb[0].mxu0 %v3530
    %v3695 = vpop.f32.mrb[0].mxu0
    %v3696 = vadd.f32 %v3599, %v3695
    %v3697 = vpop.f32.mrb[0].mxu0
    %v3698 = vpop.f32.mrb[0].mxu0
    %v3699 = vadd.f32 %v3602, %v3698
    %v3700 = vpop.f32.mrb[0].mxu0
    %3701 = vmatprep.mubr.bf16.mxu0 %v3535
    %3702 = vmatmul.mubr.bf16.gmra.mrb[0].mxu0 %v3534
    %v3703 = vpop.f32.mrb[0].mxu0
    %v3704 = vadd.f32 %v3607, %v3703
    %v3705 = vpop.f32.mrb[0].mxu0
    %v3706 = vpop.f32.mrb[0].mxu0
    %v3707 = vadd.f32 %v3610, %v3706
    %v3708 = vpop.f32.mrb[0].mxu0
    %3709 = vmatprep.mubr.bf16.mxu0 %v3539
    %3710 = vmatmul.mubr.bf16.gmra.mrb[0].mxu0 %v3538
    %v3711 = vpop.f32.mrb[0].mxu0
    %v3712 = vadd.f32 %v3615, %v3711
    %v3713 = vpop.f32.mrb[0].mxu0
    %v3714 = vpop.f32.mrb[0].mxu0
    %v3715 = vadd.f32 %v3618, %v3714
    %v3716 = vpop.f32.mrb[0].mxu0
    %3717 = vmatprep.mubr.bf16.mxu0 %v3543
    %3718 = vmatmul.mubr.bf16.gmra.mrb[0].mxu0 %v3542
    %v3719 = vpop.f32.mrb[0].mxu0
    %v3720 = vadd.f32 %v3623, %v3719
    %v3721 = vpop.f32.mrb[0].mxu0
    %v3722 = vpop.f32.mrb[0].mxu0
    %v3723 = vadd.f32 %v3626, %v3722
    %v3724 = vpop.f32.mrb[0].mxu0
    %3725 = vmatprep.mubr.bf16.mxu0 %v3547
    %3726 = vmatmul.mubr.bf16.gmra.mrb[0].mxu0 %v3546
    %v3727 = vpop.f32.mrb[0].mxu0
    %v3728 = vadd.f32 %v3631, %v3727
    %v3729 = vpop.f32.mrb[0].mxu0
    %v3730 = vpop.f32.mrb[0].mxu0
    %v3731 = vadd.f32 %v3634, %v3730
    %v3732 = vpop.f32.mrb[0].mxu0
    %3733 = vmatprep.mubr.bf16.mxu0 %v3551
    %3734 = vmatmul.mubr.bf16.gmra.mrb[0].mxu0 %v3550
    %v3735 = vpop.f32.mrb[0].mxu0
    %v3736 = vadd.f32 %v3639, %v3735
    %v3737 = vpop.f32.mrb[0].mxu0
    %v3738 = vpop.f32.mrb[0].mxu0
    %v3739 = vadd.f32 %v3642, %v3738
    %v3740 = vpop.f32.mrb[0].mxu0
    %3741 = vmatprep.mubr.bf16.mxu0 %v3555
    %3742 = vmatmul.mubr.bf16.gmra.mrb[0].mxu0 %v3554
    %v3743 = vpop.f32.mrb[0].mxu0
    %v3744 = vadd.f32 %v3647, %v3743
    %v3745 = vpop.f32.mrb[0].mxu0
    %v3746 = vpop.f32.mrb[0].mxu0
    %v3747 = vadd.f32 %v3650, %v3746
    %v3748 = vpop.f32.mrb[0].mxu0
    %3749 = vdwg.mxu0
    %v3750 = vpack.c.bf16 %v3691, %v3688
    %v3751 = vpack.c.bf16 %v3699, %v3696
    %v3752 = vpack.c.bf16 %v3707, %v3704
    %v3753 = vpack.c.bf16 %v3715, %v3712
    %v3754 = vpack.c.bf16 %v3723, %v3720
    %v3755 = vpack.c.bf16 %v3731, %v3728
    %v3756 = vpack.c.bf16 %v3739, %v3736
    %v3757 = vpack.c.bf16 %v3747, %v3744
    %s3758 = scalar_lea.vmem %s4, 24
    %v3759 = vld [vmem:[%s3758] sm:$0xf]
    %v3760 = vld [vmem:[%s3758 + $0x4] sm:$0xf]
    %v3763 = vunpack.c.l.b16 %v3759
    %v3764 = vunpack.c.l.b16 %v3760
    %v3765 = vpack.c.b16 %v3764, %v3763
    %v3768 = vsel %vm284, %v3750, 0
    %v3771 = vsel %vm284, %v3751, 0
    %v3774 = vsel %vm284, %v3752, 0
    %v3777 = vsel %vm284, %v3753, 0
    %v3780 = vsel %vm284, %v3754, 0
    %v3783 = vsel %vm284, %v3755, 0
    %v3786 = vsel %vm284, %v3756, 0
    %v3789 = vsel %vm284, %v3757, 0
    %3791 = vmatprep.subr.bf16.mxu0 0
    %3792 = vmatpush1.bf16.msra.mxu0 %v3765
    %3793 = vmatprep.subr.bf16.mxu0 0
    %3794 = vmatpush1.bf16.msra.mxu0 0
    %3795 = vmatprep.subr.bf16.mxu0 0
    %3796 = vmatpush1.bf16.msra.mxu0 0
    %3797 = vmatprep.subr.bf16.mxu0 0
    %3798 = vmatpush1.bf16.msra.mxu0 0
    %3799 = vmatprep.subr.bf16.mxu0 0
    %3800 = vmatpush1.bf16.msra.mxu0 0
    %3801 = vmatprep.subr.bf16.mxu0 0
    %3802 = vmatpush1.bf16.msra.mxu0 0
    %3803 = vmatprep.subr.bf16.mxu0 0
    %3804 = vmatpush1.bf16.msra.mxu0 0
    %3805 = vmatprep.subr.bf16.mxu0 0
    %3806 = vmatpush1.bf16.msra.mxu0 0
    %3807 = vmatprep.subr.bf16.mxu0 0
    %3808 = vmatpush1.bf16.msra.mxu0 0
    %3809 = vmatprep.subr.bf16.mxu0 0
    %3810 = vmatpush1.bf16.msra.mxu0 0
    %3811 = vmatprep.subr.bf16.mxu0 0
    %3812 = vmatpush1.bf16.msra.mxu0 0
    %3813 = vmatprep.subr.bf16.mxu0 0
    %3814 = vmatpush1.bf16.msra.mxu0 0
    %3815 = vmatprep.subr.bf16.mxu0 0
    %3816 = vmatpush1.bf16.msra.mxu0 0
    %3817 = vmatprep.subr.bf16.mxu0 0
    %3818 = vmatpush1.bf16.msra.mxu0 0
    %3819 = vmatprep.subr.bf16.mxu0 0
    %3820 = vmatpush1.bf16.msra.mxu0 0
    %3821 = vmatprep.subr.bf16.mxu0 0
    %3822 = vmatpush1.bf16.msra.mxu0 0
    %3823 = vmatprep.mubr.bf16.mxu0 0
    %3824 = vmatmul.mubr.bf16.gmra.mrb[0].mxu0 %v3768
    %v3825 = vpop.f32.mrb[0].mxu0
    %v3826 = vadd.f32 0.0, %v3825
    %v3827 = vpop.f32.mrb[0].mxu0
    %v3828 = vpop.f32.mrb[0].mxu0
    %v3829 = vadd.f32 0.0, %v3828
    %v3830 = vpop.f32.mrb[0].mxu0
    %3831 = vmatprep.mubr.bf16.mxu0 0
    %3832 = vmatmul.mubr.bf16.gmra.mrb[0].mxu0 %v3771
    %v3833 = vpop.f32.mrb[0].mxu0
    %v3834 = vadd.f32 0.0, %v3833
    %v3835 = vpop.f32.mrb[0].mxu0
    %v3836 = vpop.f32.mrb[0].mxu0
    %v3837 = vadd.f32 0.0, %v3836
    %v3838 = vpop.f32.mrb[0].mxu0
    %3839 = vmatprep.mubr.bf16.mxu0 0
    %3840 = vmatmul.mubr.bf16.gmra.mrb[0].mxu0 %v3774
    %v3841 = vpop.f32.mrb[0].mxu0
    %v3842 = vadd.f32 0.0, %v3841
    %v3843 = vpop.f32.mrb[0].mxu0
    %v3844 = vpop.f32.mrb[0].mxu0
    %v3845 = vadd.f32 0.0, %v3844
    %v3846 = vpop.f32.mrb[0].mxu0
    %3847 = vmatprep.mubr.bf16.mxu0 0
    %3848 = vmatmul.mubr.bf16.gmra.mrb[0].mxu0 %v3777
    %v3849 = vpop.f32.mrb[0].mxu0
    %v3850 = vadd.f32 0.0, %v3849
    %v3851 = vpop.f32.mrb[0].mxu0
    %v3852 = vpop.f32.mrb[0].mxu0
    %v3853 = vadd.f32 0.0, %v3852
    %v3854 = vpop.f32.mrb[0].mxu0
    %3855 = vmatprep.mubr.bf16.mxu0 0
    %3856 = vmatmul.mubr.bf16.gmra.mrb[0].mxu0 %v3780
    %v3857 = vpop.f32.mrb[0].mxu0
    %v3858 = vadd.f32 0.0, %v3857
    %v3859 = vpop.f32.mrb[0].mxu0
    %v3860 = vpop.f32.mrb[0].mxu0
    %v3861 = vadd.f32 0.0, %v3860
    %v3862 = vpop.f32.mrb[0].mxu0
    %3863 = vmatprep.mubr.bf16.mxu0 0
    %3864 = vmatmul.mubr.bf16.gmra.mrb[0].mxu0 %v3783
    %v3865 = vpop.f32.mrb[0].mxu0
    %v3866 = vadd.f32 0.0, %v3865
    %v3867 = vpop.f32.mrb[0].mxu0
    %v3868 = vpop.f32.mrb[0].mxu0
    %v3869 = vadd.f32 0.0, %v3868
    %v3870 = vpop.f32.mrb[0].mxu0
    %3871 = vmatprep.mubr.bf16.mxu0 0
    %3872 = vmatmul.mubr.bf16.gmra.mrb[0].mxu0 %v3786
    %v3873 = vpop.f32.mrb[0].mxu0
    %v3874 = vadd.f32 0.0, %v3873
    %v3875 = vpop.f32.mrb[0].mxu0
    %v3876 = vpop.f32.mrb[0].mxu0
    %v3877 = vadd.f32 0.0, %v3876
    %v3878 = vpop.f32.mrb[0].mxu0
    %3879 = vmatprep.mubr.bf16.mxu0 0
    %3880 = vmatmul.mubr.bf16.gmra.mrb[0].mxu0 %v3789
    %v3881 = vpop.f32.mrb[0].mxu0
    %v3882 = vadd.f32 0.0, %v3881
    %v3883 = vpop.f32.mrb[0].mxu0
    %v3884 = vpop.f32.mrb[0].mxu0
    %v3885 = vadd.f32 0.0, %v3884
    %v3886 = vpop.f32.mrb[0].mxu0
    %3887 = vdwg.mxu0
    %v3888 = vadd.f32 %v3316, %v3826
    %v3889 = vadd.f32 %v3317, %v3829
    %v3890 = vadd.f32 %v3318, %v3834
    %v3891 = vadd.f32 %v3319, %v3837
    %v3892 = vadd.f32 %v3320, %v3842
    %v3893 = vadd.f32 %v3321, %v3845
    %v3894 = vadd.f32 %v3322, %v3850
    %v3895 = vadd.f32 %v3323, %v3853
    %v3896 = vadd.f32 %v3324, %v3858
    %v3897 = vadd.f32 %v3325, %v3861
    %v3898 = vadd.f32 %v3326, %v3866
    %v3899 = vadd.f32 %v3327, %v3869
    %v3900 = vadd.f32 %v3328, %v3874
    %v3901 = vadd.f32 %v3329, %v3877
    %v3902 = vadd.f32 %v3330, %v3882
    %v3903 = vadd.f32 %v3331, %v3885
    %vm3904 = vcmp.eq.s32.totalorder %v1489, 17
    %vm3905 = vcmp.eq.s32.totalorder %v1490, 17
    %vm3906 = vcmp.eq.s32.totalorder %v1491, 17
    %vm3907 = vcmp.eq.s32.totalorder %v1492, 17
    %vm3908 = vcmp.eq.s32.totalorder %v1493, 17
    %vm3909 = vcmp.eq.s32.totalorder %v1494, 17
    %vm3910 = vcmp.eq.s32.totalorder %v1495, 17
    %vm3911 = vcmp.eq.s32.totalorder %v1496, 17
    %vm3912 = vcmp.eq.s32.totalorder %v1497, 17
    %vm3913 = vcmp.eq.s32.totalorder %v1498, 17
    %vm3914 = vcmp.eq.s32.totalorder %v1499, 17
    %vm3915 = vcmp.eq.s32.totalorder %v1500, 17
    %vm3916 = vcmp.eq.s32.totalorder %v1501, 17
    %vm3917 = vcmp.eq.s32.totalorder %v1502, 17
    %vm3918 = vcmp.eq.s32.totalorder %v1503, 17
    %vm3919 = vcmp.eq.s32.totalorder %v1504, 17
    %vm3920 = vcmp.eq.s32.totalorder %v1505, 17
    %vm3921 = vcmp.eq.s32.totalorder %v1506, 17
    %vm3922 = vcmp.eq.s32.totalorder %v1507, 17
    %vm3923 = vcmp.eq.s32.totalorder %v1508, 17
    %vm3924 = vcmp.eq.s32.totalorder %v1509, 17
    %vm3925 = vcmp.eq.s32.totalorder %v1510, 17
    %vm3926 = vcmp.eq.s32.totalorder %v1511, 17
    %vm3927 = vcmp.eq.s32.totalorder %v1512, 17
    %vm3928 = vcmp.eq.s32.totalorder %v1513, 17
    %vm3929 = vcmp.eq.s32.totalorder %v1514, 17
    %vm3930 = vcmp.eq.s32.totalorder %v1515, 17
    %vm3931 = vcmp.eq.s32.totalorder %v1516, 17
    %vm3932 = vcmp.eq.s32.totalorder %v1517, 17
    %vm3933 = vcmp.eq.s32.totalorder %v1518, 17
    %vm3934 = vcmp.eq.s32.totalorder %v1519, 17
    %vm3935 = vcmp.eq.s32.totalorder %v1520, 17
    %vm3936 = vcmp.eq.s32.totalorder %v1521, 17
    %vm3937 = vcmp.eq.s32.totalorder %v1522, 17
    %vm3938 = vcmp.eq.s32.totalorder %v1523, 17
    %vm3939 = vcmp.eq.s32.totalorder %v1524, 17
    %vm3940 = vcmp.eq.s32.totalorder %v1525, 17
    %vm3941 = vcmp.eq.s32.totalorder %v1526, 17
    %vm3942 = vcmp.eq.s32.totalorder %v1527, 17
    %vm3943 = vcmp.eq.s32.totalorder %v1528, 17
    %vm3944 = vcmp.eq.s32.totalorder %v1529, 17
    %vm3945 = vcmp.eq.s32.totalorder %v1530, 17
    %vm3946 = vcmp.eq.s32.totalorder %v1531, 17
    %vm3947 = vcmp.eq.s32.totalorder %v1532, 17
    %vm3948 = vcmp.eq.s32.totalorder %v1533, 17
    %vm3949 = vcmp.eq.s32.totalorder %v1534, 17
    %vm3950 = vcmp.eq.s32.totalorder %v1535, 17
    %vm3951 = vcmp.eq.s32.totalorder %v1536, 17
    %vm3952 = vcmp.eq.s32.totalorder %v1537, 17
    %vm3953 = vcmp.eq.s32.totalorder %v1538, 17
    %vm3954 = vcmp.eq.s32.totalorder %v1539, 17
    %vm3955 = vcmp.eq.s32.totalorder %v1540, 17
    %vm3956 = vcmp.eq.s32.totalorder %v1541, 17
    %vm3957 = vcmp.eq.s32.totalorder %v1542, 17
    %vm3958 = vcmp.eq.s32.totalorder %v1543, 17
    %vm3959 = vcmp.eq.s32.totalorder %v1544, 17
    %vm3960 = vcmp.eq.s32.totalorder %v1545, 17
    %vm3961 = vcmp.eq.s32.totalorder %v1546, 17
    %vm3962 = vcmp.eq.s32.totalorder %v1547, 17
    %vm3963 = vcmp.eq.s32.totalorder %v1548, 17
    %vm3964 = vcmp.eq.s32.totalorder %v1549, 17
    %vm3965 = vcmp.eq.s32.totalorder %v1550, 17
    %vm3966 = vcmp.eq.s32.totalorder %v1551, 17
    %vm3967 = vcmp.eq.s32.totalorder %v1552, 17
    %v3968 = vsel %vm3904, 1.0, 0.0
    %v3969 = vsel %vm3905, 1.0, 0.0
    %v3970 = vsel %vm3906, 1.0, 0.0
    %v3971 = vsel %vm3907, 1.0, 0.0
    %v3972 = vsel %vm3908, 1.0, 0.0
    %v3973 = vsel %vm3909, 1.0, 0.0
    %v3974 = vsel %vm3910, 1.0, 0.0
    %v3975 = vsel %vm3911, 1.0, 0.0
    %v3976 = vsel %vm3912, 1.0, 0.0
    %v3977 = vsel %vm3913, 1.0, 0.0
    %v3978 = vsel %vm3914, 1.0, 0.0
    %v3979 = vsel %vm3915, 1.0, 0.0
    %v3980 = vsel %vm3916, 1.0, 0.0
    %v3981 = vsel %vm3917, 1.0, 0.0
    %v3982 = vsel %vm3918, 1.0, 0.0
    %v3983 = vsel %vm3919, 1.0, 0.0
    %v3984 = vsel %vm3920, 1.0, 0.0
    %v3985 = vsel %vm3921, 1.0, 0.0
    %v3986 = vsel %vm3922, 1.0, 0.0
    %v3987 = vsel %vm3923, 1.0, 0.0
    %v3988 = vsel %vm3924, 1.0, 0.0
    %v3989 = vsel %vm3925, 1.0, 0.0
    %v3990 = vsel %vm3926, 1.0, 0.0
    %v3991 = vsel %vm3927, 1.0, 0.0
    %v3992 = vsel %vm3928, 1.0, 0.0
    %v3993 = vsel %vm3929, 1.0, 0.0
    %v3994 = vsel %vm3930, 1.0, 0.0
    %v3995 = vsel %vm3931, 1.0, 0.0
    %v3996 = vsel %vm3932, 1.0, 0.0
    %v3997 = vsel %vm3933, 1.0, 0.0
    %v3998 = vsel %vm3934, 1.0, 0.0
    %v3999 = vsel %vm3935, 1.0, 0.0
    %v4000 = vsel %vm3936, 1.0, 0.0
    %v4001 = vsel %vm3937, 1.0, 0.0
    %v4002 = vsel %vm3938, 1.0, 0.0
    %v4003 = vsel %vm3939, 1.0, 0.0
    %v4004 = vsel %vm3940, 1.0, 0.0
    %v4005 = vsel %vm3941, 1.0, 0.0
    %v4006 = vsel %vm3942, 1.0, 0.0
    %v4007 = vsel %vm3943, 1.0, 0.0
    %v4008 = vsel %vm3944, 1.0, 0.0
    %v4009 = vsel %vm3945, 1.0, 0.0
    %v4010 = vsel %vm3946, 1.0, 0.0
    %v4011 = vsel %vm3947, 1.0, 0.0
    %v4012 = vsel %vm3948, 1.0, 0.0
    %v4013 = vsel %vm3949, 1.0, 0.0
    %v4014 = vsel %vm3950, 1.0, 0.0
    %v4015 = vsel %vm3951, 1.0, 0.0
    %v4016 = vsel %vm3952, 1.0, 0.0
    %v4017 = vsel %vm3953, 1.0, 0.0
    %v4018 = vsel %vm3954, 1.0, 0.0
    %v4019 = vsel %vm3955, 1.0, 0.0
    %v4020 = vsel %vm3956, 1.0, 0.0
    %v4021 = vsel %vm3957, 1.0, 0.0
    %v4022 = vsel %vm3958, 1.0, 0.0
    %v4023 = vsel %vm3959, 1.0, 0.0
    %v4024 = vsel %vm3960, 1.0, 0.0
    %v4025 = vsel %vm3961, 1.0, 0.0
    %v4026 = vsel %vm3962, 1.0, 0.0
    %v4027 = vsel %vm3963, 1.0, 0.0
    %v4028 = vsel %vm3964, 1.0, 0.0
    %v4029 = vsel %vm3965, 1.0, 0.0
    %v4030 = vsel %vm3966, 1.0, 0.0
    %v4031 = vsel %vm3967, 1.0, 0.0
    %v4032 = vpack.c.bf16 %v3972, %v3968
    %v4033 = vpack.c.bf16 %v3973, %v3969
    %v4034 = vpack.c.bf16 %v3974, %v3970
    %v4035 = vpack.c.bf16 %v3975, %v3971
    %v4036 = vpack.c.bf16 %v3980, %v3976
    %v4037 = vpack.c.bf16 %v3981, %v3977
    %v4038 = vpack.c.bf16 %v3982, %v3978
    %v4039 = vpack.c.bf16 %v3983, %v3979
    %v4040 = vpack.c.bf16 %v3988, %v3984
    %v4041 = vpack.c.bf16 %v3989, %v3985
    %v4042 = vpack.c.bf16 %v3990, %v3986
    %v4043 = vpack.c.bf16 %v3991, %v3987
    %v4044 = vpack.c.bf16 %v3996, %v3992
    %v4045 = vpack.c.bf16 %v3997, %v3993
    %v4046 = vpack.c.bf16 %v3998, %v3994
    %v4047 = vpack.c.bf16 %v3999, %v3995
    %v4048 = vpack.c.bf16 %v4004, %v4000
    %v4049 = vpack.c.bf16 %v4005, %v4001
    %v4050 = vpack.c.bf16 %v4006, %v4002
    %v4051 = vpack.c.bf16 %v4007, %v4003
    %v4052 = vpack.c.bf16 %v4012, %v4008
    %v4053 = vpack.c.bf16 %v4013, %v4009
    %v4054 = vpack.c.bf16 %v4014, %v4010
    %v4055 = vpack.c.bf16 %v4015, %v4011
    %v4056 = vpack.c.bf16 %v4020, %v4016
    %v4057 = vpack.c.bf16 %v4021, %v4017
    %v4058 = vpack.c.bf16 %v4022, %v4018
    %v4059 = vpack.c.bf16 %v4023, %v4019
    %v4060 = vpack.c.bf16 %v4028, %v4024
    %v4061 = vpack.c.bf16 %v4029, %v4025
    %v4062 = vpack.c.bf16 %v4030, %v4026
    %v4063 = vpack.c.bf16 %v4031, %v4027
    %4064 = vmatprep.subr.bf16.mxu0 0
    %4065 = vmatpush1.bf16.msra.mxu0 %v1275
    %4066 = vmatprep.subr.bf16.mxu0 0
    %4067 = vmatpush1.bf16.msra.mxu0 %v1276
    %4068 = vmatprep.subr.bf16.mxu0 0
    %4069 = vmatpush1.bf16.msra.mxu0 %v1277
    %4070 = vmatprep.subr.bf16.mxu0 0
    %4071 = vmatpush1.bf16.msra.mxu0 %v1278
    %4072 = vmatprep.subr.bf16.mxu0 0
    %4073 = vmatpush1.bf16.msra.mxu0 %v1279
    %4074 = vmatprep.subr.bf16.mxu0 0
    %4075 = vmatpush1.bf16.msra.mxu0 %v1280
    %4076 = vmatprep.subr.bf16.mxu0 0
    %4077 = vmatpush1.bf16.msra.mxu0 %v1281
    %4078 = vmatprep.subr.bf16.mxu0 0
    %4079 = vmatpush1.bf16.msra.mxu0 %v1282
    %4080 = vmatprep.subr.bf16.mxu0 0
    %4081 = vmatpush1.bf16.msra.mxu0 %v1283
    %4082 = vmatprep.subr.bf16.mxu0 0
    %4083 = vmatpush1.bf16.msra.mxu0 %v1284
    %4084 = vmatprep.subr.bf16.mxu0 0
    %4085 = vmatpush1.bf16.msra.mxu0 %v1285
    %4086 = vmatprep.subr.bf16.mxu0 0
    %4087 = vmatpush1.bf16.msra.mxu0 %v1286
    %4088 = vmatprep.subr.bf16.mxu0 0
    %4089 = vmatpush1.bf16.msra.mxu0 %v1287
    %4090 = vmatprep.subr.bf16.mxu0 0
    %4091 = vmatpush1.bf16.msra.mxu0 %v1288
    %4092 = vmatprep.subr.bf16.mxu0 0
    %4093 = vmatpush1.bf16.msra.mxu0 %v1289
    %4094 = vmatprep.subr.bf16.mxu0 0
    %4095 = vmatpush1.bf16.msra.mxu0 %v1290
    %4096 = vmatprep.mubr.bf16.mxu0 %v4033
    %4097 = vmatmul.mubr.bf16.gmra.mrb[0].mxu0 %v4032
    %v4098 = vpop.f32.mrb[0].mxu0
    %v4099 = vadd.f32 0.0, %v4098
    %v4100 = vpop.f32.mrb[0].mxu0
    %v4101 = vpop.f32.mrb[0].mxu0
    %v4102 = vadd.f32 0.0, %v4101
    %v4103 = vpop.f32.mrb[0].mxu0
    %4104 = vmatprep.mubr.bf16.mxu0 %v4037
    %4105 = vmatmul.mubr.bf16.gmra.mrb[0].mxu0 %v4036
    %v4106 = vpop.f32.mrb[0].mxu0
    %v4107 = vadd.f32 0.0, %v4106
    %v4108 = vpop.f32.mrb[0].mxu0
    %v4109 = vpop.f32.mrb[0].mxu0
    %v4110 = vadd.f32 0.0, %v4109
    %v4111 = vpop.f32.mrb[0].mxu0
    %4112 = vmatprep.mubr.bf16.mxu0 %v4041
    %4113 = vmatmul.mubr.bf16.gmra.mrb[0].mxu0 %v4040
    %v4114 = vpop.f32.mrb[0].mxu0
    %v4115 = vadd.f32 0.0, %v4114
    %v4116 = vpop.f32.mrb[0].mxu0
    %v4117 = vpop.f32.mrb[0].mxu0
    %v4118 = vadd.f32 0.0, %v4117
    %v4119 = vpop.f32.mrb[0].mxu0
    %4120 = vmatprep.mubr.bf16.mxu0 %v4045
    %4121 = vmatmul.mubr.bf16.gmra.mrb[0].mxu0 %v4044
    %v4122 = vpop.f32.mrb[0].mxu0
    %v4123 = vadd.f32 0.0, %v4122
    %v4124 = vpop.f32.mrb[0].mxu0
    %v4125 = vpop.f32.mrb[0].mxu0
    %v4126 = vadd.f32 0.0, %v4125
    %v4127 = vpop.f32.mrb[0].mxu0
    %4128 = vmatprep.mubr.bf16.mxu0 %v4049
    %4129 = vmatmul.mubr.bf16.gmra.mrb[0].mxu0 %v4048
    %v4130 = vpop.f32.mrb[0].mxu0
    %v4131 = vadd.f32 0.0, %v4130
    %v4132 = vpop.f32.mrb[0].mxu0
    %v4133 = vpop.f32.mrb[0].mxu0
    %v4134 = vadd.f32 0.0, %v4133
    %v4135 = vpop.f32.mrb[0].mxu0
    %4136 = vmatprep.mubr.bf16.mxu0 %v4053
    %4137 = vmatmul.mubr.bf16.gmra.mrb[0].mxu0 %v4052
    %v4138 = vpop.f32.mrb[0].mxu0
    %v4139 = vadd.f32 0.0, %v4138
    %v4140 = vpop.f32.mrb[0].mxu0
    %v4141 = vpop.f32.mrb[0].mxu0
    %v4142 = vadd.f32 0.0, %v4141
    %v4143 = vpop.f32.mrb[0].mxu0
    %4144 = vmatprep.mubr.bf16.mxu0 %v4057
    %4145 = vmatmul.mubr.bf16.gmra.mrb[0].mxu0 %v4056
    %v4146 = vpop.f32.mrb[0].mxu0
    %v4147 = vadd.f32 0.0, %v4146
    %v4148 = vpop.f32.mrb[0].mxu0
    %v4149 = vpop.f32.mrb[0].mxu0
    %v4150 = vadd.f32 0.0, %v4149
    %v4151 = vpop.f32.mrb[0].mxu0
    %4152 = vmatprep.mubr.bf16.mxu0 %v4061
    %4153 = vmatmul.mubr.bf16.gmra.mrb[0].mxu0 %v4060
    %v4154 = vpop.f32.mrb[0].mxu0
    %v4155 = vadd.f32 0.0, %v4154
    %v4156 = vpop.f32.mrb[0].mxu0
    %v4157 = vpop.f32.mrb[0].mxu0
    %v4158 = vadd.f32 0.0, %v4157
    %v4159 = vpop.f32.mrb[0].mxu0
    %4160 = vdwg.mxu0
    %4161 = vmatprep.subr.bf16.mxu0 0
    %4162 = vmatpush1.bf16.msra.mxu0 %v1291
    %4163 = vmatprep.subr.bf16.mxu0 0
    %4164 = vmatpush1.bf16.msra.mxu0 %v1292
    %4165 = vmatprep.subr.bf16.mxu0 0
    %4166 = vmatpush1.bf16.msra.mxu0 %v1293
    %4167 = vmatprep.subr.bf16.mxu0 0
    %4168 = vmatpush1.bf16.msra.mxu0 %v1294
    %4169 = vmatprep.subr.bf16.mxu0 0
    %4170 = vmatpush1.bf16.msra.mxu0 %v1295
    %4171 = vmatprep.subr.bf16.mxu0 0
    %4172 = vmatpush1.bf16.msra.mxu0 %v1296
    %4173 = vmatprep.subr.bf16.mxu0 0
    %4174 = vmatpush1.bf16.msra.mxu0 %v1297
    %4175 = vmatprep.subr.bf16.mxu0 0
    %4176 = vmatpush1.bf16.msra.mxu0 %v1298
    %4177 = vmatprep.subr.bf16.mxu0 0
    %4178 = vmatpush1.bf16.msra.mxu0 %v1299
    %4179 = vmatprep.subr.bf16.mxu0 0
    %4180 = vmatpush1.bf16.msra.mxu0 %v1300
    %4181 = vmatprep.subr.bf16.mxu0 0
    %4182 = vmatpush1.bf16.msra.mxu0 %v1301
    %4183 = vmatprep.subr.bf16.mxu0 0
    %4184 = vmatpush1.bf16.msra.mxu0 %v1302
    %4185 = vmatprep.subr.bf16.mxu0 0
    %4186 = vmatpush1.bf16.msra.mxu0 %v1303
    %4187 = vmatprep.subr.bf16.mxu0 0
    %4188 = vmatpush1.bf16.msra.mxu0 %v1304
    %4189 = vmatprep.subr.bf16.mxu0 0
    %4190 = vmatpush1.bf16.msra.mxu0 %v1305
    %4191 = vmatprep.subr.bf16.mxu0 0
    %4192 = vmatpush1.bf16.msra.mxu0 %v1306
    %4193 = vmatprep.mubr.bf16.mxu0 %v4035
    %4194 = vmatmul.mubr.bf16.gmra.mrb[0].mxu0 %v4034
    %v4195 = vpop.f32.mrb[0].mxu0
    %v4196 = vadd.f32 %v4099, %v4195
    %v4197 = vpop.f32.mrb[0].mxu0
    %v4198 = vpop.f32.mrb[0].mxu0
    %v4199 = vadd.f32 %v4102, %v4198
    %v4200 = vpop.f32.mrb[0].mxu0
    %4201 = vmatprep.mubr.bf16.mxu0 %v4039
    %4202 = vmatmul.mubr.bf16.gmra.mrb[0].mxu0 %v4038
    %v4203 = vpop.f32.mrb[0].mxu0
    %v4204 = vadd.f32 %v4107, %v4203
    %v4205 = vpop.f32.mrb[0].mxu0
    %v4206 = vpop.f32.mrb[0].mxu0
    %v4207 = vadd.f32 %v4110, %v4206
    %v4208 = vpop.f32.mrb[0].mxu0
    %4209 = vmatprep.mubr.bf16.mxu0 %v4043
    %4210 = vmatmul.mubr.bf16.gmra.mrb[0].mxu0 %v4042
    %v4211 = vpop.f32.mrb[0].mxu0
    %v4212 = vadd.f32 %v4115, %v4211
    %v4213 = vpop.f32.mrb[0].mxu0
    %v4214 = vpop.f32.mrb[0].mxu0
    %v4215 = vadd.f32 %v4118, %v4214
    %v4216 = vpop.f32.mrb[0].mxu0
    %4217 = vmatprep.mubr.bf16.mxu0 %v4047
    %4218 = vmatmul.mubr.bf16.gmra.mrb[0].mxu0 %v4046
    %v4219 = vpop.f32.mrb[0].mxu0
    %v4220 = vadd.f32 %v4123, %v4219
    %v4221 = vpop.f32.mrb[0].mxu0
    %v4222 = vpop.f32.mrb[0].mxu0
    %v4223 = vadd.f32 %v4126, %v4222
    %v4224 = vpop.f32.mrb[0].mxu0
    %4225 = vmatprep.mubr.bf16.mxu0 %v4051
    %4226 = vmatmul.mubr.bf16.gmra.mrb[0].mxu0 %v4050
    %v4227 = vpop.f32.mrb[0].mxu0
    %v4228 = vadd.f32 %v4131, %v4227
    %v4229 = vpop.f32.mrb[0].mxu0
    %v4230 = vpop.f32.mrb[0].mxu0
    %v4231 = vadd.f32 %v4134, %v4230
    %v4232 = vpop.f32.mrb[0].mxu0
    %4233 = vmatprep.mubr.bf16.mxu0 %v4055
    %4234 = vmatmul.mubr.bf16.gmra.mrb[0].mxu0 %v4054
    %v4235 = vpop.f32.mrb[0].mxu0
    %v4236 = vadd.f32 %v4139, %v4235
    %v4237 = vpop.f32.mrb[0].mxu0
    %v4238 = vpop.f32.mrb[0].mxu0
    %v4239 = vadd.f32 %v4142, %v4238
    %v4240 = vpop.f32.mrb[0].mxu0
    %4241 = vmatprep.mubr.bf16.mxu0 %v4059
    %4242 = vmatmul.mubr.bf16.gmra.mrb[0].mxu0 %v4058
    %v4243 = vpop.f32.mrb[0].mxu0
    %v4244 = vadd.f32 %v4147, %v4243
    %v4245 = vpop.f32.mrb[0].mxu0
    %v4246 = vpop.f32.mrb[0].mxu0
    %v4247 = vadd.f32 %v4150, %v4246
    %v4248 = vpop.f32.mrb[0].mxu0
    %4249 = vmatprep.mubr.bf16.mxu0 %v4063
    %4250 = vmatmul.mubr.bf16.gmra.mrb[0].mxu0 %v4062
    %v4251 = vpop.f32.mrb[0].mxu0
    %v4252 = vadd.f32 %v4155, %v4251
    %v4253 = vpop.f32.mrb[0].mxu0
    %v4254 = vpop.f32.mrb[0].mxu0
    %v4255 = vadd.f32 %v4158, %v4254
    %v4256 = vpop.f32.mrb[0].mxu0
    %4257 = vdwg.mxu0
    %v4258 = vpack.c.bf16 %v4199, %v4196
    %v4259 = vpack.c.bf16 %v4207, %v4204
    %v4260 = vpack.c.bf16 %v4215, %v4212
    %v4261 = vpack.c.bf16 %v4223, %v4220
    %v4262 = vpack.c.bf16 %v4231, %v4228
    %v4263 = vpack.c.bf16 %v4239, %v4236
    %v4264 = vpack.c.bf16 %v4247, %v4244
    %v4265 = vpack.c.bf16 %v4255, %v4252
    %s4266 = scalar_lea.vmem %s4, 32
    %v4267 = vld [vmem:[%s4266] sm:$0xf]
    %v4268 = vld [vmem:[%s4266 + $0x4] sm:$0xf]
    %v4271 = vunpack.c.l.b16 %v4267
    %v4272 = vunpack.c.l.b16 %v4268
    %v4273 = vpack.c.b16 %v4272, %v4271
    %v4276 = vsel %vm284, %v4258, 0
    %v4279 = vsel %vm284, %v4259, 0
    %v4282 = vsel %vm284, %v4260, 0
    %v4285 = vsel %vm284, %v4261, 0
    %v4288 = vsel %vm284, %v4262, 0
    %v4291 = vsel %vm284, %v4263, 0
    %v4294 = vsel %vm284, %v4264, 0
    %v4297 = vsel %vm284, %v4265, 0
    %4299 = vmatprep.subr.bf16.mxu0 0
    %4300 = vmatpush1.bf16.msra.mxu0 %v4273
    %4301 = vmatprep.subr.bf16.mxu0 0
    %4302 = vmatpush1.bf16.msra.mxu0 0
    %4303 = vmatprep.subr.bf16.mxu0 0
    %4304 = vmatpush1.bf16.msra.mxu0 0
    %4305 = vmatprep.subr.bf16.mxu0 0
    %4306 = vmatpush1.bf16.msra.mxu0 0
    %4307 = vmatprep.subr.bf16.mxu0 0
    %4308 = vmatpush1.bf16.msra.mxu0 0
    %4309 = vmatprep.subr.bf16.mxu0 0
    %4310 = vmatpush1.bf16.msra.mxu0 0
    %4311 = vmatprep.subr.bf16.mxu0 0
    %4312 = vmatpush1.bf16.msra.mxu0 0
    %4313 = vmatprep.subr.bf16.mxu0 0
    %4314 = vmatpush1.bf16.msra.mxu0 0
    %4315 = vmatprep.subr.bf16.mxu0 0
    %4316 = vmatpush1.bf16.msra.mxu0 0
    %4317 = vmatprep.subr.bf16.mxu0 0
    %4318 = vmatpush1.bf16.msra.mxu0 0
    %4319 = vmatprep.subr.bf16.mxu0 0
    %4320 = vmatpush1.bf16.msra.mxu0 0
    %4321 = vmatprep.subr.bf16.mxu0 0
    %4322 = vmatpush1.bf16.msra.mxu0 0
    %4323 = vmatprep.subr.bf16.mxu0 0
    %4324 = vmatpush1.bf16.msra.mxu0 0
    %4325 = vmatprep.subr.bf16.mxu0 0
    %4326 = vmatpush1.bf16.msra.mxu0 0
    %4327 = vmatprep.subr.bf16.mxu0 0
    %4328 = vmatpush1.bf16.msra.mxu0 0
    %4329 = vmatprep.subr.bf16.mxu0 0
    %4330 = vmatpush1.bf16.msra.mxu0 0
    %4331 = vmatprep.mubr.bf16.mxu0 0
    %4332 = vmatmul.mubr.bf16.gmra.mrb[0].mxu0 %v4276
    %v4333 = vpop.f32.mrb[0].mxu0
    %v4334 = vadd.f32 0.0, %v4333
    %v4335 = vpop.f32.mrb[0].mxu0
    %v4336 = vpop.f32.mrb[0].mxu0
    %v4337 = vadd.f32 0.0, %v4336
    %v4338 = vpop.f32.mrb[0].mxu0
    %4339 = vmatprep.mubr.bf16.mxu0 0
    %4340 = vmatmul.mubr.bf16.gmra.mrb[0].mxu0 %v4279
    %v4341 = vpop.f32.mrb[0].mxu0
    %v4342 = vadd.f32 0.0, %v4341
    %v4343 = vpop.f32.mrb[0].mxu0
    %v4344 = vpop.f32.mrb[0].mxu0
    %v4345 = vadd.f32 0.0, %v4344
    %v4346 = vpop.f32.mrb[0].mxu0
    %4347 = vmatprep.mubr.bf16.mxu0 0
    %4348 = vmatmul.mubr.bf16.gmra.mrb[0].mxu0 %v4282
    %v4349 = vpop.f32.mrb[0].mxu0
    %v4350 = vadd.f32 0.0, %v4349
    %v4351 = vpop.f32.mrb[0].mxu0
    %v4352 = vpop.f32.mrb[0].mxu0
    %v4353 = vadd.f32 0.0, %v4352
    %v4354 = vpop.f32.mrb[0].mxu0
    %4355 = vmatprep.mubr.bf16.mxu0 0
    %4356 = vmatmul.mubr.bf16.gmra.mrb[0].mxu0 %v4285
    %v4357 = vpop.f32.mrb[0].mxu0
    %v4358 = vadd.f32 0.0, %v4357
    %v4359 = vpop.f32.mrb[0].mxu0
    %v4360 = vpop.f32.mrb[0].mxu0
    %v4361 = vadd.f32 0.0, %v4360
    %v4362 = vpop.f32.mrb[0].mxu0
    %4363 = vmatprep.mubr.bf16.mxu0 0
    %4364 = vmatmul.mubr.bf16.gmra.mrb[0].mxu0 %v4288
    %v4365 = vpop.f32.mrb[0].mxu0
    %v4366 = vadd.f32 0.0, %v4365
    %v4367 = vpop.f32.mrb[0].mxu0
    %v4368 = vpop.f32.mrb[0].mxu0
    %v4369 = vadd.f32 0.0, %v4368
    %v4370 = vpop.f32.mrb[0].mxu0
    %4371 = vmatprep.mubr.bf16.mxu0 0
    %4372 = vmatmul.mubr.bf16.gmra.mrb[0].mxu0 %v4291
    %v4373 = vpop.f32.mrb[0].mxu0
    %v4374 = vadd.f32 0.0, %v4373
    %v4375 = vpop.f32.mrb[0].mxu0
    %v4376 = vpop.f32.mrb[0].mxu0
    %v4377 = vadd.f32 0.0, %v4376
    %v4378 = vpop.f32.mrb[0].mxu0
    %4379 = vmatprep.mubr.bf16.mxu0 0
    %4380 = vmatmul.mubr.bf16.gmra.mrb[0].mxu0 %v4294
    %v4381 = vpop.f32.mrb[0].mxu0
    %v4382 = vadd.f32 0.0, %v4381
    %v4383 = vpop.f32.mrb[0].mxu0
    %v4384 = vpop.f32.mrb[0].mxu0
    %v4385 = vadd.f32 0.0, %v4384
    %v4386 = vpop.f32.mrb[0].mxu0
    %4387 = vmatprep.mubr.bf16.mxu0 0
    %4388 = vmatmul.mubr.bf16.gmra.mrb[0].mxu0 %v4297
    %v4389 = vpop.f32.mrb[0].mxu0
    %v4390 = vadd.f32 0.0, %v4389
    %v4391 = vpop.f32.mrb[0].mxu0
    %v4392 = vpop.f32.mrb[0].mxu0
    %v4393 = vadd.f32 0.0, %v4392
    %v4394 = vpop.f32.mrb[0].mxu0
    %4395 = vdwg.mxu0
    %v4396 = vadd.f32 %v3888, %v4334
    %v4397 = vadd.f32 %v3889, %v4337
    %v4398 = vadd.f32 %v3890, %v4342
    %v4399 = vadd.f32 %v3891, %v4345
    %v4400 = vadd.f32 %v3892, %v4350
    %v4401 = vadd.f32 %v3893, %v4353
    %v4402 = vadd.f32 %v3894, %v4358
    %v4403 = vadd.f32 %v3895, %v4361
    %v4404 = vadd.f32 %v3896, %v4366
    %v4405 = vadd.f32 %v3897, %v4369
    %v4406 = vadd.f32 %v3898, %v4374
    %v4407 = vadd.f32 %v3899, %v4377
    %v4408 = vadd.f32 %v3900, %v4382
    %v4409 = vadd.f32 %v3901, %v4385
    %v4410 = vadd.f32 %v3902, %v4390
    %v4411 = vadd.f32 %v3903, %v4393
    %vm4412 = vcmp.eq.s32.totalorder %v1489, 18
    %vm4413 = vcmp.eq.s32.totalorder %v1490, 18
    %vm4414 = vcmp.eq.s32.totalorder %v1491, 18
    %vm4415 = vcmp.eq.s32.totalorder %v1492, 18
    %vm4416 = vcmp.eq.s32.totalorder %v1493, 18
    %vm4417 = vcmp.eq.s32.totalorder %v1494, 18
    %vm4418 = vcmp.eq.s32.totalorder %v1495, 18
    %vm4419 = vcmp.eq.s32.totalorder %v1496, 18
    %vm4420 = vcmp.eq.s32.totalorder %v1497, 18
    %vm4421 = vcmp.eq.s32.totalorder %v1498, 18
    %vm4422 = vcmp.eq.s32.totalorder %v1499, 18
    %vm4423 = vcmp.eq.s32.totalorder %v1500, 18
    %vm4424 = vcmp.eq.s32.totalorder %v1501, 18
    %vm4425 = vcmp.eq.s32.totalorder %v1502, 18
    %vm4426 = vcmp.eq.s32.totalorder %v1503, 18
    %vm4427 = vcmp.eq.s32.totalorder %v1504, 18
    %vm4428 = vcmp.eq.s32.totalorder %v1505, 18
    %vm4429 = vcmp.eq.s32.totalorder %v1506, 18
    %vm4430 = vcmp.eq.s32.totalorder %v1507, 18
    %vm4431 = vcmp.eq.s32.totalorder %v1508, 18
    %vm4432 = vcmp.eq.s32.totalorder %v1509, 18
    %vm4433 = vcmp.eq.s32.totalorder %v1510, 18
    %vm4434 = vcmp.eq.s32.totalorder %v1511, 18
    %vm4435 = vcmp.eq.s32.totalorder %v1512, 18
    %vm4436 = vcmp.eq.s32.totalorder %v1513, 18
    %vm4437 = vcmp.eq.s32.totalorder %v1514, 18
    %vm4438 = vcmp.eq.s32.totalorder %v1515, 18
    %vm4439 = vcmp.eq.s32.totalorder %v1516, 18
    %vm4440 = vcmp.eq.s32.totalorder %v1517, 18
    %vm4441 = vcmp.eq.s32.totalorder %v1518, 18
    %vm4442 = vcmp.eq.s32.totalorder %v1519, 18
    %vm4443 = vcmp.eq.s32.totalorder %v1520, 18
    %vm4444 = vcmp.eq.s32.totalorder %v1521, 18
    %vm4445 = vcmp.eq.s32.totalorder %v1522, 18
    %vm4446 = vcmp.eq.s32.totalorder %v1523, 18
    %vm4447 = vcmp.eq.s32.totalorder %v1524, 18
    %vm4448 = vcmp.eq.s32.totalorder %v1525, 18
    %vm4449 = vcmp.eq.s32.totalorder %v1526, 18
    %vm4450 = vcmp.eq.s32.totalorder %v1527, 18
    %vm4451 = vcmp.eq.s32.totalorder %v1528, 18
    %vm4452 = vcmp.eq.s32.totalorder %v1529, 18
    %vm4453 = vcmp.eq.s32.totalorder %v1530, 18
    %vm4454 = vcmp.eq.s32.totalorder %v1531, 18
    %vm4455 = vcmp.eq.s32.totalorder %v1532, 18
    %vm4456 = vcmp.eq.s32.totalorder %v1533, 18
    %vm4457 = vcmp.eq.s32.totalorder %v1534, 18
    %vm4458 = vcmp.eq.s32.totalorder %v1535, 18
    %vm4459 = vcmp.eq.s32.totalorder %v1536, 18
    %vm4460 = vcmp.eq.s32.totalorder %v1537, 18
    %vm4461 = vcmp.eq.s32.totalorder %v1538, 18
    %vm4462 = vcmp.eq.s32.totalorder %v1539, 18
    %vm4463 = vcmp.eq.s32.totalorder %v1540, 18
    %vm4464 = vcmp.eq.s32.totalorder %v1541, 18
    %vm4465 = vcmp.eq.s32.totalorder %v1542, 18
    %vm4466 = vcmp.eq.s32.totalorder %v1543, 18
    %vm4467 = vcmp.eq.s32.totalorder %v1544, 18
    %vm4468 = vcmp.eq.s32.totalorder %v1545, 18
    %vm4469 = vcmp.eq.s32.totalorder %v1546, 18
    %vm4470 = vcmp.eq.s32.totalorder %v1547, 18
    %vm4471 = vcmp.eq.s32.totalorder %v1548, 18
    %vm4472 = vcmp.eq.s32.totalorder %v1549, 18
    %vm4473 = vcmp.eq.s32.totalorder %v1550, 18
    %vm4474 = vcmp.eq.s32.totalorder %v1551, 18
    %vm4475 = vcmp.eq.s32.totalorder %v1552, 18
    %v4476 = vsel %vm4412, 1.0, 0.0
    %v4477 = vsel %vm4413, 1.0, 0.0
    %v4478 = vsel %vm4414, 1.0, 0.0
    %v4479 = vsel %vm4415, 1.0, 0.0
    %v4480 = vsel %vm4416, 1.0, 0.0
    %v4481 = vsel %vm4417, 1.0, 0.0
    %v4482 = vsel %vm4418, 1.0, 0.0
    %v4483 = vsel %vm4419, 1.0, 0.0
    %v4484 = vsel %vm4420, 1.0, 0.0
    %v4485 = vsel %vm4421, 1.0, 0.0
    %v4486 = vsel %vm4422, 1.0, 0.0
    %v4487 = vsel %vm4423, 1.0, 0.0
    %v4488 = vsel %vm4424, 1.0, 0.0
    %v4489 = vsel %vm4425, 1.0, 0.0
    %v4490 = vsel %vm4426, 1.0, 0.0
    %v4491 = vsel %vm4427, 1.0, 0.0
    %v4492 = vsel %vm4428, 1.0, 0.0
    %v4493 = vsel %vm4429, 1.0, 0.0
    %v4494 = vsel %vm4430, 1.0, 0.0
    %v4495 = vsel %vm4431, 1.0, 0.0
    %v4496 = vsel %vm4432, 1.0, 0.0
    %v4497 = vsel %vm4433, 1.0, 0.0
    %v4498 = vsel %vm4434, 1.0, 0.0
    %v4499 = vsel %vm4435, 1.0, 0.0
    %v4500 = vsel %vm4436, 1.0, 0.0
    %v4501 = vsel %vm4437, 1.0, 0.0
    %v4502 = vsel %vm4438, 1.0, 0.0
    %v4503 = vsel %vm4439, 1.0, 0.0
    %v4504 = vsel %vm4440, 1.0, 0.0
    %v4505 = vsel %vm4441, 1.0, 0.0
    %v4506 = vsel %vm4442, 1.0, 0.0
    %v4507 = vsel %vm4443, 1.0, 0.0
    %v4508 = vsel %vm4444, 1.0, 0.0
    %v4509 = vsel %vm4445, 1.0, 0.0
    %v4510 = vsel %vm4446, 1.0, 0.0
    %v4511 = vsel %vm4447, 1.0, 0.0
    %v4512 = vsel %vm4448, 1.0, 0.0
    %v4513 = vsel %vm4449, 1.0, 0.0
    %v4514 = vsel %vm4450, 1.0, 0.0
    %v4515 = vsel %vm4451, 1.0, 0.0
    %v4516 = vsel %vm4452, 1.0, 0.0
    %v4517 = vsel %vm4453, 1.0, 0.0
    %v4518 = vsel %vm4454, 1.0, 0.0
    %v4519 = vsel %vm4455, 1.0, 0.0
    %v4520 = vsel %vm4456, 1.0, 0.0
    %v4521 = vsel %vm4457, 1.0, 0.0
    %v4522 = vsel %vm4458, 1.0, 0.0
    %v4523 = vsel %vm4459, 1.0, 0.0
    %v4524 = vsel %vm4460, 1.0, 0.0
    %v4525 = vsel %vm4461, 1.0, 0.0
    %v4526 = vsel %vm4462, 1.0, 0.0
    %v4527 = vsel %vm4463, 1.0, 0.0
    %v4528 = vsel %vm4464, 1.0, 0.0
    %v4529 = vsel %vm4465, 1.0, 0.0
    %v4530 = vsel %vm4466, 1.0, 0.0
    %v4531 = vsel %vm4467, 1.0, 0.0
    %v4532 = vsel %vm4468, 1.0, 0.0
    %v4533 = vsel %vm4469, 1.0, 0.0
    %v4534 = vsel %vm4470, 1.0, 0.0
    %v4535 = vsel %vm4471, 1.0, 0.0
    %v4536 = vsel %vm4472, 1.0, 0.0
    %v4537 = vsel %vm4473, 1.0, 0.0
    %v4538 = vsel %vm4474, 1.0, 0.0
    %v4539 = vsel %vm4475, 1.0, 0.0
    %v4540 = vpack.c.bf16 %v4480, %v4476
    %v4541 = vpack.c.bf16 %v4481, %v4477
    %v4542 = vpack.c.bf16 %v4482, %v4478
    %v4543 = vpack.c.bf16 %v4483, %v4479
    %v4544 = vpack.c.bf16 %v4488, %v4484
    %v4545 = vpack.c.bf16 %v4489, %v4485
    %v4546 = vpack.c.bf16 %v4490, %v4486
    %v4547 = vpack.c.bf16 %v4491, %v4487
    %v4548 = vpack.c.bf16 %v4496, %v4492
    %v4549 = vpack.c.bf16 %v4497, %v4493
    %v4550 = vpack.c.bf16 %v4498, %v4494
    %v4551 = vpack.c.bf16 %v4499, %v4495
    %v4552 = vpack.c.bf16 %v4504, %v4500
    %v4553 = vpack.c.bf16 %v4505, %v4501
    %v4554 = vpack.c.bf16 %v4506, %v4502
    %v4555 = vpack.c.bf16 %v4507, %v4503
    %v4556 = vpack.c.bf16 %v4512, %v4508
    %v4557 = vpack.c.bf16 %v4513, %v4509
    %v4558 = vpack.c.bf16 %v4514, %v4510
    %v4559 = vpack.c.bf16 %v4515, %v4511
    %v4560 = vpack.c.bf16 %v4520, %v4516
    %v4561 = vpack.c.bf16 %v4521, %v4517
    %v4562 = vpack.c.bf16 %v4522, %v4518
    %v4563 = vpack.c.bf16 %v4523, %v4519
    %v4564 = vpack.c.bf16 %v4528, %v4524
    %v4565 = vpack.c.bf16 %v4529, %v4525
    %v4566 = vpack.c.bf16 %v4530, %v4526
    %v4567 = vpack.c.bf16 %v4531, %v4527
    %v4568 = vpack.c.bf16 %v4536, %v4532
    %v4569 = vpack.c.bf16 %v4537, %v4533
    %v4570 = vpack.c.bf16 %v4538, %v4534
    %v4571 = vpack.c.bf16 %v4539, %v4535
    %4572 = vmatprep.subr.bf16.mxu0 0
    %4573 = vmatpush1.bf16.msra.mxu0 %v1275
    %4574 = vmatprep.subr.bf16.mxu0 0
    %4575 = vmatpush1.bf16.msra.mxu0 %v1276
    %4576 = vmatprep.subr.bf16.mxu0 0
    %4577 = vmatpush1.bf16.msra.mxu0 %v1277
    %4578 = vmatprep.subr.bf16.mxu0 0
    %4579 = vmatpush1.bf16.msra.mxu0 %v1278
    %4580 = vmatprep.subr.bf16.mxu0 0
    %4581 = vmatpush1.bf16.msra.mxu0 %v1279
    %4582 = vmatprep.subr.bf16.mxu0 0
    %4583 = vmatpush1.bf16.msra.mxu0 %v1280
    %4584 = vmatprep.subr.bf16.mxu0 0
    %4585 = vmatpush1.bf16.msra.mxu0 %v1281
    %4586 = vmatprep.subr.bf16.mxu0 0
    %4587 = vmatpush1.bf16.msra.mxu0 %v1282
    %4588 = vmatprep.subr.bf16.mxu0 0
    %4589 = vmatpush1.bf16.msra.mxu0 %v1283
    %4590 = vmatprep.subr.bf16.mxu0 0
    %4591 = vmatpush1.bf16.msra.mxu0 %v1284
    %4592 = vmatprep.subr.bf16.mxu0 0
    %4593 = vmatpush1.bf16.msra.mxu0 %v1285
    %4594 = vmatprep.subr.bf16.mxu0 0
    %4595 = vmatpush1.bf16.msra.mxu0 %v1286
    %4596 = vmatprep.subr.bf16.mxu0 0
    %4597 = vmatpush1.bf16.msra.mxu0 %v1287
    %4598 = vmatprep.subr.bf16.mxu0 0
    %4599 = vmatpush1.bf16.msra.mxu0 %v1288
    %4600 = vmatprep.subr.bf16.mxu0 0
    %4601 = vmatpush1.bf16.msra.mxu0 %v1289
    %4602 = vmatprep.subr.bf16.mxu0 0
    %4603 = vmatpush1.bf16.msra.mxu0 %v1290
    %4604 = vmatprep.mubr.bf16.mxu0 %v4541
    %4605 = vmatmul.mubr.bf16.gmra.mrb[0].mxu0 %v4540
    %v4606 = vpop.f32.mrb[0].mxu0
    %v4607 = vadd.f32 0.0, %v4606
    %v4608 = vpop.f32.mrb[0].mxu0
    %v4609 = vpop.f32.mrb[0].mxu0
    %v4610 = vadd.f32 0.0, %v4609
    %v4611 = vpop.f32.mrb[0].mxu0
    %4612 = vmatprep.mubr.bf16.mxu0 %v4545
    %4613 = vmatmul.mubr.bf16.gmra.mrb[0].mxu0 %v4544
    %v4614 = vpop.f32.mrb[0].mxu0
    %v4615 = vadd.f32 0.0, %v4614
    %v4616 = vpop.f32.mrb[0].mxu0
    %v4617 = vpop.f32.mrb[0].mxu0
    %v4618 = vadd.f32 0.0, %v4617
    %v4619 = vpop.f32.mrb[0].mxu0
    %4620 = vmatprep.mubr.bf16.mxu0 %v4549
    %4621 = vmatmul.mubr.bf16.gmra.mrb[0].mxu0 %v4548
    %v4622 = vpop.f32.mrb[0].mxu0
    %v4623 = vadd.f32 0.0, %v4622
    %v4624 = vpop.f32.mrb[0].mxu0
    %v4625 = vpop.f32.mrb[0].mxu0
    %v4626 = vadd.f32 0.0, %v4625
    %v4627 = vpop.f32.mrb[0].mxu0
    %4628 = vmatprep.mubr.bf16.mxu0 %v4553
    %4629 = vmatmul.mubr.bf16.gmra.mrb[0].mxu0 %v4552
    %v4630 = vpop.f32.mrb[0].mxu0
    %v4631 = vadd.f32 0.0, %v4630
    %v4632 = vpop.f32.mrb[0].mxu0
    %v4633 = vpop.f32.mrb[0].mxu0
    %v4634 = vadd.f32 0.0, %v4633
    %v4635 = vpop.f32.mrb[0].mxu0
    %4636 = vmatprep.mubr.bf16.mxu0 %v4557
    %4637 = vmatmul.mubr.bf16.gmra.mrb[0].mxu0 %v4556
    %v4638 = vpop.f32.mrb[0].mxu0
    %v4639 = vadd.f32 0.0, %v4638
    %v4640 = vpop.f32.mrb[0].mxu0
    %v4641 = vpop.f32.mrb[0].mxu0
    %v4642 = vadd.f32 0.0, %v4641
    %v4643 = vpop.f32.mrb[0].mxu0
    %4644 = vmatprep.mubr.bf16.mxu0 %v4561
    %4645 = vmatmul.mubr.bf16.gmra.mrb[0].mxu0 %v4560
    %v4646 = vpop.f32.mrb[0].mxu0
    %v4647 = vadd.f32 0.0, %v4646
    %v4648 = vpop.f32.mrb[0].mxu0
    %v4649 = vpop.f32.mrb[0].mxu0
    %v4650 = vadd.f32 0.0, %v4649
    %v4651 = vpop.f32.mrb[0].mxu0
    %4652 = vmatprep.mubr.bf16.mxu0 %v4565
    %4653 = vmatmul.mubr.bf16.gmra.mrb[0].mxu0 %v4564
    %v4654 = vpop.f32.mrb[0].mxu0
    %v4655 = vadd.f32 0.0, %v4654
    %v4656 = vpop.f32.mrb[0].mxu0
    %v4657 = vpop.f32.mrb[0].mxu0
    %v4658 = vadd.f32 0.0, %v4657
    %v4659 = vpop.f32.mrb[0].mxu0
    %4660 = vmatprep.mubr.bf16.mxu0 %v4569
    %4661 = vmatmul.mubr.bf16.gmra.mrb[0].mxu0 %v4568
    %v4662 = vpop.f32.mrb[0].mxu0
    %v4663 = vadd.f32 0.0, %v4662
    %v4664 = vpop.f32.mrb[0].mxu0
    %v4665 = vpop.f32.mrb[0].mxu0
    %v4666 = vadd.f32 0.0, %v4665
    %v4667 = vpop.f32.mrb[0].mxu0
    %4668 = vdwg.mxu0
    %4669 = vmatprep.subr.bf16.mxu0 0
    %4670 = vmatpush1.bf16.msra.mxu0 %v1291
    %4671 = vmatprep.subr.bf16.mxu0 0
    %4672 = vmatpush1.bf16.msra.mxu0 %v1292
    %4673 = vmatprep.subr.bf16.mxu0 0
    %4674 = vmatpush1.bf16.msra.mxu0 %v1293
    %4675 = vmatprep.subr.bf16.mxu0 0
    %4676 = vmatpush1.bf16.msra.mxu0 %v1294
    %4677 = vmatprep.subr.bf16.mxu0 0
    %4678 = vmatpush1.bf16.msra.mxu0 %v1295
    %4679 = vmatprep.subr.bf16.mxu0 0
    %4680 = vmatpush1.bf16.msra.mxu0 %v1296
    %4681 = vmatprep.subr.bf16.mxu0 0
    %4682 = vmatpush1.bf16.msra.mxu0 %v1297
    %4683 = vmatprep.subr.bf16.mxu0 0
    %4684 = vmatpush1.bf16.msra.mxu0 %v1298
    %4685 = vmatprep.subr.bf16.mxu0 0
    %4686 = vmatpush1.bf16.msra.mxu0 %v1299
    %4687 = vmatprep.subr.bf16.mxu0 0
    %4688 = vmatpush1.bf16.msra.mxu0 %v1300
    %4689 = vmatprep.subr.bf16.mxu0 0
    %4690 = vmatpush1.bf16.msra.mxu0 %v1301
    %4691 = vmatprep.subr.bf16.mxu0 0
    %4692 = vmatpush1.bf16.msra.mxu0 %v1302
    %4693 = vmatprep.subr.bf16.mxu0 0
    %4694 = vmatpush1.bf16.msra.mxu0 %v1303
    %4695 = vmatprep.subr.bf16.mxu0 0
    %4696 = vmatpush1.bf16.msra.mxu0 %v1304
    %4697 = vmatprep.subr.bf16.mxu0 0
    %4698 = vmatpush1.bf16.msra.mxu0 %v1305
    %4699 = vmatprep.subr.bf16.mxu0 0
    %4700 = vmatpush1.bf16.msra.mxu0 %v1306
    %4701 = vmatprep.mubr.bf16.mxu0 %v4543
    %4702 = vmatmul.mubr.bf16.gmra.mrb[0].mxu0 %v4542
    %v4703 = vpop.f32.mrb[0].mxu0
    %v4704 = vadd.f32 %v4607, %v4703
    %v4705 = vpop.f32.mrb[0].mxu0
    %v4706 = vpop.f32.mrb[0].mxu0
    %v4707 = vadd.f32 %v4610, %v4706
    %v4708 = vpop.f32.mrb[0].mxu0
    %4709 = vmatprep.mubr.bf16.mxu0 %v4547
    %4710 = vmatmul.mubr.bf16.gmra.mrb[0].mxu0 %v4546
    %v4711 = vpop.f32.mrb[0].mxu0
    %v4712 = vadd.f32 %v4615, %v4711
    %v4713 = vpop.f32.mrb[0].mxu0
    %v4714 = vpop.f32.mrb[0].mxu0
    %v4715 = vadd.f32 %v4618, %v4714
    %v4716 = vpop.f32.mrb[0].mxu0
    %4717 = vmatprep.mubr.bf16.mxu0 %v4551
    %4718 = vmatmul.mubr.bf16.gmra.mrb[0].mxu0 %v4550
    %v4719 = vpop.f32.mrb[0].mxu0
    %v4720 = vadd.f32 %v4623, %v4719
    %v4721 = vpop.f32.mrb[0].mxu0
    %v4722 = vpop.f32.mrb[0].mxu0
    %v4723 = vadd.f32 %v4626, %v4722
    %v4724 = vpop.f32.mrb[0].mxu0
    %4725 = vmatprep.mubr.bf16.mxu0 %v4555
    %4726 = vmatmul.mubr.bf16.gmra.mrb[0].mxu0 %v4554
    %v4727 = vpop.f32.mrb[0].mxu0
    %v4728 = vadd.f32 %v4631, %v4727
    %v4729 = vpop.f32.mrb[0].mxu0
    %v4730 = vpop.f32.mrb[0].mxu0
    %v4731 = vadd.f32 %v4634, %v4730
    %v4732 = vpop.f32.mrb[0].mxu0
    %4733 = vmatprep.mubr.bf16.mxu0 %v4559
    %4734 = vmatmul.mubr.bf16.gmra.mrb[0].mxu0 %v4558
    %v4735 = vpop.f32.mrb[0].mxu0
    %v4736 = vadd.f32 %v4639, %v4735
    %v4737 = vpop.f32.mrb[0].mxu0
    %v4738 = vpop.f32.mrb[0].mxu0
    %v4739 = vadd.f32 %v4642, %v4738
    %v4740 = vpop.f32.mrb[0].mxu0
    %4741 = vmatprep.mubr.bf16.mxu0 %v4563
    %4742 = vmatmul.mubr.bf16.gmra.mrb[0].mxu0 %v4562
    %v4743 = vpop.f32.mrb[0].mxu0
    %v4744 = vadd.f32 %v4647, %v4743
    %v4745 = vpop.f32.mrb[0].mxu0
    %v4746 = vpop.f32.mrb[0].mxu0
    %v4747 = vadd.f32 %v4650, %v4746
    %v4748 = vpop.f32.mrb[0].mxu0
    %4749 = vmatprep.mubr.bf16.mxu0 %v4567
    %4750 = vmatmul.mubr.bf16.gmra.mrb[0].mxu0 %v4566
    %v4751 = vpop.f32.mrb[0].mxu0
    %v4752 = vadd.f32 %v4655, %v4751
    %v4753 = vpop.f32.mrb[0].mxu0
    %v4754 = vpop.f32.mrb[0].mxu0
    %v4755 = vadd.f32 %v4658, %v4754
    %v4756 = vpop.f32.mrb[0].mxu0
    %4757 = vmatprep.mubr.bf16.mxu0 %v4571
    %4758 = vmatmul.mubr.bf16.gmra.mrb[0].mxu0 %v4570
    %v4759 = vpop.f32.mrb[0].mxu0
    %v4760 = vadd.f32 %v4663, %v4759
    %v4761 = vpop.f32.mrb[0].mxu0
    %v4762 = vpop.f32.mrb[0].mxu0
    %v4763 = vadd.f32 %v4666, %v4762
    %v4764 = vpop.f32.mrb[0].mxu0
    %4765 = vdwg.mxu0
    %v4766 = vpack.c.bf16 %v4707, %v4704
    %v4767 = vpack.c.bf16 %v4715, %v4712
    %v4768 = vpack.c.bf16 %v4723, %v4720
    %v4769 = vpack.c.bf16 %v4731, %v4728
    %v4770 = vpack.c.bf16 %v4739, %v4736
    %v4771 = vpack.c.bf16 %v4747, %v4744
    %v4772 = vpack.c.bf16 %v4755, %v4752
    %v4773 = vpack.c.bf16 %v4763, %v4760
    %s4774 = scalar_lea.vmem %s4, 40
    %v4775 = vld [vmem:[%s4774] sm:$0xf]
    %v4776 = vld [vmem:[%s4774 + $0x4] sm:$0xf]
    %v4779 = vunpack.c.l.b16 %v4775
    %v4780 = vunpack.c.l.b16 %v4776
    %v4781 = vpack.c.b16 %v4780, %v4779
    %v4784 = vsel %vm284, %v4766, 0
    %v4787 = vsel %vm284, %v4767, 0
    %v4790 = vsel %vm284, %v4768, 0
    %v4793 = vsel %vm284, %v4769, 0
    %v4796 = vsel %vm284, %v4770, 0
    %v4799 = vsel %vm284, %v4771, 0
    %v4802 = vsel %vm284, %v4772, 0
    %v4805 = vsel %vm284, %v4773, 0
    %4807 = vmatprep.subr.bf16.mxu0 0
    %4808 = vmatpush1.bf16.msra.mxu0 %v4781
    %4809 = vmatprep.subr.bf16.mxu0 0
    %4810 = vmatpush1.bf16.msra.mxu0 0
    %4811 = vmatprep.subr.bf16.mxu0 0
    %4812 = vmatpush1.bf16.msra.mxu0 0
    %4813 = vmatprep.subr.bf16.mxu0 0
    %4814 = vmatpush1.bf16.msra.mxu0 0
    %4815 = vmatprep.subr.bf16.mxu0 0
    %4816 = vmatpush1.bf16.msra.mxu0 0
    %4817 = vmatprep.subr.bf16.mxu0 0
    %4818 = vmatpush1.bf16.msra.mxu0 0
    %4819 = vmatprep.subr.bf16.mxu0 0
    %4820 = vmatpush1.bf16.msra.mxu0 0
    %4821 = vmatprep.subr.bf16.mxu0 0
    %4822 = vmatpush1.bf16.msra.mxu0 0
    %4823 = vmatprep.subr.bf16.mxu0 0
    %4824 = vmatpush1.bf16.msra.mxu0 0
    %4825 = vmatprep.subr.bf16.mxu0 0
    %4826 = vmatpush1.bf16.msra.mxu0 0
    %4827 = vmatprep.subr.bf16.mxu0 0
    %4828 = vmatpush1.bf16.msra.mxu0 0
    %4829 = vmatprep.subr.bf16.mxu0 0
    %4830 = vmatpush1.bf16.msra.mxu0 0
    %4831 = vmatprep.subr.bf16.mxu0 0
    %4832 = vmatpush1.bf16.msra.mxu0 0
    %4833 = vmatprep.subr.bf16.mxu0 0
    %4834 = vmatpush1.bf16.msra.mxu0 0
    %4835 = vmatprep.subr.bf16.mxu0 0
    %4836 = vmatpush1.bf16.msra.mxu0 0
    %4837 = vmatprep.subr.bf16.mxu0 0
    %4838 = vmatpush1.bf16.msra.mxu0 0
    %4839 = vmatprep.mubr.bf16.mxu0 0
    %4840 = vmatmul.mubr.bf16.gmra.mrb[0].mxu0 %v4784
    %v4841 = vpop.f32.mrb[0].mxu0
    %v4842 = vadd.f32 0.0, %v4841
    %v4843 = vpop.f32.mrb[0].mxu0
    %v4844 = vpop.f32.mrb[0].mxu0
    %v4845 = vadd.f32 0.0, %v4844
    %v4846 = vpop.f32.mrb[0].mxu0
    %4847 = vmatprep.mubr.bf16.mxu0 0
    %4848 = vmatmul.mubr.bf16.gmra.mrb[0].mxu0 %v4787
    %v4849 = vpop.f32.mrb[0].mxu0
    %v4850 = vadd.f32 0.0, %v4849
    %v4851 = vpop.f32.mrb[0].mxu0
    %v4852 = vpop.f32.mrb[0].mxu0
    %v4853 = vadd.f32 0.0, %v4852
    %v4854 = vpop.f32.mrb[0].mxu0
    %4855 = vmatprep.mubr.bf16.mxu0 0
    %4856 = vmatmul.mubr.bf16.gmra.mrb[0].mxu0 %v4790
    %v4857 = vpop.f32.mrb[0].mxu0
    %v4858 = vadd.f32 0.0, %v4857
    %v4859 = vpop.f32.mrb[0].mxu0
    %v4860 = vpop.f32.mrb[0].mxu0
    %v4861 = vadd.f32 0.0, %v4860
    %v4862 = vpop.f32.mrb[0].mxu0
    %4863 = vmatprep.mubr.bf16.mxu0 0
    %4864 = vmatmul.mubr.bf16.gmra.mrb[0].mxu0 %v4793
    %v4865 = vpop.f32.mrb[0].mxu0
    %v4866 = vadd.f32 0.0, %v4865
    %v4867 = vpop.f32.mrb[0].mxu0
    %v4868 = vpop.f32.mrb[0].mxu0
    %v4869 = vadd.f32 0.0, %v4868
    %v4870 = vpop.f32.mrb[0].mxu0
    %4871 = vmatprep.mubr.bf16.mxu0 0
    %4872 = vmatmul.mubr.bf16.gmra.mrb[0].mxu0 %v4796
    %v4873 = vpop.f32.mrb[0].mxu0
    %v4874 = vadd.f32 0.0, %v4873
    %v4875 = vpop.f32.mrb[0].mxu0
    %v4876 = vpop.f32.mrb[0].mxu0
    %v4877 = vadd.f32 0.0, %v4876
    %v4878 = vpop.f32.mrb[0].mxu0
    %4879 = vmatprep.mubr.bf16.mxu0 0
    %4880 = vmatmul.mubr.bf16.gmra.mrb[0].mxu0 %v4799
    %v4881 = vpop.f32.mrb[0].mxu0
    %v4882 = vadd.f32 0.0, %v4881
    %v4883 = vpop.f32.mrb[0].mxu0
    %v4884 = vpop.f32.mrb[0].mxu0
    %v4885 = vadd.f32 0.0, %v4884
    %v4886 = vpop.f32.mrb[0].mxu0
    %4887 = vmatprep.mubr.bf16.mxu0 0
    %4888 = vmatmul.mubr.bf16.gmra.mrb[0].mxu0 %v4802
    %v4889 = vpop.f32.mrb[0].mxu0
    %v4890 = vadd.f32 0.0, %v4889
    %v4891 = vpop.f32.mrb[0].mxu0
    %v4892 = vpop.f32.mrb[0].mxu0
    %v4893 = vadd.f32 0.0, %v4892
    %v4894 = vpop.f32.mrb[0].mxu0
    %4895 = vmatprep.mubr.bf16.mxu0 0
    %4896 = vmatmul.mubr.bf16.gmra.mrb[0].mxu0 %v4805
    %v4897 = vpop.f32.mrb[0].mxu0
    %v4898 = vadd.f32 0.0, %v4897
    %v4899 = vpop.f32.mrb[0].mxu0
    %v4900 = vpop.f32.mrb[0].mxu0
    %v4901 = vadd.f32 0.0, %v4900
    %v4902 = vpop.f32.mrb[0].mxu0
    %4903 = vdwg.mxu0
    %v4904 = vadd.f32 %v4396, %v4842
    %v4905 = vadd.f32 %v4397, %v4845
    %v4906 = vadd.f32 %v4398, %v4850
    %v4907 = vadd.f32 %v4399, %v4853
    %v4908 = vadd.f32 %v4400, %v4858
    %v4909 = vadd.f32 %v4401, %v4861
    %v4910 = vadd.f32 %v4402, %v4866
    %v4911 = vadd.f32 %v4403, %v4869
    %v4912 = vadd.f32 %v4404, %v4874
    %v4913 = vadd.f32 %v4405, %v4877
    %v4914 = vadd.f32 %v4406, %v4882
    %v4915 = vadd.f32 %v4407, %v4885
    %v4916 = vadd.f32 %v4408, %v4890
    %v4917 = vadd.f32 %v4409, %v4893
    %v4918 = vadd.f32 %v4410, %v4898
    %v4919 = vadd.f32 %v4411, %v4901
    %vm4920 = vcmp.eq.s32.totalorder %v1489, 32
    %vm4921 = vcmp.eq.s32.totalorder %v1490, 32
    %vm4922 = vcmp.eq.s32.totalorder %v1491, 32
    %vm4923 = vcmp.eq.s32.totalorder %v1492, 32
    %vm4924 = vcmp.eq.s32.totalorder %v1493, 32
    %vm4925 = vcmp.eq.s32.totalorder %v1494, 32
    %vm4926 = vcmp.eq.s32.totalorder %v1495, 32
    %vm4927 = vcmp.eq.s32.totalorder %v1496, 32
    %vm4928 = vcmp.eq.s32.totalorder %v1497, 32
    %vm4929 = vcmp.eq.s32.totalorder %v1498, 32
    %vm4930 = vcmp.eq.s32.totalorder %v1499, 32
    %vm4931 = vcmp.eq.s32.totalorder %v1500, 32
    %vm4932 = vcmp.eq.s32.totalorder %v1501, 32
    %vm4933 = vcmp.eq.s32.totalorder %v1502, 32
    %vm4934 = vcmp.eq.s32.totalorder %v1503, 32
    %vm4935 = vcmp.eq.s32.totalorder %v1504, 32
    %vm4936 = vcmp.eq.s32.totalorder %v1505, 32
    %vm4937 = vcmp.eq.s32.totalorder %v1506, 32
    %vm4938 = vcmp.eq.s32.totalorder %v1507, 32
    %vm4939 = vcmp.eq.s32.totalorder %v1508, 32
    %vm4940 = vcmp.eq.s32.totalorder %v1509, 32
    %vm4941 = vcmp.eq.s32.totalorder %v1510, 32
    %vm4942 = vcmp.eq.s32.totalorder %v1511, 32
    %vm4943 = vcmp.eq.s32.totalorder %v1512, 32
    %vm4944 = vcmp.eq.s32.totalorder %v1513, 32
    %vm4945 = vcmp.eq.s32.totalorder %v1514, 32
    %vm4946 = vcmp.eq.s32.totalorder %v1515, 32
    %vm4947 = vcmp.eq.s32.totalorder %v1516, 32
    %vm4948 = vcmp.eq.s32.totalorder %v1517, 32
    %vm4949 = vcmp.eq.s32.totalorder %v1518, 32
    %vm4950 = vcmp.eq.s32.totalorder %v1519, 32
    %vm4951 = vcmp.eq.s32.totalorder %v1520, 32
    %vm4952 = vcmp.eq.s32.totalorder %v1521, 32
    %vm4953 = vcmp.eq.s32.totalorder %v1522, 32
    %vm4954 = vcmp.eq.s32.totalorder %v1523, 32
    %vm4955 = vcmp.eq.s32.totalorder %v1524, 32
    %vm4956 = vcmp.eq.s32.totalorder %v1525, 32
    %vm4957 = vcmp.eq.s32.totalorder %v1526, 32
    %vm4958 = vcmp.eq.s32.totalorder %v1527, 32
    %vm4959 = vcmp.eq.s32.totalorder %v1528, 32
    %vm4960 = vcmp.eq.s32.totalorder %v1529, 32
    %vm4961 = vcmp.eq.s32.totalorder %v1530, 32
    %vm4962 = vcmp.eq.s32.totalorder %v1531, 32
    %vm4963 = vcmp.eq.s32.totalorder %v1532, 32
    %vm4964 = vcmp.eq.s32.totalorder %v1533, 32
    %vm4965 = vcmp.eq.s32.totalorder %v1534, 32
    %vm4966 = vcmp.eq.s32.totalorder %v1535, 32
    %vm4967 = vcmp.eq.s32.totalorder %v1536, 32
    %vm4968 = vcmp.eq.s32.totalorder %v1537, 32
    %vm4969 = vcmp.eq.s32.totalorder %v1538, 32
    %vm4970 = vcmp.eq.s32.totalorder %v1539, 32
    %vm4971 = vcmp.eq.s32.totalorder %v1540, 32
    %vm4972 = vcmp.eq.s32.totalorder %v1541, 32
    %vm4973 = vcmp.eq.s32.totalorder %v1542, 32
    %vm4974 = vcmp.eq.s32.totalorder %v1543, 32
    %vm4975 = vcmp.eq.s32.totalorder %v1544, 32
    %vm4976 = vcmp.eq.s32.totalorder %v1545, 32
    %vm4977 = vcmp.eq.s32.totalorder %v1546, 32
    %vm4978 = vcmp.eq.s32.totalorder %v1547, 32
    %vm4979 = vcmp.eq.s32.totalorder %v1548, 32
    %vm4980 = vcmp.eq.s32.totalorder %v1549, 32
    %vm4981 = vcmp.eq.s32.totalorder %v1550, 32
    %vm4982 = vcmp.eq.s32.totalorder %v1551, 32
    %vm4983 = vcmp.eq.s32.totalorder %v1552, 32
    %vm4984 = vmand %vm4920, %vm1569
    %vm4985 = vmand %vm4921, %vm1569
    %vm4986 = vmand %vm4922, %vm1569
    %vm4987 = vmand %vm4923, %vm1569
    %vm4988 = vmand %vm4924, %vm1570
    %vm4989 = vmand %vm4925, %vm1570
    %vm4990 = vmand %vm4926, %vm1570
    %vm4991 = vmand %vm4927, %vm1570
    %vm4992 = vmand %vm4928, %vm1571
    %vm4993 = vmand %vm4929, %vm1571
    %vm4994 = vmand %vm4930, %vm1571
    %vm4995 = vmand %vm4931, %vm1571
    %vm4996 = vmand %vm4932, %vm1572
    %vm4997 = vmand %vm4933, %vm1572
    %vm4998 = vmand %vm4934, %vm1572
    %vm4999 = vmand %vm4935, %vm1572
    %vm5000 = vmand %vm4936, %vm1573
    %vm5001 = vmand %vm4937, %vm1573
    %vm5002 = vmand %vm4938, %vm1573
    %vm5003 = vmand %vm4939, %vm1573
    %vm5004 = vmand %vm4940, %vm1574
    %vm5005 = vmand %vm4941, %vm1574
    %vm5006 = vmand %vm4942, %vm1574
    %vm5007 = vmand %vm4943, %vm1574
    %vm5008 = vmand %vm4944, %vm1575
    %vm5009 = vmand %vm4945, %vm1575
    %vm5010 = vmand %vm4946, %vm1575
    %vm5011 = vmand %vm4947, %vm1575
    %vm5012 = vmand %vm4948, %vm1576
    %vm5013 = vmand %vm4949, %vm1576
    %vm5014 = vmand %vm4950, %vm1576
    %vm5015 = vmand %vm4951, %vm1576
    %vm5016 = vmand %vm4952, %vm1577
    %vm5017 = vmand %vm4953, %vm1577
    %vm5018 = vmand %vm4954, %vm1577
    %vm5019 = vmand %vm4955, %vm1577
    %vm5020 = vmand %vm4956, %vm1578
    %vm5021 = vmand %vm4957, %vm1578
    %vm5022 = vmand %vm4958, %vm1578
    %vm5023 = vmand %vm4959, %vm1578
    %vm5024 = vmand %vm4960, %vm1579
    %vm5025 = vmand %vm4961, %vm1579
    %vm5026 = vmand %vm4962, %vm1579
    %vm5027 = vmand %vm4963, %vm1579
    %vm5028 = vmand %vm4964, %vm1580
    %vm5029 = vmand %vm4965, %vm1580
    %vm5030 = vmand %vm4966, %vm1580
    %vm5031 = vmand %vm4967, %vm1580
    %vm5032 = vmand %vm4968, %vm1581
    %vm5033 = vmand %vm4969, %vm1581
    %vm5034 = vmand %vm4970, %vm1581
    %vm5035 = vmand %vm4971, %vm1581
    %vm5036 = vmand %vm4972, %vm1582
    %vm5037 = vmand %vm4973, %vm1582
    %vm5038 = vmand %vm4974, %vm1582
    %vm5039 = vmand %vm4975, %vm1582
    %vm5040 = vmand %vm4976, %vm1583
    %vm5041 = vmand %vm4977, %vm1583
    %vm5042 = vmand %vm4978, %vm1583
    %vm5043 = vmand %vm4979, %vm1583
    %vm5044 = vmand %vm4980, %vm1584
    %vm5045 = vmand %vm4981, %vm1584
    %vm5046 = vmand %vm4982, %vm1584
    %vm5047 = vmand %vm4983, %vm1584
    %v5048 = vsel %vm4984, 1.0, 0.0
    %v5049 = vsel %vm4985, 1.0, 0.0
    %v5050 = vsel %vm4986, 1.0, 0.0
    %v5051 = vsel %vm4987, 1.0, 0.0
    %v5052 = vsel %vm4988, 1.0, 0.0
    %v5053 = vsel %vm4989, 1.0, 0.0
    %v5054 = vsel %vm4990, 1.0, 0.0
    %v5055 = vsel %vm4991, 1.0, 0.0
    %v5056 = vsel %vm4992, 1.0, 0.0
    %v5057 = vsel %vm4993, 1.0, 0.0
    %v5058 = vsel %vm4994, 1.0, 0.0
    %v5059 = vsel %vm4995, 1.0, 0.0
    %v5060 = vsel %vm4996, 1.0, 0.0
    %v5061 = vsel %vm4997, 1.0, 0.0
    %v5062 = vsel %vm4998, 1.0, 0.0
    %v5063 = vsel %vm4999, 1.0, 0.0
    %v5064 = vsel %vm5000, 1.0, 0.0
    %v5065 = vsel %vm5001, 1.0, 0.0
    %v5066 = vsel %vm5002, 1.0, 0.0
    %v5067 = vsel %vm5003, 1.0, 0.0
    %v5068 = vsel %vm5004, 1.0, 0.0
    %v5069 = vsel %vm5005, 1.0, 0.0
    %v5070 = vsel %vm5006, 1.0, 0.0
    %v5071 = vsel %vm5007, 1.0, 0.0
    %v5072 = vsel %vm5008, 1.0, 0.0
    %v5073 = vsel %vm5009, 1.0, 0.0
    %v5074 = vsel %vm5010, 1.0, 0.0
    %v5075 = vsel %vm5011, 1.0, 0.0
    %v5076 = vsel %vm5012, 1.0, 0.0
    %v5077 = vsel %vm5013, 1.0, 0.0
    %v5078 = vsel %vm5014, 1.0, 0.0
    %v5079 = vsel %vm5015, 1.0, 0.0
    %v5080 = vsel %vm5016, 1.0, 0.0
    %v5081 = vsel %vm5017, 1.0, 0.0
    %v5082 = vsel %vm5018, 1.0, 0.0
    %v5083 = vsel %vm5019, 1.0, 0.0
    %v5084 = vsel %vm5020, 1.0, 0.0
    %v5085 = vsel %vm5021, 1.0, 0.0
    %v5086 = vsel %vm5022, 1.0, 0.0
    %v5087 = vsel %vm5023, 1.0, 0.0
    %v5088 = vsel %vm5024, 1.0, 0.0
    %v5089 = vsel %vm5025, 1.0, 0.0
    %v5090 = vsel %vm5026, 1.0, 0.0
    %v5091 = vsel %vm5027, 1.0, 0.0
    %v5092 = vsel %vm5028, 1.0, 0.0
    %v5093 = vsel %vm5029, 1.0, 0.0
    %v5094 = vsel %vm5030, 1.0, 0.0
    %v5095 = vsel %vm5031, 1.0, 0.0
    %v5096 = vsel %vm5032, 1.0, 0.0
    %v5097 = vsel %vm5033, 1.0, 0.0
    %v5098 = vsel %vm5034, 1.0, 0.0
    %v5099 = vsel %vm5035, 1.0, 0.0
    %v5100 = vsel %vm5036, 1.0, 0.0
    %v5101 = vsel %vm5037, 1.0, 0.0
    %v5102 = vsel %vm5038, 1.0, 0.0
    %v5103 = vsel %vm5039, 1.0, 0.0
    %v5104 = vsel %vm5040, 1.0, 0.0
    %v5105 = vsel %vm5041, 1.0, 0.0
    %v5106 = vsel %vm5042, 1.0, 0.0
    %v5107 = vsel %vm5043, 1.0, 0.0
    %v5108 = vsel %vm5044, 1.0, 0.0
    %v5109 = vsel %vm5045, 1.0, 0.0
    %v5110 = vsel %vm5046, 1.0, 0.0
    %v5111 = vsel %vm5047, 1.0, 0.0
    %v5112 = vpack.c.bf16 %v5052, %v5048
    %v5113 = vpack.c.bf16 %v5053, %v5049
    %v5114 = vpack.c.bf16 %v5054, %v5050
    %v5115 = vpack.c.bf16 %v5055, %v5051
    %v5116 = vpack.c.bf16 %v5060, %v5056
    %v5117 = vpack.c.bf16 %v5061, %v5057
    %v5118 = vpack.c.bf16 %v5062, %v5058
    %v5119 = vpack.c.bf16 %v5063, %v5059
    %v5120 = vpack.c.bf16 %v5068, %v5064
    %v5121 = vpack.c.bf16 %v5069, %v5065
    %v5122 = vpack.c.bf16 %v5070, %v5066
    %v5123 = vpack.c.bf16 %v5071, %v5067
    %v5124 = vpack.c.bf16 %v5076, %v5072
    %v5125 = vpack.c.bf16 %v5077, %v5073
    %v5126 = vpack.c.bf16 %v5078, %v5074
    %v5127 = vpack.c.bf16 %v5079, %v5075
    %v5128 = vpack.c.bf16 %v5084, %v5080
    %v5129 = vpack.c.bf16 %v5085, %v5081
    %v5130 = vpack.c.bf16 %v5086, %v5082
    %v5131 = vpack.c.bf16 %v5087, %v5083
    %v5132 = vpack.c.bf16 %v5092, %v5088
    %v5133 = vpack.c.bf16 %v5093, %v5089
    %v5134 = vpack.c.bf16 %v5094, %v5090
    %v5135 = vpack.c.bf16 %v5095, %v5091
    %v5136 = vpack.c.bf16 %v5100, %v5096
    %v5137 = vpack.c.bf16 %v5101, %v5097
    %v5138 = vpack.c.bf16 %v5102, %v5098
    %v5139 = vpack.c.bf16 %v5103, %v5099
    %v5140 = vpack.c.bf16 %v5108, %v5104
    %v5141 = vpack.c.bf16 %v5109, %v5105
    %v5142 = vpack.c.bf16 %v5110, %v5106
    %v5143 = vpack.c.bf16 %v5111, %v5107
    %5144 = vmatprep.subr.bf16.mxu0 0
    %5145 = vmatpush1.bf16.msra.mxu0 %v1275
    %5146 = vmatprep.subr.bf16.mxu0 0
    %5147 = vmatpush1.bf16.msra.mxu0 %v1276
    %5148 = vmatprep.subr.bf16.mxu0 0
    %5149 = vmatpush1.bf16.msra.mxu0 %v1277
    %5150 = vmatprep.subr.bf16.mxu0 0
    %5151 = vmatpush1.bf16.msra.mxu0 %v1278
    %5152 = vmatprep.subr.bf16.mxu0 0
    %5153 = vmatpush1.bf16.msra.mxu0 %v1279
    %5154 = vmatprep.subr.bf16.mxu0 0
    %5155 = vmatpush1.bf16.msra.mxu0 %v1280
    %5156 = vmatprep.subr.bf16.mxu0 0
    %5157 = vmatpush1.bf16.msra.mxu0 %v1281
    %5158 = vmatprep.subr.bf16.mxu0 0
    %5159 = vmatpush1.bf16.msra.mxu0 %v1282
    %5160 = vmatprep.subr.bf16.mxu0 0
    %5161 = vmatpush1.bf16.msra.mxu0 %v1283
    %5162 = vmatprep.subr.bf16.mxu0 0
    %5163 = vmatpush1.bf16.msra.mxu0 %v1284
    %5164 = vmatprep.subr.bf16.mxu0 0
    %5165 = vmatpush1.bf16.msra.mxu0 %v1285
    %5166 = vmatprep.subr.bf16.mxu0 0
    %5167 = vmatpush1.bf16.msra.mxu0 %v1286
    %5168 = vmatprep.subr.bf16.mxu0 0
    %5169 = vmatpush1.bf16.msra.mxu0 %v1287
    %5170 = vmatprep.subr.bf16.mxu0 0
    %5171 = vmatpush1.bf16.msra.mxu0 %v1288
    %5172 = vmatprep.subr.bf16.mxu0 0
    %5173 = vmatpush1.bf16.msra.mxu0 %v1289
    %5174 = vmatprep.subr.bf16.mxu0 0
    %5175 = vmatpush1.bf16.msra.mxu0 %v1290
    %5176 = vmatprep.mubr.bf16.mxu0 %v5113
    %5177 = vmatmul.mubr.bf16.gmra.mrb[0].mxu0 %v5112
    %v5178 = vpop.f32.mrb[0].mxu0
    %v5179 = vadd.f32 0.0, %v5178
    %v5180 = vpop.f32.mrb[0].mxu0
    %v5181 = vpop.f32.mrb[0].mxu0
    %v5182 = vadd.f32 0.0, %v5181
    %v5183 = vpop.f32.mrb[0].mxu0
    %5184 = vmatprep.mubr.bf16.mxu0 %v5117
    %5185 = vmatmul.mubr.bf16.gmra.mrb[0].mxu0 %v5116
    %v5186 = vpop.f32.mrb[0].mxu0
    %v5187 = vadd.f32 0.0, %v5186
    %v5188 = vpop.f32.mrb[0].mxu0
    %v5189 = vpop.f32.mrb[0].mxu0
    %v5190 = vadd.f32 0.0, %v5189
    %v5191 = vpop.f32.mrb[0].mxu0
    %5192 = vmatprep.mubr.bf16.mxu0 %v5121
    %5193 = vmatmul.mubr.bf16.gmra.mrb[0].mxu0 %v5120
    %v5194 = vpop.f32.mrb[0].mxu0
    %v5195 = vadd.f32 0.0, %v5194
    %v5196 = vpop.f32.mrb[0].mxu0
    %v5197 = vpop.f32.mrb[0].mxu0
    %v5198 = vadd.f32 0.0, %v5197
    %v5199 = vpop.f32.mrb[0].mxu0
    %5200 = vmatprep.mubr.bf16.mxu0 %v5125
    %5201 = vmatmul.mubr.bf16.gmra.mrb[0].mxu0 %v5124
    %v5202 = vpop.f32.mrb[0].mxu0
    %v5203 = vadd.f32 0.0, %v5202
    %v5204 = vpop.f32.mrb[0].mxu0
    %v5205 = vpop.f32.mrb[0].mxu0
    %v5206 = vadd.f32 0.0, %v5205
    %v5207 = vpop.f32.mrb[0].mxu0
    %5208 = vmatprep.mubr.bf16.mxu0 %v5129
    %5209 = vmatmul.mubr.bf16.gmra.mrb[0].mxu0 %v5128
    %v5210 = vpop.f32.mrb[0].mxu0
    %v5211 = vadd.f32 0.0, %v5210
    %v5212 = vpop.f32.mrb[0].mxu0
    %v5213 = vpop.f32.mrb[0].mxu0
    %v5214 = vadd.f32 0.0, %v5213
    %v5215 = vpop.f32.mrb[0].mxu0
    %5216 = vmatprep.mubr.bf16.mxu0 %v5133
    %5217 = vmatmul.mubr.bf16.gmra.mrb[0].mxu0 %v5132
    %v5218 = vpop.f32.mrb[0].mxu0
    %v5219 = vadd.f32 0.0, %v5218
    %v5220 = vpop.f32.mrb[0].mxu0
    %v5221 = vpop.f32.mrb[0].mxu0
    %v5222 = vadd.f32 0.0, %v5221
    %v5223 = vpop.f32.mrb[0].mxu0
    %5224 = vmatprep.mubr.bf16.mxu0 %v5137
    %5225 = vmatmul.mubr.bf16.gmra.mrb[0].mxu0 %v5136
    %v5226 = vpop.f32.mrb[0].mxu0
    %v5227 = vadd.f32 0.0, %v5226
    %v5228 = vpop.f32.mrb[0].mxu0
    %v5229 = vpop.f32.mrb[0].mxu0
    %v5230 = vadd.f32 0.0, %v5229
    %v5231 = vpop.f32.mrb[0].mxu0
    %5232 = vmatprep.mubr.bf16.mxu0 %v5141
    %5233 = vmatmul.mubr.bf16.gmra.mrb[0].mxu0 %v5140
    %v5234 = vpop.f32.mrb[0].mxu0
    %v5235 = vadd.f32 0.0, %v5234
    %v5236 = vpop.f32.mrb[0].mxu0
    %v5237 = vpop.f32.mrb[0].mxu0
    %v5238 = vadd.f32 0.0, %v5237
    %v5239 = vpop.f32.mrb[0].mxu0
    %5240 = vdwg.mxu0
    %5241 = vmatprep.subr.bf16.mxu0 0
    %5242 = vmatpush1.bf16.msra.mxu0 %v1291
    %5243 = vmatprep.subr.bf16.mxu0 0
    %5244 = vmatpush1.bf16.msra.mxu0 %v1292
    %5245 = vmatprep.subr.bf16.mxu0 0
    %5246 = vmatpush1.bf16.msra.mxu0 %v1293
    %5247 = vmatprep.subr.bf16.mxu0 0
    %5248 = vmatpush1.bf16.msra.mxu0 %v1294
    %5249 = vmatprep.subr.bf16.mxu0 0
    %5250 = vmatpush1.bf16.msra.mxu0 %v1295
    %5251 = vmatprep.subr.bf16.mxu0 0
    %5252 = vmatpush1.bf16.msra.mxu0 %v1296
    %5253 = vmatprep.subr.bf16.mxu0 0
    %5254 = vmatpush1.bf16.msra.mxu0 %v1297
    %5255 = vmatprep.subr.bf16.mxu0 0
    %5256 = vmatpush1.bf16.msra.mxu0 %v1298
    %5257 = vmatprep.subr.bf16.mxu0 0
    %5258 = vmatpush1.bf16.msra.mxu0 %v1299
    %5259 = vmatprep.subr.bf16.mxu0 0
    %5260 = vmatpush1.bf16.msra.mxu0 %v1300
    %5261 = vmatprep.subr.bf16.mxu0 0
    %5262 = vmatpush1.bf16.msra.mxu0 %v1301
    %5263 = vmatprep.subr.bf16.mxu0 0
    %5264 = vmatpush1.bf16.msra.mxu0 %v1302
    %5265 = vmatprep.subr.bf16.mxu0 0
    %5266 = vmatpush1.bf16.msra.mxu0 %v1303
    %5267 = vmatprep.subr.bf16.mxu0 0
    %5268 = vmatpush1.bf16.msra.mxu0 %v1304
    %5269 = vmatprep.subr.bf16.mxu0 0
    %5270 = vmatpush1.bf16.msra.mxu0 %v1305
    %5271 = vmatprep.subr.bf16.mxu0 0
    %5272 = vmatpush1.bf16.msra.mxu0 %v1306
    %5273 = vmatprep.mubr.bf16.mxu0 %v5115
    %5274 = vmatmul.mubr.bf16.gmra.mrb[0].mxu0 %v5114
    %v5275 = vpop.f32.mrb[0].mxu0
    %v5276 = vadd.f32 %v5179, %v5275
    %v5277 = vpop.f32.mrb[0].mxu0
    %v5278 = vpop.f32.mrb[0].mxu0
    %v5279 = vadd.f32 %v5182, %v5278
    %v5280 = vpop.f32.mrb[0].mxu0
    %5281 = vmatprep.mubr.bf16.mxu0 %v5119
    %5282 = vmatmul.mubr.bf16.gmra.mrb[0].mxu0 %v5118
    %v5283 = vpop.f32.mrb[0].mxu0
    %v5284 = vadd.f32 %v5187, %v5283
    %v5285 = vpop.f32.mrb[0].mxu0
    %v5286 = vpop.f32.mrb[0].mxu0
    %v5287 = vadd.f32 %v5190, %v5286
    %v5288 = vpop.f32.mrb[0].mxu0
    %5289 = vmatprep.mubr.bf16.mxu0 %v5123
    %5290 = vmatmul.mubr.bf16.gmra.mrb[0].mxu0 %v5122
    %v5291 = vpop.f32.mrb[0].mxu0
    %v5292 = vadd.f32 %v5195, %v5291
    %v5293 = vpop.f32.mrb[0].mxu0
    %v5294 = vpop.f32.mrb[0].mxu0
    %v5295 = vadd.f32 %v5198, %v5294
    %v5296 = vpop.f32.mrb[0].mxu0
    %5297 = vmatprep.mubr.bf16.mxu0 %v5127
    %5298 = vmatmul.mubr.bf16.gmra.mrb[0].mxu0 %v5126
    %v5299 = vpop.f32.mrb[0].mxu0
    %v5300 = vadd.f32 %v5203, %v5299
    %v5301 = vpop.f32.mrb[0].mxu0
    %v5302 = vpop.f32.mrb[0].mxu0
    %v5303 = vadd.f32 %v5206, %v5302
    %v5304 = vpop.f32.mrb[0].mxu0
    %5305 = vmatprep.mubr.bf16.mxu0 %v5131
    %5306 = vmatmul.mubr.bf16.gmra.mrb[0].mxu0 %v5130
    %v5307 = vpop.f32.mrb[0].mxu0
    %v5308 = vadd.f32 %v5211, %v5307
    %v5309 = vpop.f32.mrb[0].mxu0
    %v5310 = vpop.f32.mrb[0].mxu0
    %v5311 = vadd.f32 %v5214, %v5310
    %v5312 = vpop.f32.mrb[0].mxu0
    %5313 = vmatprep.mubr.bf16.mxu0 %v5135
    %5314 = vmatmul.mubr.bf16.gmra.mrb[0].mxu0 %v5134
    %v5315 = vpop.f32.mrb[0].mxu0
    %v5316 = vadd.f32 %v5219, %v5315
    %v5317 = vpop.f32.mrb[0].mxu0
    %v5318 = vpop.f32.mrb[0].mxu0
    %v5319 = vadd.f32 %v5222, %v5318
    %v5320 = vpop.f32.mrb[0].mxu0
    %5321 = vmatprep.mubr.bf16.mxu0 %v5139
    %5322 = vmatmul.mubr.bf16.gmra.mrb[0].mxu0 %v5138
    %v5323 = vpop.f32.mrb[0].mxu0
    %v5324 = vadd.f32 %v5227, %v5323
    %v5325 = vpop.f32.mrb[0].mxu0
    %v5326 = vpop.f32.mrb[0].mxu0
    %v5327 = vadd.f32 %v5230, %v5326
    %v5328 = vpop.f32.mrb[0].mxu0
    %5329 = vmatprep.mubr.bf16.mxu0 %v5143
    %5330 = vmatmul.mubr.bf16.gmra.mrb[0].mxu0 %v5142
    %v5331 = vpop.f32.mrb[0].mxu0
    %v5332 = vadd.f32 %v5235, %v5331
    %v5333 = vpop.f32.mrb[0].mxu0
    %v5334 = vpop.f32.mrb[0].mxu0
    %v5335 = vadd.f32 %v5238, %v5334
    %v5336 = vpop.f32.mrb[0].mxu0
    %5337 = vdwg.mxu0
    %v5338 = vpack.c.bf16 %v5279, %v5276
    %v5339 = vpack.c.bf16 %v5287, %v5284
    %v5340 = vpack.c.bf16 %v5295, %v5292
    %v5341 = vpack.c.bf16 %v5303, %v5300
    %v5342 = vpack.c.bf16 %v5311, %v5308
    %v5343 = vpack.c.bf16 %v5319, %v5316
    %v5344 = vpack.c.bf16 %v5327, %v5324
    %v5345 = vpack.c.bf16 %v5335, %v5332
    %s5346 = scalar_lea.vmem %s4, 48
    %v5347 = vld [vmem:[%s5346] sm:$0xf]
    %v5348 = vld [vmem:[%s5346 + $0x4] sm:$0xf]
    %v5351 = vunpack.c.l.b16 %v5347
    %v5352 = vunpack.c.l.b16 %v5348
    %v5353 = vpack.c.b16 %v5352, %v5351
    %v5356 = vsel %vm284, %v5338, 0
    %v5359 = vsel %vm284, %v5339, 0
    %v5362 = vsel %vm284, %v5340, 0
    %v5365 = vsel %vm284, %v5341, 0
    %v5368 = vsel %vm284, %v5342, 0
    %v5371 = vsel %vm284, %v5343, 0
    %v5374 = vsel %vm284, %v5344, 0
    %v5377 = vsel %vm284, %v5345, 0
    %5379 = vmatprep.subr.bf16.mxu0 0
    %5380 = vmatpush1.bf16.msra.mxu0 %v5353
    %5381 = vmatprep.subr.bf16.mxu0 0
    %5382 = vmatpush1.bf16.msra.mxu0 0
    %5383 = vmatprep.subr.bf16.mxu0 0
    %5384 = vmatpush1.bf16.msra.mxu0 0
    %5385 = vmatprep.subr.bf16.mxu0 0
    %5386 = vmatpush1.bf16.msra.mxu0 0
    %5387 = vmatprep.subr.bf16.mxu0 0
    %5388 = vmatpush1.bf16.msra.mxu0 0
    %5389 = vmatprep.subr.bf16.mxu0 0
    %5390 = vmatpush1.bf16.msra.mxu0 0
    %5391 = vmatprep.subr.bf16.mxu0 0
    %5392 = vmatpush1.bf16.msra.mxu0 0
    %5393 = vmatprep.subr.bf16.mxu0 0
    %5394 = vmatpush1.bf16.msra.mxu0 0
    %5395 = vmatprep.subr.bf16.mxu0 0
    %5396 = vmatpush1.bf16.msra.mxu0 0
    %5397 = vmatprep.subr.bf16.mxu0 0
    %5398 = vmatpush1.bf16.msra.mxu0 0
    %5399 = vmatprep.subr.bf16.mxu0 0
    %5400 = vmatpush1.bf16.msra.mxu0 0
    %5401 = vmatprep.subr.bf16.mxu0 0
    %5402 = vmatpush1.bf16.msra.mxu0 0
    %5403 = vmatprep.subr.bf16.mxu0 0
    %5404 = vmatpush1.bf16.msra.mxu0 0
    %5405 = vmatprep.subr.bf16.mxu0 0
    %5406 = vmatpush1.bf16.msra.mxu0 0
    %5407 = vmatprep.subr.bf16.mxu0 0
    %5408 = vmatpush1.bf16.msra.mxu0 0
    %5409 = vmatprep.subr.bf16.mxu0 0
    %5410 = vmatpush1.bf16.msra.mxu0 0
    %5411 = vmatprep.mubr.bf16.mxu0 0
    %5412 = vmatmul.mubr.bf16.gmra.mrb[0].mxu0 %v5356
    %v5413 = vpop.f32.mrb[0].mxu0
    %v5414 = vadd.f32 0.0, %v5413
    %v5415 = vpop.f32.mrb[0].mxu0
    %v5416 = vpop.f32.mrb[0].mxu0
    %v5417 = vadd.f32 0.0, %v5416
    %v5418 = vpop.f32.mrb[0].mxu0
    %5419 = vmatprep.mubr.bf16.mxu0 0
    %5420 = vmatmul.mubr.bf16.gmra.mrb[0].mxu0 %v5359
    %v5421 = vpop.f32.mrb[0].mxu0
    %v5422 = vadd.f32 0.0, %v5421
    %v5423 = vpop.f32.mrb[0].mxu0
    %v5424 = vpop.f32.mrb[0].mxu0
    %v5425 = vadd.f32 0.0, %v5424
    %v5426 = vpop.f32.mrb[0].mxu0
    %5427 = vmatprep.mubr.bf16.mxu0 0
    %5428 = vmatmul.mubr.bf16.gmra.mrb[0].mxu0 %v5362
    %v5429 = vpop.f32.mrb[0].mxu0
    %v5430 = vadd.f32 0.0, %v5429
    %v5431 = vpop.f32.mrb[0].mxu0
    %v5432 = vpop.f32.mrb[0].mxu0
    %v5433 = vadd.f32 0.0, %v5432
    %v5434 = vpop.f32.mrb[0].mxu0
    %5435 = vmatprep.mubr.bf16.mxu0 0
    %5436 = vmatmul.mubr.bf16.gmra.mrb[0].mxu0 %v5365
    %v5437 = vpop.f32.mrb[0].mxu0
    %v5438 = vadd.f32 0.0, %v5437
    %v5439 = vpop.f32.mrb[0].mxu0
    %v5440 = vpop.f32.mrb[0].mxu0
    %v5441 = vadd.f32 0.0, %v5440
    %v5442 = vpop.f32.mrb[0].mxu0
    %5443 = vmatprep.mubr.bf16.mxu0 0
    %5444 = vmatmul.mubr.bf16.gmra.mrb[0].mxu0 %v5368
    %v5445 = vpop.f32.mrb[0].mxu0
    %v5446 = vadd.f32 0.0, %v5445
    %v5447 = vpop.f32.mrb[0].mxu0
    %v5448 = vpop.f32.mrb[0].mxu0
    %v5449 = vadd.f32 0.0, %v5448
    %v5450 = vpop.f32.mrb[0].mxu0
    %5451 = vmatprep.mubr.bf16.mxu0 0
    %5452 = vmatmul.mubr.bf16.gmra.mrb[0].mxu0 %v5371
    %v5453 = vpop.f32.mrb[0].mxu0
    %v5454 = vadd.f32 0.0, %v5453
    %v5455 = vpop.f32.mrb[0].mxu0
    %v5456 = vpop.f32.mrb[0].mxu0
    %v5457 = vadd.f32 0.0, %v5456
    %v5458 = vpop.f32.mrb[0].mxu0
    %5459 = vmatprep.mubr.bf16.mxu0 0
    %5460 = vmatmul.mubr.bf16.gmra.mrb[0].mxu0 %v5374
    %v5461 = vpop.f32.mrb[0].mxu0
    %v5462 = vadd.f32 0.0, %v5461
    %v5463 = vpop.f32.mrb[0].mxu0
    %v5464 = vpop.f32.mrb[0].mxu0
    %v5465 = vadd.f32 0.0, %v5464
    %v5466 = vpop.f32.mrb[0].mxu0
    %5467 = vmatprep.mubr.bf16.mxu0 0
    %5468 = vmatmul.mubr.bf16.gmra.mrb[0].mxu0 %v5377
    %v5469 = vpop.f32.mrb[0].mxu0
    %v5470 = vadd.f32 0.0, %v5469
    %v5471 = vpop.f32.mrb[0].mxu0
    %v5472 = vpop.f32.mrb[0].mxu0
    %v5473 = vadd.f32 0.0, %v5472
    %v5474 = vpop.f32.mrb[0].mxu0
    %5475 = vdwg.mxu0
    %v5476 = vadd.f32 %v4904, %v5414
    %v5477 = vadd.f32 %v4905, %v5417
    %v5478 = vadd.f32 %v4906, %v5422
    %v5479 = vadd.f32 %v4907, %v5425
    %v5480 = vadd.f32 %v4908, %v5430
    %v5481 = vadd.f32 %v4909, %v5433
    %v5482 = vadd.f32 %v4910, %v5438
    %v5483 = vadd.f32 %v4911, %v5441
    %v5484 = vadd.f32 %v4912, %v5446
    %v5485 = vadd.f32 %v4913, %v5449
    %v5486 = vadd.f32 %v4914, %v5454
    %v5487 = vadd.f32 %v4915, %v5457
    %v5488 = vadd.f32 %v4916, %v5462
    %v5489 = vadd.f32 %v4917, %v5465
    %v5490 = vadd.f32 %v4918, %v5470
    %v5491 = vadd.f32 %v4919, %v5473
    %vm5492 = vcmp.eq.s32.totalorder %v1489, 33
    %vm5493 = vcmp.eq.s32.totalorder %v1490, 33
    %vm5494 = vcmp.eq.s32.totalorder %v1491, 33
    %vm5495 = vcmp.eq.s32.totalorder %v1492, 33
    %vm5496 = vcmp.eq.s32.totalorder %v1493, 33
    %vm5497 = vcmp.eq.s32.totalorder %v1494, 33
    %vm5498 = vcmp.eq.s32.totalorder %v1495, 33
    %vm5499 = vcmp.eq.s32.totalorder %v1496, 33
    %vm5500 = vcmp.eq.s32.totalorder %v1497, 33
    %vm5501 = vcmp.eq.s32.totalorder %v1498, 33
    %vm5502 = vcmp.eq.s32.totalorder %v1499, 33
    %vm5503 = vcmp.eq.s32.totalorder %v1500, 33
    %vm5504 = vcmp.eq.s32.totalorder %v1501, 33
    %vm5505 = vcmp.eq.s32.totalorder %v1502, 33
    %vm5506 = vcmp.eq.s32.totalorder %v1503, 33
    %vm5507 = vcmp.eq.s32.totalorder %v1504, 33
    %vm5508 = vcmp.eq.s32.totalorder %v1505, 33
    %vm5509 = vcmp.eq.s32.totalorder %v1506, 33
    %vm5510 = vcmp.eq.s32.totalorder %v1507, 33
    %vm5511 = vcmp.eq.s32.totalorder %v1508, 33
    %vm5512 = vcmp.eq.s32.totalorder %v1509, 33
    %vm5513 = vcmp.eq.s32.totalorder %v1510, 33
    %vm5514 = vcmp.eq.s32.totalorder %v1511, 33
    %vm5515 = vcmp.eq.s32.totalorder %v1512, 33
    %vm5516 = vcmp.eq.s32.totalorder %v1513, 33
    %vm5517 = vcmp.eq.s32.totalorder %v1514, 33
    %vm5518 = vcmp.eq.s32.totalorder %v1515, 33
    %vm5519 = vcmp.eq.s32.totalorder %v1516, 33
    %vm5520 = vcmp.eq.s32.totalorder %v1517, 33
    %vm5521 = vcmp.eq.s32.totalorder %v1518, 33
    %vm5522 = vcmp.eq.s32.totalorder %v1519, 33
    %vm5523 = vcmp.eq.s32.totalorder %v1520, 33
    %vm5524 = vcmp.eq.s32.totalorder %v1521, 33
    %vm5525 = vcmp.eq.s32.totalorder %v1522, 33
    %vm5526 = vcmp.eq.s32.totalorder %v1523, 33
    %vm5527 = vcmp.eq.s32.totalorder %v1524, 33
    %vm5528 = vcmp.eq.s32.totalorder %v1525, 33
    %vm5529 = vcmp.eq.s32.totalorder %v1526, 33
    %vm5530 = vcmp.eq.s32.totalorder %v1527, 33
    %vm5531 = vcmp.eq.s32.totalorder %v1528, 33
    %vm5532 = vcmp.eq.s32.totalorder %v1529, 33
    %vm5533 = vcmp.eq.s32.totalorder %v1530, 33
    %vm5534 = vcmp.eq.s32.totalorder %v1531, 33
    %vm5535 = vcmp.eq.s32.totalorder %v1532, 33
    %vm5536 = vcmp.eq.s32.totalorder %v1533, 33
    %vm5537 = vcmp.eq.s32.totalorder %v1534, 33
    %vm5538 = vcmp.eq.s32.totalorder %v1535, 33
    %vm5539 = vcmp.eq.s32.totalorder %v1536, 33
    %vm5540 = vcmp.eq.s32.totalorder %v1537, 33
    %vm5541 = vcmp.eq.s32.totalorder %v1538, 33
    %vm5542 = vcmp.eq.s32.totalorder %v1539, 33
    %vm5543 = vcmp.eq.s32.totalorder %v1540, 33
    %vm5544 = vcmp.eq.s32.totalorder %v1541, 33
    %vm5545 = vcmp.eq.s32.totalorder %v1542, 33
    %vm5546 = vcmp.eq.s32.totalorder %v1543, 33
    %vm5547 = vcmp.eq.s32.totalorder %v1544, 33
    %vm5548 = vcmp.eq.s32.totalorder %v1545, 33
    %vm5549 = vcmp.eq.s32.totalorder %v1546, 33
    %vm5550 = vcmp.eq.s32.totalorder %v1547, 33
    %vm5551 = vcmp.eq.s32.totalorder %v1548, 33
    %vm5552 = vcmp.eq.s32.totalorder %v1549, 33
    %vm5553 = vcmp.eq.s32.totalorder %v1550, 33
    %vm5554 = vcmp.eq.s32.totalorder %v1551, 33
    %vm5555 = vcmp.eq.s32.totalorder %v1552, 33
    %v5556 = vsel %vm5492, 1.0, 0.0
    %v5557 = vsel %vm5493, 1.0, 0.0
    %v5558 = vsel %vm5494, 1.0, 0.0
    %v5559 = vsel %vm5495, 1.0, 0.0
    %v5560 = vsel %vm5496, 1.0, 0.0
    %v5561 = vsel %vm5497, 1.0, 0.0
    %v5562 = vsel %vm5498, 1.0, 0.0
    %v5563 = vsel %vm5499, 1.0, 0.0
    %v5564 = vsel %vm5500, 1.0, 0.0
    %v5565 = vsel %vm5501, 1.0, 0.0
    %v5566 = vsel %vm5502, 1.0, 0.0
    %v5567 = vsel %vm5503, 1.0, 0.0
    %v5568 = vsel %vm5504, 1.0, 0.0
    %v5569 = vsel %vm5505, 1.0, 0.0
    %v5570 = vsel %vm5506, 1.0, 0.0
    %v5571 = vsel %vm5507, 1.0, 0.0
    %v5572 = vsel %vm5508, 1.0, 0.0
    %v5573 = vsel %vm5509, 1.0, 0.0
    %v5574 = vsel %vm5510, 1.0, 0.0
    %v5575 = vsel %vm5511, 1.0, 0.0
    %v5576 = vsel %vm5512, 1.0, 0.0
    %v5577 = vsel %vm5513, 1.0, 0.0
    %v5578 = vsel %vm5514, 1.0, 0.0
    %v5579 = vsel %vm5515, 1.0, 0.0
    %v5580 = vsel %vm5516, 1.0, 0.0
    %v5581 = vsel %vm5517, 1.0, 0.0
    %v5582 = vsel %vm5518, 1.0, 0.0
    %v5583 = vsel %vm5519, 1.0, 0.0
    %v5584 = vsel %vm5520, 1.0, 0.0
    %v5585 = vsel %vm5521, 1.0, 0.0
    %v5586 = vsel %vm5522, 1.0, 0.0
    %v5587 = vsel %vm5523, 1.0, 0.0
    %v5588 = vsel %vm5524, 1.0, 0.0
    %v5589 = vsel %vm5525, 1.0, 0.0
    %v5590 = vsel %vm5526, 1.0, 0.0
    %v5591 = vsel %vm5527, 1.0, 0.0
    %v5592 = vsel %vm5528, 1.0, 0.0
    %v5593 = vsel %vm5529, 1.0, 0.0
    %v5594 = vsel %vm5530, 1.0, 0.0
    %v5595 = vsel %vm5531, 1.0, 0.0
    %v5596 = vsel %vm5532, 1.0, 0.0
    %v5597 = vsel %vm5533, 1.0, 0.0
    %v5598 = vsel %vm5534, 1.0, 0.0
    %v5599 = vsel %vm5535, 1.0, 0.0
    %v5600 = vsel %vm5536, 1.0, 0.0
    %v5601 = vsel %vm5537, 1.0, 0.0
    %v5602 = vsel %vm5538, 1.0, 0.0
    %v5603 = vsel %vm5539, 1.0, 0.0
    %v5604 = vsel %vm5540, 1.0, 0.0
    %v5605 = vsel %vm5541, 1.0, 0.0
    %v5606 = vsel %vm5542, 1.0, 0.0
    %v5607 = vsel %vm5543, 1.0, 0.0
    %v5608 = vsel %vm5544, 1.0, 0.0
    %v5609 = vsel %vm5545, 1.0, 0.0
    %v5610 = vsel %vm5546, 1.0, 0.0
    %v5611 = vsel %vm5547, 1.0, 0.0
    %v5612 = vsel %vm5548, 1.0, 0.0
    %v5613 = vsel %vm5549, 1.0, 0.0
    %v5614 = vsel %vm5550, 1.0, 0.0
    %v5615 = vsel %vm5551, 1.0, 0.0
    %v5616 = vsel %vm5552, 1.0, 0.0
    %v5617 = vsel %vm5553, 1.0, 0.0
    %v5618 = vsel %vm5554, 1.0, 0.0
    %v5619 = vsel %vm5555, 1.0, 0.0
    %v5620 = vpack.c.bf16 %v5560, %v5556
    %v5621 = vpack.c.bf16 %v5561, %v5557
    %v5622 = vpack.c.bf16 %v5562, %v5558
    %v5623 = vpack.c.bf16 %v5563, %v5559
    %v5624 = vpack.c.bf16 %v5568, %v5564
    %v5625 = vpack.c.bf16 %v5569, %v5565
    %v5626 = vpack.c.bf16 %v5570, %v5566
    %v5627 = vpack.c.bf16 %v5571, %v5567
    %v5628 = vpack.c.bf16 %v5576, %v5572
    %v5629 = vpack.c.bf16 %v5577, %v5573
    %v5630 = vpack.c.bf16 %v5578, %v5574
    %v5631 = vpack.c.bf16 %v5579, %v5575
    %v5632 = vpack.c.bf16 %v5584, %v5580
    %v5633 = vpack.c.bf16 %v5585, %v5581
    %v5634 = vpack.c.bf16 %v5586, %v5582
    %v5635 = vpack.c.bf16 %v5587, %v5583
    %v5636 = vpack.c.bf16 %v5592, %v5588
    %v5637 = vpack.c.bf16 %v5593, %v5589
    %v5638 = vpack.c.bf16 %v5594, %v5590
    %v5639 = vpack.c.bf16 %v5595, %v5591
    %v5640 = vpack.c.bf16 %v5600, %v5596
    %v5641 = vpack.c.bf16 %v5601, %v5597
    %v5642 = vpack.c.bf16 %v5602, %v5598
    %v5643 = vpack.c.bf16 %v5603, %v5599
    %v5644 = vpack.c.bf16 %v5608, %v5604
    %v5645 = vpack.c.bf16 %v5609, %v5605
    %v5646 = vpack.c.bf16 %v5610, %v5606
    %v5647 = vpack.c.bf16 %v5611, %v5607
    %v5648 = vpack.c.bf16 %v5616, %v5612
    %v5649 = vpack.c.bf16 %v5617, %v5613
    %v5650 = vpack.c.bf16 %v5618, %v5614
    %v5651 = vpack.c.bf16 %v5619, %v5615
    %5652 = vmatprep.subr.bf16.mxu0 0
    %5653 = vmatpush1.bf16.msra.mxu0 %v1275
    %5654 = vmatprep.subr.bf16.mxu0 0
    %5655 = vmatpush1.bf16.msra.mxu0 %v1276
    %5656 = vmatprep.subr.bf16.mxu0 0
    %5657 = vmatpush1.bf16.msra.mxu0 %v1277
    %5658 = vmatprep.subr.bf16.mxu0 0
    %5659 = vmatpush1.bf16.msra.mxu0 %v1278
    %5660 = vmatprep.subr.bf16.mxu0 0
    %5661 = vmatpush1.bf16.msra.mxu0 %v1279
    %5662 = vmatprep.subr.bf16.mxu0 0
    %5663 = vmatpush1.bf16.msra.mxu0 %v1280
    %5664 = vmatprep.subr.bf16.mxu0 0
    %5665 = vmatpush1.bf16.msra.mxu0 %v1281
    %5666 = vmatprep.subr.bf16.mxu0 0
    %5667 = vmatpush1.bf16.msra.mxu0 %v1282
    %5668 = vmatprep.subr.bf16.mxu0 0
    %5669 = vmatpush1.bf16.msra.mxu0 %v1283
    %5670 = vmatprep.subr.bf16.mxu0 0
    %5671 = vmatpush1.bf16.msra.mxu0 %v1284
    %5672 = vmatprep.subr.bf16.mxu0 0
    %5673 = vmatpush1.bf16.msra.mxu0 %v1285
    %5674 = vmatprep.subr.bf16.mxu0 0
    %5675 = vmatpush1.bf16.msra.mxu0 %v1286
    %5676 = vmatprep.subr.bf16.mxu0 0
    %5677 = vmatpush1.bf16.msra.mxu0 %v1287
    %5678 = vmatprep.subr.bf16.mxu0 0
    %5679 = vmatpush1.bf16.msra.mxu0 %v1288
    %5680 = vmatprep.subr.bf16.mxu0 0
    %5681 = vmatpush1.bf16.msra.mxu0 %v1289
    %5682 = vmatprep.subr.bf16.mxu0 0
    %5683 = vmatpush1.bf16.msra.mxu0 %v1290
    %5684 = vmatprep.mubr.bf16.mxu0 %v5621
    %5685 = vmatmul.mubr.bf16.gmra.mrb[0].mxu0 %v5620
    %v5686 = vpop.f32.mrb[0].mxu0
    %v5687 = vadd.f32 0.0, %v5686
    %v5688 = vpop.f32.mrb[0].mxu0
    %v5689 = vpop.f32.mrb[0].mxu0
    %v5690 = vadd.f32 0.0, %v5689
    %v5691 = vpop.f32.mrb[0].mxu0
    %5692 = vmatprep.mubr.bf16.mxu0 %v5625
    %5693 = vmatmul.mubr.bf16.gmra.mrb[0].mxu0 %v5624
    %v5694 = vpop.f32.mrb[0].mxu0
    %v5695 = vadd.f32 0.0, %v5694
    %v5696 = vpop.f32.mrb[0].mxu0
    %v5697 = vpop.f32.mrb[0].mxu0
    %v5698 = vadd.f32 0.0, %v5697
    %v5699 = vpop.f32.mrb[0].mxu0
    %5700 = vmatprep.mubr.bf16.mxu0 %v5629
    %5701 = vmatmul.mubr.bf16.gmra.mrb[0].mxu0 %v5628
    %v5702 = vpop.f32.mrb[0].mxu0
    %v5703 = vadd.f32 0.0, %v5702
    %v5704 = vpop.f32.mrb[0].mxu0
    %v5705 = vpop.f32.mrb[0].mxu0
    %v5706 = vadd.f32 0.0, %v5705
    %v5707 = vpop.f32.mrb[0].mxu0
    %5708 = vmatprep.mubr.bf16.mxu0 %v5633
    %5709 = vmatmul.mubr.bf16.gmra.mrb[0].mxu0 %v5632
    %v5710 = vpop.f32.mrb[0].mxu0
    %v5711 = vadd.f32 0.0, %v5710
    %v5712 = vpop.f32.mrb[0].mxu0
    %v5713 = vpop.f32.mrb[0].mxu0
    %v5714 = vadd.f32 0.0, %v5713
    %v5715 = vpop.f32.mrb[0].mxu0
    %5716 = vmatprep.mubr.bf16.mxu0 %v5637
    %5717 = vmatmul.mubr.bf16.gmra.mrb[0].mxu0 %v5636
    %v5718 = vpop.f32.mrb[0].mxu0
    %v5719 = vadd.f32 0.0, %v5718
    %v5720 = vpop.f32.mrb[0].mxu0
    %v5721 = vpop.f32.mrb[0].mxu0
    %v5722 = vadd.f32 0.0, %v5721
    %v5723 = vpop.f32.mrb[0].mxu0
    %5724 = vmatprep.mubr.bf16.mxu0 %v5641
    %5725 = vmatmul.mubr.bf16.gmra.mrb[0].mxu0 %v5640
    %v5726 = vpop.f32.mrb[0].mxu0
    %v5727 = vadd.f32 0.0, %v5726
    %v5728 = vpop.f32.mrb[0].mxu0
    %v5729 = vpop.f32.mrb[0].mxu0
    %v5730 = vadd.f32 0.0, %v5729
    %v5731 = vpop.f32.mrb[0].mxu0
    %5732 = vmatprep.mubr.bf16.mxu0 %v5645
    %5733 = vmatmul.mubr.bf16.gmra.mrb[0].mxu0 %v5644
    %v5734 = vpop.f32.mrb[0].mxu0
    %v5735 = vadd.f32 0.0, %v5734
    %v5736 = vpop.f32.mrb[0].mxu0
    %v5737 = vpop.f32.mrb[0].mxu0
    %v5738 = vadd.f32 0.0, %v5737
    %v5739 = vpop.f32.mrb[0].mxu0
    %5740 = vmatprep.mubr.bf16.mxu0 %v5649
    %5741 = vmatmul.mubr.bf16.gmra.mrb[0].mxu0 %v5648
    %v5742 = vpop.f32.mrb[0].mxu0
    %v5743 = vadd.f32 0.0, %v5742
    %v5744 = vpop.f32.mrb[0].mxu0
    %v5745 = vpop.f32.mrb[0].mxu0
    %v5746 = vadd.f32 0.0, %v5745
    %v5747 = vpop.f32.mrb[0].mxu0
    %5748 = vdwg.mxu0
    %5749 = vmatprep.subr.bf16.mxu0 0
    %5750 = vmatpush1.bf16.msra.mxu0 %v1291
    %5751 = vmatprep.subr.bf16.mxu0 0
    %5752 = vmatpush1.bf16.msra.mxu0 %v1292
    %5753 = vmatprep.subr.bf16.mxu0 0
    %5754 = vmatpush1.bf16.msra.mxu0 %v1293
    %5755 = vmatprep.subr.bf16.mxu0 0
    %5756 = vmatpush1.bf16.msra.mxu0 %v1294
    %5757 = vmatprep.subr.bf16.mxu0 0
    %5758 = vmatpush1.bf16.msra.mxu0 %v1295
    %5759 = vmatprep.subr.bf16.mxu0 0
    %5760 = vmatpush1.bf16.msra.mxu0 %v1296
    %5761 = vmatprep.subr.bf16.mxu0 0
    %5762 = vmatpush1.bf16.msra.mxu0 %v1297
    %5763 = vmatprep.subr.bf16.mxu0 0
    %5764 = vmatpush1.bf16.msra.mxu0 %v1298
    %5765 = vmatprep.subr.bf16.mxu0 0
    %5766 = vmatpush1.bf16.msra.mxu0 %v1299
    %5767 = vmatprep.subr.bf16.mxu0 0
    %5768 = vmatpush1.bf16.msra.mxu0 %v1300
    %5769 = vmatprep.subr.bf16.mxu0 0
    %5770 = vmatpush1.bf16.msra.mxu0 %v1301
    %5771 = vmatprep.subr.bf16.mxu0 0
    %5772 = vmatpush1.bf16.msra.mxu0 %v1302
    %5773 = vmatprep.subr.bf16.mxu0 0
    %5774 = vmatpush1.bf16.msra.mxu0 %v1303
    %5775 = vmatprep.subr.bf16.mxu0 0
    %5776 = vmatpush1.bf16.msra.mxu0 %v1304
    %5777 = vmatprep.subr.bf16.mxu0 0
    %5778 = vmatpush1.bf16.msra.mxu0 %v1305
    %5779 = vmatprep.subr.bf16.mxu0 0
    %5780 = vmatpush1.bf16.msra.mxu0 %v1306
    %5781 = vmatprep.mubr.bf16.mxu0 %v5623
    %5782 = vmatmul.mubr.bf16.gmra.mrb[0].mxu0 %v5622
    %v5783 = vpop.f32.mrb[0].mxu0
    %v5784 = vadd.f32 %v5687, %v5783
    %v5785 = vpop.f32.mrb[0].mxu0
    %v5786 = vpop.f32.mrb[0].mxu0
    %v5787 = vadd.f32 %v5690, %v5786
    %v5788 = vpop.f32.mrb[0].mxu0
    %5789 = vmatprep.mubr.bf16.mxu0 %v5627
    %5790 = vmatmul.mubr.bf16.gmra.mrb[0].mxu0 %v5626
    %v5791 = vpop.f32.mrb[0].mxu0
    %v5792 = vadd.f32 %v5695, %v5791
    %v5793 = vpop.f32.mrb[0].mxu0
    %v5794 = vpop.f32.mrb[0].mxu0
    %v5795 = vadd.f32 %v5698, %v5794
    %v5796 = vpop.f32.mrb[0].mxu0
    %5797 = vmatprep.mubr.bf16.mxu0 %v5631
    %5798 = vmatmul.mubr.bf16.gmra.mrb[0].mxu0 %v5630
    %v5799 = vpop.f32.mrb[0].mxu0
    %v5800 = vadd.f32 %v5703, %v5799
    %v5801 = vpop.f32.mrb[0].mxu0
    %v5802 = vpop.f32.mrb[0].mxu0
    %v5803 = vadd.f32 %v5706, %v5802
    %v5804 = vpop.f32.mrb[0].mxu0
    %5805 = vmatprep.mubr.bf16.mxu0 %v5635
    %5806 = vmatmul.mubr.bf16.gmra.mrb[0].mxu0 %v5634
    %v5807 = vpop.f32.mrb[0].mxu0
    %v5808 = vadd.f32 %v5711, %v5807
    %v5809 = vpop.f32.mrb[0].mxu0
    %v5810 = vpop.f32.mrb[0].mxu0
    %v5811 = vadd.f32 %v5714, %v5810
    %v5812 = vpop.f32.mrb[0].mxu0
    %5813 = vmatprep.mubr.bf16.mxu0 %v5639
    %5814 = vmatmul.mubr.bf16.gmra.mrb[0].mxu0 %v5638
    %v5815 = vpop.f32.mrb[0].mxu0
    %v5816 = vadd.f32 %v5719, %v5815
    %v5817 = vpop.f32.mrb[0].mxu0
    %v5818 = vpop.f32.mrb[0].mxu0
    %v5819 = vadd.f32 %v5722, %v5818
    %v5820 = vpop.f32.mrb[0].mxu0
    %5821 = vmatprep.mubr.bf16.mxu0 %v5643
    %5822 = vmatmul.mubr.bf16.gmra.mrb[0].mxu0 %v5642
    %v5823 = vpop.f32.mrb[0].mxu0
    %v5824 = vadd.f32 %v5727, %v5823
    %v5825 = vpop.f32.mrb[0].mxu0
    %v5826 = vpop.f32.mrb[0].mxu0
    %v5827 = vadd.f32 %v5730, %v5826
    %v5828 = vpop.f32.mrb[0].mxu0
    %5829 = vmatprep.mubr.bf16.mxu0 %v5647
    %5830 = vmatmul.mubr.bf16.gmra.mrb[0].mxu0 %v5646
    %v5831 = vpop.f32.mrb[0].mxu0
    %v5832 = vadd.f32 %v5735, %v5831
    %v5833 = vpop.f32.mrb[0].mxu0
    %v5834 = vpop.f32.mrb[0].mxu0
    %v5835 = vadd.f32 %v5738, %v5834
    %v5836 = vpop.f32.mrb[0].mxu0
    %5837 = vmatprep.mubr.bf16.mxu0 %v5651
    %5838 = vmatmul.mubr.bf16.gmra.mrb[0].mxu0 %v5650
    %v5839 = vpop.f32.mrb[0].mxu0
    %v5840 = vadd.f32 %v5743, %v5839
    %v5841 = vpop.f32.mrb[0].mxu0
    %v5842 = vpop.f32.mrb[0].mxu0
    %v5843 = vadd.f32 %v5746, %v5842
    %v5844 = vpop.f32.mrb[0].mxu0
    %5845 = vdwg.mxu0
    %v5846 = vpack.c.bf16 %v5787, %v5784
    %v5847 = vpack.c.bf16 %v5795, %v5792
    %v5848 = vpack.c.bf16 %v5803, %v5800
    %v5849 = vpack.c.bf16 %v5811, %v5808
    %v5850 = vpack.c.bf16 %v5819, %v5816
    %v5851 = vpack.c.bf16 %v5827, %v5824
    %v5852 = vpack.c.bf16 %v5835, %v5832
    %v5853 = vpack.c.bf16 %v5843, %v5840
    %s5854 = scalar_lea.vmem %s4, 56
    %v5855 = vld [vmem:[%s5854] sm:$0xf]
    %v5856 = vld [vmem:[%s5854 + $0x4] sm:$0xf]
    %v5859 = vunpack.c.l.b16 %v5855
    %v5860 = vunpack.c.l.b16 %v5856
    %v5861 = vpack.c.b16 %v5860, %v5859
    %v5864 = vsel %vm284, %v5846, 0
    %v5867 = vsel %vm284, %v5847, 0
    %v5870 = vsel %vm284, %v5848, 0
    %v5873 = vsel %vm284, %v5849, 0
    %v5876 = vsel %vm284, %v5850, 0
    %v5879 = vsel %vm284, %v5851, 0
    %v5882 = vsel %vm284, %v5852, 0
    %v5885 = vsel %vm284, %v5853, 0
    %5887 = vmatprep.subr.bf16.mxu0 0
    %5888 = vmatpush1.bf16.msra.mxu0 %v5861
    %5889 = vmatprep.subr.bf16.mxu0 0
    %5890 = vmatpush1.bf16.msra.mxu0 0
    %5891 = vmatprep.subr.bf16.mxu0 0
    %5892 = vmatpush1.bf16.msra.mxu0 0
    %5893 = vmatprep.subr.bf16.mxu0 0
    %5894 = vmatpush1.bf16.msra.mxu0 0
    %5895 = vmatprep.subr.bf16.mxu0 0
    %5896 = vmatpush1.bf16.msra.mxu0 0
    %5897 = vmatprep.subr.bf16.mxu0 0
    %5898 = vmatpush1.bf16.msra.mxu0 0
    %5899 = vmatprep.subr.bf16.mxu0 0
    %5900 = vmatpush1.bf16.msra.mxu0 0
    %5901 = vmatprep.subr.bf16.mxu0 0
    %5902 = vmatpush1.bf16.msra.mxu0 0
    %5903 = vmatprep.subr.bf16.mxu0 0
    %5904 = vmatpush1.bf16.msra.mxu0 0
    %5905 = vmatprep.subr.bf16.mxu0 0
    %5906 = vmatpush1.bf16.msra.mxu0 0
    %5907 = vmatprep.subr.bf16.mxu0 0
    %5908 = vmatpush1.bf16.msra.mxu0 0
    %5909 = vmatprep.subr.bf16.mxu0 0
    %5910 = vmatpush1.bf16.msra.mxu0 0
    %5911 = vmatprep.subr.bf16.mxu0 0
    %5912 = vmatpush1.bf16.msra.mxu0 0
    %5913 = vmatprep.subr.bf16.mxu0 0
    %5914 = vmatpush1.bf16.msra.mxu0 0
    %5915 = vmatprep.subr.bf16.mxu0 0
    %5916 = vmatpush1.bf16.msra.mxu0 0
    %5917 = vmatprep.subr.bf16.mxu0 0
    %5918 = vmatpush1.bf16.msra.mxu0 0
    %5919 = vmatprep.mubr.bf16.mxu0 0
    %5920 = vmatmul.mubr.bf16.gmra.mrb[0].mxu0 %v5864
    %v5921 = vpop.f32.mrb[0].mxu0
    %v5922 = vadd.f32 0.0, %v5921
    %v5923 = vpop.f32.mrb[0].mxu0
    %v5924 = vpop.f32.mrb[0].mxu0
    %v5925 = vadd.f32 0.0, %v5924
    %v5926 = vpop.f32.mrb[0].mxu0
    %5927 = vmatprep.mubr.bf16.mxu0 0
    %5928 = vmatmul.mubr.bf16.gmra.mrb[0].mxu0 %v5867
    %v5929 = vpop.f32.mrb[0].mxu0
    %v5930 = vadd.f32 0.0, %v5929
    %v5931 = vpop.f32.mrb[0].mxu0
    %v5932 = vpop.f32.mrb[0].mxu0
    %v5933 = vadd.f32 0.0, %v5932
    %v5934 = vpop.f32.mrb[0].mxu0
    %5935 = vmatprep.mubr.bf16.mxu0 0
    %5936 = vmatmul.mubr.bf16.gmra.mrb[0].mxu0 %v5870
    %v5937 = vpop.f32.mrb[0].mxu0
    %v5938 = vadd.f32 0.0, %v5937
    %v5939 = vpop.f32.mrb[0].mxu0
    %v5940 = vpop.f32.mrb[0].mxu0
    %v5941 = vadd.f32 0.0, %v5940
    %v5942 = vpop.f32.mrb[0].mxu0
    %5943 = vmatprep.mubr.bf16.mxu0 0
    %5944 = vmatmul.mubr.bf16.gmra.mrb[0].mxu0 %v5873
    %v5945 = vpop.f32.mrb[0].mxu0
    %v5946 = vadd.f32 0.0, %v5945
    %v5947 = vpop.f32.mrb[0].mxu0
    %v5948 = vpop.f32.mrb[0].mxu0
    %v5949 = vadd.f32 0.0, %v5948
    %v5950 = vpop.f32.mrb[0].mxu0
    %5951 = vmatprep.mubr.bf16.mxu0 0
    %5952 = vmatmul.mubr.bf16.gmra.mrb[0].mxu0 %v5876
    %v5953 = vpop.f32.mrb[0].mxu0
    %v5954 = vadd.f32 0.0, %v5953
    %v5955 = vpop.f32.mrb[0].mxu0
    %v5956 = vpop.f32.mrb[0].mxu0
    %v5957 = vadd.f32 0.0, %v5956
    %v5958 = vpop.f32.mrb[0].mxu0
    %5959 = vmatprep.mubr.bf16.mxu0 0
    %5960 = vmatmul.mubr.bf16.gmra.mrb[0].mxu0 %v5879
    %v5961 = vpop.f32.mrb[0].mxu0
    %v5962 = vadd.f32 0.0, %v5961
    %v5963 = vpop.f32.mrb[0].mxu0
    %v5964 = vpop.f32.mrb[0].mxu0
    %v5965 = vadd.f32 0.0, %v5964
    %v5966 = vpop.f32.mrb[0].mxu0
    %5967 = vmatprep.mubr.bf16.mxu0 0
    %5968 = vmatmul.mubr.bf16.gmra.mrb[0].mxu0 %v5882
    %v5969 = vpop.f32.mrb[0].mxu0
    %v5970 = vadd.f32 0.0, %v5969
    %v5971 = vpop.f32.mrb[0].mxu0
    %v5972 = vpop.f32.mrb[0].mxu0
    %v5973 = vadd.f32 0.0, %v5972
    %v5974 = vpop.f32.mrb[0].mxu0
    %5975 = vmatprep.mubr.bf16.mxu0 0
    %5976 = vmatmul.mubr.bf16.gmra.mrb[0].mxu0 %v5885
    %v5977 = vpop.f32.mrb[0].mxu0
    %v5978 = vadd.f32 0.0, %v5977
    %v5979 = vpop.f32.mrb[0].mxu0
    %v5980 = vpop.f32.mrb[0].mxu0
    %v5981 = vadd.f32 0.0, %v5980
    %v5982 = vpop.f32.mrb[0].mxu0
    %5983 = vdwg.mxu0
    %v5984 = vadd.f32 %v5476, %v5922
    %v5985 = vadd.f32 %v5477, %v5925
    %v5986 = vadd.f32 %v5478, %v5930
    %v5987 = vadd.f32 %v5479, %v5933
    %v5988 = vadd.f32 %v5480, %v5938
    %v5989 = vadd.f32 %v5481, %v5941
    %v5990 = vadd.f32 %v5482, %v5946
    %v5991 = vadd.f32 %v5483, %v5949
    %v5992 = vadd.f32 %v5484, %v5954
    %v5993 = vadd.f32 %v5485, %v5957
    %v5994 = vadd.f32 %v5486, %v5962
    %v5995 = vadd.f32 %v5487, %v5965
    %v5996 = vadd.f32 %v5488, %v5970
    %v5997 = vadd.f32 %v5489, %v5973
    %v5998 = vadd.f32 %v5490, %v5978
    %v5999 = vadd.f32 %v5491, %v5981
    %vm6000 = vcmp.eq.s32.totalorder %v1489, 34
    %vm6001 = vcmp.eq.s32.totalorder %v1490, 34
    %vm6002 = vcmp.eq.s32.totalorder %v1491, 34
    %vm6003 = vcmp.eq.s32.totalorder %v1492, 34
    %vm6004 = vcmp.eq.s32.totalorder %v1493, 34
    %vm6005 = vcmp.eq.s32.totalorder %v1494, 34
    %vm6006 = vcmp.eq.s32.totalorder %v1495, 34
    %vm6007 = vcmp.eq.s32.totalorder %v1496, 34
    %vm6008 = vcmp.eq.s32.totalorder %v1497, 34
    %vm6009 = vcmp.eq.s32.totalorder %v1498, 34
    %vm6010 = vcmp.eq.s32.totalorder %v1499, 34
    %vm6011 = vcmp.eq.s32.totalorder %v1500, 34
    %vm6012 = vcmp.eq.s32.totalorder %v1501, 34
    %vm6013 = vcmp.eq.s32.totalorder %v1502, 34
    %vm6014 = vcmp.eq.s32.totalorder %v1503, 34
    %vm6015 = vcmp.eq.s32.totalorder %v1504, 34
    %vm6016 = vcmp.eq.s32.totalorder %v1505, 34
    %vm6017 = vcmp.eq.s32.totalorder %v1506, 34
    %vm6018 = vcmp.eq.s32.totalorder %v1507, 34
    %vm6019 = vcmp.eq.s32.totalorder %v1508, 34
    %vm6020 = vcmp.eq.s32.totalorder %v1509, 34
    %vm6021 = vcmp.eq.s32.totalorder %v1510, 34
    %vm6022 = vcmp.eq.s32.totalorder %v1511, 34
    %vm6023 = vcmp.eq.s32.totalorder %v1512, 34
    %vm6024 = vcmp.eq.s32.totalorder %v1513, 34
    %vm6025 = vcmp.eq.s32.totalorder %v1514, 34
    %vm6026 = vcmp.eq.s32.totalorder %v1515, 34
    %vm6027 = vcmp.eq.s32.totalorder %v1516, 34
    %vm6028 = vcmp.eq.s32.totalorder %v1517, 34
    %vm6029 = vcmp.eq.s32.totalorder %v1518, 34
    %vm6030 = vcmp.eq.s32.totalorder %v1519, 34
    %vm6031 = vcmp.eq.s32.totalorder %v1520, 34
    %vm6032 = vcmp.eq.s32.totalorder %v1521, 34
    %vm6033 = vcmp.eq.s32.totalorder %v1522, 34
    %vm6034 = vcmp.eq.s32.totalorder %v1523, 34
    %vm6035 = vcmp.eq.s32.totalorder %v1524, 34
    %vm6036 = vcmp.eq.s32.totalorder %v1525, 34
    %vm6037 = vcmp.eq.s32.totalorder %v1526, 34
    %vm6038 = vcmp.eq.s32.totalorder %v1527, 34
    %vm6039 = vcmp.eq.s32.totalorder %v1528, 34
    %vm6040 = vcmp.eq.s32.totalorder %v1529, 34
    %vm6041 = vcmp.eq.s32.totalorder %v1530, 34
    %vm6042 = vcmp.eq.s32.totalorder %v1531, 34
    %vm6043 = vcmp.eq.s32.totalorder %v1532, 34
    %vm6044 = vcmp.eq.s32.totalorder %v1533, 34
    %vm6045 = vcmp.eq.s32.totalorder %v1534, 34
    %vm6046 = vcmp.eq.s32.totalorder %v1535, 34
    %vm6047 = vcmp.eq.s32.totalorder %v1536, 34
    %vm6048 = vcmp.eq.s32.totalorder %v1537, 34
    %vm6049 = vcmp.eq.s32.totalorder %v1538, 34
    %vm6050 = vcmp.eq.s32.totalorder %v1539, 34
    %vm6051 = vcmp.eq.s32.totalorder %v1540, 34
    %vm6052 = vcmp.eq.s32.totalorder %v1541, 34
    %vm6053 = vcmp.eq.s32.totalorder %v1542, 34
    %vm6054 = vcmp.eq.s32.totalorder %v1543, 34
    %vm6055 = vcmp.eq.s32.totalorder %v1544, 34
    %vm6056 = vcmp.eq.s32.totalorder %v1545, 34
    %vm6057 = vcmp.eq.s32.totalorder %v1546, 34
    %vm6058 = vcmp.eq.s32.totalorder %v1547, 34
    %vm6059 = vcmp.eq.s32.totalorder %v1548, 34
    %vm6060 = vcmp.eq.s32.totalorder %v1549, 34
    %vm6061 = vcmp.eq.s32.totalorder %v1550, 34
    %vm6062 = vcmp.eq.s32.totalorder %v1551, 34
    %vm6063 = vcmp.eq.s32.totalorder %v1552, 34
    %v6064 = vsel %vm6000, 1.0, 0.0
    %v6065 = vsel %vm6001, 1.0, 0.0
    %v6066 = vsel %vm6002, 1.0, 0.0
    %v6067 = vsel %vm6003, 1.0, 0.0
    %v6068 = vsel %vm6004, 1.0, 0.0
    %v6069 = vsel %vm6005, 1.0, 0.0
    %v6070 = vsel %vm6006, 1.0, 0.0
    %v6071 = vsel %vm6007, 1.0, 0.0
    %v6072 = vsel %vm6008, 1.0, 0.0
    %v6073 = vsel %vm6009, 1.0, 0.0
    %v6074 = vsel %vm6010, 1.0, 0.0
    %v6075 = vsel %vm6011, 1.0, 0.0
    %v6076 = vsel %vm6012, 1.0, 0.0
    %v6077 = vsel %vm6013, 1.0, 0.0
    %v6078 = vsel %vm6014, 1.0, 0.0
    %v6079 = vsel %vm6015, 1.0, 0.0
    %v6080 = vsel %vm6016, 1.0, 0.0
    %v6081 = vsel %vm6017, 1.0, 0.0
    %v6082 = vsel %vm6018, 1.0, 0.0
    %v6083 = vsel %vm6019, 1.0, 0.0
    %v6084 = vsel %vm6020, 1.0, 0.0
    %v6085 = vsel %vm6021, 1.0, 0.0
    %v6086 = vsel %vm6022, 1.0, 0.0
    %v6087 = vsel %vm6023, 1.0, 0.0
    %v6088 = vsel %vm6024, 1.0, 0.0
    %v6089 = vsel %vm6025, 1.0, 0.0
    %v6090 = vsel %vm6026, 1.0, 0.0
    %v6091 = vsel %vm6027, 1.0, 0.0
    %v6092 = vsel %vm6028, 1.0, 0.0
    %v6093 = vsel %vm6029, 1.0, 0.0
    %v6094 = vsel %vm6030, 1.0, 0.0
    %v6095 = vsel %vm6031, 1.0, 0.0
    %v6096 = vsel %vm6032, 1.0, 0.0
    %v6097 = vsel %vm6033, 1.0, 0.0
    %v6098 = vsel %vm6034, 1.0, 0.0
    %v6099 = vsel %vm6035, 1.0, 0.0
    %v6100 = vsel %vm6036, 1.0, 0.0
    %v6101 = vsel %vm6037, 1.0, 0.0
    %v6102 = vsel %vm6038, 1.0, 0.0
    %v6103 = vsel %vm6039, 1.0, 0.0
    %v6104 = vsel %vm6040, 1.0, 0.0
    %v6105 = vsel %vm6041, 1.0, 0.0
    %v6106 = vsel %vm6042, 1.0, 0.0
    %v6107 = vsel %vm6043, 1.0, 0.0
    %v6108 = vsel %vm6044, 1.0, 0.0
    %v6109 = vsel %vm6045, 1.0, 0.0
    %v6110 = vsel %vm6046, 1.0, 0.0
    %v6111 = vsel %vm6047, 1.0, 0.0
    %v6112 = vsel %vm6048, 1.0, 0.0
    %v6113 = vsel %vm6049, 1.0, 0.0
    %v6114 = vsel %vm6050, 1.0, 0.0
    %v6115 = vsel %vm6051, 1.0, 0.0
    %v6116 = vsel %vm6052, 1.0, 0.0
    %v6117 = vsel %vm6053, 1.0, 0.0
    %v6118 = vsel %vm6054, 1.0, 0.0
    %v6119 = vsel %vm6055, 1.0, 0.0
    %v6120 = vsel %vm6056, 1.0, 0.0
    %v6121 = vsel %vm6057, 1.0, 0.0
    %v6122 = vsel %vm6058, 1.0, 0.0
    %v6123 = vsel %vm6059, 1.0, 0.0
    %v6124 = vsel %vm6060, 1.0, 0.0
    %v6125 = vsel %vm6061, 1.0, 0.0
    %v6126 = vsel %vm6062, 1.0, 0.0
    %v6127 = vsel %vm6063, 1.0, 0.0
    %v6128 = vpack.c.bf16 %v6068, %v6064
    %v6129 = vpack.c.bf16 %v6069, %v6065
    %v6130 = vpack.c.bf16 %v6070, %v6066
    %v6131 = vpack.c.bf16 %v6071, %v6067
    %v6132 = vpack.c.bf16 %v6076, %v6072
    %v6133 = vpack.c.bf16 %v6077, %v6073
    %v6134 = vpack.c.bf16 %v6078, %v6074
    %v6135 = vpack.c.bf16 %v6079, %v6075
    %v6136 = vpack.c.bf16 %v6084, %v6080
    %v6137 = vpack.c.bf16 %v6085, %v6081
    %v6138 = vpack.c.bf16 %v6086, %v6082
    %v6139 = vpack.c.bf16 %v6087, %v6083
    %v6140 = vpack.c.bf16 %v6092, %v6088
    %v6141 = vpack.c.bf16 %v6093, %v6089
    %v6142 = vpack.c.bf16 %v6094, %v6090
    %v6143 = vpack.c.bf16 %v6095, %v6091
    %v6144 = vpack.c.bf16 %v6100, %v6096
    %v6145 = vpack.c.bf16 %v6101, %v6097
    %v6146 = vpack.c.bf16 %v6102, %v6098
    %v6147 = vpack.c.bf16 %v6103, %v6099
    %v6148 = vpack.c.bf16 %v6108, %v6104
    %v6149 = vpack.c.bf16 %v6109, %v6105
    %v6150 = vpack.c.bf16 %v6110, %v6106
    %v6151 = vpack.c.bf16 %v6111, %v6107
    %v6152 = vpack.c.bf16 %v6116, %v6112
    %v6153 = vpack.c.bf16 %v6117, %v6113
    %v6154 = vpack.c.bf16 %v6118, %v6114
    %v6155 = vpack.c.bf16 %v6119, %v6115
    %v6156 = vpack.c.bf16 %v6124, %v6120
    %v6157 = vpack.c.bf16 %v6125, %v6121
    %v6158 = vpack.c.bf16 %v6126, %v6122
    %v6159 = vpack.c.bf16 %v6127, %v6123
    %6160 = vmatprep.subr.bf16.mxu0 0
    %6161 = vmatpush1.bf16.msra.mxu0 %v1275
    %6162 = vmatprep.subr.bf16.mxu0 0
    %6163 = vmatpush1.bf16.msra.mxu0 %v1276
    %6164 = vmatprep.subr.bf16.mxu0 0
    %6165 = vmatpush1.bf16.msra.mxu0 %v1277
    %6166 = vmatprep.subr.bf16.mxu0 0
    %6167 = vmatpush1.bf16.msra.mxu0 %v1278
    %6168 = vmatprep.subr.bf16.mxu0 0
    %6169 = vmatpush1.bf16.msra.mxu0 %v1279
    %6170 = vmatprep.subr.bf16.mxu0 0
    %6171 = vmatpush1.bf16.msra.mxu0 %v1280
    %6172 = vmatprep.subr.bf16.mxu0 0
    %6173 = vmatpush1.bf16.msra.mxu0 %v1281
    %6174 = vmatprep.subr.bf16.mxu0 0
    %6175 = vmatpush1.bf16.msra.mxu0 %v1282
    %6176 = vmatprep.subr.bf16.mxu0 0
    %6177 = vmatpush1.bf16.msra.mxu0 %v1283
    %6178 = vmatprep.subr.bf16.mxu0 0
    %6179 = vmatpush1.bf16.msra.mxu0 %v1284
    %6180 = vmatprep.subr.bf16.mxu0 0
    %6181 = vmatpush1.bf16.msra.mxu0 %v1285
    %6182 = vmatprep.subr.bf16.mxu0 0
    %6183 = vmatpush1.bf16.msra.mxu0 %v1286
    %6184 = vmatprep.subr.bf16.mxu0 0
    %6185 = vmatpush1.bf16.msra.mxu0 %v1287
    %6186 = vmatprep.subr.bf16.mxu0 0
    %6187 = vmatpush1.bf16.msra.mxu0 %v1288
    %6188 = vmatprep.subr.bf16.mxu0 0
    %6189 = vmatpush1.bf16.msra.mxu0 %v1289
    %6190 = vmatprep.subr.bf16.mxu0 0
    %6191 = vmatpush1.bf16.msra.mxu0 %v1290
    %6192 = vmatprep.mubr.bf16.mxu0 %v6129
    %6193 = vmatmul.mubr.bf16.gmra.mrb[0].mxu0 %v6128
    %v6194 = vpop.f32.mrb[0].mxu0
    %v6195 = vadd.f32 0.0, %v6194
    %v6196 = vpop.f32.mrb[0].mxu0
    %v6197 = vpop.f32.mrb[0].mxu0
    %v6198 = vadd.f32 0.0, %v6197
    %v6199 = vpop.f32.mrb[0].mxu0
    %6200 = vmatprep.mubr.bf16.mxu0 %v6133
    %6201 = vmatmul.mubr.bf16.gmra.mrb[0].mxu0 %v6132
    %v6202 = vpop.f32.mrb[0].mxu0
    %v6203 = vadd.f32 0.0, %v6202
    %v6204 = vpop.f32.mrb[0].mxu0
    %v6205 = vpop.f32.mrb[0].mxu0
    %v6206 = vadd.f32 0.0, %v6205
    %v6207 = vpop.f32.mrb[0].mxu0
    %6208 = vmatprep.mubr.bf16.mxu0 %v6137
    %6209 = vmatmul.mubr.bf16.gmra.mrb[0].mxu0 %v6136
    %v6210 = vpop.f32.mrb[0].mxu0
    %v6211 = vadd.f32 0.0, %v6210
    %v6212 = vpop.f32.mrb[0].mxu0
    %v6213 = vpop.f32.mrb[0].mxu0
    %v6214 = vadd.f32 0.0, %v6213
    %v6215 = vpop.f32.mrb[0].mxu0
    %6216 = vmatprep.mubr.bf16.mxu0 %v6141
    %6217 = vmatmul.mubr.bf16.gmra.mrb[0].mxu0 %v6140
    %v6218 = vpop.f32.mrb[0].mxu0
    %v6219 = vadd.f32 0.0, %v6218
    %v6220 = vpop.f32.mrb[0].mxu0
    %v6221 = vpop.f32.mrb[0].mxu0
    %v6222 = vadd.f32 0.0, %v6221
    %v6223 = vpop.f32.mrb[0].mxu0
    %6224 = vmatprep.mubr.bf16.mxu0 %v6145
    %6225 = vmatmul.mubr.bf16.gmra.mrb[0].mxu0 %v6144
    %v6226 = vpop.f32.mrb[0].mxu0
    %v6227 = vadd.f32 0.0, %v6226
    %v6228 = vpop.f32.mrb[0].mxu0
    %v6229 = vpop.f32.mrb[0].mxu0
    %v6230 = vadd.f32 0.0, %v6229
    %v6231 = vpop.f32.mrb[0].mxu0
    %6232 = vmatprep.mubr.bf16.mxu0 %v6149
    %6233 = vmatmul.mubr.bf16.gmra.mrb[0].mxu0 %v6148
    %v6234 = vpop.f32.mrb[0].mxu0
    %v6235 = vadd.f32 0.0, %v6234
    %v6236 = vpop.f32.mrb[0].mxu0
    %v6237 = vpop.f32.mrb[0].mxu0
    %v6238 = vadd.f32 0.0, %v6237
    %v6239 = vpop.f32.mrb[0].mxu0
    %6240 = vmatprep.mubr.bf16.mxu0 %v6153
    %6241 = vmatmul.mubr.bf16.gmra.mrb[0].mxu0 %v6152
    %v6242 = vpop.f32.mrb[0].mxu0
    %v6243 = vadd.f32 0.0, %v6242
    %v6244 = vpop.f32.mrb[0].mxu0
    %v6245 = vpop.f32.mrb[0].mxu0
    %v6246 = vadd.f32 0.0, %v6245
    %v6247 = vpop.f32.mrb[0].mxu0
    %6248 = vmatprep.mubr.bf16.mxu0 %v6157
    %6249 = vmatmul.mubr.bf16.gmra.mrb[0].mxu0 %v6156
    %v6250 = vpop.f32.mrb[0].mxu0
    %v6251 = vadd.f32 0.0, %v6250
    %v6252 = vpop.f32.mrb[0].mxu0
    %v6253 = vpop.f32.mrb[0].mxu0
    %v6254 = vadd.f32 0.0, %v6253
    %v6255 = vpop.f32.mrb[0].mxu0
    %6256 = vdwg.mxu0
    %6257 = vmatprep.subr.bf16.mxu0 0
    %6258 = vmatpush1.bf16.msra.mxu0 %v1291
    %6259 = vmatprep.subr.bf16.mxu0 0
    %6260 = vmatpush1.bf16.msra.mxu0 %v1292
    %6261 = vmatprep.subr.bf16.mxu0 0
    %6262 = vmatpush1.bf16.msra.mxu0 %v1293
    %6263 = vmatprep.subr.bf16.mxu0 0
    %6264 = vmatpush1.bf16.msra.mxu0 %v1294
    %6265 = vmatprep.subr.bf16.mxu0 0
    %6266 = vmatpush1.bf16.msra.mxu0 %v1295
    %6267 = vmatprep.subr.bf16.mxu0 0
    %6268 = vmatpush1.bf16.msra.mxu0 %v1296
    %6269 = vmatprep.subr.bf16.mxu0 0
    %6270 = vmatpush1.bf16.msra.mxu0 %v1297
    %6271 = vmatprep.subr.bf16.mxu0 0
    %6272 = vmatpush1.bf16.msra.mxu0 %v1298
    %6273 = vmatprep.subr.bf16.mxu0 0
    %6274 = vmatpush1.bf16.msra.mxu0 %v1299
    %6275 = vmatprep.subr.bf16.mxu0 0
    %6276 = vmatpush1.bf16.msra.mxu0 %v1300
    %6277 = vmatprep.subr.bf16.mxu0 0
    %6278 = vmatpush1.bf16.msra.mxu0 %v1301
    %6279 = vmatprep.subr.bf16.mxu0 0
    %6280 = vmatpush1.bf16.msra.mxu0 %v1302
    %6281 = vmatprep.subr.bf16.mxu0 0
    %6282 = vmatpush1.bf16.msra.mxu0 %v1303
    %6283 = vmatprep.subr.bf16.mxu0 0
    %6284 = vmatpush1.bf16.msra.mxu0 %v1304
    %6285 = vmatprep.subr.bf16.mxu0 0
    %6286 = vmatpush1.bf16.msra.mxu0 %v1305
    %6287 = vmatprep.subr.bf16.mxu0 0
    %6288 = vmatpush1.bf16.msra.mxu0 %v1306
    %6289 = vmatprep.mubr.bf16.mxu0 %v6131
    %6290 = vmatmul.mubr.bf16.gmra.mrb[0].mxu0 %v6130
    %v6291 = vpop.f32.mrb[0].mxu0
    %v6292 = vadd.f32 %v6195, %v6291
    %v6293 = vpop.f32.mrb[0].mxu0
    %v6294 = vpop.f32.mrb[0].mxu0
    %v6295 = vadd.f32 %v6198, %v6294
    %v6296 = vpop.f32.mrb[0].mxu0
    %6297 = vmatprep.mubr.bf16.mxu0 %v6135
    %6298 = vmatmul.mubr.bf16.gmra.mrb[0].mxu0 %v6134
    %v6299 = vpop.f32.mrb[0].mxu0
    %v6300 = vadd.f32 %v6203, %v6299
    %v6301 = vpop.f32.mrb[0].mxu0
    %v6302 = vpop.f32.mrb[0].mxu0
    %v6303 = vadd.f32 %v6206, %v6302
    %v6304 = vpop.f32.mrb[0].mxu0
    %6305 = vmatprep.mubr.bf16.mxu0 %v6139
    %6306 = vmatmul.mubr.bf16.gmra.mrb[0].mxu0 %v6138
    %v6307 = vpop.f32.mrb[0].mxu0
    %v6308 = vadd.f32 %v6211, %v6307
    %v6309 = vpop.f32.mrb[0].mxu0
    %v6310 = vpop.f32.mrb[0].mxu0
    %v6311 = vadd.f32 %v6214, %v6310
    %v6312 = vpop.f32.mrb[0].mxu0
    %6313 = vmatprep.mubr.bf16.mxu0 %v6143
    %6314 = vmatmul.mubr.bf16.gmra.mrb[0].mxu0 %v6142
    %v6315 = vpop.f32.mrb[0].mxu0
    %v6316 = vadd.f32 %v6219, %v6315
    %v6317 = vpop.f32.mrb[0].mxu0
    %v6318 = vpop.f32.mrb[0].mxu0
    %v6319 = vadd.f32 %v6222, %v6318
    %v6320 = vpop.f32.mrb[0].mxu0
    %6321 = vmatprep.mubr.bf16.mxu0 %v6147
    %6322 = vmatmul.mubr.bf16.gmra.mrb[0].mxu0 %v6146
    %v6323 = vpop.f32.mrb[0].mxu0
    %v6324 = vadd.f32 %v6227, %v6323
    %v6325 = vpop.f32.mrb[0].mxu0
    %v6326 = vpop.f32.mrb[0].mxu0
    %v6327 = vadd.f32 %v6230, %v6326
    %v6328 = vpop.f32.mrb[0].mxu0
    %6329 = vmatprep.mubr.bf16.mxu0 %v6151
    %6330 = vmatmul.mubr.bf16.gmra.mrb[0].mxu0 %v6150
    %v6331 = vpop.f32.mrb[0].mxu0
    %v6332 = vadd.f32 %v6235, %v6331
    %v6333 = vpop.f32.mrb[0].mxu0
    %v6334 = vpop.f32.mrb[0].mxu0
    %v6335 = vadd.f32 %v6238, %v6334
    %v6336 = vpop.f32.mrb[0].mxu0
    %6337 = vmatprep.mubr.bf16.mxu0 %v6155
    %6338 = vmatmul.mubr.bf16.gmra.mrb[0].mxu0 %v6154
    %v6339 = vpop.f32.mrb[0].mxu0
    %v6340 = vadd.f32 %v6243, %v6339
    %v6341 = vpop.f32.mrb[0].mxu0
    %v6342 = vpop.f32.mrb[0].mxu0
    %v6343 = vadd.f32 %v6246, %v6342
    %v6344 = vpop.f32.mrb[0].mxu0
    %6345 = vmatprep.mubr.bf16.mxu0 %v6159
    %6346 = vmatmul.mubr.bf16.gmra.mrb[0].mxu0 %v6158
    %v6347 = vpop.f32.mrb[0].mxu0
    %v6348 = vadd.f32 %v6251, %v6347
    %v6349 = vpop.f32.mrb[0].mxu0
    %v6350 = vpop.f32.mrb[0].mxu0
    %v6351 = vadd.f32 %v6254, %v6350
    %v6352 = vpop.f32.mrb[0].mxu0
    %6353 = vdwg.mxu0
    %v6354 = vpack.c.bf16 %v6295, %v6292
    %v6355 = vpack.c.bf16 %v6303, %v6300
    %v6356 = vpack.c.bf16 %v6311, %v6308
    %v6357 = vpack.c.bf16 %v6319, %v6316
    %v6358 = vpack.c.bf16 %v6327, %v6324
    %v6359 = vpack.c.bf16 %v6335, %v6332
    %v6360 = vpack.c.bf16 %v6343, %v6340
    %v6361 = vpack.c.bf16 %v6351, %v6348
    %s6362 = scalar_lea.vmem %s4, 64
    %v6363 = vld [vmem:[%s6362] sm:$0xf]
    %v6364 = vld [vmem:[%s6362 + $0x4] sm:$0xf]
    %v6367 = vunpack.c.l.b16 %v6363
    %v6368 = vunpack.c.l.b16 %v6364
    %v6369 = vpack.c.b16 %v6368, %v6367
    %v6372 = vsel %vm284, %v6354, 0
    %v6375 = vsel %vm284, %v6355, 0
    %v6378 = vsel %vm284, %v6356, 0
    %v6381 = vsel %vm284, %v6357, 0
    %v6384 = vsel %vm284, %v6358, 0
    %v6387 = vsel %vm284, %v6359, 0
    %v6390 = vsel %vm284, %v6360, 0
    %v6393 = vsel %vm284, %v6361, 0
    %6395 = vmatprep.subr.bf16.mxu0 0
    %6396 = vmatpush1.bf16.msra.mxu0 %v6369
    %6397 = vmatprep.subr.bf16.mxu0 0
    %6398 = vmatpush1.bf16.msra.mxu0 0
    %6399 = vmatprep.subr.bf16.mxu0 0
    %6400 = vmatpush1.bf16.msra.mxu0 0
    %6401 = vmatprep.subr.bf16.mxu0 0
    %6402 = vmatpush1.bf16.msra.mxu0 0
    %6403 = vmatprep.subr.bf16.mxu0 0
    %6404 = vmatpush1.bf16.msra.mxu0 0
    %6405 = vmatprep.subr.bf16.mxu0 0
    %6406 = vmatpush1.bf16.msra.mxu0 0
    %6407 = vmatprep.subr.bf16.mxu0 0
    %6408 = vmatpush1.bf16.msra.mxu0 0
    %6409 = vmatprep.subr.bf16.mxu0 0
    %6410 = vmatpush1.bf16.msra.mxu0 0
    %6411 = vmatprep.subr.bf16.mxu0 0
    %6412 = vmatpush1.bf16.msra.mxu0 0
    %6413 = vmatprep.subr.bf16.mxu0 0
    %6414 = vmatpush1.bf16.msra.mxu0 0
    %6415 = vmatprep.subr.bf16.mxu0 0
    %6416 = vmatpush1.bf16.msra.mxu0 0
    %6417 = vmatprep.subr.bf16.mxu0 0
    %6418 = vmatpush1.bf16.msra.mxu0 0
    %6419 = vmatprep.subr.bf16.mxu0 0
    %6420 = vmatpush1.bf16.msra.mxu0 0
    %6421 = vmatprep.subr.bf16.mxu0 0
    %6422 = vmatpush1.bf16.msra.mxu0 0
    %6423 = vmatprep.subr.bf16.mxu0 0
    %6424 = vmatpush1.bf16.msra.mxu0 0
    %6425 = vmatprep.subr.bf16.mxu0 0
    %6426 = vmatpush1.bf16.msra.mxu0 0
    %6427 = vmatprep.mubr.bf16.mxu0 0
    %6428 = vmatmul.mubr.bf16.gmra.mrb[0].mxu0 %v6372
    %v6429 = vpop.f32.mrb[0].mxu0
    %v6430 = vadd.f32 0.0, %v6429
    %v6431 = vpop.f32.mrb[0].mxu0
    %v6432 = vpop.f32.mrb[0].mxu0
    %v6433 = vadd.f32 0.0, %v6432
    %v6434 = vpop.f32.mrb[0].mxu0
    %6435 = vmatprep.mubr.bf16.mxu0 0
    %6436 = vmatmul.mubr.bf16.gmra.mrb[0].mxu0 %v6375
    %v6437 = vpop.f32.mrb[0].mxu0
    %v6438 = vadd.f32 0.0, %v6437
    %v6439 = vpop.f32.mrb[0].mxu0
    %v6440 = vpop.f32.mrb[0].mxu0
    %v6441 = vadd.f32 0.0, %v6440
    %v6442 = vpop.f32.mrb[0].mxu0
    %6443 = vmatprep.mubr.bf16.mxu0 0
    %6444 = vmatmul.mubr.bf16.gmra.mrb[0].mxu0 %v6378
    %v6445 = vpop.f32.mrb[0].mxu0
    %v6446 = vadd.f32 0.0, %v6445
    %v6447 = vpop.f32.mrb[0].mxu0
    %v6448 = vpop.f32.mrb[0].mxu0
    %v6449 = vadd.f32 0.0, %v6448
    %v6450 = vpop.f32.mrb[0].mxu0
    %6451 = vmatprep.mubr.bf16.mxu0 0
    %6452 = vmatmul.mubr.bf16.gmra.mrb[0].mxu0 %v6381
    %v6453 = vpop.f32.mrb[0].mxu0
    %v6454 = vadd.f32 0.0, %v6453
    %v6455 = vpop.f32.mrb[0].mxu0
    %v6456 = vpop.f32.mrb[0].mxu0
    %v6457 = vadd.f32 0.0, %v6456
    %v6458 = vpop.f32.mrb[0].mxu0
    %6459 = vmatprep.mubr.bf16.mxu0 0
    %6460 = vmatmul.mubr.bf16.gmra.mrb[0].mxu0 %v6384
    %v6461 = vpop.f32.mrb[0].mxu0
    %v6462 = vadd.f32 0.0, %v6461
    %v6463 = vpop.f32.mrb[0].mxu0
    %v6464 = vpop.f32.mrb[0].mxu0
    %v6465 = vadd.f32 0.0, %v6464
    %v6466 = vpop.f32.mrb[0].mxu0
    %6467 = vmatprep.mubr.bf16.mxu0 0
    %6468 = vmatmul.mubr.bf16.gmra.mrb[0].mxu0 %v6387
    %v6469 = vpop.f32.mrb[0].mxu0
    %v6470 = vadd.f32 0.0, %v6469
    %v6471 = vpop.f32.mrb[0].mxu0
    %v6472 = vpop.f32.mrb[0].mxu0
    %v6473 = vadd.f32 0.0, %v6472
    %v6474 = vpop.f32.mrb[0].mxu0
    %6475 = vmatprep.mubr.bf16.mxu0 0
    %6476 = vmatmul.mubr.bf16.gmra.mrb[0].mxu0 %v6390
    %v6477 = vpop.f32.mrb[0].mxu0
    %v6478 = vadd.f32 0.0, %v6477
    %v6479 = vpop.f32.mrb[0].mxu0
    %v6480 = vpop.f32.mrb[0].mxu0
    %v6481 = vadd.f32 0.0, %v6480
    %v6482 = vpop.f32.mrb[0].mxu0
    %6483 = vmatprep.mubr.bf16.mxu0 0
    %6484 = vmatmul.mubr.bf16.gmra.mrb[0].mxu0 %v6393
    %v6485 = vpop.f32.mrb[0].mxu0
    %v6486 = vadd.f32 0.0, %v6485
    %v6487 = vpop.f32.mrb[0].mxu0
    %v6488 = vpop.f32.mrb[0].mxu0
    %v6489 = vadd.f32 0.0, %v6488
    %v6490 = vpop.f32.mrb[0].mxu0
    %6491 = vdwg.mxu0
    %v6492 = vadd.f32 %v5984, %v6430
    %v6493 = vadd.f32 %v5985, %v6433
    %v6494 = vadd.f32 %v5986, %v6438
    %v6495 = vadd.f32 %v5987, %v6441
    %v6496 = vadd.f32 %v5988, %v6446
    %v6497 = vadd.f32 %v5989, %v6449
    %v6498 = vadd.f32 %v5990, %v6454
    %v6499 = vadd.f32 %v5991, %v6457
    %v6500 = vadd.f32 %v5992, %v6462
    %v6501 = vadd.f32 %v5993, %v6465
    %v6502 = vadd.f32 %v5994, %v6470
    %v6503 = vadd.f32 %v5995, %v6473
    %v6504 = vadd.f32 %v5996, %v6478
    %v6505 = vadd.f32 %v5997, %v6481
    %v6506 = vadd.f32 %v5998, %v6486
    %v6507 = vadd.f32 %v5999, %v6489
    %v6508 = vld [vmem:[%s5] sm:$0x1]
    %v6509 = vld [vmem:[%s6] sm:$0x1]
    %vm6510 = vcmask 261120
    %v6511 = vsel %vm6510, %v6492, 0.0
    %v6512 = vsel %vm6510, %v6493, 0.0
    %v6513 = vadd.f32 %v6511, %v6512
    %v6514 = vsel %vm6510, %v6494, 0.0
    %v6515 = vadd.f32 %v6513, %v6514
    %v6516 = vsel %vm6510, %v6495, 0.0
    %v6517 = vadd.f32 %v6515, %v6516
    %v6518 = vsel %vm6510, %v6496, 0.0
    %v6519 = vadd.f32 %v6517, %v6518
    %v6520 = vsel %vm6510, %v6497, 0.0
    %v6521 = vadd.f32 %v6519, %v6520
    %v6522 = vsel %vm6510, %v6498, 0.0
    %v6523 = vadd.f32 %v6521, %v6522
    %v6524 = vsel %vm6510, %v6499, 0.0
    %v6525 = vadd.f32 %v6523, %v6524
    %v6526 = vsel %vm6510, %v6500, 0.0
    %v6527 = vadd.f32 %v6525, %v6526
    %v6528 = vsel %vm6510, %v6501, 0.0
    %v6529 = vadd.f32 %v6527, %v6528
    %v6530 = vsel %vm6510, %v6502, 0.0
    %v6531 = vadd.f32 %v6529, %v6530
    %v6532 = vsel %vm6510, %v6503, 0.0
    %v6533 = vadd.f32 %v6531, %v6532
    %v6534 = vsel %vm6510, %v6504, 0.0
    %v6535 = vadd.f32 %v6533, %v6534
    %v6536 = vsel %vm6510, %v6505, 0.0
    %v6537 = vadd.f32 %v6535, %v6536
    %v6538 = vsel %vm6510, %v6506, 0.0
    %v6539 = vadd.f32 %v6537, %v6538
    %v6540 = vsel %vm6510, %v6507, 0.0
    %v6541 = vadd.f32 %v6539, %v6540
    %v6542 = vrot.slane %v6541, 4
    %v6543 = vadd.f32 %v6541, %v6542
    %v6544 = vrot.slane %v6543, 2
    %v6545 = vadd.f32 %v6543, %v6544
    %v6546 = vrot.slane %v6545, 1
    %v6547 = vadd.f32 %v6545, %v6546
    %v6548 = vmul.f32 %v6547, 0.0078125
    %v6549 = vsub.f32 %v6492, %v6548
    %v6550 = vsub.f32 %v6493, %v6548
    %v6551 = vsub.f32 %v6494, %v6548
    %v6552 = vsub.f32 %v6495, %v6548
    %v6553 = vsub.f32 %v6496, %v6548
    %v6554 = vsub.f32 %v6497, %v6548
    %v6555 = vsub.f32 %v6498, %v6548
    %v6556 = vsub.f32 %v6499, %v6548
    %v6557 = vsub.f32 %v6500, %v6548
    %v6558 = vsub.f32 %v6501, %v6548
    %v6559 = vsub.f32 %v6502, %v6548
    %v6560 = vsub.f32 %v6503, %v6548
    %v6561 = vsub.f32 %v6504, %v6548
    %v6562 = vsub.f32 %v6505, %v6548
    %v6563 = vsub.f32 %v6506, %v6548
    %v6564 = vsub.f32 %v6507, %v6548
    %v6565 = vmul.f32 %v6549, %v6549
    %v6566 = vmul.f32 %v6550, %v6550
    %v6567 = vmul.f32 %v6551, %v6551
    %v6568 = vmul.f32 %v6552, %v6552
    %v6569 = vmul.f32 %v6553, %v6553
    %v6570 = vmul.f32 %v6554, %v6554
    %v6571 = vmul.f32 %v6555, %v6555
    %v6572 = vmul.f32 %v6556, %v6556
    %v6573 = vmul.f32 %v6557, %v6557
    %v6574 = vmul.f32 %v6558, %v6558
    %v6575 = vmul.f32 %v6559, %v6559
    %v6576 = vmul.f32 %v6560, %v6560
    %v6577 = vmul.f32 %v6561, %v6561
    %v6578 = vmul.f32 %v6562, %v6562
    %v6579 = vmul.f32 %v6563, %v6563
    %v6580 = vmul.f32 %v6564, %v6564
    %v6581 = vsel %vm6510, %v6565, 0.0
    %v6582 = vsel %vm6510, %v6566, 0.0
    %v6583 = vadd.f32 %v6581, %v6582
    %v6584 = vsel %vm6510, %v6567, 0.0
    %v6585 = vadd.f32 %v6583, %v6584
    %v6586 = vsel %vm6510, %v6568, 0.0
    %v6587 = vadd.f32 %v6585, %v6586
    %v6588 = vsel %vm6510, %v6569, 0.0
    %v6589 = vadd.f32 %v6587, %v6588
    %v6590 = vsel %vm6510, %v6570, 0.0
    %v6591 = vadd.f32 %v6589, %v6590
    %v6592 = vsel %vm6510, %v6571, 0.0
    %v6593 = vadd.f32 %v6591, %v6592
    %v6594 = vsel %vm6510, %v6572, 0.0
    %v6595 = vadd.f32 %v6593, %v6594
    %v6596 = vsel %vm6510, %v6573, 0.0
    %v6597 = vadd.f32 %v6595, %v6596
    %v6598 = vsel %vm6510, %v6574, 0.0
    %v6599 = vadd.f32 %v6597, %v6598
    %v6600 = vsel %vm6510, %v6575, 0.0
    %v6601 = vadd.f32 %v6599, %v6600
    %v6602 = vsel %vm6510, %v6576, 0.0
    %v6603 = vadd.f32 %v6601, %v6602
    %v6604 = vsel %vm6510, %v6577, 0.0
    %v6605 = vadd.f32 %v6603, %v6604
    %v6606 = vsel %vm6510, %v6578, 0.0
    %v6607 = vadd.f32 %v6605, %v6606
    %v6608 = vsel %vm6510, %v6579, 0.0
    %v6609 = vadd.f32 %v6607, %v6608
    %v6610 = vsel %vm6510, %v6580, 0.0
    %v6611 = vadd.f32 %v6609, %v6610
    %v6612 = vrot.slane %v6611, 4
    %v6613 = vadd.f32 %v6611, %v6612
    %v6614 = vrot.slane %v6613, 2
    %v6615 = vadd.f32 %v6613, %v6614
    %v6616 = vrot.slane %v6615, 1
    %v6617 = vadd.f32 %v6615, %v6616
    %v6618 = vmul.f32 %v6617, 0.0078125
    %v6619 = vadd.f32 %v6618, 1e-05
    %v6620 = vrsqrt.pop %v6619
    %v6621 = vmul.f32 %v6508, %v6620
    %v6623 = vlaneseq
    %v6624 = vshrl.u32 %v6623, 7
    %v6625 = vsub.s32 0, %v6624
    %v6626 = vrot.slane %v6621, %v6625
    %v6628 = vmul.f32 %v6549, %v6626
    %v6629 = vmul.f32 %v6550, %v6626
    %v6630 = vmul.f32 %v6551, %v6626
    %v6631 = vmul.f32 %v6552, %v6626
    %v6632 = vmul.f32 %v6553, %v6626
    %v6633 = vmul.f32 %v6554, %v6626
    %v6634 = vmul.f32 %v6555, %v6626
    %v6635 = vmul.f32 %v6556, %v6626
    %v6636 = vmul.f32 %v6557, %v6626
    %v6637 = vmul.f32 %v6558, %v6626
    %v6638 = vmul.f32 %v6559, %v6626
    %v6639 = vmul.f32 %v6560, %v6626
    %v6640 = vmul.f32 %v6561, %v6626
    %v6641 = vmul.f32 %v6562, %v6626
    %v6642 = vmul.f32 %v6563, %v6626
    %v6643 = vmul.f32 %v6564, %v6626
    %v6645 = vlaneseq
    %v6646 = vshrl.u32 %v6645, 7
    %v6647 = vsub.s32 0, %v6646
    %v6648 = vrot.slane %v6509, %v6647
    %v6650 = vadd.f32 %v6628, %v6648
    %v6651 = vadd.f32 %v6629, %v6648
    %v6652 = vadd.f32 %v6630, %v6648
    %v6653 = vadd.f32 %v6631, %v6648
    %v6654 = vadd.f32 %v6632, %v6648
    %v6655 = vadd.f32 %v6633, %v6648
    %v6656 = vadd.f32 %v6634, %v6648
    %v6657 = vadd.f32 %v6635, %v6648
    %v6658 = vadd.f32 %v6636, %v6648
    %v6659 = vadd.f32 %v6637, %v6648
    %v6660 = vadd.f32 %v6638, %v6648
    %v6661 = vadd.f32 %v6639, %v6648
    %v6662 = vadd.f32 %v6640, %v6648
    %v6663 = vadd.f32 %v6641, %v6648
    %v6664 = vadd.f32 %v6642, %v6648
    %v6665 = vadd.f32 %v6643, %v6648
    %v6666 = vmax.f32 %v6650, 0.0
    %v6667 = vmax.f32 %v6651, 0.0
    %v6668 = vmax.f32 %v6652, 0.0
    %v6669 = vmax.f32 %v6653, 0.0
    %v6670 = vmax.f32 %v6654, 0.0
    %v6671 = vmax.f32 %v6655, 0.0
    %v6672 = vmax.f32 %v6656, 0.0
    %v6673 = vmax.f32 %v6657, 0.0
    %v6674 = vmax.f32 %v6658, 0.0
    %v6675 = vmax.f32 %v6659, 0.0
    %v6676 = vmax.f32 %v6660, 0.0
    %v6677 = vmax.f32 %v6661, 0.0
    %v6678 = vmax.f32 %v6662, 0.0
    %v6679 = vmax.f32 %v6663, 0.0
    %v6680 = vmax.f32 %v6664, 0.0
    %v6681 = vmax.f32 %v6665, 0.0
    %v6682 = vpack.c.bf16 %v6667, %v6666
    %v6683 = vpack.c.bf16 %v6669, %v6668
    %v6684 = vpack.c.bf16 %v6671, %v6670
    %v6685 = vpack.c.bf16 %v6673, %v6672
    %v6686 = vpack.c.bf16 %v6675, %v6674
    %v6687 = vpack.c.bf16 %v6677, %v6676
    %v6688 = vpack.c.bf16 %v6679, %v6678
    %v6689 = vpack.c.bf16 %v6681, %v6680
    %v6690 = vshra.s32 %v1308, 4
    %v6691 = vshra.s32 %v1309, 4
    %v6692 = vshra.s32 %v1310, 4
    %v6693 = vshra.s32 %v1311, 4
    %v6694 = vand.u32 %v1308, 15
    %v6695 = vand.u32 %v1309, 15
    %v6696 = vand.u32 %v1310, 15
    %v6697 = vand.u32 %v1311, 15
    %v6698 = vshra.s32 %v6694, 2
    %v6699 = vshra.s32 %v6695, 2
    %v6700 = vshra.s32 %v6696, 2
    %v6701 = vshra.s32 %v6697, 2
    %v6702 = vand.u32 %v6694, 3
    %v6703 = vand.u32 %v6695, 3
    %v6704 = vand.u32 %v6696, 3
    %v6705 = vand.u32 %v6697, 3
    %v6706 = vshll.u32 %v6690, 6
    %v6707 = vshll.u32 %v6691, 6
    %v6708 = vshll.u32 %v6692, 6
    %v6709 = vshll.u32 %v6693, 6
    %v6710 = vshll.u32 %v6698, 4
    %v6711 = vshll.u32 %v6699, 4
    %v6712 = vshll.u32 %v6700, 4
    %v6713 = vshll.u32 %v6701, 4
    %v6714 = vadd.s32 %v6706, %v6710
    %v6715 = vadd.s32 %v6707, %v6711
    %v6716 = vadd.s32 %v6708, %v6712
    %v6717 = vadd.s32 %v6709, %v6713
    %v6718 = vshll.u32 %v6702, 1
    %v6719 = vshll.u32 %v6703, 1
    %v6720 = vshll.u32 %v6704, 1
    %v6721 = vshll.u32 %v6705, 1
    %v6722 = vadd.s32 %v6714, %v6718
    %v6723 = vadd.s32 %v6715, %v6719
    %v6724 = vadd.s32 %v6716, %v6720
    %v6725 = vadd.s32 %v6717, %v6721
    %v6726 = vsub.s32 %v6722, 9
    %v6727 = vsub.s32 %v6723, 9
    %v6728 = vsub.s32 %v6724, 9
    %v6729 = vsub.s32 %v6725, 9
    %v6730 = vsub.s32 %v1325, %v6726
    %v6731 = vsub.s32 %v1325, %v6727
    %v6732 = vsub.s32 %v1325, %v6728
    %v6733 = vsub.s32 %v1325, %v6729
    %vm6734 = vcmp.gt.s32.totalorder %v6698, 0
    %vm6735 = vcmp.gt.s32.totalorder %v6699, 0
    %vm6736 = vcmp.gt.s32.totalorder %v6700, 0
    %vm6737 = vcmp.gt.s32.totalorder %v6701, 0
    %vm6738 = vcmp.gt.s32.totalorder %v6702, 0
    %vm6739 = vcmp.gt.s32.totalorder %v6703, 0
    %vm6740 = vcmp.gt.s32.totalorder %v6704, 0
    %vm6741 = vcmp.gt.s32.totalorder %v6705, 0
    %vm6742 = vcmp.eq.s32.totalorder %v6730, 0
    %vm6743 = vcmp.eq.s32.totalorder %v6731, 0
    %vm6744 = vcmp.eq.s32.totalorder %v6732, 0
    %vm6745 = vcmp.eq.s32.totalorder %v6733, 0
    %vm6746 = vmand %vm6742, %vm6734
    %vm6747 = vmand %vm6743, %vm6735
    %vm6748 = vmand %vm6744, %vm6736
    %vm6749 = vmand %vm6745, %vm6737
    %vm6750 = vmand %vm6746, %vm6738
    %vm6751 = vmand %vm6747, %vm6739
    %vm6752 = vmand %vm6748, %vm6740
    %vm6753 = vmand %vm6749, %vm6741
    %v6754 = vsel %vm6750, 1.0, 0.0
    %v6755 = vsel %vm6751, 1.0, 0.0
    %v6756 = vsel %vm6752, 1.0, 0.0
    %v6757 = vsel %vm6753, 1.0, 0.0
    %v6758 = vpack.c.bf16 %v6755, %v6754
    %v6759 = vpack.c.bf16 %v6757, %v6756
    %6760 = vmatprep.subr.bf16.mxu0 0
    %6761 = vmatpush1.bf16.msra.mxu0 %v6682
    %6762 = vmatprep.subr.bf16.mxu0 0
    %6763 = vmatpush1.bf16.msra.mxu0 %v6683
    %6764 = vmatprep.subr.bf16.mxu0 0
    %6765 = vmatpush1.bf16.msra.mxu0 %v6684
    %6766 = vmatprep.subr.bf16.mxu0 0
    %6767 = vmatpush1.bf16.msra.mxu0 %v6685
    %6768 = vmatprep.subr.bf16.mxu0 0
    %6769 = vmatpush1.bf16.msra.mxu0 %v6686
    %6770 = vmatprep.subr.bf16.mxu0 0
    %6771 = vmatpush1.bf16.msra.mxu0 %v6687
    %6772 = vmatprep.subr.bf16.mxu0 0
    %6773 = vmatpush1.bf16.msra.mxu0 %v6688
    %6774 = vmatprep.subr.bf16.mxu0 0
    %6775 = vmatpush1.bf16.msra.mxu0 %v6689
    %6776 = vmatprep.subr.bf16.mxu0 0
    %6777 = vmatpush1.bf16.msra.mxu0 0
    %6778 = vmatprep.subr.bf16.mxu0 0
    %6779 = vmatpush1.bf16.msra.mxu0 0
    %6780 = vmatprep.subr.bf16.mxu0 0
    %6781 = vmatpush1.bf16.msra.mxu0 0
    %6782 = vmatprep.subr.bf16.mxu0 0
    %6783 = vmatpush1.bf16.msra.mxu0 0
    %6784 = vmatprep.subr.bf16.mxu0 0
    %6785 = vmatpush1.bf16.msra.mxu0 0
    %6786 = vmatprep.subr.bf16.mxu0 0
    %6787 = vmatpush1.bf16.msra.mxu0 0
    %6788 = vmatprep.subr.bf16.mxu0 0
    %6789 = vmatpush1.bf16.msra.mxu0 0
    %6790 = vmatprep.subr.bf16.mxu0 0
    %6791 = vmatpush1.bf16.msra.mxu0 0
    %6792 = vmatprep.mubr.bf16.mxu0 0
    %6793 = vmatmul.mubr.bf16.gmra.mrb[0].mxu0 %v6758
    %v6794 = vpop.f32.mrb[0].mxu0
    %v6795 = vadd.f32 0.0, %v6794
    %v6796 = vpop.f32.mrb[0].mxu0
    %v6797 = vpop.f32.mrb[0].mxu0
    %v6798 = vadd.f32 0.0, %v6797
    %v6799 = vpop.f32.mrb[0].mxu0
    %6800 = vmatprep.mubr.bf16.mxu0 0
    %6801 = vmatmul.mubr.bf16.gmra.mrb[0].mxu0 %v6759
    %v6802 = vpop.f32.mrb[0].mxu0
    %v6803 = vadd.f32 0.0, %v6802
    %v6804 = vpop.f32.mrb[0].mxu0
    %v6805 = vpop.f32.mrb[0].mxu0
    %v6806 = vadd.f32 0.0, %v6805
    %v6807 = vpop.f32.mrb[0].mxu0
    %6808 = vdwg.mxu0
    %v6809 = vpack.c.bf16 %v6798, %v6795
    %v6810 = vpack.c.bf16 %v6806, %v6803
    %v6811 = vld [vmem:[%s7] sm:$0xf]
    %v6812 = vld [vmem:[%s7 + $0x4] sm:$0xf]
    %v6813 = vld [vmem:[%s7 + $0x8] sm:$0xf]
    %v6814 = vld [vmem:[%s7 + $0xc] sm:$0xf]
    %vm6815 = vcmp.eq.s32.totalorder %v6730, 1
    %vm6816 = vcmp.eq.s32.totalorder %v6731, 1
    %vm6817 = vcmp.eq.s32.totalorder %v6732, 1
    %vm6818 = vcmp.eq.s32.totalorder %v6733, 1
    %vm6819 = vmand %vm6815, %vm6734
    %vm6820 = vmand %vm6816, %vm6735
    %vm6821 = vmand %vm6817, %vm6736
    %vm6822 = vmand %vm6818, %vm6737
    %v6823 = vsel %vm6819, 1.0, 0.0
    %v6824 = vsel %vm6820, 1.0, 0.0
    %v6825 = vsel %vm6821, 1.0, 0.0
    %v6826 = vsel %vm6822, 1.0, 0.0
    %v6827 = vpack.c.bf16 %v6824, %v6823
    %v6828 = vpack.c.bf16 %v6826, %v6825
    %6829 = vmatprep.subr.bf16.mxu0 0
    %6830 = vmatpush1.bf16.msra.mxu0 %v6682
    %6831 = vmatprep.subr.bf16.mxu0 0
    %6832 = vmatpush1.bf16.msra.mxu0 %v6683
    %6833 = vmatprep.subr.bf16.mxu0 0
    %6834 = vmatpush1.bf16.msra.mxu0 %v6684
    %6835 = vmatprep.subr.bf16.mxu0 0
    %6836 = vmatpush1.bf16.msra.mxu0 %v6685
    %6837 = vmatprep.subr.bf16.mxu0 0
    %6838 = vmatpush1.bf16.msra.mxu0 %v6686
    %6839 = vmatprep.subr.bf16.mxu0 0
    %6840 = vmatpush1.bf16.msra.mxu0 %v6687
    %6841 = vmatprep.subr.bf16.mxu0 0
    %6842 = vmatpush1.bf16.msra.mxu0 %v6688
    %6843 = vmatprep.subr.bf16.mxu0 0
    %6844 = vmatpush1.bf16.msra.mxu0 %v6689
    %6845 = vmatprep.subr.bf16.mxu0 0
    %6846 = vmatpush1.bf16.msra.mxu0 0
    %6847 = vmatprep.subr.bf16.mxu0 0
    %6848 = vmatpush1.bf16.msra.mxu0 0
    %6849 = vmatprep.subr.bf16.mxu0 0
    %6850 = vmatpush1.bf16.msra.mxu0 0
    %6851 = vmatprep.subr.bf16.mxu0 0
    %6852 = vmatpush1.bf16.msra.mxu0 0
    %6853 = vmatprep.subr.bf16.mxu0 0
    %6854 = vmatpush1.bf16.msra.mxu0 0
    %6855 = vmatprep.subr.bf16.mxu0 0
    %6856 = vmatpush1.bf16.msra.mxu0 0
    %6857 = vmatprep.subr.bf16.mxu0 0
    %6858 = vmatpush1.bf16.msra.mxu0 0
    %6859 = vmatprep.subr.bf16.mxu0 0
    %6860 = vmatpush1.bf16.msra.mxu0 0
    %6861 = vmatprep.mubr.bf16.mxu0 0
    %6862 = vmatmul.mubr.bf16.gmra.mrb[0].mxu0 %v6827
    %v6863 = vpop.f32.mrb[0].mxu0
    %v6864 = vadd.f32 0.0, %v6863
    %v6865 = vpop.f32.mrb[0].mxu0
    %v6866 = vpop.f32.mrb[0].mxu0
    %v6867 = vadd.f32 0.0, %v6866
    %v6868 = vpop.f32.mrb[0].mxu0
    %6869 = vmatprep.mubr.bf16.mxu0 0
    %6870 = vmatmul.mubr.bf16.gmra.mrb[0].mxu0 %v6828
    %v6871 = vpop.f32.mrb[0].mxu0
    %v6872 = vadd.f32 0.0, %v6871
    %v6873 = vpop.f32.mrb[0].mxu0
    %v6874 = vpop.f32.mrb[0].mxu0
    %v6875 = vadd.f32 0.0, %v6874
    %v6876 = vpop.f32.mrb[0].mxu0
    %6877 = vdwg.mxu0
    %v6878 = vpack.c.bf16 %v6867, %v6864
    %v6879 = vpack.c.bf16 %v6875, %v6872
    %s6880 = scalar_lea.vmem %s7, 16
    %v6881 = vld [vmem:[%s6880] sm:$0xf]
    %v6882 = vld [vmem:[%s6880 + $0x4] sm:$0xf]
    %v6883 = vld [vmem:[%s6880 + $0x8] sm:$0xf]
    %v6884 = vld [vmem:[%s6880 + $0xc] sm:$0xf]
    %v6889 = vunpack.c.l.b16 %v6881
    %v6890 = vunpack.c.l.b16 %v6882
    %v6891 = vunpack.c.l.b16 %v6883
    %v6892 = vunpack.c.l.b16 %v6884
    %v6893 = vpack.c.b16 %v6890, %v6889
    %v6894 = vpack.c.b16 %v6892, %v6891
    %v6898 = vsel %vm6510, %v6878, 0
    %v6901 = vsel %vm6510, %v6879, 0
    %6903 = vmatprep.subr.bf16.mxu0 0
    %6904 = vmatpush1.bf16.msra.mxu0 %v6893
    %6905 = vmatprep.subr.bf16.mxu0 0
    %6906 = vmatpush1.bf16.msra.mxu0 %v6894
    %6907 = vmatprep.subr.bf16.mxu0 0
    %6908 = vmatpush1.bf16.msra.mxu0 0
    %6909 = vmatprep.subr.bf16.mxu0 0
    %6910 = vmatpush1.bf16.msra.mxu0 0
    %6911 = vmatprep.subr.bf16.mxu0 0
    %6912 = vmatpush1.bf16.msra.mxu0 0
    %6913 = vmatprep.subr.bf16.mxu0 0
    %6914 = vmatpush1.bf16.msra.mxu0 0
    %6915 = vmatprep.subr.bf16.mxu0 0
    %6916 = vmatpush1.bf16.msra.mxu0 0
    %6917 = vmatprep.subr.bf16.mxu0 0
    %6918 = vmatpush1.bf16.msra.mxu0 0
    %6919 = vmatprep.subr.bf16.mxu0 0
    %6920 = vmatpush1.bf16.msra.mxu0 0
    %6921 = vmatprep.subr.bf16.mxu0 0
    %6922 = vmatpush1.bf16.msra.mxu0 0
    %6923 = vmatprep.subr.bf16.mxu0 0
    %6924 = vmatpush1.bf16.msra.mxu0 0
    %6925 = vmatprep.subr.bf16.mxu0 0
    %6926 = vmatpush1.bf16.msra.mxu0 0
    %6927 = vmatprep.subr.bf16.mxu0 0
    %6928 = vmatpush1.bf16.msra.mxu0 0
    %6929 = vmatprep.subr.bf16.mxu0 0
    %6930 = vmatpush1.bf16.msra.mxu0 0
    %6931 = vmatprep.subr.bf16.mxu0 0
    %6932 = vmatpush1.bf16.msra.mxu0 0
    %6933 = vmatprep.subr.bf16.mxu0 0
    %6934 = vmatpush1.bf16.msra.mxu0 0
    %6935 = vmatprep.mubr.bf16.mxu0 0
    %6936 = vmatmul.mubr.bf16.gmra.mrb[0].mxu0 %v6898
    %v6937 = vpop.f32.mrb[0].mxu0
    %v6938 = vadd.f32 0.0, %v6937
    %v6939 = vpop.f32.mrb[0].mxu0
    %v6940 = vpop.f32.mrb[0].mxu0
    %v6941 = vadd.f32 0.0, %v6940
    %v6942 = vpop.f32.mrb[0].mxu0
    %6943 = vmatprep.mubr.bf16.mxu0 0
    %6944 = vmatmul.mubr.bf16.gmra.mrb[0].mxu0 %v6901
    %v6945 = vpop.f32.mrb[0].mxu0
    %v6946 = vadd.f32 0.0, %v6945
    %v6947 = vpop.f32.mrb[0].mxu0
    %v6948 = vpop.f32.mrb[0].mxu0
    %v6949 = vadd.f32 0.0, %v6948
    %v6950 = vpop.f32.mrb[0].mxu0
    %6951 = vdwg.mxu0
    %v6956 = vunpack.c.l.b16 %v6811
    %v6957 = vunpack.c.l.b16 %v6812
    %v6958 = vunpack.c.l.b16 %v6813
    %v6959 = vunpack.c.l.b16 %v6814
    %v6960 = vpack.c.b16 %v6957, %v6956
    %v6961 = vpack.c.b16 %v6959, %v6958
    %v6965 = vsel %vm6510, %v6809, 0
    %v6968 = vsel %vm6510, %v6810, 0
    %6970 = vmatprep.subr.bf16.mxu0 0
    %6971 = vmatpush1.bf16.msra.mxu0 %v6960
    %6972 = vmatprep.subr.bf16.mxu0 0
    %6973 = vmatpush1.bf16.msra.mxu0 %v6961
    %6974 = vmatprep.subr.bf16.mxu0 0
    %6975 = vmatpush1.bf16.msra.mxu0 0
    %6976 = vmatprep.subr.bf16.mxu0 0
    %6977 = vmatpush1.bf16.msra.mxu0 0
    %6978 = vmatprep.subr.bf16.mxu0 0
    %6979 = vmatpush1.bf16.msra.mxu0 0
    %6980 = vmatprep.subr.bf16.mxu0 0
    %6981 = vmatpush1.bf16.msra.mxu0 0
    %6982 = vmatprep.subr.bf16.mxu0 0
    %6983 = vmatpush1.bf16.msra.mxu0 0
    %6984 = vmatprep.subr.bf16.mxu0 0
    %6985 = vmatpush1.bf16.msra.mxu0 0
    %6986 = vmatprep.subr.bf16.mxu0 0
    %6987 = vmatpush1.bf16.msra.mxu0 0
    %6988 = vmatprep.subr.bf16.mxu0 0
    %6989 = vmatpush1.bf16.msra.mxu0 0
    %6990 = vmatprep.subr.bf16.mxu0 0
    %6991 = vmatpush1.bf16.msra.mxu0 0
    %6992 = vmatprep.subr.bf16.mxu0 0
    %6993 = vmatpush1.bf16.msra.mxu0 0
    %6994 = vmatprep.subr.bf16.mxu0 0
    %6995 = vmatpush1.bf16.msra.mxu0 0
    %6996 = vmatprep.subr.bf16.mxu0 0
    %6997 = vmatpush1.bf16.msra.mxu0 0
    %6998 = vmatprep.subr.bf16.mxu0 0
    %6999 = vmatpush1.bf16.msra.mxu0 0
    %7000 = vmatprep.subr.bf16.mxu0 0
    %7001 = vmatpush1.bf16.msra.mxu0 0
    %7002 = vmatprep.mubr.bf16.mxu0 0
    %7003 = vmatmul.mubr.bf16.gmra.mrb[0].mxu0 %v6965
    %v7004 = vpop.f32.mrb[0].mxu0
    %v7005 = vadd.f32 %v6938, %v7004
    %v7006 = vpop.f32.mrb[0].mxu0
    %v7007 = vpop.f32.mrb[0].mxu0
    %v7008 = vadd.f32 %v6941, %v7007
    %v7009 = vpop.f32.mrb[0].mxu0
    %7010 = vmatprep.mubr.bf16.mxu0 0
    %7011 = vmatmul.mubr.bf16.gmra.mrb[0].mxu0 %v6968
    %v7012 = vpop.f32.mrb[0].mxu0
    %v7013 = vadd.f32 %v6946, %v7012
    %v7014 = vpop.f32.mrb[0].mxu0
    %v7015 = vpop.f32.mrb[0].mxu0
    %v7016 = vadd.f32 %v6949, %v7015
    %v7017 = vpop.f32.mrb[0].mxu0
    %7018 = vdwg.mxu0
    %vm7019 = vcmp.eq.s32.totalorder %v6730, 2
    %vm7020 = vcmp.eq.s32.totalorder %v6731, 2
    %vm7021 = vcmp.eq.s32.totalorder %v6732, 2
    %vm7022 = vcmp.eq.s32.totalorder %v6733, 2
    %vm7023 = vmand %vm7019, %vm6734
    %vm7024 = vmand %vm7020, %vm6735
    %vm7025 = vmand %vm7021, %vm6736
    %vm7026 = vmand %vm7022, %vm6737
    %v7027 = vsel %vm7023, 1.0, 0.0
    %v7028 = vsel %vm7024, 1.0, 0.0
    %v7029 = vsel %vm7025, 1.0, 0.0
    %v7030 = vsel %vm7026, 1.0, 0.0
    %v7031 = vpack.c.bf16 %v7028, %v7027
    %v7032 = vpack.c.bf16 %v7030, %v7029
    %7033 = vmatprep.subr.bf16.mxu0 0
    %7034 = vmatpush1.bf16.msra.mxu0 %v6682
    %7035 = vmatprep.subr.bf16.mxu0 0
    %7036 = vmatpush1.bf16.msra.mxu0 %v6683
    %7037 = vmatprep.subr.bf16.mxu0 0
    %7038 = vmatpush1.bf16.msra.mxu0 %v6684
    %7039 = vmatprep.subr.bf16.mxu0 0
    %7040 = vmatpush1.bf16.msra.mxu0 %v6685
    %7041 = vmatprep.subr.bf16.mxu0 0
    %7042 = vmatpush1.bf16.msra.mxu0 %v6686
    %7043 = vmatprep.subr.bf16.mxu0 0
    %7044 = vmatpush1.bf16.msra.mxu0 %v6687
    %7045 = vmatprep.subr.bf16.mxu0 0
    %7046 = vmatpush1.bf16.msra.mxu0 %v6688
    %7047 = vmatprep.subr.bf16.mxu0 0
    %7048 = vmatpush1.bf16.msra.mxu0 %v6689
    %7049 = vmatprep.subr.bf16.mxu0 0
    %7050 = vmatpush1.bf16.msra.mxu0 0
    %7051 = vmatprep.subr.bf16.mxu0 0
    %7052 = vmatpush1.bf16.msra.mxu0 0
    %7053 = vmatprep.subr.bf16.mxu0 0
    %7054 = vmatpush1.bf16.msra.mxu0 0
    %7055 = vmatprep.subr.bf16.mxu0 0
    %7056 = vmatpush1.bf16.msra.mxu0 0
    %7057 = vmatprep.subr.bf16.mxu0 0
    %7058 = vmatpush1.bf16.msra.mxu0 0
    %7059 = vmatprep.subr.bf16.mxu0 0
    %7060 = vmatpush1.bf16.msra.mxu0 0
    %7061 = vmatprep.subr.bf16.mxu0 0
    %7062 = vmatpush1.bf16.msra.mxu0 0
    %7063 = vmatprep.subr.bf16.mxu0 0
    %7064 = vmatpush1.bf16.msra.mxu0 0
    %7065 = vmatprep.mubr.bf16.mxu0 0
    %7066 = vmatmul.mubr.bf16.gmra.mrb[0].mxu0 %v7031
    %v7067 = vpop.f32.mrb[0].mxu0
    %v7068 = vadd.f32 0.0, %v7067
    %v7069 = vpop.f32.mrb[0].mxu0
    %v7070 = vpop.f32.mrb[0].mxu0
    %v7071 = vadd.f32 0.0, %v7070
    %v7072 = vpop.f32.mrb[0].mxu0
    %7073 = vmatprep.mubr.bf16.mxu0 0
    %7074 = vmatmul.mubr.bf16.gmra.mrb[0].mxu0 %v7032
    %v7075 = vpop.f32.mrb[0].mxu0
    %v7076 = vadd.f32 0.0, %v7075
    %v7077 = vpop.f32.mrb[0].mxu0
    %v7078 = vpop.f32.mrb[0].mxu0
    %v7079 = vadd.f32 0.0, %v7078
    %v7080 = vpop.f32.mrb[0].mxu0
    %7081 = vdwg.mxu0
    %v7082 = vpack.c.bf16 %v7071, %v7068
    %v7083 = vpack.c.bf16 %v7079, %v7076
    %s7084 = scalar_lea.vmem %s7, 32
    %v7085 = vld [vmem:[%s7084] sm:$0xf]
    %v7086 = vld [vmem:[%s7084 + $0x4] sm:$0xf]
    %v7087 = vld [vmem:[%s7084 + $0x8] sm:$0xf]
    %v7088 = vld [vmem:[%s7084 + $0xc] sm:$0xf]
    %v7093 = vunpack.c.l.b16 %v7085
    %v7094 = vunpack.c.l.b16 %v7086
    %v7095 = vunpack.c.l.b16 %v7087
    %v7096 = vunpack.c.l.b16 %v7088
    %v7097 = vpack.c.b16 %v7094, %v7093
    %v7098 = vpack.c.b16 %v7096, %v7095
    %v7102 = vsel %vm6510, %v7082, 0
    %v7105 = vsel %vm6510, %v7083, 0
    %7107 = vmatprep.subr.bf16.mxu0 0
    %7108 = vmatpush1.bf16.msra.mxu0 %v7097
    %7109 = vmatprep.subr.bf16.mxu0 0
    %7110 = vmatpush1.bf16.msra.mxu0 %v7098
    %7111 = vmatprep.subr.bf16.mxu0 0
    %7112 = vmatpush1.bf16.msra.mxu0 0
    %7113 = vmatprep.subr.bf16.mxu0 0
    %7114 = vmatpush1.bf16.msra.mxu0 0
    %7115 = vmatprep.subr.bf16.mxu0 0
    %7116 = vmatpush1.bf16.msra.mxu0 0
    %7117 = vmatprep.subr.bf16.mxu0 0
    %7118 = vmatpush1.bf16.msra.mxu0 0
    %7119 = vmatprep.subr.bf16.mxu0 0
    %7120 = vmatpush1.bf16.msra.mxu0 0
    %7121 = vmatprep.subr.bf16.mxu0 0
    %7122 = vmatpush1.bf16.msra.mxu0 0
    %7123 = vmatprep.subr.bf16.mxu0 0
    %7124 = vmatpush1.bf16.msra.mxu0 0
    %7125 = vmatprep.subr.bf16.mxu0 0
    %7126 = vmatpush1.bf16.msra.mxu0 0
    %7127 = vmatprep.subr.bf16.mxu0 0
    %7128 = vmatpush1.bf16.msra.mxu0 0
    %7129 = vmatprep.subr.bf16.mxu0 0
    %7130 = vmatpush1.bf16.msra.mxu0 0
    %7131 = vmatprep.subr.bf16.mxu0 0
    %7132 = vmatpush1.bf16.msra.mxu0 0
    %7133 = vmatprep.subr.bf16.mxu0 0
    %7134 = vmatpush1.bf16.msra.mxu0 0
    %7135 = vmatprep.subr.bf16.mxu0 0
    %7136 = vmatpush1.bf16.msra.mxu0 0
    %7137 = vmatprep.subr.bf16.mxu0 0
    %7138 = vmatpush1.bf16.msra.mxu0 0
    %7139 = vmatprep.mubr.bf16.mxu0 0
    %7140 = vmatmul.mubr.bf16.gmra.mrb[0].mxu0 %v7102
    %v7141 = vpop.f32.mrb[0].mxu0
    %v7142 = vadd.f32 0.0, %v7141
    %v7143 = vpop.f32.mrb[0].mxu0
    %v7144 = vpop.f32.mrb[0].mxu0
    %v7145 = vadd.f32 0.0, %v7144
    %v7146 = vpop.f32.mrb[0].mxu0
    %7147 = vmatprep.mubr.bf16.mxu0 0
    %7148 = vmatmul.mubr.bf16.gmra.mrb[0].mxu0 %v7105
    %v7149 = vpop.f32.mrb[0].mxu0
    %v7150 = vadd.f32 0.0, %v7149
    %v7151 = vpop.f32.mrb[0].mxu0
    %v7152 = vpop.f32.mrb[0].mxu0
    %v7153 = vadd.f32 0.0, %v7152
    %v7154 = vpop.f32.mrb[0].mxu0
    %7155 = vdwg.mxu0
    %v7156 = vadd.f32 %v7005, %v7142
    %v7157 = vadd.f32 %v7008, %v7145
    %v7158 = vadd.f32 %v7013, %v7150
    %v7159 = vadd.f32 %v7016, %v7153
    %vm7160 = vcmp.eq.s32.totalorder %v6730, 8
    %vm7161 = vcmp.eq.s32.totalorder %v6731, 8
    %vm7162 = vcmp.eq.s32.totalorder %v6732, 8
    %vm7163 = vcmp.eq.s32.totalorder %v6733, 8
    %vm7164 = vmand %vm7160, %vm6738
    %vm7165 = vmand %vm7161, %vm6739
    %vm7166 = vmand %vm7162, %vm6740
    %vm7167 = vmand %vm7163, %vm6741
    %v7168 = vsel %vm7164, 1.0, 0.0
    %v7169 = vsel %vm7165, 1.0, 0.0
    %v7170 = vsel %vm7166, 1.0, 0.0
    %v7171 = vsel %vm7167, 1.0, 0.0
    %v7172 = vpack.c.bf16 %v7169, %v7168
    %v7173 = vpack.c.bf16 %v7171, %v7170
    %7174 = vmatprep.subr.bf16.mxu0 0
    %7175 = vmatpush1.bf16.msra.mxu0 %v6682
    %7176 = vmatprep.subr.bf16.mxu0 0
    %7177 = vmatpush1.bf16.msra.mxu0 %v6683
    %7178 = vmatprep.subr.bf16.mxu0 0
    %7179 = vmatpush1.bf16.msra.mxu0 %v6684
    %7180 = vmatprep.subr.bf16.mxu0 0
    %7181 = vmatpush1.bf16.msra.mxu0 %v6685
    %7182 = vmatprep.subr.bf16.mxu0 0
    %7183 = vmatpush1.bf16.msra.mxu0 %v6686
    %7184 = vmatprep.subr.bf16.mxu0 0
    %7185 = vmatpush1.bf16.msra.mxu0 %v6687
    %7186 = vmatprep.subr.bf16.mxu0 0
    %7187 = vmatpush1.bf16.msra.mxu0 %v6688
    %7188 = vmatprep.subr.bf16.mxu0 0
    %7189 = vmatpush1.bf16.msra.mxu0 %v6689
    %7190 = vmatprep.subr.bf16.mxu0 0
    %7191 = vmatpush1.bf16.msra.mxu0 0
    %7192 = vmatprep.subr.bf16.mxu0 0
    %7193 = vmatpush1.bf16.msra.mxu0 0
    %7194 = vmatprep.subr.bf16.mxu0 0
    %7195 = vmatpush1.bf16.msra.mxu0 0
    %7196 = vmatprep.subr.bf16.mxu0 0
    %7197 = vmatpush1.bf16.msra.mxu0 0
    %7198 = vmatprep.subr.bf16.mxu0 0
    %7199 = vmatpush1.bf16.msra.mxu0 0
    %7200 = vmatprep.subr.bf16.mxu0 0
    %7201 = vmatpush1.bf16.msra.mxu0 0
    %7202 = vmatprep.subr.bf16.mxu0 0
    %7203 = vmatpush1.bf16.msra.mxu0 0
    %7204 = vmatprep.subr.bf16.mxu0 0
    %7205 = vmatpush1.bf16.msra.mxu0 0
    %7206 = vmatprep.mubr.bf16.mxu0 0
    %7207 = vmatmul.mubr.bf16.gmra.mrb[0].mxu0 %v7172
    %v7208 = vpop.f32.mrb[0].mxu0
    %v7209 = vadd.f32 0.0, %v7208
    %v7210 = vpop.f32.mrb[0].mxu0
    %v7211 = vpop.f32.mrb[0].mxu0
    %v7212 = vadd.f32 0.0, %v7211
    %v7213 = vpop.f32.mrb[0].mxu0
    %7214 = vmatprep.mubr.bf16.mxu0 0
    %7215 = vmatmul.mubr.bf16.gmra.mrb[0].mxu0 %v7173
    %v7216 = vpop.f32.mrb[0].mxu0
    %v7217 = vadd.f32 0.0, %v7216
    %v7218 = vpop.f32.mrb[0].mxu0
    %v7219 = vpop.f32.mrb[0].mxu0
    %v7220 = vadd.f32 0.0, %v7219
    %v7221 = vpop.f32.mrb[0].mxu0
    %7222 = vdwg.mxu0
    %v7223 = vpack.c.bf16 %v7212, %v7209
    %v7224 = vpack.c.bf16 %v7220, %v7217
    %s7225 = scalar_lea.vmem %s7, 48
    %v7226 = vld [vmem:[%s7225] sm:$0xf]
    %v7227 = vld [vmem:[%s7225 + $0x4] sm:$0xf]
    %v7228 = vld [vmem:[%s7225 + $0x8] sm:$0xf]
    %v7229 = vld [vmem:[%s7225 + $0xc] sm:$0xf]
    %v7234 = vunpack.c.l.b16 %v7226
    %v7235 = vunpack.c.l.b16 %v7227
    %v7236 = vunpack.c.l.b16 %v7228
    %v7237 = vunpack.c.l.b16 %v7229
    %v7238 = vpack.c.b16 %v7235, %v7234
    %v7239 = vpack.c.b16 %v7237, %v7236
    %v7243 = vsel %vm6510, %v7223, 0
    %v7246 = vsel %vm6510, %v7224, 0
    %7248 = vmatprep.subr.bf16.mxu0 0
    %7249 = vmatpush1.bf16.msra.mxu0 %v7238
    %7250 = vmatprep.subr.bf16.mxu0 0
    %7251 = vmatpush1.bf16.msra.mxu0 %v7239
    %7252 = vmatprep.subr.bf16.mxu0 0
    %7253 = vmatpush1.bf16.msra.mxu0 0
    %7254 = vmatprep.subr.bf16.mxu0 0
    %7255 = vmatpush1.bf16.msra.mxu0 0
    %7256 = vmatprep.subr.bf16.mxu0 0
    %7257 = vmatpush1.bf16.msra.mxu0 0
    %7258 = vmatprep.subr.bf16.mxu0 0
    %7259 = vmatpush1.bf16.msra.mxu0 0
    %7260 = vmatprep.subr.bf16.mxu0 0
    %7261 = vmatpush1.bf16.msra.mxu0 0
    %7262 = vmatprep.subr.bf16.mxu0 0
    %7263 = vmatpush1.bf16.msra.mxu0 0
    %7264 = vmatprep.subr.bf16.mxu0 0
    %7265 = vmatpush1.bf16.msra.mxu0 0
    %7266 = vmatprep.subr.bf16.mxu0 0
    %7267 = vmatpush1.bf16.msra.mxu0 0
    %7268 = vmatprep.subr.bf16.mxu0 0
    %7269 = vmatpush1.bf16.msra.mxu0 0
    %7270 = vmatprep.subr.bf16.mxu0 0
    %7271 = vmatpush1.bf16.msra.mxu0 0
    %7272 = vmatprep.subr.bf16.mxu0 0
    %7273 = vmatpush1.bf16.msra.mxu0 0
    %7274 = vmatprep.subr.bf16.mxu0 0
    %7275 = vmatpush1.bf16.msra.mxu0 0
    %7276 = vmatprep.subr.bf16.mxu0 0
    %7277 = vmatpush1.bf16.msra.mxu0 0
    %7278 = vmatprep.subr.bf16.mxu0 0
    %7279 = vmatpush1.bf16.msra.mxu0 0
    %7280 = vmatprep.mubr.bf16.mxu0 0
    %7281 = vmatmul.mubr.bf16.gmra.mrb[0].mxu0 %v7243
    %v7282 = vpop.f32.mrb[0].mxu0
    %v7283 = vadd.f32 0.0, %v7282
    %v7284 = vpop.f32.mrb[0].mxu0
    %v7285 = vpop.f32.mrb[0].mxu0
    %v7286 = vadd.f32 0.0, %v7285
    %v7287 = vpop.f32.mrb[0].mxu0
    %7288 = vmatprep.mubr.bf16.mxu0 0
    %7289 = vmatmul.mubr.bf16.gmra.mrb[0].mxu0 %v7246
    %v7290 = vpop.f32.mrb[0].mxu0
    %v7291 = vadd.f32 0.0, %v7290
    %v7292 = vpop.f32.mrb[0].mxu0
    %v7293 = vpop.f32.mrb[0].mxu0
    %v7294 = vadd.f32 0.0, %v7293
    %v7295 = vpop.f32.mrb[0].mxu0
    %7296 = vdwg.mxu0
    %v7297 = vadd.f32 %v7156, %v7283
    %v7298 = vadd.f32 %v7157, %v7286
    %v7299 = vadd.f32 %v7158, %v7291
    %v7300 = vadd.f32 %v7159, %v7294
    %vm7301 = vcmp.eq.s32.totalorder %v6730, 9
    %vm7302 = vcmp.eq.s32.totalorder %v6731, 9
    %vm7303 = vcmp.eq.s32.totalorder %v6732, 9
    %vm7304 = vcmp.eq.s32.totalorder %v6733, 9
    %v7305 = vsel %vm7301, 1.0, 0.0
    %v7306 = vsel %vm7302, 1.0, 0.0
    %v7307 = vsel %vm7303, 1.0, 0.0
    %v7308 = vsel %vm7304, 1.0, 0.0
    %v7309 = vpack.c.bf16 %v7306, %v7305
    %v7310 = vpack.c.bf16 %v7308, %v7307
    %7311 = vmatprep.subr.bf16.mxu0 0
    %7312 = vmatpush1.bf16.msra.mxu0 %v6682
    %7313 = vmatprep.subr.bf16.mxu0 0
    %7314 = vmatpush1.bf16.msra.mxu0 %v6683
    %7315 = vmatprep.subr.bf16.mxu0 0
    %7316 = vmatpush1.bf16.msra.mxu0 %v6684
    %7317 = vmatprep.subr.bf16.mxu0 0
    %7318 = vmatpush1.bf16.msra.mxu0 %v6685
    %7319 = vmatprep.subr.bf16.mxu0 0
    %7320 = vmatpush1.bf16.msra.mxu0 %v6686
    %7321 = vmatprep.subr.bf16.mxu0 0
    %7322 = vmatpush1.bf16.msra.mxu0 %v6687
    %7323 = vmatprep.subr.bf16.mxu0 0
    %7324 = vmatpush1.bf16.msra.mxu0 %v6688
    %7325 = vmatprep.subr.bf16.mxu0 0
    %7326 = vmatpush1.bf16.msra.mxu0 %v6689
    %7327 = vmatprep.subr.bf16.mxu0 0
    %7328 = vmatpush1.bf16.msra.mxu0 0
    %7329 = vmatprep.subr.bf16.mxu0 0
    %7330 = vmatpush1.bf16.msra.mxu0 0
    %7331 = vmatprep.subr.bf16.mxu0 0
    %7332 = vmatpush1.bf16.msra.mxu0 0
    %7333 = vmatprep.subr.bf16.mxu0 0
    %7334 = vmatpush1.bf16.msra.mxu0 0
    %7335 = vmatprep.subr.bf16.mxu0 0
    %7336 = vmatpush1.bf16.msra.mxu0 0
    %7337 = vmatprep.subr.bf16.mxu0 0
    %7338 = vmatpush1.bf16.msra.mxu0 0
    %7339 = vmatprep.subr.bf16.mxu0 0
    %7340 = vmatpush1.bf16.msra.mxu0 0
    %7341 = vmatprep.subr.bf16.mxu0 0
    %7342 = vmatpush1.bf16.msra.mxu0 0
    %7343 = vmatprep.mubr.bf16.mxu0 0
    %7344 = vmatmul.mubr.bf16.gmra.mrb[0].mxu0 %v7309
    %v7345 = vpop.f32.mrb[0].mxu0
    %v7346 = vadd.f32 0.0, %v7345
    %v7347 = vpop.f32.mrb[0].mxu0
    %v7348 = vpop.f32.mrb[0].mxu0
    %v7349 = vadd.f32 0.0, %v7348
    %v7350 = vpop.f32.mrb[0].mxu0
    %7351 = vmatprep.mubr.bf16.mxu0 0
    %7352 = vmatmul.mubr.bf16.gmra.mrb[0].mxu0 %v7310
    %v7353 = vpop.f32.mrb[0].mxu0
    %v7354 = vadd.f32 0.0, %v7353
    %v7355 = vpop.f32.mrb[0].mxu0
    %v7356 = vpop.f32.mrb[0].mxu0
    %v7357 = vadd.f32 0.0, %v7356
    %v7358 = vpop.f32.mrb[0].mxu0
    %7359 = vdwg.mxu0
    %v7360 = vpack.c.bf16 %v7349, %v7346
    %v7361 = vpack.c.bf16 %v7357, %v7354
    %s7362 = scalar_lea.vmem %s7, 64
    %v7363 = vld [vmem:[%s7362] sm:$0xf]
    %v7364 = vld [vmem:[%s7362 + $0x4] sm:$0xf]
    %v7365 = vld [vmem:[%s7362 + $0x8] sm:$0xf]
    %v7366 = vld [vmem:[%s7362 + $0xc] sm:$0xf]
    %v7371 = vunpack.c.l.b16 %v7363
    %v7372 = vunpack.c.l.b16 %v7364
    %v7373 = vunpack.c.l.b16 %v7365
    %v7374 = vunpack.c.l.b16 %v7366
    %v7375 = vpack.c.b16 %v7372, %v7371
    %v7376 = vpack.c.b16 %v7374, %v7373
    %v7380 = vsel %vm6510, %v7360, 0
    %v7383 = vsel %vm6510, %v7361, 0
    %7385 = vmatprep.subr.bf16.mxu0 0
    %7386 = vmatpush1.bf16.msra.mxu0 %v7375
    %7387 = vmatprep.subr.bf16.mxu0 0
    %7388 = vmatpush1.bf16.msra.mxu0 %v7376
    %7389 = vmatprep.subr.bf16.mxu0 0
    %7390 = vmatpush1.bf16.msra.mxu0 0
    %7391 = vmatprep.subr.bf16.mxu0 0
    %7392 = vmatpush1.bf16.msra.mxu0 0
    %7393 = vmatprep.subr.bf16.mxu0 0
    %7394 = vmatpush1.bf16.msra.mxu0 0
    %7395 = vmatprep.subr.bf16.mxu0 0
    %7396 = vmatpush1.bf16.msra.mxu0 0
    %7397 = vmatprep.subr.bf16.mxu0 0
    %7398 = vmatpush1.bf16.msra.mxu0 0
    %7399 = vmatprep.subr.bf16.mxu0 0
    %7400 = vmatpush1.bf16.msra.mxu0 0
    %7401 = vmatprep.subr.bf16.mxu0 0
    %7402 = vmatpush1.bf16.msra.mxu0 0
    %7403 = vmatprep.subr.bf16.mxu0 0
    %7404 = vmatpush1.bf16.msra.mxu0 0
    %7405 = vmatprep.subr.bf16.mxu0 0
    %7406 = vmatpush1.bf16.msra.mxu0 0
    %7407 = vmatprep.subr.bf16.mxu0 0
    %7408 = vmatpush1.bf16.msra.mxu0 0
    %7409 = vmatprep.subr.bf16.mxu0 0
    %7410 = vmatpush1.bf16.msra.mxu0 0
    %7411 = vmatprep.subr.bf16.mxu0 0
    %7412 = vmatpush1.bf16.msra.mxu0 0
    %7413 = vmatprep.subr.bf16.mxu0 0
    %7414 = vmatpush1.bf16.msra.mxu0 0
    %7415 = vmatprep.subr.bf16.mxu0 0
    %7416 = vmatpush1.bf16.msra.mxu0 0
    %7417 = vmatprep.mubr.bf16.mxu0 0
    %7418 = vmatmul.mubr.bf16.gmra.mrb[0].mxu0 %v7380
    %v7419 = vpop.f32.mrb[0].mxu0
    %v7420 = vadd.f32 0.0, %v7419
    %v7421 = vpop.f32.mrb[0].mxu0
    %v7422 = vpop.f32.mrb[0].mxu0
    %v7423 = vadd.f32 0.0, %v7422
    %v7424 = vpop.f32.mrb[0].mxu0
    %7425 = vmatprep.mubr.bf16.mxu0 0
    %7426 = vmatmul.mubr.bf16.gmra.mrb[0].mxu0 %v7383
    %v7427 = vpop.f32.mrb[0].mxu0
    %v7428 = vadd.f32 0.0, %v7427
    %v7429 = vpop.f32.mrb[0].mxu0
    %v7430 = vpop.f32.mrb[0].mxu0
    %v7431 = vadd.f32 0.0, %v7430
    %v7432 = vpop.f32.mrb[0].mxu0
    %7433 = vdwg.mxu0
    %v7434 = vadd.f32 %v7297, %v7420
    %v7435 = vadd.f32 %v7298, %v7423
    %v7436 = vadd.f32 %v7299, %v7428
    %v7437 = vadd.f32 %v7300, %v7431
    %vm7438 = vcmp.eq.s32.totalorder %v6730, 10
    %vm7439 = vcmp.eq.s32.totalorder %v6731, 10
    %vm7440 = vcmp.eq.s32.totalorder %v6732, 10
    %vm7441 = vcmp.eq.s32.totalorder %v6733, 10
    %v7442 = vsel %vm7438, 1.0, 0.0
    %v7443 = vsel %vm7439, 1.0, 0.0
    %v7444 = vsel %vm7440, 1.0, 0.0
    %v7445 = vsel %vm7441, 1.0, 0.0
    %v7446 = vpack.c.bf16 %v7443, %v7442
    %v7447 = vpack.c.bf16 %v7445, %v7444
    %7448 = vmatprep.subr.bf16.mxu0 0
    %7449 = vmatpush1.bf16.msra.mxu0 %v6682
    %7450 = vmatprep.subr.bf16.mxu0 0
    %7451 = vmatpush1.bf16.msra.mxu0 %v6683
    %7452 = vmatprep.subr.bf16.mxu0 0
    %7453 = vmatpush1.bf16.msra.mxu0 %v6684
    %7454 = vmatprep.subr.bf16.mxu0 0
    %7455 = vmatpush1.bf16.msra.mxu0 %v6685
    %7456 = vmatprep.subr.bf16.mxu0 0
    %7457 = vmatpush1.bf16.msra.mxu0 %v6686
    %7458 = vmatprep.subr.bf16.mxu0 0
    %7459 = vmatpush1.bf16.msra.mxu0 %v6687
    %7460 = vmatprep.subr.bf16.mxu0 0
    %7461 = vmatpush1.bf16.msra.mxu0 %v6688
    %7462 = vmatprep.subr.bf16.mxu0 0
    %7463 = vmatpush1.bf16.msra.mxu0 %v6689
    %7464 = vmatprep.subr.bf16.mxu0 0
    %7465 = vmatpush1.bf16.msra.mxu0 0
    %7466 = vmatprep.subr.bf16.mxu0 0
    %7467 = vmatpush1.bf16.msra.mxu0 0
    %7468 = vmatprep.subr.bf16.mxu0 0
    %7469 = vmatpush1.bf16.msra.mxu0 0
    %7470 = vmatprep.subr.bf16.mxu0 0
    %7471 = vmatpush1.bf16.msra.mxu0 0
    %7472 = vmatprep.subr.bf16.mxu0 0
    %7473 = vmatpush1.bf16.msra.mxu0 0
    %7474 = vmatprep.subr.bf16.mxu0 0
    %7475 = vmatpush1.bf16.msra.mxu0 0
    %7476 = vmatprep.subr.bf16.mxu0 0
    %7477 = vmatpush1.bf16.msra.mxu0 0
    %7478 = vmatprep.subr.bf16.mxu0 0
    %7479 = vmatpush1.bf16.msra.mxu0 0
    %7480 = vmatprep.mubr.bf16.mxu0 0
    %7481 = vmatmul.mubr.bf16.gmra.mrb[0].mxu0 %v7446
    %v7482 = vpop.f32.mrb[0].mxu0
    %v7483 = vadd.f32 0.0, %v7482
    %v7484 = vpop.f32.mrb[0].mxu0
    %v7485 = vpop.f32.mrb[0].mxu0
    %v7486 = vadd.f32 0.0, %v7485
    %v7487 = vpop.f32.mrb[0].mxu0
    %7488 = vmatprep.mubr.bf16.mxu0 0
    %7489 = vmatmul.mubr.bf16.gmra.mrb[0].mxu0 %v7447
    %v7490 = vpop.f32.mrb[0].mxu0
    %v7491 = vadd.f32 0.0, %v7490
    %v7492 = vpop.f32.mrb[0].mxu0
    %v7493 = vpop.f32.mrb[0].mxu0
    %v7494 = vadd.f32 0.0, %v7493
    %v7495 = vpop.f32.mrb[0].mxu0
    %7496 = vdwg.mxu0
    %v7497 = vpack.c.bf16 %v7486, %v7483
    %v7498 = vpack.c.bf16 %v7494, %v7491
    %s7499 = scalar_lea.vmem %s7, 80
    %v7500 = vld [vmem:[%s7499] sm:$0xf]
    %v7501 = vld [vmem:[%s7499 + $0x4] sm:$0xf]
    %v7502 = vld [vmem:[%s7499 + $0x8] sm:$0xf]
    %v7503 = vld [vmem:[%s7499 + $0xc] sm:$0xf]
    %v7508 = vunpack.c.l.b16 %v7500
    %v7509 = vunpack.c.l.b16 %v7501
    %v7510 = vunpack.c.l.b16 %v7502
    %v7511 = vunpack.c.l.b16 %v7503
    %v7512 = vpack.c.b16 %v7509, %v7508
    %v7513 = vpack.c.b16 %v7511, %v7510
    %v7517 = vsel %vm6510, %v7497, 0
    %v7520 = vsel %vm6510, %v7498, 0
    %7522 = vmatprep.subr.bf16.mxu0 0
    %7523 = vmatpush1.bf16.msra.mxu0 %v7512
    %7524 = vmatprep.subr.bf16.mxu0 0
    %7525 = vmatpush1.bf16.msra.mxu0 %v7513
    %7526 = vmatprep.subr.bf16.mxu0 0
    %7527 = vmatpush1.bf16.msra.mxu0 0
    %7528 = vmatprep.subr.bf16.mxu0 0
    %7529 = vmatpush1.bf16.msra.mxu0 0
    %7530 = vmatprep.subr.bf16.mxu0 0
    %7531 = vmatpush1.bf16.msra.mxu0 0
    %7532 = vmatprep.subr.bf16.mxu0 0
    %7533 = vmatpush1.bf16.msra.mxu0 0
    %7534 = vmatprep.subr.bf16.mxu0 0
    %7535 = vmatpush1.bf16.msra.mxu0 0
    %7536 = vmatprep.subr.bf16.mxu0 0
    %7537 = vmatpush1.bf16.msra.mxu0 0
    %7538 = vmatprep.subr.bf16.mxu0 0
    %7539 = vmatpush1.bf16.msra.mxu0 0
    %7540 = vmatprep.subr.bf16.mxu0 0
    %7541 = vmatpush1.bf16.msra.mxu0 0
    %7542 = vmatprep.subr.bf16.mxu0 0
    %7543 = vmatpush1.bf16.msra.mxu0 0
    %7544 = vmatprep.subr.bf16.mxu0 0
    %7545 = vmatpush1.bf16.msra.mxu0 0
    %7546 = vmatprep.subr.bf16.mxu0 0
    %7547 = vmatpush1.bf16.msra.mxu0 0
    %7548 = vmatprep.subr.bf16.mxu0 0
    %7549 = vmatpush1.bf16.msra.mxu0 0
    %7550 = vmatprep.subr.bf16.mxu0 0
    %7551 = vmatpush1.bf16.msra.mxu0 0
    %7552 = vmatprep.subr.bf16.mxu0 0
    %7553 = vmatpush1.bf16.msra.mxu0 0
    %7554 = vmatprep.mubr.bf16.mxu0 0
    %7555 = vmatmul.mubr.bf16.gmra.mrb[0].mxu0 %v7517
    %v7556 = vpop.f32.mrb[0].mxu0
    %v7557 = vadd.f32 0.0, %v7556
    %v7558 = vpop.f32.mrb[0].mxu0
    %v7559 = vpop.f32.mrb[0].mxu0
    %v7560 = vadd.f32 0.0, %v7559
    %v7561 = vpop.f32.mrb[0].mxu0
    %7562 = vmatprep.mubr.bf16.mxu0 0
    %7563 = vmatmul.mubr.bf16.gmra.mrb[0].mxu0 %v7520
    %v7564 = vpop.f32.mrb[0].mxu0
    %v7565 = vadd.f32 0.0, %v7564
    %v7566 = vpop.f32.mrb[0].mxu0
    %v7567 = vpop.f32.mrb[0].mxu0
    %v7568 = vadd.f32 0.0, %v7567
    %v7569 = vpop.f32.mrb[0].mxu0
    %7570 = vdwg.mxu0
    %v7571 = vadd.f32 %v7434, %v7557
    %v7572 = vadd.f32 %v7435, %v7560
    %v7573 = vadd.f32 %v7436, %v7565
    %v7574 = vadd.f32 %v7437, %v7568
    %vm7575 = vcmp.eq.s32.totalorder %v6730, 16
    %vm7576 = vcmp.eq.s32.totalorder %v6731, 16
    %vm7577 = vcmp.eq.s32.totalorder %v6732, 16
    %vm7578 = vcmp.eq.s32.totalorder %v6733, 16
    %vm7579 = vmand %vm7575, %vm6738
    %vm7580 = vmand %vm7576, %vm6739
    %vm7581 = vmand %vm7577, %vm6740
    %vm7582 = vmand %vm7578, %vm6741
    %v7583 = vsel %vm7579, 1.0, 0.0
    %v7584 = vsel %vm7580, 1.0, 0.0
    %v7585 = vsel %vm7581, 1.0, 0.0
    %v7586 = vsel %vm7582, 1.0, 0.0
    %v7587 = vpack.c.bf16 %v7584, %v7583
    %v7588 = vpack.c.bf16 %v7586, %v7585
    %7589 = vmatprep.subr.bf16.mxu0 0
    %7590 = vmatpush1.bf16.msra.mxu0 %v6682
    %7591 = vmatprep.subr.bf16.mxu0 0
    %7592 = vmatpush1.bf16.msra.mxu0 %v6683
    %7593 = vmatprep.subr.bf16.mxu0 0
    %7594 = vmatpush1.bf16.msra.mxu0 %v6684
    %7595 = vmatprep.subr.bf16.mxu0 0
    %7596 = vmatpush1.bf16.msra.mxu0 %v6685
    %7597 = vmatprep.subr.bf16.mxu0 0
    %7598 = vmatpush1.bf16.msra.mxu0 %v6686
    %7599 = vmatprep.subr.bf16.mxu0 0
    %7600 = vmatpush1.bf16.msra.mxu0 %v6687
    %7601 = vmatprep.subr.bf16.mxu0 0
    %7602 = vmatpush1.bf16.msra.mxu0 %v6688
    %7603 = vmatprep.subr.bf16.mxu0 0
    %7604 = vmatpush1.bf16.msra.mxu0 %v6689
    %7605 = vmatprep.subr.bf16.mxu0 0
    %7606 = vmatpush1.bf16.msra.mxu0 0
    %7607 = vmatprep.subr.bf16.mxu0 0
    %7608 = vmatpush1.bf16.msra.mxu0 0
    %7609 = vmatprep.subr.bf16.mxu0 0
    %7610 = vmatpush1.bf16.msra.mxu0 0
    %7611 = vmatprep.subr.bf16.mxu0 0
    %7612 = vmatpush1.bf16.msra.mxu0 0
    %7613 = vmatprep.subr.bf16.mxu0 0
    %7614 = vmatpush1.bf16.msra.mxu0 0
    %7615 = vmatprep.subr.bf16.mxu0 0
    %7616 = vmatpush1.bf16.msra.mxu0 0
    %7617 = vmatprep.subr.bf16.mxu0 0
    %7618 = vmatpush1.bf16.msra.mxu0 0
    %7619 = vmatprep.subr.bf16.mxu0 0
    %7620 = vmatpush1.bf16.msra.mxu0 0
    %7621 = vmatprep.mubr.bf16.mxu0 0
    %7622 = vmatmul.mubr.bf16.gmra.mrb[0].mxu0 %v7587
    %v7623 = vpop.f32.mrb[0].mxu0
    %v7624 = vadd.f32 0.0, %v7623
    %v7625 = vpop.f32.mrb[0].mxu0
    %v7626 = vpop.f32.mrb[0].mxu0
    %v7627 = vadd.f32 0.0, %v7626
    %v7628 = vpop.f32.mrb[0].mxu0
    %7629 = vmatprep.mubr.bf16.mxu0 0
    %7630 = vmatmul.mubr.bf16.gmra.mrb[0].mxu0 %v7588
    %v7631 = vpop.f32.mrb[0].mxu0
    %v7632 = vadd.f32 0.0, %v7631
    %v7633 = vpop.f32.mrb[0].mxu0
    %v7634 = vpop.f32.mrb[0].mxu0
    %v7635 = vadd.f32 0.0, %v7634
    %v7636 = vpop.f32.mrb[0].mxu0
    %7637 = vdwg.mxu0
    %v7638 = vpack.c.bf16 %v7627, %v7624
    %v7639 = vpack.c.bf16 %v7635, %v7632
    %s7640 = scalar_lea.vmem %s7, 96
    %v7641 = vld [vmem:[%s7640] sm:$0xf]
    %v7642 = vld [vmem:[%s7640 + $0x4] sm:$0xf]
    %v7643 = vld [vmem:[%s7640 + $0x8] sm:$0xf]
    %v7644 = vld [vmem:[%s7640 + $0xc] sm:$0xf]
    %v7649 = vunpack.c.l.b16 %v7641
    %v7650 = vunpack.c.l.b16 %v7642
    %v7651 = vunpack.c.l.b16 %v7643
    %v7652 = vunpack.c.l.b16 %v7644
    %v7653 = vpack.c.b16 %v7650, %v7649
    %v7654 = vpack.c.b16 %v7652, %v7651
    %v7658 = vsel %vm6510, %v7638, 0
    %v7661 = vsel %vm6510, %v7639, 0
    %7663 = vmatprep.subr.bf16.mxu0 0
    %7664 = vmatpush1.bf16.msra.mxu0 %v7653
    %7665 = vmatprep.subr.bf16.mxu0 0
    %7666 = vmatpush1.bf16.msra.mxu0 %v7654
    %7667 = vmatprep.subr.bf16.mxu0 0
    %7668 = vmatpush1.bf16.msra.mxu0 0
    %7669 = vmatprep.subr.bf16.mxu0 0
    %7670 = vmatpush1.bf16.msra.mxu0 0
    %7671 = vmatprep.subr.bf16.mxu0 0
    %7672 = vmatpush1.bf16.msra.mxu0 0
    %7673 = vmatprep.subr.bf16.mxu0 0
    %7674 = vmatpush1.bf16.msra.mxu0 0
    %7675 = vmatprep.subr.bf16.mxu0 0
    %7676 = vmatpush1.bf16.msra.mxu0 0
    %7677 = vmatprep.subr.bf16.mxu0 0
    %7678 = vmatpush1.bf16.msra.mxu0 0
    %7679 = vmatprep.subr.bf16.mxu0 0
    %7680 = vmatpush1.bf16.msra.mxu0 0
    %7681 = vmatprep.subr.bf16.mxu0 0
    %7682 = vmatpush1.bf16.msra.mxu0 0
    %7683 = vmatprep.subr.bf16.mxu0 0
    %7684 = vmatpush1.bf16.msra.mxu0 0
    %7685 = vmatprep.subr.bf16.mxu0 0
    %7686 = vmatpush1.bf16.msra.mxu0 0
    %7687 = vmatprep.subr.bf16.mxu0 0
    %7688 = vmatpush1.bf16.msra.mxu0 0
    %7689 = vmatprep.subr.bf16.mxu0 0
    %7690 = vmatpush1.bf16.msra.mxu0 0
    %7691 = vmatprep.subr.bf16.mxu0 0
    %7692 = vmatpush1.bf16.msra.mxu0 0
    %7693 = vmatprep.subr.bf16.mxu0 0
    %7694 = vmatpush1.bf16.msra.mxu0 0
    %7695 = vmatprep.mubr.bf16.mxu0 0
    %7696 = vmatmul.mubr.bf16.gmra.mrb[0].mxu0 %v7658
    %v7697 = vpop.f32.mrb[0].mxu0
    %v7698 = vadd.f32 0.0, %v7697
    %v7699 = vpop.f32.mrb[0].mxu0
    %v7700 = vpop.f32.mrb[0].mxu0
    %v7701 = vadd.f32 0.0, %v7700
    %v7702 = vpop.f32.mrb[0].mxu0
    %7703 = vmatprep.mubr.bf16.mxu0 0
    %7704 = vmatmul.mubr.bf16.gmra.mrb[0].mxu0 %v7661
    %v7705 = vpop.f32.mrb[0].mxu0
    %v7706 = vadd.f32 0.0, %v7705
    %v7707 = vpop.f32.mrb[0].mxu0
    %v7708 = vpop.f32.mrb[0].mxu0
    %v7709 = vadd.f32 0.0, %v7708
    %v7710 = vpop.f32.mrb[0].mxu0
    %7711 = vdwg.mxu0
    %v7712 = vadd.f32 %v7571, %v7698
    %v7713 = vadd.f32 %v7572, %v7701
    %v7714 = vadd.f32 %v7573, %v7706
    %v7715 = vadd.f32 %v7574, %v7709
    %vm7716 = vcmp.eq.s32.totalorder %v6730, 17
    %vm7717 = vcmp.eq.s32.totalorder %v6731, 17
    %vm7718 = vcmp.eq.s32.totalorder %v6732, 17
    %vm7719 = vcmp.eq.s32.totalorder %v6733, 17
    %v7720 = vsel %vm7716, 1.0, 0.0
    %v7721 = vsel %vm7717, 1.0, 0.0
    %v7722 = vsel %vm7718, 1.0, 0.0
    %v7723 = vsel %vm7719, 1.0, 0.0
    %v7724 = vpack.c.bf16 %v7721, %v7720
    %v7725 = vpack.c.bf16 %v7723, %v7722
    %7726 = vmatprep.subr.bf16.mxu0 0
    %7727 = vmatpush1.bf16.msra.mxu0 %v6682
    %7728 = vmatprep.subr.bf16.mxu0 0
    %7729 = vmatpush1.bf16.msra.mxu0 %v6683
    %7730 = vmatprep.subr.bf16.mxu0 0
    %7731 = vmatpush1.bf16.msra.mxu0 %v6684
    %7732 = vmatprep.subr.bf16.mxu0 0
    %7733 = vmatpush1.bf16.msra.mxu0 %v6685
    %7734 = vmatprep.subr.bf16.mxu0 0
    %7735 = vmatpush1.bf16.msra.mxu0 %v6686
    %7736 = vmatprep.subr.bf16.mxu0 0
    %7737 = vmatpush1.bf16.msra.mxu0 %v6687
    %7738 = vmatprep.subr.bf16.mxu0 0
    %7739 = vmatpush1.bf16.msra.mxu0 %v6688
    %7740 = vmatprep.subr.bf16.mxu0 0
    %7741 = vmatpush1.bf16.msra.mxu0 %v6689
    %7742 = vmatprep.subr.bf16.mxu0 0
    %7743 = vmatpush1.bf16.msra.mxu0 0
    %7744 = vmatprep.subr.bf16.mxu0 0
    %7745 = vmatpush1.bf16.msra.mxu0 0
    %7746 = vmatprep.subr.bf16.mxu0 0
    %7747 = vmatpush1.bf16.msra.mxu0 0
    %7748 = vmatprep.subr.bf16.mxu0 0
    %7749 = vmatpush1.bf16.msra.mxu0 0
    %7750 = vmatprep.subr.bf16.mxu0 0
    %7751 = vmatpush1.bf16.msra.mxu0 0
    %7752 = vmatprep.subr.bf16.mxu0 0
    %7753 = vmatpush1.bf16.msra.mxu0 0
    %7754 = vmatprep.subr.bf16.mxu0 0
    %7755 = vmatpush1.bf16.msra.mxu0 0
    %7756 = vmatprep.subr.bf16.mxu0 0
    %7757 = vmatpush1.bf16.msra.mxu0 0
    %7758 = vmatprep.mubr.bf16.mxu0 0
    %7759 = vmatmul.mubr.bf16.gmra.mrb[0].mxu0 %v7724
    %v7760 = vpop.f32.mrb[0].mxu0
    %v7761 = vadd.f32 0.0, %v7760
    %v7762 = vpop.f32.mrb[0].mxu0
    %v7763 = vpop.f32.mrb[0].mxu0
    %v7764 = vadd.f32 0.0, %v7763
    %v7765 = vpop.f32.mrb[0].mxu0
    %7766 = vmatprep.mubr.bf16.mxu0 0
    %7767 = vmatmul.mubr.bf16.gmra.mrb[0].mxu0 %v7725
    %v7768 = vpop.f32.mrb[0].mxu0
    %v7769 = vadd.f32 0.0, %v7768
    %v7770 = vpop.f32.mrb[0].mxu0
    %v7771 = vpop.f32.mrb[0].mxu0
    %v7772 = vadd.f32 0.0, %v7771
    %v7773 = vpop.f32.mrb[0].mxu0
    %7774 = vdwg.mxu0
    %v7775 = vpack.c.bf16 %v7764, %v7761
    %v7776 = vpack.c.bf16 %v7772, %v7769
    %s7777 = scalar_lea.vmem %s7, 112
    %v7778 = vld [vmem:[%s7777] sm:$0xf]
    %v7779 = vld [vmem:[%s7777 + $0x4] sm:$0xf]
    %v7780 = vld [vmem:[%s7777 + $0x8] sm:$0xf]
    %v7781 = vld [vmem:[%s7777 + $0xc] sm:$0xf]
    %v7786 = vunpack.c.l.b16 %v7778
    %v7787 = vunpack.c.l.b16 %v7779
    %v7788 = vunpack.c.l.b16 %v7780
    %v7789 = vunpack.c.l.b16 %v7781
    %v7790 = vpack.c.b16 %v7787, %v7786
    %v7791 = vpack.c.b16 %v7789, %v7788
    %v7795 = vsel %vm6510, %v7775, 0
    %v7798 = vsel %vm6510, %v7776, 0
    %7800 = vmatprep.subr.bf16.mxu0 0
    %7801 = vmatpush1.bf16.msra.mxu0 %v7790
    %7802 = vmatprep.subr.bf16.mxu0 0
    %7803 = vmatpush1.bf16.msra.mxu0 %v7791
    %7804 = vmatprep.subr.bf16.mxu0 0
    %7805 = vmatpush1.bf16.msra.mxu0 0
    %7806 = vmatprep.subr.bf16.mxu0 0
    %7807 = vmatpush1.bf16.msra.mxu0 0
    %7808 = vmatprep.subr.bf16.mxu0 0
    %7809 = vmatpush1.bf16.msra.mxu0 0
    %7810 = vmatprep.subr.bf16.mxu0 0
    %7811 = vmatpush1.bf16.msra.mxu0 0
    %7812 = vmatprep.subr.bf16.mxu0 0
    %7813 = vmatpush1.bf16.msra.mxu0 0
    %7814 = vmatprep.subr.bf16.mxu0 0
    %7815 = vmatpush1.bf16.msra.mxu0 0
    %7816 = vmatprep.subr.bf16.mxu0 0
    %7817 = vmatpush1.bf16.msra.mxu0 0
    %7818 = vmatprep.subr.bf16.mxu0 0
    %7819 = vmatpush1.bf16.msra.mxu0 0
    %7820 = vmatprep.subr.bf16.mxu0 0
    %7821 = vmatpush1.bf16.msra.mxu0 0
    %7822 = vmatprep.subr.bf16.mxu0 0
    %7823 = vmatpush1.bf16.msra.mxu0 0
    %7824 = vmatprep.subr.bf16.mxu0 0
    %7825 = vmatpush1.bf16.msra.mxu0 0
    %7826 = vmatprep.subr.bf16.mxu0 0
    %7827 = vmatpush1.bf16.msra.mxu0 0
    %7828 = vmatprep.subr.bf16.mxu0 0
    %7829 = vmatpush1.bf16.msra.mxu0 0
    %7830 = vmatprep.subr.bf16.mxu0 0
    %7831 = vmatpush1.bf16.msra.mxu0 0
    %7832 = vmatprep.mubr.bf16.mxu0 0
    %7833 = vmatmul.mubr.bf16.gmra.mrb[0].mxu0 %v7795
    %v7834 = vpop.f32.mrb[0].mxu0
    %v7835 = vadd.f32 0.0, %v7834
    %v7836 = vpop.f32.mrb[0].mxu0
    %v7837 = vpop.f32.mrb[0].mxu0
    %v7838 = vadd.f32 0.0, %v7837
    %v7839 = vpop.f32.mrb[0].mxu0
    %7840 = vmatprep.mubr.bf16.mxu0 0
    %7841 = vmatmul.mubr.bf16.gmra.mrb[0].mxu0 %v7798
    %v7842 = vpop.f32.mrb[0].mxu0
    %v7843 = vadd.f32 0.0, %v7842
    %v7844 = vpop.f32.mrb[0].mxu0
    %v7845 = vpop.f32.mrb[0].mxu0
    %v7846 = vadd.f32 0.0, %v7845
    %v7847 = vpop.f32.mrb[0].mxu0
    %7848 = vdwg.mxu0
    %v7849 = vadd.f32 %v7712, %v7835
    %v7850 = vadd.f32 %v7713, %v7838
    %v7851 = vadd.f32 %v7714, %v7843
    %v7852 = vadd.f32 %v7715, %v7846
    %vm7853 = vcmp.eq.s32.totalorder %v6730, 18
    %vm7854 = vcmp.eq.s32.totalorder %v6731, 18
    %vm7855 = vcmp.eq.s32.totalorder %v6732, 18
    %vm7856 = vcmp.eq.s32.totalorder %v6733, 18
    %v7857 = vsel %vm7853, 1.0, 0.0
    %v7858 = vsel %vm7854, 1.0, 0.0
    %v7859 = vsel %vm7855, 1.0, 0.0
    %v7860 = vsel %vm7856, 1.0, 0.0
    %v7861 = vpack.c.bf16 %v7858, %v7857
    %v7862 = vpack.c.bf16 %v7860, %v7859
    %7863 = vmatprep.subr.bf16.mxu0 0
    %7864 = vmatpush1.bf16.msra.mxu0 %v6682
    %7865 = vmatprep.subr.bf16.mxu0 0
    %7866 = vmatpush1.bf16.msra.mxu0 %v6683
    %7867 = vmatprep.subr.bf16.mxu0 0
    %7868 = vmatpush1.bf16.msra.mxu0 %v6684
    %7869 = vmatprep.subr.bf16.mxu0 0
    %7870 = vmatpush1.bf16.msra.mxu0 %v6685
    %7871 = vmatprep.subr.bf16.mxu0 0
    %7872 = vmatpush1.bf16.msra.mxu0 %v6686
    %7873 = vmatprep.subr.bf16.mxu0 0
    %7874 = vmatpush1.bf16.msra.mxu0 %v6687
    %7875 = vmatprep.subr.bf16.mxu0 0
    %7876 = vmatpush1.bf16.msra.mxu0 %v6688
    %7877 = vmatprep.subr.bf16.mxu0 0
    %7878 = vmatpush1.bf16.msra.mxu0 %v6689
    %7879 = vmatprep.subr.bf16.mxu0 0
    %7880 = vmatpush1.bf16.msra.mxu0 0
    %7881 = vmatprep.subr.bf16.mxu0 0
    %7882 = vmatpush1.bf16.msra.mxu0 0
    %7883 = vmatprep.subr.bf16.mxu0 0
    %7884 = vmatpush1.bf16.msra.mxu0 0
    %7885 = vmatprep.subr.bf16.mxu0 0
    %7886 = vmatpush1.bf16.msra.mxu0 0
    %7887 = vmatprep.subr.bf16.mxu0 0
    %7888 = vmatpush1.bf16.msra.mxu0 0
    %7889 = vmatprep.subr.bf16.mxu0 0
    %7890 = vmatpush1.bf16.msra.mxu0 0
    %7891 = vmatprep.subr.bf16.mxu0 0
    %7892 = vmatpush1.bf16.msra.mxu0 0
    %7893 = vmatprep.subr.bf16.mxu0 0
    %7894 = vmatpush1.bf16.msra.mxu0 0
    %7895 = vmatprep.mubr.bf16.mxu0 0
    %7896 = vmatmul.mubr.bf16.gmra.mrb[0].mxu0 %v7861
    %v7897 = vpop.f32.mrb[0].mxu0
    %v7898 = vadd.f32 0.0, %v7897
    %v7899 = vpop.f32.mrb[0].mxu0
    %v7900 = vpop.f32.mrb[0].mxu0
    %v7901 = vadd.f32 0.0, %v7900
    %v7902 = vpop.f32.mrb[0].mxu0
    %7903 = vmatprep.mubr.bf16.mxu0 0
    %7904 = vmatmul.mubr.bf16.gmra.mrb[0].mxu0 %v7862
    %v7905 = vpop.f32.mrb[0].mxu0
    %v7906 = vadd.f32 0.0, %v7905
    %v7907 = vpop.f32.mrb[0].mxu0
    %v7908 = vpop.f32.mrb[0].mxu0
    %v7909 = vadd.f32 0.0, %v7908
    %v7910 = vpop.f32.mrb[0].mxu0
    %7911 = vdwg.mxu0
    %v7912 = vpack.c.bf16 %v7901, %v7898
    %v7913 = vpack.c.bf16 %v7909, %v7906
    %s7914 = scalar_lea.vmem %s7, 128
    %v7915 = vld [vmem:[%s7914] sm:$0xf]
    %v7916 = vld [vmem:[%s7914 + $0x4] sm:$0xf]
    %v7917 = vld [vmem:[%s7914 + $0x8] sm:$0xf]
    %v7918 = vld [vmem:[%s7914 + $0xc] sm:$0xf]
    %v7923 = vunpack.c.l.b16 %v7915
    %v7924 = vunpack.c.l.b16 %v7916
    %v7925 = vunpack.c.l.b16 %v7917
    %v7926 = vunpack.c.l.b16 %v7918
    %v7927 = vpack.c.b16 %v7924, %v7923
    %v7928 = vpack.c.b16 %v7926, %v7925
    %v7932 = vsel %vm6510, %v7912, 0
    %v7935 = vsel %vm6510, %v7913, 0
    %7937 = vmatprep.subr.bf16.mxu0 0
    %7938 = vmatpush1.bf16.msra.mxu0 %v7927
    %7939 = vmatprep.subr.bf16.mxu0 0
    %7940 = vmatpush1.bf16.msra.mxu0 %v7928
    %7941 = vmatprep.subr.bf16.mxu0 0
    %7942 = vmatpush1.bf16.msra.mxu0 0
    %7943 = vmatprep.subr.bf16.mxu0 0
    %7944 = vmatpush1.bf16.msra.mxu0 0
    %7945 = vmatprep.subr.bf16.mxu0 0
    %7946 = vmatpush1.bf16.msra.mxu0 0
    %7947 = vmatprep.subr.bf16.mxu0 0
    %7948 = vmatpush1.bf16.msra.mxu0 0
    %7949 = vmatprep.subr.bf16.mxu0 0
    %7950 = vmatpush1.bf16.msra.mxu0 0
    %7951 = vmatprep.subr.bf16.mxu0 0
    %7952 = vmatpush1.bf16.msra.mxu0 0
    %7953 = vmatprep.subr.bf16.mxu0 0
    %7954 = vmatpush1.bf16.msra.mxu0 0
    %7955 = vmatprep.subr.bf16.mxu0 0
    %7956 = vmatpush1.bf16.msra.mxu0 0
    %7957 = vmatprep.subr.bf16.mxu0 0
    %7958 = vmatpush1.bf16.msra.mxu0 0
    %7959 = vmatprep.subr.bf16.mxu0 0
    %7960 = vmatpush1.bf16.msra.mxu0 0
    %7961 = vmatprep.subr.bf16.mxu0 0
    %7962 = vmatpush1.bf16.msra.mxu0 0
    %7963 = vmatprep.subr.bf16.mxu0 0
    %7964 = vmatpush1.bf16.msra.mxu0 0
    %7965 = vmatprep.subr.bf16.mxu0 0
    %7966 = vmatpush1.bf16.msra.mxu0 0
    %7967 = vmatprep.subr.bf16.mxu0 0
    %7968 = vmatpush1.bf16.msra.mxu0 0
    %7969 = vmatprep.mubr.bf16.mxu0 0
    %7970 = vmatmul.mubr.bf16.gmra.mrb[0].mxu0 %v7932
    %v7971 = vpop.f32.mrb[0].mxu0
    %v7972 = vadd.f32 0.0, %v7971
    %v7973 = vpop.f32.mrb[0].mxu0
    %v7974 = vpop.f32.mrb[0].mxu0
    %v7975 = vadd.f32 0.0, %v7974
    %v7976 = vpop.f32.mrb[0].mxu0
    %7977 = vmatprep.mubr.bf16.mxu0 0
    %7978 = vmatmul.mubr.bf16.gmra.mrb[0].mxu0 %v7935
    %v7979 = vpop.f32.mrb[0].mxu0
    %v7980 = vadd.f32 0.0, %v7979
    %v7981 = vpop.f32.mrb[0].mxu0
    %v7982 = vpop.f32.mrb[0].mxu0
    %v7983 = vadd.f32 0.0, %v7982
    %v7984 = vpop.f32.mrb[0].mxu0
    %7985 = vdwg.mxu0
    %v7986 = vadd.f32 %v7849, %v7972
    %v7987 = vadd.f32 %v7850, %v7975
    %v7988 = vadd.f32 %v7851, %v7980
    %v7989 = vadd.f32 %v7852, %v7983
    %v7990 = vld [vmem:[%s8] sm:$0x1]
    %v7991 = vld [vmem:[%s9] sm:$0x1]
    %vm7992 = vcmask 523264
    %v7993 = vsel %vm7992, %v7986, 0.0
    %v7994 = vsel %vm7992, %v7987, 0.0
    %v7995 = vadd.f32 %v7993, %v7994
    %v7996 = vsel %vm7992, %v7988, 0.0
    %v7997 = vadd.f32 %v7995, %v7996
    %v7998 = vsel %vm7992, %v7989, 0.0
    %v7999 = vadd.f32 %v7997, %v7998
    %v8000 = vrot.slane %v7999, 4
    %v8001 = vadd.f32 %v7999, %v8000
    %v8002 = vrot.slane %v8001, 2
    %v8003 = vadd.f32 %v8001, %v8002
    %v8004 = vrot.slane %v8003, 1
    %v8005 = vadd.f32 %v8003, %v8004
    %v8006 = vmul.f32 %v8005, 0.03125
    %v8007 = vsub.f32 %v7986, %v8006
    %v8008 = vsub.f32 %v7987, %v8006
    %v8009 = vsub.f32 %v7988, %v8006
    %v8010 = vsub.f32 %v7989, %v8006
    %v8011 = vmul.f32 %v8007, %v8007
    %v8012 = vmul.f32 %v8008, %v8008
    %v8013 = vmul.f32 %v8009, %v8009
    %v8014 = vmul.f32 %v8010, %v8010
    %v8015 = vsel %vm7992, %v8011, 0.0
    %v8016 = vsel %vm7992, %v8012, 0.0
    %v8017 = vadd.f32 %v8015, %v8016
    %v8018 = vsel %vm7992, %v8013, 0.0
    %v8019 = vadd.f32 %v8017, %v8018
    %v8020 = vsel %vm7992, %v8014, 0.0
    %v8021 = vadd.f32 %v8019, %v8020
    %v8022 = vrot.slane %v8021, 4
    %v8023 = vadd.f32 %v8021, %v8022
    %v8024 = vrot.slane %v8023, 2
    %v8025 = vadd.f32 %v8023, %v8024
    %v8026 = vrot.slane %v8025, 1
    %v8027 = vadd.f32 %v8025, %v8026
    %v8028 = vmul.f32 %v8027, 0.03125
    %v8029 = vadd.f32 %v8028, 1e-05
    %v8030 = vrsqrt.pop %v8029
    %v8031 = vmul.f32 %v7990, %v8030
    %v8033 = vlaneseq
    %v8034 = vshrl.u32 %v8033, 7
    %v8035 = vsub.s32 0, %v8034
    %v8036 = vrot.slane %v8031, %v8035
    %v8038 = vmul.f32 %v8007, %v8036
    %v8039 = vmul.f32 %v8008, %v8036
    %v8040 = vmul.f32 %v8009, %v8036
    %v8041 = vmul.f32 %v8010, %v8036
    %v8043 = vlaneseq
    %v8044 = vshrl.u32 %v8043, 7
    %v8045 = vsub.s32 0, %v8044
    %v8046 = vrot.slane %v7991, %v8045
    %v8048 = vadd.f32 %v8038, %v8046
    %v8049 = vadd.f32 %v8039, %v8046
    %v8050 = vadd.f32 %v8040, %v8046
    %v8051 = vadd.f32 %v8041, %v8046
    %v8052 = vmax.f32 %v8048, 0.0
    %v8053 = vmax.f32 %v8049, 0.0
    %v8054 = vmax.f32 %v8050, 0.0
    %v8055 = vmax.f32 %v8051, 0.0
    %v8056 = vpack.c.bf16 %v8053, %v8052
    %v8057 = vpack.c.bf16 %v8055, %v8054
    %v8058 = vand.u32 %v1308, 1
    %v8059 = vshra.s32 %v1308, 1
    %v8060 = vshra.s32 %v8059, 1
    %v8061 = vand.u32 %v8059, 1
    %v8062 = vshll.u32 %v8058, 4
    %v8063 = vshll.u32 %v8060, 3
    %v8064 = vadd.s32 %v8062, %v8063
    %v8065 = vshll.u32 %v8061, 1
    %v8066 = vadd.s32 %v8064, %v8065
    %v8067 = vsub.s32 %v1325, %v8066
    %vm8068 = vcmp.eq.s32.totalorder %v8067, 0
    %v8069 = vsel %vm8068, 1.0, 0.0
    %v8070 = vpack.c.bf16 %v8069, %v8069
    %v8072 = vsel %vm6510, %v8070, 0
    %8074 = vmatprep.subr.bf16.mxu0 0
    %8075 = vmatpush1.bf16.msra.mxu0 %v8056
    %8076 = vmatprep.subr.bf16.mxu0 0
    %8077 = vmatpush1.bf16.msra.mxu0 %v8057
    %8078 = vmatprep.subr.bf16.mxu0 0
    %8079 = vmatpush1.bf16.msra.mxu0 0
    %8080 = vmatprep.subr.bf16.mxu0 0
    %8081 = vmatpush1.bf16.msra.mxu0 0
    %8082 = vmatprep.subr.bf16.mxu0 0
    %8083 = vmatpush1.bf16.msra.mxu0 0
    %8084 = vmatprep.subr.bf16.mxu0 0
    %8085 = vmatpush1.bf16.msra.mxu0 0
    %8086 = vmatprep.subr.bf16.mxu0 0
    %8087 = vmatpush1.bf16.msra.mxu0 0
    %8088 = vmatprep.subr.bf16.mxu0 0
    %8089 = vmatpush1.bf16.msra.mxu0 0
    %8090 = vmatprep.subr.bf16.mxu0 0
    %8091 = vmatpush1.bf16.msra.mxu0 0
    %8092 = vmatprep.subr.bf16.mxu0 0
    %8093 = vmatpush1.bf16.msra.mxu0 0
    %8094 = vmatprep.subr.bf16.mxu0 0
    %8095 = vmatpush1.bf16.msra.mxu0 0
    %8096 = vmatprep.subr.bf16.mxu0 0
    %8097 = vmatpush1.bf16.msra.mxu0 0
    %8098 = vmatprep.subr.bf16.mxu0 0
    %8099 = vmatpush1.bf16.msra.mxu0 0
    %8100 = vmatprep.subr.bf16.mxu0 0
    %8101 = vmatpush1.bf16.msra.mxu0 0
    %8102 = vmatprep.subr.bf16.mxu0 0
    %8103 = vmatpush1.bf16.msra.mxu0 0
    %8104 = vmatprep.subr.bf16.mxu0 0
    %8105 = vmatpush1.bf16.msra.mxu0 0
    %8106 = vmatprep.mubr.bf16.mxu0 0
    %8107 = vmatmul.mubr.bf16.gmra.mrb[0].mxu0 %v8072
    %v8108 = vpop.f32.mrb[0].mxu0
    %v8109 = vadd.f32 0.0, %v8108
    %v8110 = vpop.f32.mrb[0].mxu0
    %v8111 = vpop.f32.mrb[0].mxu0
    %v8112 = vpop.f32.mrb[0].mxu0
    %8113 = vdwg.mxu0
    %v8114 = vpack.c.bf16 %v8109, %v8109
    %v8115 = vld [vmem:[%s10] sm:$0xf]
    %v8116 = vld [vmem:[%s10 + $0x4] sm:$0xf]
    %v8117 = vld [vmem:[%s10 + $0x8] sm:$0xf]
    %v8118 = vld [vmem:[%s10 + $0xc] sm:$0xf]
    %v8119 = vld [vmem:[%s10 + $0x10] sm:$0xf]
    %v8120 = vld [vmem:[%s10 + $0x14] sm:$0xf]
    %v8121 = vld [vmem:[%s10 + $0x18] sm:$0xf]
    %v8122 = vld [vmem:[%s10 + $0x1c] sm:$0xf]
    %vm8123 = vcmp.eq.s32.totalorder %v8067, 1
    %v8124 = vsel %vm8123, 1.0, 0.0
    %v8125 = vpack.c.bf16 %v8124, %v8124
    %v8127 = vsel %vm6510, %v8125, 0
    %8129 = vmatprep.subr.bf16.mxu0 0
    %8130 = vmatpush1.bf16.msra.mxu0 %v8056
    %8131 = vmatprep.subr.bf16.mxu0 0
    %8132 = vmatpush1.bf16.msra.mxu0 %v8057
    %8133 = vmatprep.subr.bf16.mxu0 0
    %8134 = vmatpush1.bf16.msra.mxu0 0
    %8135 = vmatprep.subr.bf16.mxu0 0
    %8136 = vmatpush1.bf16.msra.mxu0 0
    %8137 = vmatprep.subr.bf16.mxu0 0
    %8138 = vmatpush1.bf16.msra.mxu0 0
    %8139 = vmatprep.subr.bf16.mxu0 0
    %8140 = vmatpush1.bf16.msra.mxu0 0
    %8141 = vmatprep.subr.bf16.mxu0 0
    %8142 = vmatpush1.bf16.msra.mxu0 0
    %8143 = vmatprep.subr.bf16.mxu0 0
    %8144 = vmatpush1.bf16.msra.mxu0 0
    %8145 = vmatprep.subr.bf16.mxu0 0
    %8146 = vmatpush1.bf16.msra.mxu0 0
    %8147 = vmatprep.subr.bf16.mxu0 0
    %8148 = vmatpush1.bf16.msra.mxu0 0
    %8149 = vmatprep.subr.bf16.mxu0 0
    %8150 = vmatpush1.bf16.msra.mxu0 0
    %8151 = vmatprep.subr.bf16.mxu0 0
    %8152 = vmatpush1.bf16.msra.mxu0 0
    %8153 = vmatprep.subr.bf16.mxu0 0
    %8154 = vmatpush1.bf16.msra.mxu0 0
    %8155 = vmatprep.subr.bf16.mxu0 0
    %8156 = vmatpush1.bf16.msra.mxu0 0
    %8157 = vmatprep.subr.bf16.mxu0 0
    %8158 = vmatpush1.bf16.msra.mxu0 0
    %8159 = vmatprep.subr.bf16.mxu0 0
    %8160 = vmatpush1.bf16.msra.mxu0 0
    %8161 = vmatprep.mubr.bf16.mxu0 0
    %8162 = vmatmul.mubr.bf16.gmra.mrb[0].mxu0 %v8127
    %v8163 = vpop.f32.mrb[0].mxu0
    %v8164 = vadd.f32 0.0, %v8163
    %v8165 = vpop.f32.mrb[0].mxu0
    %v8166 = vpop.f32.mrb[0].mxu0
    %v8167 = vpop.f32.mrb[0].mxu0
    %8168 = vdwg.mxu0
    %v8169 = vpack.c.bf16 %v8164, %v8164
    %s8170 = scalar_lea.vmem %s10, 32
    %v8171 = vld [vmem:[%s8170] sm:$0xf]
    %v8172 = vld [vmem:[%s8170 + $0x4] sm:$0xf]
    %v8173 = vld [vmem:[%s8170 + $0x8] sm:$0xf]
    %v8174 = vld [vmem:[%s8170 + $0xc] sm:$0xf]
    %v8175 = vld [vmem:[%s8170 + $0x10] sm:$0xf]
    %v8176 = vld [vmem:[%s8170 + $0x14] sm:$0xf]
    %v8177 = vld [vmem:[%s8170 + $0x18] sm:$0xf]
    %v8178 = vld [vmem:[%s8170 + $0x1c] sm:$0xf]
    %v8187 = vunpack.c.l.b16 %v8171
    %v8188 = vunpack.c.l.b16 %v8172
    %v8189 = vunpack.c.l.b16 %v8173
    %v8190 = vunpack.c.l.b16 %v8174
    %v8191 = vunpack.c.l.b16 %v8175
    %v8192 = vunpack.c.l.b16 %v8176
    %v8193 = vunpack.c.l.b16 %v8177
    %v8194 = vunpack.c.l.b16 %v8178
    %v8195 = vpack.c.b16 %v8188, %v8187
    %v8196 = vpack.c.b16 %v8190, %v8189
    %v8197 = vpack.c.b16 %v8192, %v8191
    %v8198 = vpack.c.b16 %v8194, %v8193
    %v8204 = vsel %vm7992, %v8169, 0
    %8206 = vmatprep.subr.bf16.mxu0 0
    %8207 = vmatpush1.bf16.msra.mxu0 %v8195
    %8208 = vmatprep.subr.bf16.mxu0 0
    %8209 = vmatpush1.bf16.msra.mxu0 %v8196
    %8210 = vmatprep.subr.bf16.mxu0 0
    %8211 = vmatpush1.bf16.msra.mxu0 %v8197
    %8212 = vmatprep.subr.bf16.mxu0 0
    %8213 = vmatpush1.bf16.msra.mxu0 %v8198
    %8214 = vmatprep.subr.bf16.mxu0 0
    %8215 = vmatpush1.bf16.msra.mxu0 0
    %8216 = vmatprep.subr.bf16.mxu0 0
    %8217 = vmatpush1.bf16.msra.mxu0 0
    %8218 = vmatprep.subr.bf16.mxu0 0
    %8219 = vmatpush1.bf16.msra.mxu0 0
    %8220 = vmatprep.subr.bf16.mxu0 0
    %8221 = vmatpush1.bf16.msra.mxu0 0
    %8222 = vmatprep.subr.bf16.mxu0 0
    %8223 = vmatpush1.bf16.msra.mxu0 0
    %8224 = vmatprep.subr.bf16.mxu0 0
    %8225 = vmatpush1.bf16.msra.mxu0 0
    %8226 = vmatprep.subr.bf16.mxu0 0
    %8227 = vmatpush1.bf16.msra.mxu0 0
    %8228 = vmatprep.subr.bf16.mxu0 0
    %8229 = vmatpush1.bf16.msra.mxu0 0
    %8230 = vmatprep.subr.bf16.mxu0 0
    %8231 = vmatpush1.bf16.msra.mxu0 0
    %8232 = vmatprep.subr.bf16.mxu0 0
    %8233 = vmatpush1.bf16.msra.mxu0 0
    %8234 = vmatprep.subr.bf16.mxu0 0
    %8235 = vmatpush1.bf16.msra.mxu0 0
    %8236 = vmatprep.subr.bf16.mxu0 0
    %8237 = vmatpush1.bf16.msra.mxu0 0
    %8238 = vmatprep.mubr.bf16.mxu0 0
    %8239 = vmatmul.mubr.bf16.gmra.mrb[0].mxu0 %v8204
    %v8240 = vpop.f32.mrb[0].mxu0
    %v8241 = vadd.f32 0.0, %v8240
    %v8242 = vpop.f32.mrb[0].mxu0
    %v8243 = vpop.f32.mrb[0].mxu0
    %v8244 = vpop.f32.mrb[0].mxu0
    %8245 = vdwg.mxu0
    %v8254 = vunpack.c.l.b16 %v8115
    %v8255 = vunpack.c.l.b16 %v8116
    %v8256 = vunpack.c.l.b16 %v8117
    %v8257 = vunpack.c.l.b16 %v8118
    %v8258 = vunpack.c.l.b16 %v8119
    %v8259 = vunpack.c.l.b16 %v8120
    %v8260 = vunpack.c.l.b16 %v8121
    %v8261 = vunpack.c.l.b16 %v8122
    %v8262 = vpack.c.b16 %v8255, %v8254
    %v8263 = vpack.c.b16 %v8257, %v8256
    %v8264 = vpack.c.b16 %v8259, %v8258
    %v8265 = vpack.c.b16 %v8261, %v8260
    %v8271 = vsel %vm7992, %v8114, 0
    %8273 = vmatprep.subr.bf16.mxu0 0
    %8274 = vmatpush1.bf16.msra.mxu0 %v8262
    %8275 = vmatprep.subr.bf16.mxu0 0
    %8276 = vmatpush1.bf16.msra.mxu0 %v8263
    %8277 = vmatprep.subr.bf16.mxu0 0
    %8278 = vmatpush1.bf16.msra.mxu0 %v8264
    %8279 = vmatprep.subr.bf16.mxu0 0
    %8280 = vmatpush1.bf16.msra.mxu0 %v8265
    %8281 = vmatprep.subr.bf16.mxu0 0
    %8282 = vmatpush1.bf16.msra.mxu0 0
    %8283 = vmatprep.subr.bf16.mxu0 0
    %8284 = vmatpush1.bf16.msra.mxu0 0
    %8285 = vmatprep.subr.bf16.mxu0 0
    %8286 = vmatpush1.bf16.msra.mxu0 0
    %8287 = vmatprep.subr.bf16.mxu0 0
    %8288 = vmatpush1.bf16.msra.mxu0 0
    %8289 = vmatprep.subr.bf16.mxu0 0
    %8290 = vmatpush1.bf16.msra.mxu0 0
    %8291 = vmatprep.subr.bf16.mxu0 0
    %8292 = vmatpush1.bf16.msra.mxu0 0
    %8293 = vmatprep.subr.bf16.mxu0 0
    %8294 = vmatpush1.bf16.msra.mxu0 0
    %8295 = vmatprep.subr.bf16.mxu0 0
    %8296 = vmatpush1.bf16.msra.mxu0 0
    %8297 = vmatprep.subr.bf16.mxu0 0
    %8298 = vmatpush1.bf16.msra.mxu0 0
    %8299 = vmatprep.subr.bf16.mxu0 0
    %8300 = vmatpush1.bf16.msra.mxu0 0
    %8301 = vmatprep.subr.bf16.mxu0 0
    %8302 = vmatpush1.bf16.msra.mxu0 0
    %8303 = vmatprep.subr.bf16.mxu0 0
    %8304 = vmatpush1.bf16.msra.mxu0 0
    %8305 = vmatprep.mubr.bf16.mxu0 0
    %8306 = vmatmul.mubr.bf16.gmra.mrb[0].mxu0 %v8271
    %v8307 = vpop.f32.mrb[0].mxu0
    %v8308 = vadd.f32 %v8241, %v8307
    %v8309 = vpop.f32.mrb[0].mxu0
    %v8310 = vpop.f32.mrb[0].mxu0
    %v8311 = vpop.f32.mrb[0].mxu0
    %8312 = vdwg.mxu0
    %vm8313 = vcmp.eq.s32.totalorder %v8067, 4
    %v8314 = vsel %vm8313, 1.0, 0.0
    %v8315 = vpack.c.bf16 %v8314, %v8314
    %v8317 = vsel %vm6510, %v8315, 0
    %8319 = vmatprep.subr.bf16.mxu0 0
    %8320 = vmatpush1.bf16.msra.mxu0 %v8056
    %8321 = vmatprep.subr.bf16.mxu0 0
    %8322 = vmatpush1.bf16.msra.mxu0 %v8057
    %8323 = vmatprep.subr.bf16.mxu0 0
    %8324 = vmatpush1.bf16.msra.mxu0 0
    %8325 = vmatprep.subr.bf16.mxu0 0
    %8326 = vmatpush1.bf16.msra.mxu0 0
    %8327 = vmatprep.subr.bf16.mxu0 0
    %8328 = vmatpush1.bf16.msra.mxu0 0
    %8329 = vmatprep.subr.bf16.mxu0 0
    %8330 = vmatpush1.bf16.msra.mxu0 0
    %8331 = vmatprep.subr.bf16.mxu0 0
    %8332 = vmatpush1.bf16.msra.mxu0 0
    %8333 = vmatprep.subr.bf16.mxu0 0
    %8334 = vmatpush1.bf16.msra.mxu0 0
    %8335 = vmatprep.subr.bf16.mxu0 0
    %8336 = vmatpush1.bf16.msra.mxu0 0
    %8337 = vmatprep.subr.bf16.mxu0 0
    %8338 = vmatpush1.bf16.msra.mxu0 0
    %8339 = vmatprep.subr.bf16.mxu0 0
    %8340 = vmatpush1.bf16.msra.mxu0 0
    %8341 = vmatprep.subr.bf16.mxu0 0
    %8342 = vmatpush1.bf16.msra.mxu0 0
    %8343 = vmatprep.subr.bf16.mxu0 0
    %8344 = vmatpush1.bf16.msra.mxu0 0
    %8345 = vmatprep.subr.bf16.mxu0 0
    %8346 = vmatpush1.bf16.msra.mxu0 0
    %8347 = vmatprep.subr.bf16.mxu0 0
    %8348 = vmatpush1.bf16.msra.mxu0 0
    %8349 = vmatprep.subr.bf16.mxu0 0
    %8350 = vmatpush1.bf16.msra.mxu0 0
    %8351 = vmatprep.mubr.bf16.mxu0 0
    %8352 = vmatmul.mubr.bf16.gmra.mrb[0].mxu0 %v8317
    %v8353 = vpop.f32.mrb[0].mxu0
    %v8354 = vadd.f32 0.0, %v8353
    %v8355 = vpop.f32.mrb[0].mxu0
    %v8356 = vpop.f32.mrb[0].mxu0
    %v8357 = vpop.f32.mrb[0].mxu0
    %8358 = vdwg.mxu0
    %v8359 = vpack.c.bf16 %v8354, %v8354
    %s8360 = scalar_lea.vmem %s10, 64
    %v8361 = vld [vmem:[%s8360] sm:$0xf]
    %v8362 = vld [vmem:[%s8360 + $0x4] sm:$0xf]
    %v8363 = vld [vmem:[%s8360 + $0x8] sm:$0xf]
    %v8364 = vld [vmem:[%s8360 + $0xc] sm:$0xf]
    %v8365 = vld [vmem:[%s8360 + $0x10] sm:$0xf]
    %v8366 = vld [vmem:[%s8360 + $0x14] sm:$0xf]
    %v8367 = vld [vmem:[%s8360 + $0x18] sm:$0xf]
    %v8368 = vld [vmem:[%s8360 + $0x1c] sm:$0xf]
    %v8377 = vunpack.c.l.b16 %v8361
    %v8378 = vunpack.c.l.b16 %v8362
    %v8379 = vunpack.c.l.b16 %v8363
    %v8380 = vunpack.c.l.b16 %v8364
    %v8381 = vunpack.c.l.b16 %v8365
    %v8382 = vunpack.c.l.b16 %v8366
    %v8383 = vunpack.c.l.b16 %v8367
    %v8384 = vunpack.c.l.b16 %v8368
    %v8385 = vpack.c.b16 %v8378, %v8377
    %v8386 = vpack.c.b16 %v8380, %v8379
    %v8387 = vpack.c.b16 %v8382, %v8381
    %v8388 = vpack.c.b16 %v8384, %v8383
    %v8394 = vsel %vm7992, %v8359, 0
    %8396 = vmatprep.subr.bf16.mxu0 0
    %8397 = vmatpush1.bf16.msra.mxu0 %v8385
    %8398 = vmatprep.subr.bf16.mxu0 0
    %8399 = vmatpush1.bf16.msra.mxu0 %v8386
    %8400 = vmatprep.subr.bf16.mxu0 0
    %8401 = vmatpush1.bf16.msra.mxu0 %v8387
    %8402 = vmatprep.subr.bf16.mxu0 0
    %8403 = vmatpush1.bf16.msra.mxu0 %v8388
    %8404 = vmatprep.subr.bf16.mxu0 0
    %8405 = vmatpush1.bf16.msra.mxu0 0
    %8406 = vmatprep.subr.bf16.mxu0 0
    %8407 = vmatpush1.bf16.msra.mxu0 0
    %8408 = vmatprep.subr.bf16.mxu0 0
    %8409 = vmatpush1.bf16.msra.mxu0 0
    %8410 = vmatprep.subr.bf16.mxu0 0
    %8411 = vmatpush1.bf16.msra.mxu0 0
    %8412 = vmatprep.subr.bf16.mxu0 0
    %8413 = vmatpush1.bf16.msra.mxu0 0
    %8414 = vmatprep.subr.bf16.mxu0 0
    %8415 = vmatpush1.bf16.msra.mxu0 0
    %8416 = vmatprep.subr.bf16.mxu0 0
    %8417 = vmatpush1.bf16.msra.mxu0 0
    %8418 = vmatprep.subr.bf16.mxu0 0
    %8419 = vmatpush1.bf16.msra.mxu0 0
    %8420 = vmatprep.subr.bf16.mxu0 0
    %8421 = vmatpush1.bf16.msra.mxu0 0
    %8422 = vmatprep.subr.bf16.mxu0 0
    %8423 = vmatpush1.bf16.msra.mxu0 0
    %8424 = vmatprep.subr.bf16.mxu0 0
    %8425 = vmatpush1.bf16.msra.mxu0 0
    %8426 = vmatprep.subr.bf16.mxu0 0
    %8427 = vmatpush1.bf16.msra.mxu0 0
    %8428 = vmatprep.mubr.bf16.mxu0 0
    %8429 = vmatmul.mubr.bf16.gmra.mrb[0].mxu0 %v8394
    %v8430 = vpop.f32.mrb[0].mxu0
    %v8431 = vadd.f32 0.0, %v8430
    %v8432 = vpop.f32.mrb[0].mxu0
    %v8433 = vpop.f32.mrb[0].mxu0
    %v8434 = vpop.f32.mrb[0].mxu0
    %8435 = vdwg.mxu0
    %v8436 = vadd.f32 %v8308, %v8431
    %vm8437 = vcmp.eq.s32.totalorder %v8067, 5
    %v8438 = vsel %vm8437, 1.0, 0.0
    %v8439 = vpack.c.bf16 %v8438, %v8438
    %v8441 = vsel %vm6510, %v8439, 0
    %8443 = vmatprep.subr.bf16.mxu0 0
    %8444 = vmatpush1.bf16.msra.mxu0 %v8056
    %8445 = vmatprep.subr.bf16.mxu0 0
    %8446 = vmatpush1.bf16.msra.mxu0 %v8057
    %8447 = vmatprep.subr.bf16.mxu0 0
    %8448 = vmatpush1.bf16.msra.mxu0 0
    %8449 = vmatprep.subr.bf16.mxu0 0
    %8450 = vmatpush1.bf16.msra.mxu0 0
    %8451 = vmatprep.subr.bf16.mxu0 0
    %8452 = vmatpush1.bf16.msra.mxu0 0
    %8453 = vmatprep.subr.bf16.mxu0 0
    %8454 = vmatpush1.bf16.msra.mxu0 0
    %8455 = vmatprep.subr.bf16.mxu0 0
    %8456 = vmatpush1.bf16.msra.mxu0 0
    %8457 = vmatprep.subr.bf16.mxu0 0
    %8458 = vmatpush1.bf16.msra.mxu0 0
    %8459 = vmatprep.subr.bf16.mxu0 0
    %8460 = vmatpush1.bf16.msra.mxu0 0
    %8461 = vmatprep.subr.bf16.mxu0 0
    %8462 = vmatpush1.bf16.msra.mxu0 0
    %8463 = vmatprep.subr.bf16.mxu0 0
    %8464 = vmatpush1.bf16.msra.mxu0 0
    %8465 = vmatprep.subr.bf16.mxu0 0
    %8466 = vmatpush1.bf16.msra.mxu0 0
    %8467 = vmatprep.subr.bf16.mxu0 0
    %8468 = vmatpush1.bf16.msra.mxu0 0
    %8469 = vmatprep.subr.bf16.mxu0 0
    %8470 = vmatpush1.bf16.msra.mxu0 0
    %8471 = vmatprep.subr.bf16.mxu0 0
    %8472 = vmatpush1.bf16.msra.mxu0 0
    %8473 = vmatprep.subr.bf16.mxu0 0
    %8474 = vmatpush1.bf16.msra.mxu0 0
    %8475 = vmatprep.mubr.bf16.mxu0 0
    %8476 = vmatmul.mubr.bf16.gmra.mrb[0].mxu0 %v8441
    %v8477 = vpop.f32.mrb[0].mxu0
    %v8478 = vadd.f32 0.0, %v8477
    %v8479 = vpop.f32.mrb[0].mxu0
    %v8480 = vpop.f32.mrb[0].mxu0
    %v8481 = vpop.f32.mrb[0].mxu0
    %8482 = vdwg.mxu0
    %v8483 = vpack.c.bf16 %v8478, %v8478
    %s8484 = scalar_lea.vmem %s10, 96
    %v8485 = vld [vmem:[%s8484] sm:$0xf]
    %v8486 = vld [vmem:[%s8484 + $0x4] sm:$0xf]
    %v8487 = vld [vmem:[%s8484 + $0x8] sm:$0xf]
    %v8488 = vld [vmem:[%s8484 + $0xc] sm:$0xf]
    %v8489 = vld [vmem:[%s8484 + $0x10] sm:$0xf]
    %v8490 = vld [vmem:[%s8484 + $0x14] sm:$0xf]
    %v8491 = vld [vmem:[%s8484 + $0x18] sm:$0xf]
    %v8492 = vld [vmem:[%s8484 + $0x1c] sm:$0xf]
    %v8501 = vunpack.c.l.b16 %v8485
    %v8502 = vunpack.c.l.b16 %v8486
    %v8503 = vunpack.c.l.b16 %v8487
    %v8504 = vunpack.c.l.b16 %v8488
    %v8505 = vunpack.c.l.b16 %v8489
    %v8506 = vunpack.c.l.b16 %v8490
    %v8507 = vunpack.c.l.b16 %v8491
    %v8508 = vunpack.c.l.b16 %v8492
    %v8509 = vpack.c.b16 %v8502, %v8501
    %v8510 = vpack.c.b16 %v8504, %v8503
    %v8511 = vpack.c.b16 %v8506, %v8505
    %v8512 = vpack.c.b16 %v8508, %v8507
    %v8518 = vsel %vm7992, %v8483, 0
    %8520 = vmatprep.subr.bf16.mxu0 0
    %8521 = vmatpush1.bf16.msra.mxu0 %v8509
    %8522 = vmatprep.subr.bf16.mxu0 0
    %8523 = vmatpush1.bf16.msra.mxu0 %v8510
    %8524 = vmatprep.subr.bf16.mxu0 0
    %8525 = vmatpush1.bf16.msra.mxu0 %v8511
    %8526 = vmatprep.subr.bf16.mxu0 0
    %8527 = vmatpush1.bf16.msra.mxu0 %v8512
    %8528 = vmatprep.subr.bf16.mxu0 0
    %8529 = vmatpush1.bf16.msra.mxu0 0
    %8530 = vmatprep.subr.bf16.mxu0 0
    %8531 = vmatpush1.bf16.msra.mxu0 0
    %8532 = vmatprep.subr.bf16.mxu0 0
    %8533 = vmatpush1.bf16.msra.mxu0 0
    %8534 = vmatprep.subr.bf16.mxu0 0
    %8535 = vmatpush1.bf16.msra.mxu0 0
    %8536 = vmatprep.subr.bf16.mxu0 0
    %8537 = vmatpush1.bf16.msra.mxu0 0
    %8538 = vmatprep.subr.bf16.mxu0 0
    %8539 = vmatpush1.bf16.msra.mxu0 0
    %8540 = vmatprep.subr.bf16.mxu0 0
    %8541 = vmatpush1.bf16.msra.mxu0 0
    %8542 = vmatprep.subr.bf16.mxu0 0
    %8543 = vmatpush1.bf16.msra.mxu0 0
    %8544 = vmatprep.subr.bf16.mxu0 0
    %8545 = vmatpush1.bf16.msra.mxu0 0
    %8546 = vmatprep.subr.bf16.mxu0 0
    %8547 = vmatpush1.bf16.msra.mxu0 0
    %8548 = vmatprep.subr.bf16.mxu0 0
    %8549 = vmatpush1.bf16.msra.mxu0 0
    %8550 = vmatprep.subr.bf16.mxu0 0
    %8551 = vmatpush1.bf16.msra.mxu0 0
    %8552 = vmatprep.mubr.bf16.mxu0 0
    %8553 = vmatmul.mubr.bf16.gmra.mrb[0].mxu0 %v8518
    %v8554 = vpop.f32.mrb[0].mxu0
    %v8555 = vadd.f32 0.0, %v8554
    %v8556 = vpop.f32.mrb[0].mxu0
    %v8557 = vpop.f32.mrb[0].mxu0
    %v8558 = vpop.f32.mrb[0].mxu0
    %8559 = vdwg.mxu0
    %v8560 = vadd.f32 %v8436, %v8555
    %v8561 = vld [vmem:[%s11] sm:$0x1]
    %v8562 = vld [vmem:[%s12] sm:$0x1]
    %v8563 = vsel %vm7992, %v8560, 0.0
    %v8564 = vrot.slane %v8563, 4
    %v8565 = vadd.f32 %v8563, %v8564
    %v8566 = vrot.slane %v8565, 2
    %v8567 = vadd.f32 %v8565, %v8566
    %v8568 = vrot.slane %v8567, 1
    %v8569 = vadd.f32 %v8567, %v8568
    %v8570 = vmul.f32 %v8569, 0.125
    %v8571 = vsub.f32 %v8560, %v8570
    %v8572 = vmul.f32 %v8571, %v8571
    %v8573 = vsel %vm7992, %v8572, 0.0
    %v8574 = vrot.slane %v8573, 4
    %v8575 = vadd.f32 %v8573, %v8574
    %v8576 = vrot.slane %v8575, 2
    %v8577 = vadd.f32 %v8575, %v8576
    %v8578 = vrot.slane %v8577, 1
    %v8579 = vadd.f32 %v8577, %v8578
    %v8580 = vmul.f32 %v8579, 0.125
    %v8581 = vadd.f32 %v8580, 1e-05
    %v8582 = vrsqrt.pop %v8581
    %v8583 = vmul.f32 %v8561, %v8582
    %v8585 = vlaneseq
    %v8586 = vshrl.u32 %v8585, 7
    %v8587 = vsub.s32 0, %v8586
    %v8588 = vrot.slane %v8583, %v8587
    %v8590 = vmul.f32 %v8571, %v8588
    %v8592 = vlaneseq
    %v8593 = vshrl.u32 %v8592, 7
    %v8594 = vsub.s32 0, %v8593
    %v8595 = vrot.slane %v8562, %v8594
    %v8597 = vadd.f32 %v8590, %v8595
    %v8598 = vmax.f32 %v8597, 0.0
    %v8599 = vpack.c.bf16 %v8598, %v8598
    %v8600 = vld [vmem:[%s13] sm:$0xf]
    %v8601 = vld [vmem:[%s13 + $0x4] sm:$0xf]
    %v8602 = vld [vmem:[%s13 + $0x8] sm:$0xf]
    %v8603 = vld [vmem:[%s13 + $0xc] sm:$0xf]
    %v8604 = vld [vmem:[%s13 + $0x10] sm:$0xf]
    %v8605 = vld [vmem:[%s13 + $0x14] sm:$0xf]
    %v8606 = vld [vmem:[%s13 + $0x18] sm:$0xf]
    %v8607 = vld [vmem:[%s13 + $0x1c] sm:$0xf]
    %s8608 = scalar_lea.vmem %s13, 32
    %v8609 = vld [vmem:[%s8608] sm:$0xf]
    %v8610 = vld [vmem:[%s8608 + $0x4] sm:$0xf]
    %v8611 = vld [vmem:[%s8608 + $0x8] sm:$0xf]
    %v8612 = vld [vmem:[%s8608 + $0xc] sm:$0xf]
    %v8613 = vld [vmem:[%s8608 + $0x10] sm:$0xf]
    %v8614 = vld [vmem:[%s8608 + $0x14] sm:$0xf]
    %v8615 = vld [vmem:[%s8608 + $0x18] sm:$0xf]
    %v8616 = vld [vmem:[%s8608 + $0x1c] sm:$0xf]
    %v8618 = vrot.slane %v8599, 1
    %v8627 = vunpack.c.l.b16 %v8609
    %v8628 = vunpack.c.l.b16 %v8610
    %v8629 = vunpack.c.l.b16 %v8611
    %v8630 = vunpack.c.l.b16 %v8612
    %v8631 = vunpack.c.l.b16 %v8613
    %v8632 = vunpack.c.l.b16 %v8614
    %v8633 = vunpack.c.l.b16 %v8615
    %v8634 = vunpack.c.l.b16 %v8616
    %v8635 = vpack.c.b16 %v8628, %v8627
    %v8636 = vpack.c.b16 %v8630, %v8629
    %v8637 = vpack.c.b16 %v8632, %v8631
    %v8638 = vpack.c.b16 %v8634, %v8633
    %v8644 = vsel %vm7992, %v8618, 0
    %8646 = vmatprep.subr.bf16.mxu0 0
    %8647 = vmatpush1.bf16.msra.mxu0 %v8635
    %8648 = vmatprep.subr.bf16.mxu0 0
    %8649 = vmatpush1.bf16.msra.mxu0 %v8636
    %8650 = vmatprep.subr.bf16.mxu0 0
    %8651 = vmatpush1.bf16.msra.mxu0 %v8637
    %8652 = vmatprep.subr.bf16.mxu0 0
    %8653 = vmatpush1.bf16.msra.mxu0 %v8638
    %8654 = vmatprep.subr.bf16.mxu0 0
    %8655 = vmatpush1.bf16.msra.mxu0 0
    %8656 = vmatprep.subr.bf16.mxu0 0
    %8657 = vmatpush1.bf16.msra.mxu0 0
    %8658 = vmatprep.subr.bf16.mxu0 0
    %8659 = vmatpush1.bf16.msra.mxu0 0
    %8660 = vmatprep.subr.bf16.mxu0 0
    %8661 = vmatpush1.bf16.msra.mxu0 0
    %8662 = vmatprep.subr.bf16.mxu0 0
    %8663 = vmatpush1.bf16.msra.mxu0 0
    %8664 = vmatprep.subr.bf16.mxu0 0
    %8665 = vmatpush1.bf16.msra.mxu0 0
    %8666 = vmatprep.subr.bf16.mxu0 0
    %8667 = vmatpush1.bf16.msra.mxu0 0
    %8668 = vmatprep.subr.bf16.mxu0 0
    %8669 = vmatpush1.bf16.msra.mxu0 0
    %8670 = vmatprep.subr.bf16.mxu0 0
    %8671 = vmatpush1.bf16.msra.mxu0 0
    %8672 = vmatprep.subr.bf16.mxu0 0
    %8673 = vmatpush1.bf16.msra.mxu0 0
    %8674 = vmatprep.subr.bf16.mxu0 0
    %8675 = vmatpush1.bf16.msra.mxu0 0
    %8676 = vmatprep.subr.bf16.mxu0 0
    %8677 = vmatpush1.bf16.msra.mxu0 0
    %8678 = vmatprep.mubr.bf16.mxu0 0
    %8679 = vmatmul.mubr.bf16.gmra.mrb[0].mxu0 %v8644
    %v8680 = vpop.f32.mrb[0].mxu0
    %v8681 = vadd.f32 0.0, %v8680
    %v8682 = vpop.f32.mrb[0].mxu0
    %v8683 = vpop.f32.mrb[0].mxu0
    %v8684 = vpop.f32.mrb[0].mxu0
    %8685 = vdwg.mxu0
    %v8694 = vunpack.c.l.b16 %v8600
    %v8695 = vunpack.c.l.b16 %v8601
    %v8696 = vunpack.c.l.b16 %v8602
    %v8697 = vunpack.c.l.b16 %v8603
    %v8698 = vunpack.c.l.b16 %v8604
    %v8699 = vunpack.c.l.b16 %v8605
    %v8700 = vunpack.c.l.b16 %v8606
    %v8701 = vunpack.c.l.b16 %v8607
    %v8702 = vpack.c.b16 %v8695, %v8694
    %v8703 = vpack.c.b16 %v8697, %v8696
    %v8704 = vpack.c.b16 %v8699, %v8698
    %v8705 = vpack.c.b16 %v8701, %v8700
    %v8711 = vsel %vm7992, %v8599, 0
    %8713 = vmatprep.subr.bf16.mxu0 0
    %8714 = vmatpush1.bf16.msra.mxu0 %v8702
    %8715 = vmatprep.subr.bf16.mxu0 0
    %8716 = vmatpush1.bf16.msra.mxu0 %v8703
    %8717 = vmatprep.subr.bf16.mxu0 0
    %8718 = vmatpush1.bf16.msra.mxu0 %v8704
    %8719 = vmatprep.subr.bf16.mxu0 0
    %8720 = vmatpush1.bf16.msra.mxu0 %v8705
    %8721 = vmatprep.subr.bf16.mxu0 0
    %8722 = vmatpush1.bf16.msra.mxu0 0
    %8723 = vmatprep.subr.bf16.mxu0 0
    %8724 = vmatpush1.bf16.msra.mxu0 0
    %8725 = vmatprep.subr.bf16.mxu0 0
    %8726 = vmatpush1.bf16.msra.mxu0 0
    %8727 = vmatprep.subr.bf16.mxu0 0
    %8728 = vmatpush1.bf16.msra.mxu0 0
    %8729 = vmatprep.subr.bf16.mxu0 0
    %8730 = vmatpush1.bf16.msra.mxu0 0
    %8731 = vmatprep.subr.bf16.mxu0 0
    %8732 = vmatpush1.bf16.msra.mxu0 0
    %8733 = vmatprep.subr.bf16.mxu0 0
    %8734 = vmatpush1.bf16.msra.mxu0 0
    %8735 = vmatprep.subr.bf16.mxu0 0
    %8736 = vmatpush1.bf16.msra.mxu0 0
    %8737 = vmatprep.subr.bf16.mxu0 0
    %8738 = vmatpush1.bf16.msra.mxu0 0
    %8739 = vmatprep.subr.bf16.mxu0 0
    %8740 = vmatpush1.bf16.msra.mxu0 0
    %8741 = vmatprep.subr.bf16.mxu0 0
    %8742 = vmatpush1.bf16.msra.mxu0 0
    %8743 = vmatprep.subr.bf16.mxu0 0
    %8744 = vmatpush1.bf16.msra.mxu0 0
    %8745 = vmatprep.mubr.bf16.mxu0 0
    %8746 = vmatmul.mubr.bf16.gmra.mrb[0].mxu0 %v8711
    %v8747 = vpop.f32.mrb[0].mxu0
    %v8748 = vadd.f32 %v8681, %v8747
    %v8749 = vpop.f32.mrb[0].mxu0
    %v8750 = vpop.f32.mrb[0].mxu0
    %v8751 = vpop.f32.mrb[0].mxu0
    %8752 = vdwg.mxu0
    %s8753 = scalar_lea.vmem %s13, 64
    %v8754 = vld [vmem:[%s8753] sm:$0xf]
    %v8755 = vld [vmem:[%s8753 + $0x4] sm:$0xf]
    %v8756 = vld [vmem:[%s8753 + $0x8] sm:$0xf]
    %v8757 = vld [vmem:[%s8753 + $0xc] sm:$0xf]
    %v8758 = vld [vmem:[%s8753 + $0x10] sm:$0xf]
    %v8759 = vld [vmem:[%s8753 + $0x14] sm:$0xf]
    %v8760 = vld [vmem:[%s8753 + $0x18] sm:$0xf]
    %v8761 = vld [vmem:[%s8753 + $0x1c] sm:$0xf]
    %v8762 = vrot.slane %v8599, 2
    %v8771 = vunpack.c.l.b16 %v8754
    %v8772 = vunpack.c.l.b16 %v8755
    %v8773 = vunpack.c.l.b16 %v8756
    %v8774 = vunpack.c.l.b16 %v8757
    %v8775 = vunpack.c.l.b16 %v8758
    %v8776 = vunpack.c.l.b16 %v8759
    %v8777 = vunpack.c.l.b16 %v8760
    %v8778 = vunpack.c.l.b16 %v8761
    %v8779 = vpack.c.b16 %v8772, %v8771
    %v8780 = vpack.c.b16 %v8774, %v8773
    %v8781 = vpack.c.b16 %v8776, %v8775
    %v8782 = vpack.c.b16 %v8778, %v8777
    %v8788 = vsel %vm7992, %v8762, 0
    %8790 = vmatprep.subr.bf16.mxu0 0
    %8791 = vmatpush1.bf16.msra.mxu0 %v8779
    %8792 = vmatprep.subr.bf16.mxu0 0
    %8793 = vmatpush1.bf16.msra.mxu0 %v8780
    %8794 = vmatprep.subr.bf16.mxu0 0
    %8795 = vmatpush1.bf16.msra.mxu0 %v8781
    %8796 = vmatprep.subr.bf16.mxu0 0
    %8797 = vmatpush1.bf16.msra.mxu0 %v8782
    %8798 = vmatprep.subr.bf16.mxu0 0
    %8799 = vmatpush1.bf16.msra.mxu0 0
    %8800 = vmatprep.subr.bf16.mxu0 0
    %8801 = vmatpush1.bf16.msra.mxu0 0
    %8802 = vmatprep.subr.bf16.mxu0 0
    %8803 = vmatpush1.bf16.msra.mxu0 0
    %8804 = vmatprep.subr.bf16.mxu0 0
    %8805 = vmatpush1.bf16.msra.mxu0 0
    %8806 = vmatprep.subr.bf16.mxu0 0
    %8807 = vmatpush1.bf16.msra.mxu0 0
    %8808 = vmatprep.subr.bf16.mxu0 0
    %8809 = vmatpush1.bf16.msra.mxu0 0
    %8810 = vmatprep.subr.bf16.mxu0 0
    %8811 = vmatpush1.bf16.msra.mxu0 0
    %8812 = vmatprep.subr.bf16.mxu0 0
    %8813 = vmatpush1.bf16.msra.mxu0 0
    %8814 = vmatprep.subr.bf16.mxu0 0
    %8815 = vmatpush1.bf16.msra.mxu0 0
    %8816 = vmatprep.subr.bf16.mxu0 0
    %8817 = vmatpush1.bf16.msra.mxu0 0
    %8818 = vmatprep.subr.bf16.mxu0 0
    %8819 = vmatpush1.bf16.msra.mxu0 0
    %8820 = vmatprep.subr.bf16.mxu0 0
    %8821 = vmatpush1.bf16.msra.mxu0 0
    %8822 = vmatprep.mubr.bf16.mxu0 0
    %8823 = vmatmul.mubr.bf16.gmra.mrb[0].mxu0 %v8788
    %v8824 = vpop.f32.mrb[0].mxu0
    %v8825 = vadd.f32 0.0, %v8824
    %v8826 = vpop.f32.mrb[0].mxu0
    %v8827 = vpop.f32.mrb[0].mxu0
    %v8828 = vpop.f32.mrb[0].mxu0
    %8829 = vdwg.mxu0
    %v8830 = vadd.f32 %v8748, %v8825
    %s8831 = scalar_lea.vmem %s13, 96
    %v8832 = vld [vmem:[%s8831] sm:$0xf]
    %v8833 = vld [vmem:[%s8831 + $0x4] sm:$0xf]
    %v8834 = vld [vmem:[%s8831 + $0x8] sm:$0xf]
    %v8835 = vld [vmem:[%s8831 + $0xc] sm:$0xf]
    %v8836 = vld [vmem:[%s8831 + $0x10] sm:$0xf]
    %v8837 = vld [vmem:[%s8831 + $0x14] sm:$0xf]
    %v8838 = vld [vmem:[%s8831 + $0x18] sm:$0xf]
    %v8839 = vld [vmem:[%s8831 + $0x1c] sm:$0xf]
    %v8840 = vrot.slane %v8599, 3
    %v8849 = vunpack.c.l.b16 %v8832
    %v8850 = vunpack.c.l.b16 %v8833
    %v8851 = vunpack.c.l.b16 %v8834
    %v8852 = vunpack.c.l.b16 %v8835
    %v8853 = vunpack.c.l.b16 %v8836
    %v8854 = vunpack.c.l.b16 %v8837
    %v8855 = vunpack.c.l.b16 %v8838
    %v8856 = vunpack.c.l.b16 %v8839
    %v8857 = vpack.c.b16 %v8850, %v8849
    %v8858 = vpack.c.b16 %v8852, %v8851
    %v8859 = vpack.c.b16 %v8854, %v8853
    %v8860 = vpack.c.b16 %v8856, %v8855
    %v8866 = vsel %vm7992, %v8840, 0
    %8868 = vmatprep.subr.bf16.mxu0 0
    %8869 = vmatpush1.bf16.msra.mxu0 %v8857
    %8870 = vmatprep.subr.bf16.mxu0 0
    %8871 = vmatpush1.bf16.msra.mxu0 %v8858
    %8872 = vmatprep.subr.bf16.mxu0 0
    %8873 = vmatpush1.bf16.msra.mxu0 %v8859
    %8874 = vmatprep.subr.bf16.mxu0 0
    %8875 = vmatpush1.bf16.msra.mxu0 %v8860
    %8876 = vmatprep.subr.bf16.mxu0 0
    %8877 = vmatpush1.bf16.msra.mxu0 0
    %8878 = vmatprep.subr.bf16.mxu0 0
    %8879 = vmatpush1.bf16.msra.mxu0 0
    %8880 = vmatprep.subr.bf16.mxu0 0
    %8881 = vmatpush1.bf16.msra.mxu0 0
    %8882 = vmatprep.subr.bf16.mxu0 0
    %8883 = vmatpush1.bf16.msra.mxu0 0
    %8884 = vmatprep.subr.bf16.mxu0 0
    %8885 = vmatpush1.bf16.msra.mxu0 0
    %8886 = vmatprep.subr.bf16.mxu0 0
    %8887 = vmatpush1.bf16.msra.mxu0 0
    %8888 = vmatprep.subr.bf16.mxu0 0
    %8889 = vmatpush1.bf16.msra.mxu0 0
    %8890 = vmatprep.subr.bf16.mxu0 0
    %8891 = vmatpush1.bf16.msra.mxu0 0
    %8892 = vmatprep.subr.bf16.mxu0 0
    %8893 = vmatpush1.bf16.msra.mxu0 0
    %8894 = vmatprep.subr.bf16.mxu0 0
    %8895 = vmatpush1.bf16.msra.mxu0 0
    %8896 = vmatprep.subr.bf16.mxu0 0
    %8897 = vmatpush1.bf16.msra.mxu0 0
    %8898 = vmatprep.subr.bf16.mxu0 0
    %8899 = vmatpush1.bf16.msra.mxu0 0
    %8900 = vmatprep.mubr.bf16.mxu0 0
    %8901 = vmatmul.mubr.bf16.gmra.mrb[0].mxu0 %v8866
    %v8902 = vpop.f32.mrb[0].mxu0
    %v8903 = vadd.f32 0.0, %v8902
    %v8904 = vpop.f32.mrb[0].mxu0
    %v8905 = vpop.f32.mrb[0].mxu0
    %v8906 = vpop.f32.mrb[0].mxu0
    %8907 = vdwg.mxu0
    %v8908 = vadd.f32 %v8830, %v8903
    %v8909 = vld [vmem:[%s14] sm:$0x1]
    %v8911 = vlaneseq
    %v8912 = vshrl.u32 %v8911, 7
    %v8913 = vsub.s32 0, %v8912
    %v8914 = vrot.slane %v8909, %v8913
    %v8916 = vadd.f32 %v8908, %v8914
    %8917 = vst [vmem:[#allocation2] sm:$0x3] %v8916
    // Predicated region
    $region62: #{cnn_forward.1} parent=1 // pred_check
      _
    $region63: #{cnn_forward.1} parent=1 // pred_check_branch
      %8919 = sbr.rel (0) target = $region65
    $region64: #{cnn_forward.1} parent=1 // pred_region
      %s8921 = ssub.s32 32, 32
      %8922 = vsyncadd [#allocation3], %s8921
      %s8924 = sshll.u32 [#allocation2], 4
      %s8925 = int_to_ptr.vmem [resolvable:$true] %s8924
      %8927 = dma.vmem_to_hbm [thread:$0]  %s8925, 32, %s15, [#allocation3]
    $region65: #{cnn_forward.1} parent=1 // pred_fallthru
      _
    // Predicated region
    $region66: #{cnn_forward.1} parent=1 // pred_check
      _
    $region67: #{cnn_forward.1} parent=1 // pred_check_branch
      %8929 = sbr.rel (0) target = $region69
    $region68: #{cnn_forward.1} parent=1 // pred_region
      %8930 = dma.done [#allocation3], 32
    $region69: #{cnn_forward.1} parent=1 // pred_fallthru
      _
    %8931 = vsyncpa [#allocation3], 1

</llo_original>
